<compile_context>
chip_gen: v6e
topology: v6e:2x2x1
jax: 0.10.0
libtpu: 0.0.40
codegen_flags: <defaults>
</compile_context>

<pallas_src>
import functools
import math

import numpy as np
import jax
import jax.numpy as jnp
from jax import lax
from jax.experimental import pallas as pl
from jax.experimental.pallas import tpu as pltpu

EPS = 1e-5

# ConvTranspose3d(k=4, s=2, p=1) tap table per output parity:
#   output o = 2b + parity uses padded-input offsets od in {0,1,2} with kernel
#   index kd given below (hpad[j] = h[j-1], zero outside).
_TAP = {0: {0: 3, 1: 1}, 1: {1: 2, 2: 0}}


def _parity_selector():
    """0/1 tensor S[offset, parity, kd, kh, kw] selecting the deconv tap."""
    S = np.zeros((27, 8, 4, 4, 4), np.float32)
    for pd in range(2):
        for ph in range(2):
            for pw in range(2):
                p = (pd * 2 + ph) * 2 + pw
                for od, kd in _TAP[pd].items():
                    for oh, kh in _TAP[ph].items():
                        for ow, kw in _TAP[pw].items():
                            o = (od * 3 + oh) * 3 + ow
                            S[o, p, kd, kh, kw] = 1.0
    return S


def _pad_hw(vol, dtype):
    """Zero-pad a (Dp, H, W, C) slab by 1 along H and W (concat, VMEM only)."""
    Dp, H, W, C = vol.shape
    zh = jnp.zeros((Dp, 1, W, C), dtype)
    vol = jnp.concatenate([zh, vol, zh], axis=1)
    zw = jnp.zeros((Dp, H + 2, 1, C), dtype)
    return jnp.concatenate([zw, vol, zw], axis=2)


def _im2col_27(vol, TD, H, W, C):
    """(TD+2, H+2, W+2, C) padded slab -> (TD*H*W, 27*C) patch matrix."""
    R = TD * H * W
    cols = [vol[a:a + TD, b:b + H, c:c + W, :].reshape(R, C)
            for a in range(3) for b in range(3) for c in range(3)]
    return jnp.concatenate(cols, axis=1)


# --------------------------------------------------------------------------
# Kernel 1: Conv3d(3x3x3, s=1, p=1) + bias -> raw output + BN partial stats
# --------------------------------------------------------------------------
def _conv_stats_kernel(xc_ref, xlo_ref, xhi_ref, w_ref, b_ref,
                       h_ref, st_ref, *, TD, H, W, Cin, Cmid, use_bf16):
    d = pl.program_id(1)
    nD = pl.num_programs(1)

    # stage the tile in f32 (robust layouts); matmul operands cast to bf16
    xc = xc_ref[...].astype(jnp.float32).reshape(TD, H, W, Cin)
    lo = xlo_ref[...].astype(jnp.float32).reshape(1, H, W, Cin)
    hi = xhi_ref[...].astype(jnp.float32).reshape(1, H, W, Cin)
    lo = jnp.where(d == 0, jnp.zeros_like(lo), lo)          # D halo = conv zero pad
    hi = jnp.where(d == nD - 1, jnp.zeros_like(hi), hi)

    xp = jnp.concatenate([lo, xc, hi], axis=0)               # (TD+2, H, W, Cin)
    xp = _pad_hw(xp, jnp.float32)                            # (TD+2, H+2, W+2, Cin)
    patches = _im2col_27(xp, TD, H, W, Cin)                  # (R, 27*Cin)

    if use_bf16:
        acc = jnp.dot(patches.astype(jnp.bfloat16), w_ref[...],
                      preferred_element_type=jnp.float32)
    else:
        acc = jnp.dot(patches, w_ref[...], precision=lax.Precision.HIGHEST,
                      preferred_element_type=jnp.float32)
    acc = acc + b_ref[...]                                   # (R, Cmid) f32

    h_ref[...] = acc
    st_ref[...] = jnp.concatenate(
        [jnp.sum(acc, axis=0, keepdims=True),
         jnp.sum(acc * acc, axis=0, keepdims=True)], axis=0).reshape(1, 2, Cmid)


# --------------------------------------------------------------------------
# Kernel 2: BN1+ReLU (fused on load) -> ConvTranspose3d(4,2,1) as ONE matmul
#           (all 8 output parities at once) + bias -> raw output + BN2 stats
# --------------------------------------------------------------------------
def _deconv_stats_kernel(hc_ref, hlo_ref, hhi_ref, s1_ref, t1_ref, w_ref, b_ref,
                         z_ref, st_ref, *, TD, H, W, Cmid, Cout, use_bf16):
    d = pl.program_id(1)
    nD = pl.num_programs(1)
    scale = s1_ref[...]                                      # (1, Cmid) f32
    shift = t1_ref[...]

    def act(ref):                                            # BN1 + ReLU
        return jnp.maximum(ref[...] * scale + shift, 0.0)

    hc = act(hc_ref).reshape(TD, H, W, Cmid)
    lo = act(hlo_ref).reshape(1, H, W, Cmid)
    hi = act(hhi_ref).reshape(1, H, W, Cmid)
    lo = jnp.where(d == 0, jnp.zeros_like(lo), lo)           # deconv zero pad
    hi = jnp.where(d == nD - 1, jnp.zeros_like(hi), hi)

    hp = jnp.concatenate([lo, hc, hi], axis=0)               # (TD+2, H, W, Cmid)
    hp = _pad_hw(hp, jnp.float32)                            # (TD+2, H+2, W+2, Cmid)
    patches = _im2col_27(hp, TD, H, W, Cmid)                 # (R, 27*Cmid)

    if use_bf16:
        z = jnp.dot(patches.astype(jnp.bfloat16), w_ref[...],
                    preferred_element_type=jnp.float32)
    else:
        z = jnp.dot(patches, w_ref[...], precision=lax.Precision.HIGHEST,
                    preferred_element_type=jnp.float32)
    z = z + b_ref[...]                                       # (R, 8*Cout) f32

    z_ref[...] = z
    st_ref[...] = jnp.concatenate(
        [jnp.sum(z, axis=0, keepdims=True),
         jnp.sum(z * z, axis=0, keepdims=True)], axis=0).reshape(1, 2, 8 * Cout)


# --------------------------------------------------------------------------
# Wrapper
# --------------------------------------------------------------------------
def _auto_tile_d(D, H, W, cmax, budget=8 << 20):
    # keep the per-step working set well inside v7x's 64 MiB VMEM (double buffered)
    for t in range(D, 0, -1):
        if D % t:
            continue
        work = ((t + 2) * (H + 2) * (W + 2) * cmax * 4          # padded slab (f32)
                + t * H * W * 27 * cmax * 6                      # im2col f32 + bf16
                + t * H * W * cmax * 8)                          # f32 outputs
        if work <= budget:
            return t
    return 1


def decoder_block3d(x_ncdhw, params, *, tile_d=None, use_bf16=True):
    w1, b1, g1, be1, wt, bt, g2, be2 = params
    N, Cin, D, H, W = x_ncdhw.shape
    Cmid = w1.shape[-1]
    Cout = wt.shape[-1]

    TD = tile_d if tile_d is not None else _auto_tile_d(D, H, W, max(Cin, Cmid, Cout))
    if D % TD != 0:
        TD = D   # TODO(synk): ragged D tiles (pl.BoundedSlice) not implemented
    nD = D // TD
    RB = TD * H * W
    HW = H * W
    rows = N * D * H * W
    wdt = jnp.bfloat16 if use_bf16 else jnp.float32
    wsz = 2 if use_bf16 else 4

    # ---- host-side packing (tiny) --------------------------------------
    x_f = (jnp.transpose(x_ncdhw, (0, 2, 3, 4, 1))
              .reshape(rows, Cin).astype(wdt))                     # (rows, Cin)
    w1m = w1.reshape(27 * Cin, Cmid).astype(wdt)                   # (27*Cin, Cmid)
    b1r = b1.reshape(1, Cmid).astype(jnp.float32)
    # parity-combined deconv weight: one K=27*Cmid matmul produces all 8 parities
    S = jnp.asarray(_parity_selector())
    w2m = (jnp.einsum('opabc,abcij->oipj', S, wt)
              .reshape(27 * Cmid, 8 * Cout).astype(wdt))
    b2r = jnp.tile(bt, 8).reshape(1, 8 * Cout).astype(jnp.float32)

    row_map = lambda n, d: (n * nD + d, 0)
    lo_map = lambda n, d: (jnp.maximum(n * D + d * TD - 1, 0), 0)
    hi_map = lambda n, d: (jnp.minimum(n * D + d * TD + TD, N * D - 1), 0)
    st_map = lambda n, d: (n * nD + d, 0, 0)
    full0 = lambda n, d: (0, 0)

    cparams = pltpu.CompilerParams(
        dimension_semantics=("parallel", "parallel"),
        vmem_limit_bytes=48 * 1024 * 1024)

    # ---- stage 1: conv3x3 + bias (+ BN1 partial stats) ------------------
    kern_a = functools.partial(_conv_stats_kernel, TD=TD, H=H, W=W,
                               Cin=Cin, Cmid=Cmid, use_bf16=use_bf16)
    h_raw, st1 = pl.pallas_call(
        kern_a,
        grid=(N, nD),
        in_specs=[
            pl.BlockSpec((RB, Cin), row_map),
            pl.BlockSpec((HW, Cin), lo_map),
            pl.BlockSpec((HW, Cin), hi_map),
            pl.BlockSpec((27 * Cin, Cmid), full0),
            pl.BlockSpec((1, Cmid), full0),
        ],
        out_specs=(
            pl.BlockSpec((RB, Cmid), row_map),
            pl.BlockSpec((1, 2, Cmid), st_map),
        ),
        out_shape=(
            jax.ShapeDtypeStruct((rows, Cmid), jnp.float32),
            jax.ShapeDtypeStruct((N * nD, 2, Cmid), jnp.float32),
        ),
        compiler_params=cparams,
        cost_estimate=pl.CostEstimate(
            flops=2 * rows * 27 * Cin * Cmid,
            transcendentals=0,
            bytes_accessed=rows * Cin * wsz + rows * Cmid * 4 + 27 * Cin * Cmid * wsz),
    )(x_f, x_f, x_f, w1m, b1r)

    # ---- BN1 global stats (tiny combine) --------------------------------
    cnt1 = float(rows)
    mean1 = jnp.sum(st1[:, 0, :], axis=0) / cnt1
    var1 = jnp.maximum(jnp.sum(st1[:, 1, :], axis=0) / cnt1 - mean1 * mean1, 0.0)
    inv1 = lax.rsqrt(var1 + EPS)
    scale1 = (g1 * inv1).reshape(1, Cmid).astype(jnp.float32)
    shift1 = (be1 - mean1 * g1 * inv1).reshape(1, Cmid).astype(jnp.float32)

    # ---- stage 2: BN1+ReLU fused, deconv4s2 + bias (+ BN2 partial stats) -
    kern_b = functools.partial(_deconv_stats_kernel, TD=TD, H=H, W=W,
                               Cmid=Cmid, Cout=Cout, use_bf16=use_bf16)
    z_raw, st2 = pl.pallas_call(
        kern_b,
        grid=(N, nD),
        in_specs=[
            pl.BlockSpec((RB, Cmid), row_map),
            pl.BlockSpec((HW, Cmid), lo_map),
            pl.BlockSpec((HW, Cmid), hi_map),
            pl.BlockSpec((1, Cmid), full0),
            pl.BlockSpec((1, Cmid), full0),
            pl.BlockSpec((27 * Cmid, 8 * Cout), full0),
            pl.BlockSpec((1, 8 * Cout), full0),
        ],
        out_specs=(
            pl.BlockSpec((RB, 8 * Cout), row_map),
            pl.BlockSpec((1, 2, 8 * Cout), st_map),
        ),
        out_shape=(
            jax.ShapeDtypeStruct((rows, 8 * Cout), jnp.float32),
            jax.ShapeDtypeStruct((N * nD, 2, 8 * Cout), jnp.float32),
        ),
        compiler_params=cparams,
        cost_estimate=pl.CostEstimate(
            flops=2 * rows * 27 * Cmid * 8 * Cout,
            transcendentals=0,
            bytes_accessed=rows * Cmid * 4 + rows * 8 * Cout * 4
                           + 27 * Cmid * 8 * Cout * wsz),
    )(h_raw, h_raw, h_raw, scale1, shift1, w2m, b2r)

    # ---- BN2 global stats + fused epilogue -------------------------------
    cnt2 = float(rows * 8)
    mean2 = jnp.sum(st2[:, 0, :], axis=0).reshape(8, Cout).sum(axis=0) / cnt2
    ex2 = jnp.sum(st2[:, 1, :], axis=0).reshape(8, Cout).sum(axis=0) / cnt2
    var2 = jnp.maximum(ex2 - mean2 * mean2, 0.0)
    inv2 = lax.rsqrt(var2 + EPS)
    scale2 = g2 * inv2
    shift2 = be2 - mean2 * scale2

    # BN2 + ReLU + parity interleave + NCDHW layout: one fused XLA output pass
    z = z_raw.reshape(N, D, H, W, 2, 2, 2, Cout)
    y = jnp.maximum(z * scale2 + shift2, 0.0)
    out = (y.transpose(0, 7, 1, 4, 2, 5, 3, 6)
             .reshape(N, Cout, 2 * D, 2 * H, 2 * W))
    return out


# --------------------------------------------------------------------------
# Pure-JAX reference (lax convolutions) for verification
# --------------------------------------------------------------------------
def _bn_relu_ncdhw(x, gamma, beta):
    mean = x.mean(axis=(0, 2, 3, 4), keepdims=True)
    var = ((x - mean) ** 2).mean(axis=(0, 2, 3, 4), keepdims=True)
    y = (x - mean) * lax.rsqrt(var + EPS)
    y = y * gamma.reshape(1, -1, 1, 1, 1) + beta.reshape(1, -1, 1, 1, 1)
    return jnp.maximum(y, 0.0)


def reference(x, params, use_bf16=True):
    w1, b1, g1, be1, wt, bt, g2, be2 = params
    Cmid = w1.shape[-1]
    Cout = wt.shape[-1]
    cdt = jnp.bfloat16 if use_bf16 else jnp.float32
    prec = None if use_bf16 else lax.Precision.HIGHEST

    w1_oidhw = jnp.transpose(w1, (4, 3, 0, 1, 2)).astype(cdt)       # OIDHW
    y = lax.conv_general_dilated(x.astype(cdt), w1_oidhw, (1, 1, 1), [(1, 1)] * 3,
                                 dimension_numbers=('NCDHW', 'OIDHW', 'NCDHW'),
                                 precision=prec,
                                 preferred_element_type=jnp.float32)
    y = y + b1.reshape(1, Cmid, 1, 1, 1)
    y = _bn_relu_ncdhw(y, g1, be1)

    w2_oidhw = jnp.transpose(jnp.flip(wt, axis=(0, 1, 2)), (4, 3, 0, 1, 2)).astype(cdt)
    z = lax.conv_general_dilated(y.astype(cdt), w2_oidhw, (1, 1, 1), [(2, 2)] * 3,
                                 lhs_dilation=(2, 2, 2),
                                 dimension_numbers=('NCDHW', 'OIDHW', 'NCDHW'),
                                 precision=prec,
                                 preferred_element_type=jnp.float32)
    z = z + bt.reshape(1, Cout, 1, 1, 1)
    z = _bn_relu_ncdhw(z, g2, be2)
    return z


if __name__ == "__main__":
    N, Cin, Cmid, Cout = 2, 4, 8, 4
    D = H = W = 8

    key = jax.random.PRNGKey(0)
    kx, k1, k2, k3, k4 = jax.random.split(key, 5)

    x = jax.random.normal(kx, (N, Cin, D, H, W), jnp.float32)

    # Conv3d weight init as in the module: normal(0, sqrt(2 / (3*3*Cmid)))
    std1 = math.sqrt(2.0 / (3 * 3 * Cmid))
    w1 = std1 * jax.random.normal(k1, (3, 3, 3, Cin, Cmid), jnp.float32)
    b1 = 0.1 * jax.random.normal(k2, (Cmid,), jnp.float32)
    g1 = jnp.ones((Cmid,), jnp.float32)
    be1 = jnp.zeros((Cmid,), jnp.float32)

    # ConvTranspose3d (synthetic init at the default-init scale), layout (kd,kh,kw,ci,co)
    std2 = 1.0 / math.sqrt(Cmid * 4 * 4 * 4)
    wt = std2 * jax.random.normal(k3, (4, 4, 4, Cmid, Cout), jnp.float32)
    bt = 0.1 * jax.random.normal(k4, (Cout,), jnp.float32)
    g2 = jnp.ones((Cout,), jnp.float32)
    be2 = jnp.zeros((Cout,), jnp.float32)

    params = (w1, b1, g1, be1, wt, bt, g2, be2)

    fwd = jax.jit(functools.partial(decoder_block3d, tile_d=4))   # 2 D-tiles: exercises halos
    out = jax.block_until_ready(fwd(x, params))
    assert out.shape == (N, Cout, 2 * D, 2 * H, 2 * W)

    ref = jax.block_until_ready(jax.jit(reference)(x, params))
    np.testing.assert_allclose(np.asarray(out), np.asarray(ref),
                               rtol=1e-3, atol=1e-3)

    print("KERNEL_OK")
</pallas_src>

<mosaic_0001>
module attributes {stable_mosaic.version = 11 : i64} {
  func.func @_conv_stats_kernel(%arg0: i32, %arg1: i32, %arg2: memref<256x4xbf16, #tpu.memory_space<vmem>>, %arg3: memref<64x4xbf16, #tpu.memory_space<vmem>>, %arg4: memref<64x4xbf16, #tpu.memory_space<vmem>>, %arg5: memref<108x8xbf16, #tpu.memory_space<vmem>>, %arg6: memref<1x8xf32, #tpu.memory_space<vmem>>, %arg7: memref<256x8xf32, #tpu.memory_space<vmem>>, %arg8: memref<1x2x8xf32, #tpu.memory_space<vmem>>) attributes {dimension_semantics = [#tpu.dimension_semantics<parallel>, #tpu.dimension_semantics<parallel>], iteration_bounds = array<i64: 2, 2>, scalar_prefetch = 0 : i64, scratch_operands = 0 : i64, tpu.core_type = #tpu.core_type<tc>, window_params = [{transform_indices = @transform_0, window_bounds = array<i64: 256, 4>}, {transform_indices = @transform_1, window_bounds = array<i64: 64, 4>}, {transform_indices = @transform_2, window_bounds = array<i64: 64, 4>}, {pipeline_mode = #tpu.pipeline_mode<synchronous>, transform_indices = @transform_3, window_bounds = array<i64: 108, 8>}, {pipeline_mode = #tpu.pipeline_mode<synchronous>, transform_indices = @transform_4, window_bounds = array<i64: 1, 8>}, {transform_indices = @transform_5, window_bounds = array<i64: 256, 8>}, {transform_indices = @transform_6, window_bounds = array<i64: 1, 2, 8>}]} {
    %c0 = arith.constant 0 : index
    %c0_0 = arith.constant 0 : index
    %0 = vector.load %arg2[%c0, %c0_0] : memref<256x4xbf16, #tpu.memory_space<vmem>>, vector<256x4xbf16>
    %1 = arith.extf %0 : vector<256x4xbf16> to vector<256x4xf32>
    %2 = vector.shape_cast %1 : vector<256x4xf32> to vector<4x8x8x4xf32>
    %c0_1 = arith.constant 0 : index
    %c0_2 = arith.constant 0 : index
    %3 = vector.load %arg3[%c0_1, %c0_2] : memref<64x4xbf16, #tpu.memory_space<vmem>>, vector<64x4xbf16>
    %4 = arith.extf %3 : vector<64x4xbf16> to vector<64x4xf32>
    %5 = vector.shape_cast %4 : vector<64x4xf32> to vector<1x8x8x4xf32>
    %c0_3 = arith.constant 0 : index
    %c0_4 = arith.constant 0 : index
    %6 = vector.load %arg4[%c0_3, %c0_4] : memref<64x4xbf16, #tpu.memory_space<vmem>>, vector<64x4xbf16>
    %7 = arith.extf %6 : vector<64x4xbf16> to vector<64x4xf32>
    %8 = vector.shape_cast %7 : vector<64x4xf32> to vector<1x8x8x4xf32>
    %c0_i32 = arith.constant 0 : i32
    %9 = arith.cmpi eq, %arg1, %c0_i32 : i32
    %cst = arith.constant 0.000000e+00 : f32
    %10 = vector.broadcast %cst : f32 to vector<1x8x8x4xf32>
    %11 = arith.select %9, %10, %5 : vector<1x8x8x4xf32>
    %c1_i32 = arith.constant 1 : i32
    %12 = arith.cmpi eq, %arg1, %c1_i32 : i32
    %cst_5 = arith.constant 0.000000e+00 : f32
    %13 = vector.broadcast %cst_5 : f32 to vector<1x8x8x4xf32>
    %14 = arith.select %12, %13, %8 : vector<1x8x8x4xf32>
    %15 = tpu.concatenate %11, %2, %14 in 0 : vector<1x8x8x4xf32>, vector<4x8x8x4xf32>, vector<1x8x8x4xf32> -> vector<6x8x8x4xf32>
    %cst_6 = arith.constant 0.000000e+00 : f32
    %16 = vector.broadcast %cst_6 : f32 to vector<6x1x8x4xf32>
    %17 = tpu.concatenate %16, %15, %16 in 1 : vector<6x1x8x4xf32>, vector<6x8x8x4xf32>, vector<6x1x8x4xf32> -> vector<6x10x8x4xf32>
    %cst_7 = arith.constant 0.000000e+00 : f32
    %18 = vector.broadcast %cst_7 : f32 to vector<6x10x1x4xf32>
    %19 = tpu.concatenate %18, %17, %18 in 2 : vector<6x10x1x4xf32>, vector<6x10x8x4xf32>, vector<6x10x1x4xf32> -> vector<6x10x10x4xf32>
    %20 = vector.extract_strided_slice %19 {offsets = [0, 0, 0, 0], sizes = [4, 8, 8, 4], strides = [1, 1, 1, 1]} : vector<6x10x10x4xf32> to vector<4x8x8x4xf32>
    %21 = vector.shape_cast %20 : vector<4x8x8x4xf32> to vector<256x4xf32>
    %22 = vector.extract_strided_slice %19 {offsets = [0, 0, 1, 0], sizes = [4, 8, 8, 4], strides = [1, 1, 1, 1]} : vector<6x10x10x4xf32> to vector<4x8x8x4xf32>
    %23 = vector.shape_cast %22 : vector<4x8x8x4xf32> to vector<256x4xf32>
    %24 = vector.extract_strided_slice %19 {offsets = [0, 0, 2, 0], sizes = [4, 8, 8, 4], strides = [1, 1, 1, 1]} : vector<6x10x10x4xf32> to vector<4x8x8x4xf32>
    %25 = vector.shape_cast %24 : vector<4x8x8x4xf32> to vector<256x4xf32>
    %26 = vector.extract_strided_slice %19 {offsets = [0, 1, 0, 0], sizes = [4, 8, 8, 4], strides = [1, 1, 1, 1]} : vector<6x10x10x4xf32> to vector<4x8x8x4xf32>
    %27 = vector.shape_cast %26 : vector<4x8x8x4xf32> to vector<256x4xf32>
    %28 = vector.extract_strided_slice %19 {offsets = [0, 1, 1, 0], sizes = [4, 8, 8, 4], strides = [1, 1, 1, 1]} : vector<6x10x10x4xf32> to vector<4x8x8x4xf32>
    %29 = vector.shape_cast %28 : vector<4x8x8x4xf32> to vector<256x4xf32>
    %30 = vector.extract_strided_slice %19 {offsets = [0, 1, 2, 0], sizes = [4, 8, 8, 4], strides = [1, 1, 1, 1]} : vector<6x10x10x4xf32> to vector<4x8x8x4xf32>
    %31 = vector.shape_cast %30 : vector<4x8x8x4xf32> to vector<256x4xf32>
    %32 = vector.extract_strided_slice %19 {offsets = [0, 2, 0, 0], sizes = [4, 8, 8, 4], strides = [1, 1, 1, 1]} : vector<6x10x10x4xf32> to vector<4x8x8x4xf32>
    %33 = vector.shape_cast %32 : vector<4x8x8x4xf32> to vector<256x4xf32>
    %34 = vector.extract_strided_slice %19 {offsets = [0, 2, 1, 0], sizes = [4, 8, 8, 4], strides = [1, 1, 1, 1]} : vector<6x10x10x4xf32> to vector<4x8x8x4xf32>
    %35 = vector.shape_cast %34 : vector<4x8x8x4xf32> to vector<256x4xf32>
    %36 = vector.extract_strided_slice %19 {offsets = [0, 2, 2, 0], sizes = [4, 8, 8, 4], strides = [1, 1, 1, 1]} : vector<6x10x10x4xf32> to vector<4x8x8x4xf32>
    %37 = vector.shape_cast %36 : vector<4x8x8x4xf32> to vector<256x4xf32>
    %38 = vector.extract_strided_slice %19 {offsets = [1, 0, 0, 0], sizes = [4, 8, 8, 4], strides = [1, 1, 1, 1]} : vector<6x10x10x4xf32> to vector<4x8x8x4xf32>
    %39 = vector.shape_cast %38 : vector<4x8x8x4xf32> to vector<256x4xf32>
    %40 = vector.extract_strided_slice %19 {offsets = [1, 0, 1, 0], sizes = [4, 8, 8, 4], strides = [1, 1, 1, 1]} : vector<6x10x10x4xf32> to vector<4x8x8x4xf32>
    %41 = vector.shape_cast %40 : vector<4x8x8x4xf32> to vector<256x4xf32>
    %42 = vector.extract_strided_slice %19 {offsets = [1, 0, 2, 0], sizes = [4, 8, 8, 4], strides = [1, 1, 1, 1]} : vector<6x10x10x4xf32> to vector<4x8x8x4xf32>
    %43 = vector.shape_cast %42 : vector<4x8x8x4xf32> to vector<256x4xf32>
    %44 = vector.extract_strided_slice %19 {offsets = [1, 1, 0, 0], sizes = [4, 8, 8, 4], strides = [1, 1, 1, 1]} : vector<6x10x10x4xf32> to vector<4x8x8x4xf32>
    %45 = vector.shape_cast %44 : vector<4x8x8x4xf32> to vector<256x4xf32>
    %46 = vector.extract_strided_slice %19 {offsets = [1, 1, 1, 0], sizes = [4, 8, 8, 4], strides = [1, 1, 1, 1]} : vector<6x10x10x4xf32> to vector<4x8x8x4xf32>
    %47 = vector.shape_cast %46 : vector<4x8x8x4xf32> to vector<256x4xf32>
    %48 = vector.extract_strided_slice %19 {offsets = [1, 1, 2, 0], sizes = [4, 8, 8, 4], strides = [1, 1, 1, 1]} : vector<6x10x10x4xf32> to vector<4x8x8x4xf32>
    %49 = vector.shape_cast %48 : vector<4x8x8x4xf32> to vector<256x4xf32>
    %50 = vector.extract_strided_slice %19 {offsets = [1, 2, 0, 0], sizes = [4, 8, 8, 4], strides = [1, 1, 1, 1]} : vector<6x10x10x4xf32> to vector<4x8x8x4xf32>
    %51 = vector.shape_cast %50 : vector<4x8x8x4xf32> to vector<256x4xf32>
    %52 = vector.extract_strided_slice %19 {offsets = [1, 2, 1, 0], sizes = [4, 8, 8, 4], strides = [1, 1, 1, 1]} : vector<6x10x10x4xf32> to vector<4x8x8x4xf32>
    %53 = vector.shape_cast %52 : vector<4x8x8x4xf32> to vector<256x4xf32>
    %54 = vector.extract_strided_slice %19 {offsets = [1, 2, 2, 0], sizes = [4, 8, 8, 4], strides = [1, 1, 1, 1]} : vector<6x10x10x4xf32> to vector<4x8x8x4xf32>
    %55 = vector.shape_cast %54 : vector<4x8x8x4xf32> to vector<256x4xf32>
    %56 = vector.extract_strided_slice %19 {offsets = [2, 0, 0, 0], sizes = [4, 8, 8, 4], strides = [1, 1, 1, 1]} : vector<6x10x10x4xf32> to vector<4x8x8x4xf32>
    %57 = vector.shape_cast %56 : vector<4x8x8x4xf32> to vector<256x4xf32>
    %58 = vector.extract_strided_slice %19 {offsets = [2, 0, 1, 0], sizes = [4, 8, 8, 4], strides = [1, 1, 1, 1]} : vector<6x10x10x4xf32> to vector<4x8x8x4xf32>
    %59 = vector.shape_cast %58 : vector<4x8x8x4xf32> to vector<256x4xf32>
    %60 = vector.extract_strided_slice %19 {offsets = [2, 0, 2, 0], sizes = [4, 8, 8, 4], strides = [1, 1, 1, 1]} : vector<6x10x10x4xf32> to vector<4x8x8x4xf32>
    %61 = vector.shape_cast %60 : vector<4x8x8x4xf32> to vector<256x4xf32>
    %62 = vector.extract_strided_slice %19 {offsets = [2, 1, 0, 0], sizes = [4, 8, 8, 4], strides = [1, 1, 1, 1]} : vector<6x10x10x4xf32> to vector<4x8x8x4xf32>
    %63 = vector.shape_cast %62 : vector<4x8x8x4xf32> to vector<256x4xf32>
    %64 = vector.extract_strided_slice %19 {offsets = [2, 1, 1, 0], sizes = [4, 8, 8, 4], strides = [1, 1, 1, 1]} : vector<6x10x10x4xf32> to vector<4x8x8x4xf32>
    %65 = vector.shape_cast %64 : vector<4x8x8x4xf32> to vector<256x4xf32>
    %66 = vector.extract_strided_slice %19 {offsets = [2, 1, 2, 0], sizes = [4, 8, 8, 4], strides = [1, 1, 1, 1]} : vector<6x10x10x4xf32> to vector<4x8x8x4xf32>
    %67 = vector.shape_cast %66 : vector<4x8x8x4xf32> to vector<256x4xf32>
    %68 = vector.extract_strided_slice %19 {offsets = [2, 2, 0, 0], sizes = [4, 8, 8, 4], strides = [1, 1, 1, 1]} : vector<6x10x10x4xf32> to vector<4x8x8x4xf32>
    %69 = vector.shape_cast %68 : vector<4x8x8x4xf32> to vector<256x4xf32>
    %70 = vector.extract_strided_slice %19 {offsets = [2, 2, 1, 0], sizes = [4, 8, 8, 4], strides = [1, 1, 1, 1]} : vector<6x10x10x4xf32> to vector<4x8x8x4xf32>
    %71 = vector.shape_cast %70 : vector<4x8x8x4xf32> to vector<256x4xf32>
    %72 = vector.extract_strided_slice %19 {offsets = [2, 2, 2, 0], sizes = [4, 8, 8, 4], strides = [1, 1, 1, 1]} : vector<6x10x10x4xf32> to vector<4x8x8x4xf32>
    %73 = vector.shape_cast %72 : vector<4x8x8x4xf32> to vector<256x4xf32>
    %74 = tpu.concatenate %21, %23, %25, %27, %29, %31, %33, %35, %37, %39, %41, %43, %45, %47, %49, %51 in 1 : vector<256x4xf32>, vector<256x4xf32>, vector<256x4xf32>, vector<256x4xf32>, vector<256x4xf32>, vector<256x4xf32>, vector<256x4xf32>, vector<256x4xf32>, vector<256x4xf32>, vector<256x4xf32>, vector<256x4xf32>, vector<256x4xf32>, vector<256x4xf32>, vector<256x4xf32>, vector<256x4xf32>, vector<256x4xf32> -> vector<256x64xf32>
    %75 = tpu.concatenate %53, %55, %57, %59, %61, %63, %65, %67, %69, %71, %73 in 1 : vector<256x4xf32>, vector<256x4xf32>, vector<256x4xf32>, vector<256x4xf32>, vector<256x4xf32>, vector<256x4xf32>, vector<256x4xf32>, vector<256x4xf32>, vector<256x4xf32>, vector<256x4xf32>, vector<256x4xf32> -> vector<256x44xf32>
    %76 = tpu.concatenate %74, %75 in 1 : vector<256x64xf32>, vector<256x44xf32> -> vector<256x108xf32>
    %77 = arith.truncf %76 : vector<256x108xf32> to vector<256x108xbf16>
    %c0_8 = arith.constant 0 : index
    %c0_9 = arith.constant 0 : index
    %78 = vector.load %arg5[%c0_8, %c0_9] : memref<108x8xbf16, #tpu.memory_space<vmem>>, vector<108x8xbf16>
    %cst_10 = arith.constant dense<0.000000e+00> : vector<256x8xf32>
    %79 = tpu.matmul %77, %78, %cst_10 {dimension_numbers = #tpu.dot_dimension_numbers<[1], [0], [0], [1], [0, 0, 1, 1], [], []>} : vector<256x108xbf16>, vector<108x8xbf16>, vector<256x8xf32> -> vector<256x8xf32>
    %c0_11 = arith.constant 0 : index
    %c0_12 = arith.constant 0 : index
    %80 = vector.load %arg6[%c0_11, %c0_12] : memref<1x8xf32, #tpu.memory_space<vmem>>, vector<1x8xf32>
    %81 = vector.broadcast %80 : vector<1x8xf32> to vector<256x8xf32>
    %82 = arith.addf %79, %81 : vector<256x8xf32>
    %c0_13 = arith.constant 0 : index
    %c0_14 = arith.constant 0 : index
    %83 = vector.load %arg7[%c0_13, %c0_14] : memref<256x8xf32, #tpu.memory_space<vmem>>, vector<256x8xf32>
    tpu.vector_store %arg7[%c0_13, %c0_14], %82 {strides = array<i32>} : memref<256x8xf32, #tpu.memory_space<vmem>>, vector<256x8xf32>,
    %cst_15 = arith.constant dense<0.000000e+00> : vector<8xf32>
    %84 = vector.multi_reduction <add>, %82, %cst_15 [0] : vector<256x8xf32> to vector<8xf32>
    %85 = vector.shape_cast %84 : vector<8xf32> to vector<1x8xf32>
    %86 = arith.mulf %82, %82 : vector<256x8xf32>
    %cst_16 = arith.constant dense<0.000000e+00> : vector<8xf32>
    %87 = vector.multi_reduction <add>, %86, %cst_16 [0] : vector<256x8xf32> to vector<8xf32>
    %88 = vector.shape_cast %87 : vector<8xf32> to vector<1x8xf32>
    %89 = tpu.concatenate %85, %88 in 0 : vector<1x8xf32>, vector<1x8xf32> -> vector<2x8xf32>
    %90 = vector.shape_cast %89 : vector<2x8xf32> to vector<1x2x8xf32>
    %c0_17 = arith.constant 0 : index
    %c0_18 = arith.constant 0 : index
    %c0_19 = arith.constant 0 : index
    %91 = vector.load %arg8[%c0_17, %c0_18, %c0_19] : memref<1x2x8xf32, #tpu.memory_space<vmem>>, vector<1x2x8xf32>
    tpu.vector_store %arg8[%c0_17, %c0_18, %c0_19], %90 {strides = array<i32>} : memref<1x2x8xf32, #tpu.memory_space<vmem>>, vector<1x2x8xf32>,
    return
  }
  func.func @transform_0(%arg0: i32, %arg1: i32) -> (i32, i32) {
    %c2_i32 = arith.constant 2 : i32
    %0 = arith.muli %arg0, %c2_i32 : i32
    %1 = arith.addi %0, %arg1 : i32
    %c0_i32 = arith.constant 0 : i32
    %c0_i32_0 = arith.constant 0 : i32
    return %1, %c0_i32 : i32, i32
  }
  func.func @transform_1(%arg0: i32, %arg1: i32) -> (i32, i32) {
    %c8_i32 = arith.constant 8 : i32
    %0 = arith.muli %arg0, %c8_i32 : i32
    %c4_i32 = arith.constant 4 : i32
    %1 = arith.muli %arg1, %c4_i32 : i32
    %2 = arith.addi %0, %1 : i32
    %c1_i32 = arith.constant 1 : i32
    %3 = arith.subi %2, %c1_i32 : i32
    %c0_i32 = arith.constant 0 : i32
    %4 = arith.maxsi %3, %c0_i32 : i32
    %c0_i32_0 = arith.constant 0 : i32
    %c0_i32_1 = arith.constant 0 : i32
    return %4, %c0_i32_0 : i32, i32
  }
  func.func @transform_2(%arg0: i32, %arg1: i32) -> (i32, i32) {
    %c8_i32 = arith.constant 8 : i32
    %0 = arith.muli %arg0, %c8_i32 : i32
    %c4_i32 = arith.constant 4 : i32
    %1 = arith.muli %arg1, %c4_i32 : i32
    %2 = arith.addi %0, %1 : i32
    %c4_i32_0 = arith.constant 4 : i32
    %3 = arith.addi %2, %c4_i32_0 : i32
    %c15_i32 = arith.constant 15 : i32
    %4 = arith.minsi %3, %c15_i32 : i32
    %c0_i32 = arith.constant 0 : i32
    %c0_i32_1 = arith.constant 0 : i32
    return %4, %c0_i32 : i32, i32
  }
  func.func @transform_3(%arg0: i32, %arg1: i32) -> (i32, i32) {
    %c0_i32 = arith.constant 0 : i32
    %c0_i32_0 = arith.constant 0 : i32
    %c0_i32_1 = arith.constant 0 : i32
    return %c0_i32, %c0_i32_0 : i32, i32
  }
  func.func @transform_4(%arg0: i32, %arg1: i32) -> (i32, i32) {
    %c0_i32 = arith.constant 0 : i32
    %c0_i32_0 = arith.constant 0 : i32
    %c0_i32_1 = arith.constant 0 : i32
    return %c0_i32, %c0_i32_0 : i32, i32
  }
  func.func @transform_5(%arg0: i32, %arg1: i32) -> (i32, i32) {
    %c2_i32 = arith.constant 2 : i32
    %0 = arith.muli %arg0, %c2_i32 : i32
    %1 = arith.addi %0, %arg1 : i32
    %c0_i32 = arith.constant 0 : i32
    %c0_i32_0 = arith.constant 0 : i32
    return %1, %c0_i32 : i32, i32
  }
  func.func @transform_6(%arg0: i32, %arg1: i32) -> (i32, i32, i32) {
    %c2_i32 = arith.constant 2 : i32
    %0 = arith.muli %arg0, %c2_i32 : i32
    %1 = arith.addi %0, %arg1 : i32
    %c0_i32 = arith.constant 0 : i32
    %c0_i32_0 = arith.constant 0 : i32
    %c0_i32_1 = arith.constant 0 : i32
    return %1, %c0_i32, %c0_i32_0 : i32, i32, i32
  }
}

module attributes {stable_mosaic.version = 11 : i64} {
  func.func @_deconv_stats_kernel(%arg0: i32, %arg1: i32, %arg2: memref<256x8xf32, #tpu.memory_space<vmem>>, %arg3: memref<64x8xf32, #tpu.memory_space<vmem>>, %arg4: memref<64x8xf32, #tpu.memory_space<vmem>>, %arg5: memref<1x8xf32, #tpu.memory_space<vmem>>, %arg6: memref<1x8xf32, #tpu.memory_space<vmem>>, %arg7: memref<216x32xbf16, #tpu.memory_space<vmem>>, %arg8: memref<1x32xf32, #tpu.memory_space<vmem>>, %arg9: memref<256x32xf32, #tpu.memory_space<vmem>>, %arg10: memref<1x2x32xf32, #tpu.memory_space<vmem>>) attributes {dimension_semantics = [#tpu.dimension_semantics<parallel>, #tpu.dimension_semantics<parallel>], iteration_bounds = array<i64: 2, 2>, scalar_prefetch = 0 : i64, scratch_operands = 0 : i64, tpu.core_type = #tpu.core_type<tc>, window_params = [{transform_indices = @transform_0, window_bounds = array<i64: 256, 8>}, {transform_indices = @transform_1, window_bounds = array<i64: 64, 8>}, {transform_indices = @transform_2, window_bounds = array<i64: 64, 8>}, {pipeline_mode = #tpu.pipeline_mode<synchronous>, transform_indices = @transform_3, window_bounds = array<i64: 1, 8>}, {pipeline_mode = #tpu.pipeline_mode<synchronous>, transform_indices = @transform_4, window_bounds = array<i64: 1, 8>}, {pipeline_mode = #tpu.pipeline_mode<synchronous>, transform_indices = @transform_5, window_bounds = array<i64: 216, 32>}, {pipeline_mode = #tpu.pipeline_mode<synchronous>, transform_indices = @transform_6, window_bounds = array<i64: 1, 32>}, {transform_indices = @transform_7, window_bounds = array<i64: 256, 32>}, {transform_indices = @transform_8, window_bounds = array<i64: 1, 2, 32>}]} {
    %c0 = arith.constant 0 : index
    %c0_0 = arith.constant 0 : index
    %0 = vector.load %arg5[%c0, %c0_0] : memref<1x8xf32, #tpu.memory_space<vmem>>, vector<1x8xf32>
    %c0_1 = arith.constant 0 : index
    %c0_2 = arith.constant 0 : index
    %1 = vector.load %arg6[%c0_1, %c0_2] : memref<1x8xf32, #tpu.memory_space<vmem>>, vector<1x8xf32>
    %c0_3 = arith.constant 0 : index
    %c0_4 = arith.constant 0 : index
    %2 = vector.load %arg2[%c0_3, %c0_4] : memref<256x8xf32, #tpu.memory_space<vmem>>, vector<256x8xf32>
    %3 = vector.broadcast %0 : vector<1x8xf32> to vector<256x8xf32>
    %4 = arith.mulf %2, %3 : vector<256x8xf32>
    %5 = vector.broadcast %1 : vector<1x8xf32> to vector<256x8xf32>
    %6 = arith.addf %4, %5 : vector<256x8xf32>
    %cst = arith.constant 0.000000e+00 : f32
    %7 = vector.broadcast %cst : f32 to vector<256x8xf32>
    %8 = arith.maximumf %6, %7 : vector<256x8xf32>
    %9 = vector.shape_cast %8 : vector<256x8xf32> to vector<4x8x8x8xf32>
    %c0_5 = arith.constant 0 : index
    %c0_6 = arith.constant 0 : index
    %10 = vector.load %arg3[%c0_5, %c0_6] : memref<64x8xf32, #tpu.memory_space<vmem>>, vector<64x8xf32>
    %11 = vector.broadcast %0 : vector<1x8xf32> to vector<64x8xf32>
    %12 = arith.mulf %10, %11 : vector<64x8xf32>
    %13 = vector.broadcast %1 : vector<1x8xf32> to vector<64x8xf32>
    %14 = arith.addf %12, %13 : vector<64x8xf32>
    %cst_7 = arith.constant 0.000000e+00 : f32
    %15 = vector.broadcast %cst_7 : f32 to vector<64x8xf32>
    %16 = arith.maximumf %14, %15 : vector<64x8xf32>
    %17 = vector.shape_cast %16 : vector<64x8xf32> to vector<1x8x8x8xf32>
    %c0_8 = arith.constant 0 : index
    %c0_9 = arith.constant 0 : index
    %18 = vector.load %arg4[%c0_8, %c0_9] : memref<64x8xf32, #tpu.memory_space<vmem>>, vector<64x8xf32>
    %19 = vector.broadcast %0 : vector<1x8xf32> to vector<64x8xf32>
    %20 = arith.mulf %18, %19 : vector<64x8xf32>
    %21 = vector.broadcast %1 : vector<1x8xf32> to vector<64x8xf32>
    %22 = arith.addf %20, %21 : vector<64x8xf32>
    %cst_10 = arith.constant 0.000000e+00 : f32
    %23 = vector.broadcast %cst_10 : f32 to vector<64x8xf32>
    %24 = arith.maximumf %22, %23 : vector<64x8xf32>
    %25 = vector.shape_cast %24 : vector<64x8xf32> to vector<1x8x8x8xf32>
    %c0_i32 = arith.constant 0 : i32
    %26 = arith.cmpi eq, %arg1, %c0_i32 : i32
    %cst_11 = arith.constant 0.000000e+00 : f32
    %27 = vector.broadcast %cst_11 : f32 to vector<1x8x8x8xf32>
    %28 = arith.select %26, %27, %17 : vector<1x8x8x8xf32>
    %c1_i32 = arith.constant 1 : i32
    %29 = arith.cmpi eq, %arg1, %c1_i32 : i32
    %cst_12 = arith.constant 0.000000e+00 : f32
    %30 = vector.broadcast %cst_12 : f32 to vector<1x8x8x8xf32>
    %31 = arith.select %29, %30, %25 : vector<1x8x8x8xf32>
    %32 = tpu.concatenate %28, %9, %31 in 0 : vector<1x8x8x8xf32>, vector<4x8x8x8xf32>, vector<1x8x8x8xf32> -> vector<6x8x8x8xf32>
    %cst_13 = arith.constant 0.000000e+00 : f32
    %33 = vector.broadcast %cst_13 : f32 to vector<6x1x8x8xf32>
    %34 = tpu.concatenate %33, %32, %33 in 1 : vector<6x1x8x8xf32>, vector<6x8x8x8xf32>, vector<6x1x8x8xf32> -> vector<6x10x8x8xf32>
    %cst_14 = arith.constant 0.000000e+00 : f32
    %35 = vector.broadcast %cst_14 : f32 to vector<6x10x1x8xf32>
    %36 = tpu.concatenate %35, %34, %35 in 2 : vector<6x10x1x8xf32>, vector<6x10x8x8xf32>, vector<6x10x1x8xf32> -> vector<6x10x10x8xf32>
    %37 = vector.extract_strided_slice %36 {offsets = [0, 0, 0, 0], sizes = [4, 8, 8, 8], strides = [1, 1, 1, 1]} : vector<6x10x10x8xf32> to vector<4x8x8x8xf32>
    %38 = vector.shape_cast %37 : vector<4x8x8x8xf32> to vector<256x8xf32>
    %39 = vector.extract_strided_slice %36 {offsets = [0, 0, 1, 0], sizes = [4, 8, 8, 8], strides = [1, 1, 1, 1]} : vector<6x10x10x8xf32> to vector<4x8x8x8xf32>
    %40 = vector.shape_cast %39 : vector<4x8x8x8xf32> to vector<256x8xf32>
    %41 = vector.extract_strided_slice %36 {offsets = [0, 0, 2, 0], sizes = [4, 8, 8, 8], strides = [1, 1, 1, 1]} : vector<6x10x10x8xf32> to vector<4x8x8x8xf32>
    %42 = vector.shape_cast %41 : vector<4x8x8x8xf32> to vector<256x8xf32>
    %43 = vector.extract_strided_slice %36 {offsets = [0, 1, 0, 0], sizes = [4, 8, 8, 8], strides = [1, 1, 1, 1]} : vector<6x10x10x8xf32> to vector<4x8x8x8xf32>
    %44 = vector.shape_cast %43 : vector<4x8x8x8xf32> to vector<256x8xf32>
    %45 = vector.extract_strided_slice %36 {offsets = [0, 1, 1, 0], sizes = [4, 8, 8, 8], strides = [1, 1, 1, 1]} : vector<6x10x10x8xf32> to vector<4x8x8x8xf32>
    %46 = vector.shape_cast %45 : vector<4x8x8x8xf32> to vector<256x8xf32>
    %47 = vector.extract_strided_slice %36 {offsets = [0, 1, 2, 0], sizes = [4, 8, 8, 8], strides = [1, 1, 1, 1]} : vector<6x10x10x8xf32> to vector<4x8x8x8xf32>
    %48 = vector.shape_cast %47 : vector<4x8x8x8xf32> to vector<256x8xf32>
    %49 = vector.extract_strided_slice %36 {offsets = [0, 2, 0, 0], sizes = [4, 8, 8, 8], strides = [1, 1, 1, 1]} : vector<6x10x10x8xf32> to vector<4x8x8x8xf32>
    %50 = vector.shape_cast %49 : vector<4x8x8x8xf32> to vector<256x8xf32>
    %51 = vector.extract_strided_slice %36 {offsets = [0, 2, 1, 0], sizes = [4, 8, 8, 8], strides = [1, 1, 1, 1]} : vector<6x10x10x8xf32> to vector<4x8x8x8xf32>
    %52 = vector.shape_cast %51 : vector<4x8x8x8xf32> to vector<256x8xf32>
    %53 = vector.extract_strided_slice %36 {offsets = [0, 2, 2, 0], sizes = [4, 8, 8, 8], strides = [1, 1, 1, 1]} : vector<6x10x10x8xf32> to vector<4x8x8x8xf32>
    %54 = vector.shape_cast %53 : vector<4x8x8x8xf32> to vector<256x8xf32>
    %55 = vector.extract_strided_slice %36 {offsets = [1, 0, 0, 0], sizes = [4, 8, 8, 8], strides = [1, 1, 1, 1]} : vector<6x10x10x8xf32> to vector<4x8x8x8xf32>
    %56 = vector.shape_cast %55 : vector<4x8x8x8xf32> to vector<256x8xf32>
    %57 = vector.extract_strided_slice %36 {offsets = [1, 0, 1, 0], sizes = [4, 8, 8, 8], strides = [1, 1, 1, 1]} : vector<6x10x10x8xf32> to vector<4x8x8x8xf32>
    %58 = vector.shape_cast %57 : vector<4x8x8x8xf32> to vector<256x8xf32>
    %59 = vector.extract_strided_slice %36 {offsets = [1, 0, 2, 0], sizes = [4, 8, 8, 8], strides = [1, 1, 1, 1]} : vector<6x10x10x8xf32> to vector<4x8x8x8xf32>
    %60 = vector.shape_cast %59 : vector<4x8x8x8xf32> to vector<256x8xf32>
    %61 = vector.extract_strided_slice %36 {offsets = [1, 1, 0, 0], sizes = [4, 8, 8, 8], strides = [1, 1, 1, 1]} : vector<6x10x10x8xf32> to vector<4x8x8x8xf32>
    %62 = vector.shape_cast %61 : vector<4x8x8x8xf32> to vector<256x8xf32>
    %63 = vector.extract_strided_slice %36 {offsets = [1, 1, 1, 0], sizes = [4, 8, 8, 8], strides = [1, 1, 1, 1]} : vector<6x10x10x8xf32> to vector<4x8x8x8xf32>
    %64 = vector.shape_cast %63 : vector<4x8x8x8xf32> to vector<256x8xf32>
    %65 = vector.extract_strided_slice %36 {offsets = [1, 1, 2, 0], sizes = [4, 8, 8, 8], strides = [1, 1, 1, 1]} : vector<6x10x10x8xf32> to vector<4x8x8x8xf32>
    %66 = vector.shape_cast %65 : vector<4x8x8x8xf32> to vector<256x8xf32>
    %67 = vector.extract_strided_slice %36 {offsets = [1, 2, 0, 0], sizes = [4, 8, 8, 8], strides = [1, 1, 1, 1]} : vector<6x10x10x8xf32> to vector<4x8x8x8xf32>
    %68 = vector.shape_cast %67 : vector<4x8x8x8xf32> to vector<256x8xf32>
    %69 = vector.extract_strided_slice %36 {offsets = [1, 2, 1, 0], sizes = [4, 8, 8, 8], strides = [1, 1, 1, 1]} : vector<6x10x10x8xf32> to vector<4x8x8x8xf32>
    %70 = vector.shape_cast %69 : vector<4x8x8x8xf32> to vector<256x8xf32>
    %71 = vector.extract_strided_slice %36 {offsets = [1, 2, 2, 0], sizes = [4, 8, 8, 8], strides = [1, 1, 1, 1]} : vector<6x10x10x8xf32> to vector<4x8x8x8xf32>
    %72 = vector.shape_cast %71 : vector<4x8x8x8xf32> to vector<256x8xf32>
    %73 = vector.extract_strided_slice %36 {offsets = [2, 0, 0, 0], sizes = [4, 8, 8, 8], strides = [1, 1, 1, 1]} : vector<6x10x10x8xf32> to vector<4x8x8x8xf32>
    %74 = vector.shape_cast %73 : vector<4x8x8x8xf32> to vector<256x8xf32>
    %75 = vector.extract_strided_slice %36 {offsets = [2, 0, 1, 0], sizes = [4, 8, 8, 8], strides = [1, 1, 1, 1]} : vector<6x10x10x8xf32> to vector<4x8x8x8xf32>
    %76 = vector.shape_cast %75 : vector<4x8x8x8xf32> to vector<256x8xf32>
    %77 = vector.extract_strided_slice %36 {offsets = [2, 0, 2, 0], sizes = [4, 8, 8, 8], strides = [1, 1, 1, 1]} : vector<6x10x10x8xf32> to vector<4x8x8x8xf32>
    %78 = vector.shape_cast %77 : vector<4x8x8x8xf32> to vector<256x8xf32>
    %79 = vector.extract_strided_slice %36 {offsets = [2, 1, 0, 0], sizes = [4, 8, 8, 8], strides = [1, 1, 1, 1]} : vector<6x10x10x8xf32> to vector<4x8x8x8xf32>
    %80 = vector.shape_cast %79 : vector<4x8x8x8xf32> to vector<256x8xf32>
    %81 = vector.extract_strided_slice %36 {offsets = [2, 1, 1, 0], sizes = [4, 8, 8, 8], strides = [1, 1, 1, 1]} : vector<6x10x10x8xf32> to vector<4x8x8x8xf32>
    %82 = vector.shape_cast %81 : vector<4x8x8x8xf32> to vector<256x8xf32>
    %83 = vector.extract_strided_slice %36 {offsets = [2, 1, 2, 0], sizes = [4, 8, 8, 8], strides = [1, 1, 1, 1]} : vector<6x10x10x8xf32> to vector<4x8x8x8xf32>
    %84 = vector.shape_cast %83 : vector<4x8x8x8xf32> to vector<256x8xf32>
    %85 = vector.extract_strided_slice %36 {offsets = [2, 2, 0, 0], sizes = [4, 8, 8, 8], strides = [1, 1, 1, 1]} : vector<6x10x10x8xf32> to vector<4x8x8x8xf32>
    %86 = vector.shape_cast %85 : vector<4x8x8x8xf32> to vector<256x8xf32>
    %87 = vector.extract_strided_slice %36 {offsets = [2, 2, 1, 0], sizes = [4, 8, 8, 8], strides = [1, 1, 1, 1]} : vector<6x10x10x8xf32> to vector<4x8x8x8xf32>
    %88 = vector.shape_cast %87 : vector<4x8x8x8xf32> to vector<256x8xf32>
    %89 = vector.extract_strided_slice %36 {offsets = [2, 2, 2, 0], sizes = [4, 8, 8, 8], strides = [1, 1, 1, 1]} : vector<6x10x10x8xf32> to vector<4x8x8x8xf32>
    %90 = vector.shape_cast %89 : vector<4x8x8x8xf32> to vector<256x8xf32>
    %91 = tpu.concatenate %38, %40, %42, %44, %46, %48, %50, %52, %54, %56, %58, %60, %62, %64, %66, %68 in 1 : vector<256x8xf32>, vector<256x8xf32>, vector<256x8xf32>, vector<256x8xf32>, vector<256x8xf32>, vector<256x8xf32>, vector<256x8xf32>, vector<256x8xf32>, vector<256x8xf32>, vector<256x8xf32>, vector<256x8xf32>, vector<256x8xf32>, vector<256x8xf32>, vector<256x8xf32>, vector<256x8xf32>, vector<256x8xf32> -> vector<256x128xf32>
    %92 = tpu.concatenate %70, %72, %74, %76, %78, %80, %82, %84, %86, %88, %90 in 1 : vector<256x8xf32>, vector<256x8xf32>, vector<256x8xf32>, vector<256x8xf32>, vector<256x8xf32>, vector<256x8xf32>, vector<256x8xf32>, vector<256x8xf32>, vector<256x8xf32>, vector<256x8xf32>, vector<256x8xf32> -> vector<256x88xf32>
    %93 = tpu.concatenate %91, %92 in 1 : vector<256x128xf32>, vector<256x88xf32> -> vector<256x216xf32>
    %94 = arith.truncf %93 : vector<256x216xf32> to vector<256x216xbf16>
    %c0_15 = arith.constant 0 : index
    %c0_16 = arith.constant 0 : index
    %95 = vector.load %arg7[%c0_15, %c0_16] : memref<216x32xbf16, #tpu.memory_space<vmem>>, vector<216x32xbf16>
    %cst_17 = arith.constant dense<0.000000e+00> : vector<256x32xf32>
    %96 = tpu.matmul %94, %95, %cst_17 {dimension_numbers = #tpu.dot_dimension_numbers<[1], [0], [0], [1], [0, 0, 1, 1], [], []>} : vector<256x216xbf16>, vector<216x32xbf16>, vector<256x32xf32> -> vector<256x32xf32>
    %c0_18 = arith.constant 0 : index
    %c0_19 = arith.constant 0 : index
    %97 = vector.load %arg8[%c0_18, %c0_19] : memref<1x32xf32, #tpu.memory_space<vmem>>, vector<1x32xf32>
    %98 = vector.broadcast %97 : vector<1x32xf32> to vector<256x32xf32>
    %99 = arith.addf %96, %98 : vector<256x32xf32>
    %c0_20 = arith.constant 0 : index
    %c0_21 = arith.constant 0 : index
    %100 = vector.load %arg9[%c0_20, %c0_21] : memref<256x32xf32, #tpu.memory_space<vmem>>, vector<256x32xf32>
    tpu.vector_store %arg9[%c0_20, %c0_21], %99 {strides = array<i32>} : memref<256x32xf32, #tpu.memory_space<vmem>>, vector<256x32xf32>,
    %cst_22 = arith.constant dense<0.000000e+00> : vector<32xf32>
    %101 = vector.multi_reduction <add>, %99, %cst_22 [0] : vector<256x32xf32> to vector<32xf32>
    %102 = vector.shape_cast %101 : vector<32xf32> to vector<1x32xf32>
    %103 = arith.mulf %99, %99 : vector<256x32xf32>
    %cst_23 = arith.constant dense<0.000000e+00> : vector<32xf32>
    %104 = vector.multi_reduction <add>, %103, %cst_23 [0] : vector<256x32xf32> to vector<32xf32>
    %105 = vector.shape_cast %104 : vector<32xf32> to vector<1x32xf32>
    %106 = tpu.concatenate %102, %105 in 0 : vector<1x32xf32>, vector<1x32xf32> -> vector<2x32xf32>
    %107 = vector.shape_cast %106 : vector<2x32xf32> to vector<1x2x32xf32>
    %c0_24 = arith.constant 0 : index
    %c0_25 = arith.constant 0 : index
    %c0_26 = arith.constant 0 : index
    %108 = vector.load %arg10[%c0_24, %c0_25, %c0_26] : memref<1x2x32xf32, #tpu.memory_space<vmem>>, vector<1x2x32xf32>
    tpu.vector_store %arg10[%c0_24, %c0_25, %c0_26], %107 {strides = array<i32>} : memref<1x2x32xf32, #tpu.memory_space<vmem>>, vector<1x2x32xf32>,
    return
  }
  func.func @transform_0(%arg0: i32, %arg1: i32) -> (i32, i32) {
    %c2_i32 = arith.constant 2 : i32
    %0 = arith.muli %arg0, %c2_i32 : i32
    %1 = arith.addi %0, %arg1 : i32
    %c0_i32 = arith.constant 0 : i32
    %c0_i32_0 = arith.constant 0 : i32
    return %1, %c0_i32 : i32, i32
  }
  func.func @transform_1(%arg0: i32, %arg1: i32) -> (i32, i32) {
    %c8_i32 = arith.constant 8 : i32
    %0 = arith.muli %arg0, %c8_i32 : i32
    %c4_i32 = arith.constant 4 : i32
    %1 = arith.muli %arg1, %c4_i32 : i32
    %2 = arith.addi %0, %1 : i32
    %c1_i32 = arith.constant 1 : i32
    %3 = arith.subi %2, %c1_i32 : i32
    %c0_i32 = arith.constant 0 : i32
    %4 = arith.maxsi %3, %c0_i32 : i32
    %c0_i32_0 = arith.constant 0 : i32
    %c0_i32_1 = arith.constant 0 : i32
    return %4, %c0_i32_0 : i32, i32
  }
  func.func @transform_2(%arg0: i32, %arg1: i32) -> (i32, i32) {
    %c8_i32 = arith.constant 8 : i32
    %0 = arith.muli %arg0, %c8_i32 : i32
    %c4_i32 = arith.constant 4 : i32
    %1 = arith.muli %arg1, %c4_i32 : i32
    %2 = arith.addi %0, %1 : i32
    %c4_i32_0 = arith.constant 4 : i32
    %3 = arith.addi %2, %c4_i32_0 : i32
    %c15_i32 = arith.constant 15 : i32
    %4 = arith.minsi %3, %c15_i32 : i32
    %c0_i32 = arith.constant 0 : i32
    %c0_i32_1 = arith.constant 0 : i32
    return %4, %c0_i32 : i32, i32
  }
  func.func @transform_3(%arg0: i32, %arg1: i32) -> (i32, i32) {
    %c0_i32 = arith.constant 0 : i32
    %c0_i32_0 = arith.constant 0 : i32
    %c0_i32_1 = arith.constant 0 : i32
    return %c0_i32, %c0_i32_0 : i32, i32
  }
  func.func @transform_4(%arg0: i32, %arg1: i32) -> (i32, i32) {
    %c0_i32 = arith.constant 0 : i32
    %c0_i32_0 = arith.constant 0 : i32
    %c0_i32_1 = arith.constant 0 : i32
    return %c0_i32, %c0_i32_0 : i32, i32
  }
  func.func @transform_5(%arg0: i32, %arg1: i32) -> (i32, i32) {
    %c0_i32 = arith.constant 0 : i32
    %c0_i32_0 = arith.constant 0 : i32
    %c0_i32_1 = arith.constant 0 : i32
    return %c0_i32, %c0_i32_0 : i32, i32
  }
  func.func @transform_6(%arg0: i32, %arg1: i32) -> (i32, i32) {
    %c0_i32 = arith.constant 0 : i32
    %c0_i32_0 = arith.constant 0 : i32
    %c0_i32_1 = arith.constant 0 : i32
    return %c0_i32, %c0_i32_0 : i32, i32
  }
  func.func @transform_7(%arg0: i32, %arg1: i32) -> (i32, i32) {
    %c2_i32 = arith.constant 2 : i32
    %0 = arith.muli %arg0, %c2_i32 : i32
    %1 = arith.addi %0, %arg1 : i32
    %c0_i32 = arith.constant 0 : i32
    %c0_i32_0 = arith.constant 0 : i32
    return %1, %c0_i32 : i32, i32
  }
  func.func @transform_8(%arg0: i32, %arg1: i32) -> (i32, i32, i32) {
    %c2_i32 = arith.constant 2 : i32
    %0 = arith.muli %arg0, %c2_i32 : i32
    %1 = arith.addi %0, %arg1 : i32
    %c0_i32 = arith.constant 0 : i32
    %c0_i32_0 = arith.constant 0 : i32
    %c0_i32_1 = arith.constant 0 : i32
    return %1, %c0_i32, %c0_i32_0 : i32, i32, i32
  }
}

</mosaic_0001>

<llo_original>
// kernel: tile.9
$region0: #{tile.9}
  %s0 = inlined_call_operand.vmem [shape: f32[8,4], index: 0, kind: input, shape index: {}]
  %s1 = inlined_call_operand.vmem [shape: f32[1,32], index: 1, kind: output, shape index: {}]
  $region1: #{tile.9} parent=0
    #allocation0 [shape = 'u8[4096]{0}', space=vmem, size = 0x1000, scoped, tag = 'scoped mem for output reshape']
    %v2 = vld [vmem:[%s0] sm:$0x1]
    %vm3 = vcmask 31744
    %4 = vst.msk [vmem:[#allocation0] sm:$0x1] %vm3, %v2
    %s5 = scalar_lea.vmem %s0, 7
    %v6 = vld [vmem:[%s5] sm:$0x1]
    %7 = vrot.lane.b32.xlu0 %v6, 28
    %v8 = vpop.permute.xlu0 %7
    %vm9 = vcmask 261344
    %10 = vst.msk [vmem:[#allocation0] sm:$0x1] %vm9, %v8
    %s11 = scalar_lea.vmem %s0, 6
    %v12 = vld [vmem:[%s11] sm:$0x1]
    %13 = vrot.lane.b32.xlu0 %v12, 24
    %v14 = vpop.permute.xlu0 %13
    %vm15 = vcmask 228544
    %16 = vst.msk [vmem:[#allocation0] sm:$0x1] %vm15, %v14
    %s17 = scalar_lea.vmem %s0, 5
    %v18 = vld [vmem:[%s17] sm:$0x1]
    %19 = vrot.lane.b32.xlu0 %v18, 20
    %v20 = vpop.permute.xlu0 %19
    %vm21 = vcmask 195744
    %22 = vst.msk [vmem:[#allocation0] sm:$0x1] %vm21, %v20
    %s23 = scalar_lea.vmem %s0, 4
    %v24 = vld [vmem:[%s23] sm:$0x1]
    %25 = vrot.lane.b32.xlu0 %v24, 16
    %v26 = vpop.permute.xlu0 %25
    %vm27 = vcmask 162944
    %28 = vst.msk [vmem:[#allocation0] sm:$0x1] %vm27, %v26
    %s29 = scalar_lea.vmem %s0, 3
    %v30 = vld [vmem:[%s29] sm:$0x1]
    %31 = vrot.lane.b32.xlu0 %v30, 12
    %v32 = vpop.permute.xlu0 %31
    %vm33 = vcmask 130144
    %34 = vst.msk [vmem:[#allocation0] sm:$0x1] %vm33, %v32
    %s35 = scalar_lea.vmem %s0, 2
    %v36 = vld [vmem:[%s35] sm:$0x1]
    %37 = vrot.lane.b32.xlu0 %v36, 8
    %v38 = vpop.permute.xlu0 %37
    %vm39 = vcmask 97344
    %40 = vst.msk [vmem:[#allocation0] sm:$0x1] %vm39, %v38
    %s41 = scalar_lea.vmem %s0, 1
    %v42 = vld [vmem:[%s41] sm:$0x1]
    %43 = vrot.lane.b32.xlu0 %v42, 4
    %v44 = vpop.permute.xlu0 %43
    %vm45 = vcmask 64544
    %46 = vst.msk [vmem:[#allocation0] sm:$0x1] %vm45, %v44
    %s48 = sshll.u32 1, 1
    %s49 = ssub.s32 %s48, 1
    %v51 = vld [vmem:[#allocation0] sm:%s49]
    %s52 = sshll.u32 1, 1
    %s53 = ssub.s32 %s52, 1
    %54 = vst [vmem:[%s1] sm:%s53] %v51

// kernel: tile.8
$region0: #{tile.8}
  #allocation2 [shape = 's32[1]{0}', space=sflag, size = 0x4, scoped, tag = 'scoped memory for tile.8']
  %s0 = inlined_call_operand.hbm [shape: f32[4], index: 0, kind: input, shape index: {}]
  %s1 = inlined_call_operand.vmem [shape: f32[8,4], index: 1, kind: output, shape index: {}]
  $region1: #{tile.8} parent=0
    #allocation0 [shape = 'u8[512]{0}', space=vmem, size = 0x400, scoped, tag = 'operand span for operand 0']
    #allocation1 [shape = 's32[1]{0}', space=sflag, size = 0x4, scoped, tag = 'scoped memory for tile.8']
    %2 = vsyncpa [#allocation1], 0
    // Predicated region
    $region2: #{tile.8} parent=1 // pred_check
      _
    $region3: #{tile.8} parent=1 // pred_check_branch
      %4 = sbr.rel (0) target = $region5
    $region4: #{tile.8} parent=1 // pred_region
      %s6 = ssub.s32 16, 16
      %7 = vsyncadd [#allocation1], %s6
      %s9 = sshll.u32 [#allocation0], 4
      %s10 = int_to_ptr.vmem [resolvable:$true] %s9
      %12 = dma.hbm_to_vmem [thread:$0]  %s0, 16, %s10, [#allocation1]
    $region5: #{tile.8} parent=1 // pred_fallthru
      _
    // Predicated region
    $region6: #{tile.8} parent=1 // pred_check
      _
    $region7: #{tile.8} parent=1 // pred_check_branch
      %14 = sbr.rel (0) target = $region9
    $region8: #{tile.8} parent=1 // pred_region
      %15 = dma.done [#allocation1], 16
    $region9: #{tile.8} parent=1 // pred_fallthru
      _
    %v16 = vld [vmem:[#allocation0] ss:$0 sm:$0xff]
    %17 = vst [vmem:[%s1] sm:$0xff] %v16
    %18 = vsyncpa [#allocation1], 1

// kernel: decoder_block3d.3
$region0: #{decoder_block3d.3}
  #allocation0 [shape = 'u32[]', space=smem, size = 0x4, offset = 0x4, fixed_abs, tag = 'smem constant byte address 0x4 - core index']
  #allocation1 [shape = 'u32[144,128]{1,0:T(1,128)}', space=vmem, size = 0x12000, scoped, tag = 'internal scratch']
  %s0 = inlined_call_operand.vmem [shape: f32[1024,8], index: 0, kind: input, shape index: {}, may-alias: {0,1,2}]
  %s1 = inlined_call_operand.vmem [shape: f32[1024,8], index: 1, kind: input, shape index: {}, may-alias: {0,1,2}]
  %s2 = inlined_call_operand.vmem [shape: f32[1024,8], index: 2, kind: input, shape index: {}, may-alias: {0,1,2}]
  %s3 = inlined_call_operand.vmem [shape: f32[1,8], index: 3, kind: input, shape index: {}]
  %s4 = inlined_call_operand.vmem [shape: f32[1,8], index: 4, kind: input, shape index: {}]
  %s5 = inlined_call_operand.vmem [shape: bf16[216,32], index: 5, kind: input, shape index: {}]
  %s6 = inlined_call_operand.vmem [shape: f32[1,32], index: 6, kind: input, shape index: {}]
  %s7 = inlined_call_operand.vmem [shape: f32[1024,32], index: 7, kind: output, shape index: {0}]
  %s8 = inlined_call_operand.vmem [shape: f32[4,2,32], index: 8, kind: output, shape index: {1}]
  %9 = xla_tuple %s7, %s8
  %s10 = sld [smem:[#allocation0]]
  $region69: #{decoder_block3d.3} parent=0
    _
  %s12 = ssub.s32 1, %s10
  %s13 = scalar_select 0, %s12, %s10
  loop: start=0, step=1, limit=6
  $region2: #{decoder_block3d.3} parent=0 // loop_pre_header
    _
  $region3: #{decoder_block3d.3} parent=0 // loop_header
    %s15 = sphi 0, %s19
    %p16 = scmp.ge.s32.totalorder %s15, 6
    %s22 = sphi 0, %s34
    %s23 = sphi 0, %s30
    %s24 = sphi 0, %s22
    %s25 = sphi 0, %s23
    %s26 = sphi 0, %s24
    %s27 = sphi 0, %s25
    %s41 = sphi 0, %s43
    %s44 = sphi 0, %s41
    %s45 = sphi 0, %s44
    %s61 = sphi 0, %s45
    %s79 = sphi 0, %s81
    %s82 = sphi 0, %s79
    %s83 = sphi 0, %s82
    %s99 = sphi 0, %s83
    %s117 = sphi 0, %s119
    %s120 = sphi 0, %s117
    %s121 = sphi 0, %s120
    %s137 = sphi 0, %s121
    %s141 = sphi 0, %s141
    %s143 = sphi 0, %s141
    %s144 = sphi 0, %s143
    %s158 = sphi 0, %s144
    %s162 = sphi 0, %s162
    %s164 = sphi 0, %s162
    %s165 = sphi 0, %s164
    %s179 = sphi 0, %s165
    %s183 = sphi 0, %s183
    %s185 = sphi 0, %s183
    %s186 = sphi 0, %s185
    %s200 = sphi 0, %s186
    %s204 = sphi 0, %s204
    %s206 = sphi 0, %s204
    %s207 = sphi 0, %s206
    %s221 = sphi 0, %s207
    %s231 = sphi 0, %s233
    %s234 = sphi 0, %s231
    %s235 = sphi 0, %s234
    %s251 = sphi 0, %s235
    %s261 = sphi 0, %s263
    %s264 = sphi 0, %s261
    %s265 = sphi 0, %s264
    %s281 = sphi 0, %s265
  $region4: #{decoder_block3d.3} parent=0 // loop_header_branch
    %18 = sbr.rel (%p16) target = $region8
  $region5: #{decoder_block3d.3} parent=0 // loop_body
    %s20 = ssub.s32 %s15, 1
    %s21 = ssub.s32 %s15, 2
    %s28 = sadd.s32 1, %s23
    %p29 = scmp.ge.s32.totalorder %s28, 2
    %s30 = scalar_select %p29, 0, %s28
    %s31 = sadd.s32 1, %s22
    %s32 = scalar_select %p29, %s31, %s22
    %p33 = scmp.ge.s32.totalorder %s32, 2
    %s34 = scalar_select %p33, 0, %s32
    %s35 = smul.u32 %s22, 2
    %s36 = sadd.s32 %s35, %s23
    %s37 = smul.u32 %s34, 2
    %s38 = sadd.s32 %s37, %s30
    %s39 = ssub.s32 %s36, %s38
    %p40 = scmp.eq.s32.totalorder %s39, 0
    %s42 = sadd.s32 %s41, 1
    %s43 = scalar_select %p40, %s41, %s42
    %p46 = pneg %p40
    %p47 = scmp.eq.s32.totalorder %s15, 3
    %p48 = por %p46, %p47
    %p49 = scmp.ne.s32.totalorder %s41, %s44
    %p50 = scmp.eq.s32.totalorder %s15, 0
    %p51 = por %p49, %p50
    %p52 = scmp.ne.s32.totalorder %s41, %s44
    %p53 = scmp.eq.s32.totalorder %s20, 3
    %p54 = por %p52, %p53
    %p55 = scmp.ne.s32.totalorder %s44, %s45
    %p56 = scmp.eq.s32.totalorder %s20, 0
    %p57 = por %p55, %p56
    %p58 = scmp.ne.s32.totalorder %s44, %s45
    %p59 = scmp.eq.s32.totalorder %s21, 3
    %p60 = por %p58, %p59
    %p62 = scmp.ne.s32.totalorder %s45, %s61
    %p63 = scmp.eq.s32.totalorder %s21, 0
    %p64 = por %p62, %p63
    %s65 = smul.u32 %s22, 8
    %s66 = smul.u32 %s23, 4
    %s67 = sadd.s32 %s65, %s66
    %s68 = ssub.s32 %s67, 1
    %p69 = scmp.gt.s32.totalorder %s68, 0
    %s70 = scalar_select %p69, %s68, 0
    %s71 = smul.u32 %s34, 8
    %s72 = smul.u32 %s30, 4
    %s73 = sadd.s32 %s71, %s72
    %s74 = ssub.s32 %s73, 1
    %p75 = scmp.gt.s32.totalorder %s74, 0
    %s76 = scalar_select %p75, %s74, 0
    %s77 = ssub.s32 %s70, %s76
    %p78 = scmp.eq.s32.totalorder %s77, 0
    %s80 = sadd.s32 %s79, 1
    %s81 = scalar_select %p78, %s79, %s80
    %p84 = pneg %p78
    %p85 = scmp.eq.s32.totalorder %s15, 3
    %p86 = por %p84, %p85
    %p87 = scmp.ne.s32.totalorder %s79, %s82
    %p88 = scmp.eq.s32.totalorder %s15, 0
    %p89 = por %p87, %p88
    %p90 = scmp.ne.s32.totalorder %s79, %s82
    %p91 = scmp.eq.s32.totalorder %s20, 3
    %p92 = por %p90, %p91
    %p93 = scmp.ne.s32.totalorder %s82, %s83
    %p94 = scmp.eq.s32.totalorder %s20, 0
    %p95 = por %p93, %p94
    %p96 = scmp.ne.s32.totalorder %s82, %s83
    %p97 = scmp.eq.s32.totalorder %s21, 3
    %p98 = por %p96, %p97
    %p100 = scmp.ne.s32.totalorder %s83, %s99
    %p101 = scmp.eq.s32.totalorder %s21, 0
    %p102 = por %p100, %p101
    %s103 = smul.u32 %s22, 8
    %s104 = smul.u32 %s23, 4
    %s105 = sadd.s32 %s103, %s104
    %s106 = sadd.s32 %s105, 4
    %p107 = scmp.lt.s32.totalorder %s106, 15
    %s108 = scalar_select %p107, %s106, 15
    %s109 = smul.u32 %s34, 8
    %s110 = smul.u32 %s30, 4
    %s111 = sadd.s32 %s109, %s110
    %s112 = sadd.s32 %s111, 4
    %p113 = scmp.lt.s32.totalorder %s112, 15
    %s114 = scalar_select %p113, %s112, 15
    %s115 = ssub.s32 %s108, %s114
    %p116 = scmp.eq.s32.totalorder %s115, 0
    %s118 = sadd.s32 %s117, 1
    %s119 = scalar_select %p116, %s117, %s118
    %p122 = pneg %p116
    %p123 = scmp.eq.s32.totalorder %s15, 3
    %p124 = por %p122, %p123
    %p125 = scmp.ne.s32.totalorder %s117, %s120
    %p126 = scmp.eq.s32.totalorder %s15, 0
    %p127 = por %p125, %p126
    %p128 = scmp.ne.s32.totalorder %s117, %s120
    %p129 = scmp.eq.s32.totalorder %s20, 3
    %p130 = por %p128, %p129
    %p131 = scmp.ne.s32.totalorder %s120, %s121
    %p132 = scmp.eq.s32.totalorder %s20, 0
    %p133 = por %p131, %p132
    %p134 = scmp.ne.s32.totalorder %s120, %s121
    %p135 = scmp.eq.s32.totalorder %s21, 3
    %p136 = por %p134, %p135
    %p138 = scmp.ne.s32.totalorder %s121, %s137
    %p139 = scmp.eq.s32.totalorder %s21, 0
    %p140 = por %p138, %p139
    %s142 = sadd.s32 %s141, 1
    %p145 = scmp.eq.s32.totalorder %s15, 3
    %p146 = scmp.ne.s32.totalorder %s141, %s143
    %p147 = scmp.eq.s32.totalorder %s15, 0
    %p148 = por %p146, %p147
    %p149 = scmp.ne.s32.totalorder %s141, %s143
    %p150 = scmp.eq.s32.totalorder %s20, 3
    %p151 = por %p149, %p150
    %p152 = scmp.ne.s32.totalorder %s143, %s144
    %p153 = scmp.eq.s32.totalorder %s20, 0
    %p154 = por %p152, %p153
    %p155 = scmp.ne.s32.totalorder %s143, %s144
    %p156 = scmp.eq.s32.totalorder %s21, 3
    %p157 = por %p155, %p156
    %p159 = scmp.ne.s32.totalorder %s144, %s158
    %p160 = scmp.eq.s32.totalorder %s21, 0
    %p161 = por %p159, %p160
    %s163 = sadd.s32 %s162, 1
    %p166 = scmp.eq.s32.totalorder %s15, 3
    %p167 = scmp.ne.s32.totalorder %s162, %s164
    %p168 = scmp.eq.s32.totalorder %s15, 0
    %p169 = por %p167, %p168
    %p170 = scmp.ne.s32.totalorder %s162, %s164
    %p171 = scmp.eq.s32.totalorder %s20, 3
    %p172 = por %p170, %p171
    %p173 = scmp.ne.s32.totalorder %s164, %s165
    %p174 = scmp.eq.s32.totalorder %s20, 0
    %p175 = por %p173, %p174
    %p176 = scmp.ne.s32.totalorder %s164, %s165
    %p177 = scmp.eq.s32.totalorder %s21, 3
    %p178 = por %p176, %p177
    %p180 = scmp.ne.s32.totalorder %s165, %s179
    %p181 = scmp.eq.s32.totalorder %s21, 0
    %p182 = por %p180, %p181
    %s184 = sadd.s32 %s183, 1
    %p187 = scmp.eq.s32.totalorder %s15, 3
    %p188 = scmp.ne.s32.totalorder %s183, %s185
    %p189 = scmp.eq.s32.totalorder %s15, 0
    %p190 = por %p188, %p189
    %p191 = scmp.ne.s32.totalorder %s183, %s185
    %p192 = scmp.eq.s32.totalorder %s20, 3
    %p193 = por %p191, %p192
    %p194 = scmp.ne.s32.totalorder %s185, %s186
    %p195 = scmp.eq.s32.totalorder %s20, 0
    %p196 = por %p194, %p195
    %p197 = scmp.ne.s32.totalorder %s185, %s186
    %p198 = scmp.eq.s32.totalorder %s21, 3
    %p199 = por %p197, %p198
    %p201 = scmp.ne.s32.totalorder %s186, %s200
    %p202 = scmp.eq.s32.totalorder %s21, 0
    %p203 = por %p201, %p202
    %s205 = sadd.s32 %s204, 1
    %p208 = scmp.eq.s32.totalorder %s15, 3
    %p209 = scmp.ne.s32.totalorder %s204, %s206
    %p210 = scmp.eq.s32.totalorder %s15, 0
    %p211 = por %p209, %p210
    %p212 = scmp.ne.s32.totalorder %s204, %s206
    %p213 = scmp.eq.s32.totalorder %s20, 3
    %p214 = por %p212, %p213
    %p215 = scmp.ne.s32.totalorder %s206, %s207
    %p216 = scmp.eq.s32.totalorder %s20, 0
    %p217 = por %p215, %p216
    %p218 = scmp.ne.s32.totalorder %s206, %s207
    %p219 = scmp.eq.s32.totalorder %s21, 3
    %p220 = por %p218, %p219
    %p222 = scmp.ne.s32.totalorder %s207, %s221
    %p223 = scmp.eq.s32.totalorder %s21, 0
    %p224 = por %p222, %p223
    %s225 = smul.u32 %s22, 2
    %s226 = sadd.s32 %s225, %s23
    %s227 = smul.u32 %s34, 2
    %s228 = sadd.s32 %s227, %s30
    %s229 = ssub.s32 %s226, %s228
    %p230 = scmp.eq.s32.totalorder %s229, 0
    %s232 = sadd.s32 %s231, 1
    %s233 = scalar_select %p230, %s231, %s232
    %p236 = pneg %p230
    %p237 = scmp.eq.s32.totalorder %s15, 3
    %p238 = por %p236, %p237
    %p239 = scmp.ne.s32.totalorder %s231, %s234
    %p240 = scmp.eq.s32.totalorder %s15, 0
    %p241 = por %p239, %p240
    %p242 = scmp.ne.s32.totalorder %s231, %s234
    %p243 = scmp.eq.s32.totalorder %s20, 3
    %p244 = por %p242, %p243
    %p245 = scmp.ne.s32.totalorder %s234, %s235
    %p246 = scmp.eq.s32.totalorder %s20, 0
    %p247 = por %p245, %p246
    %p248 = scmp.ne.s32.totalorder %s234, %s235
    %p249 = scmp.eq.s32.totalorder %s21, 3
    %p250 = por %p248, %p249
    %p252 = scmp.ne.s32.totalorder %s235, %s251
    %p253 = scmp.eq.s32.totalorder %s21, 0
    %p254 = por %p252, %p253
    %s255 = smul.u32 %s22, 2
    %s256 = sadd.s32 %s255, %s23
    %s257 = smul.u32 %s34, 2
    %s258 = sadd.s32 %s257, %s30
    %s259 = ssub.s32 %s256, %s258
    %p260 = scmp.eq.s32.totalorder %s259, 0
    %s262 = sadd.s32 %s261, 1
    %s263 = scalar_select %p260, %s261, %s262
    %p266 = pneg %p260
    %p267 = scmp.eq.s32.totalorder %s15, 3
    %p268 = por %p266, %p267
    %p269 = scmp.ne.s32.totalorder %s261, %s264
    %p270 = scmp.eq.s32.totalorder %s15, 0
    %p271 = por %p269, %p270
    %p272 = scmp.ne.s32.totalorder %s261, %s264
    %p273 = scmp.eq.s32.totalorder %s20, 3
    %p274 = por %p272, %p273
    %p275 = scmp.ne.s32.totalorder %s264, %s265
    %p276 = scmp.eq.s32.totalorder %s20, 0
    %p277 = por %p275, %p276
    %p278 = scmp.ne.s32.totalorder %s264, %s265
    %p279 = scmp.eq.s32.totalorder %s21, 3
    %p280 = por %p278, %p279
    %p282 = scmp.ne.s32.totalorder %s265, %s281
    %p283 = scmp.eq.s32.totalorder %s21, 0
    %p284 = por %p282, %p283
    %p285 = scmp.le.s32.totalorder 1, %s15
    %p286 = scmp.lt.s32.totalorder %s15, 5
    %p287 = pnand %p285, %p286
    %p288 = pneg %p287
    // Predicated region
    $region9: #{decoder_block3d.3} parent=5 // pred_check
      _
    $region10: #{decoder_block3d.3} parent=5 // pred_check_branch
      %290 = sbr.rel (%p287) target = $region12
    $region11: #{decoder_block3d.3} parent=5 // pred_region
      %s291 = ssub.s32 %s15, 1
      // Predicated region
      $region13: #{decoder_block3d.3} parent=11 // pred_check
        %p292 = pneg %p154
      $region14: #{decoder_block3d.3} parent=11 // pred_check_branch
        %294 = sbr.rel (%p292) target = $region16
      $region15: #{decoder_block3d.3} parent=11 // pred_region
        _
      $region16: #{decoder_block3d.3} parent=11 // pred_fallthru
        _
      // Predicated region
      $region17: #{decoder_block3d.3} parent=11 // pred_check
        %p295 = pneg %p175
      $region18: #{decoder_block3d.3} parent=11 // pred_check_branch
        %297 = sbr.rel (%p295) target = $region20
      $region19: #{decoder_block3d.3} parent=11 // pred_region
        _
      $region20: #{decoder_block3d.3} parent=11 // pred_fallthru
        _
      // Predicated region
      $region21: #{decoder_block3d.3} parent=11 // pred_check
        %p298 = pneg %p196
      $region22: #{decoder_block3d.3} parent=11 // pred_check_branch
        %300 = sbr.rel (%p298) target = $region24
      $region23: #{decoder_block3d.3} parent=11 // pred_region
        _
      $region24: #{decoder_block3d.3} parent=11 // pred_fallthru
        _
      // Predicated region
      $region25: #{decoder_block3d.3} parent=11 // pred_check
        %p301 = pneg %p217
      $region26: #{decoder_block3d.3} parent=11 // pred_check_branch
        %303 = sbr.rel (%p301) target = $region28
      $region27: #{decoder_block3d.3} parent=11 // pred_region
        _
      $region28: #{decoder_block3d.3} parent=11 // pred_fallthru
        _
    $region12: #{decoder_block3d.3} parent=5 // pred_fallthru
      _
    %p304 = scmp.lt.s32.totalorder %s15, 4
    // Predicated region
    $region29: #{decoder_block3d.3} parent=5 // pred_check
      %p305 = pneg %p304
    $region30: #{decoder_block3d.3} parent=5 // pred_check_branch
      %307 = sbr.rel (%p305) target = $region32
    $region31: #{decoder_block3d.3} parent=5 // pred_region
      // Predicated region
      $region33: #{decoder_block3d.3} parent=31 // pred_check
        %p308 = pneg %p51
      $region34: #{decoder_block3d.3} parent=31 // pred_check_branch
        %310 = sbr.rel (%p308) target = $region36
      $region35: #{decoder_block3d.3} parent=31 // pred_region
        %s311 = smul.u32 %s22, 2
        %s312 = sadd.s32 %s311, %s23
        %s313 = smul.u32 32, %s312
        %p314 = scmp.lt.s32.totalorder %s313, 127
        %s315 = scalar_select %p314, %s313, 127
        %s316 = smul.addr %s315, 8
        %s317 = scalar_lea.vmem %s0, %s316
        %s318 = smul.u32 %s22, 2
        %s319 = sadd.s32 %s318, %s23
        %s320 = smul.u32 32, %s319
      $region36: #{decoder_block3d.3} parent=31 // pred_fallthru
        _
      // Predicated region
      $region37: #{decoder_block3d.3} parent=31 // pred_check
        %p321 = pneg %p89
      $region38: #{decoder_block3d.3} parent=31 // pred_check_branch
        %323 = sbr.rel (%p321) target = $region40
      $region39: #{decoder_block3d.3} parent=31 // pred_region
        %s324 = smul.u32 %s22, 8
        %s325 = smul.u32 %s23, 4
        %s326 = sadd.s32 %s324, %s325
        %s327 = ssub.s32 %s326, 1
        %p328 = scmp.gt.s32.totalorder %s327, 0
        %s329 = scalar_select %p328, %s327, 0
        %s330 = smul.u32 8, %s329
        %p331 = scmp.lt.s32.totalorder %s330, 127
        %s332 = scalar_select %p331, %s330, 127
        %s333 = smul.addr %s332, 8
        %s334 = scalar_lea.vmem %s1, %s333
        %s335 = smul.u32 %s22, 8
        %s336 = smul.u32 %s23, 4
        %s337 = sadd.s32 %s335, %s336
        %s338 = ssub.s32 %s337, 1
        %p339 = scmp.gt.s32.totalorder %s338, 0
        %s340 = scalar_select %p339, %s338, 0
        %s341 = smul.u32 8, %s340
      $region40: #{decoder_block3d.3} parent=31 // pred_fallthru
        _
      // Predicated region
      $region41: #{decoder_block3d.3} parent=31 // pred_check
        %p342 = pneg %p127
      $region42: #{decoder_block3d.3} parent=31 // pred_check_branch
        %344 = sbr.rel (%p342) target = $region44
      $region43: #{decoder_block3d.3} parent=31 // pred_region
        %s345 = smul.u32 %s22, 8
        %s346 = smul.u32 %s23, 4
        %s347 = sadd.s32 %s345, %s346
        %s348 = sadd.s32 %s347, 4
        %p349 = scmp.lt.s32.totalorder %s348, 15
        %s350 = scalar_select %p349, %s348, 15
        %s351 = smul.u32 8, %s350
        %p352 = scmp.lt.s32.totalorder %s351, 127
        %s353 = scalar_select %p352, %s351, 127
        %s354 = smul.addr %s353, 8
        %s355 = scalar_lea.vmem %s2, %s354
        %s356 = smul.u32 %s22, 8
        %s357 = smul.u32 %s23, 4
        %s358 = sadd.s32 %s356, %s357
        %s359 = sadd.s32 %s358, 4
        %p360 = scmp.lt.s32.totalorder %s359, 15
        %s361 = scalar_select %p360, %s359, 15
        %s362 = smul.u32 8, %s361
      $region44: #{decoder_block3d.3} parent=31 // pred_fallthru
        _
    $region32: #{decoder_block3d.3} parent=5 // pred_fallthru
      _
    %p363 = scmp.le.s32.totalorder 1, %s15
    %p364 = scmp.lt.s32.totalorder %s15, 5
    %p365 = pnand %p363, %p364
    %p366 = pneg %p365
    // Predicated region
    $region45: #{decoder_block3d.3} parent=5 // pred_check
      _
    $region46: #{decoder_block3d.3} parent=5 // pred_check_branch
      %368 = sbr.rel (%p365) target = $region48
    $region47: #{decoder_block3d.3} parent=5 // pred_region
      %s369 = ssub.s32 %s15, 1
      %s370 = smul.u32 %s24, 2
      %s371 = sadd.s32 %s370, %s25
      %s372 = smul.u32 32, %s371
      %p373 = scmp.lt.s32.totalorder %s372, 127
      %s374 = scalar_select %p373, %s372, 127
      %s375 = smul.addr %s374, 8
      %s376 = scalar_lea.vmem %s0, %s375
      %p377 = pneg %p57
      %p378 = pneg %p54
      %s379 = smul.u32 %s24, 8
      %s380 = smul.u32 %s25, 4
      %s381 = sadd.s32 %s379, %s380
      %s382 = ssub.s32 %s381, 1
      %p383 = scmp.gt.s32.totalorder %s382, 0
      %s384 = scalar_select %p383, %s382, 0
      %s385 = smul.u32 8, %s384
      %p386 = scmp.lt.s32.totalorder %s385, 127
      %s387 = scalar_select %p386, %s385, 127
      %s388 = smul.addr %s387, 8
      %s389 = scalar_lea.vmem %s1, %s388
      %p390 = pneg %p95
      %p391 = pneg %p92
      %s392 = smul.u32 %s24, 8
      %s393 = smul.u32 %s25, 4
      %s394 = sadd.s32 %s392, %s393
      %s395 = sadd.s32 %s394, 4
      %p396 = scmp.lt.s32.totalorder %s395, 15
      %s397 = scalar_select %p396, %s395, 15
      %s398 = smul.u32 8, %s397
      %p399 = scmp.lt.s32.totalorder %s398, 127
      %s400 = scalar_select %p399, %s398, 127
      %s401 = smul.addr %s400, 8
      %s402 = scalar_lea.vmem %s2, %s401
      %p403 = pneg %p133
      %p404 = pneg %p130
      %p405 = pneg %p154
      %p406 = pneg %p151
      %p407 = pneg %p175
      %p408 = pneg %p172
      %p409 = pneg %p196
      %p410 = pneg %p193
      %p411 = pneg %p217
      %p412 = pneg %p214
      %p413 = pneg %p247
      %p414 = pneg %p244
      %s415 = smul.u32 %s24, 2
      %s416 = sadd.s32 %s415, %s25
      %s417 = smul.u32 32, %s416
      %p418 = scmp.lt.s32.totalorder %s417, 127
      %s419 = scalar_select %p418, %s417, 127
      %s420 = smul.addr %s419, 8
      %s421 = scalar_lea.vmem %s7, %s420
      %p422 = pneg %p277
      %p423 = pneg %p274
      %s424 = smul.u32 %s24, 2
      %s425 = sadd.s32 %s424, %s25
      %p426 = scmp.lt.s32.totalorder %s425, 3
      %s427 = scalar_select %p426, %s425, 3
      %s428 = smul.addr %s427, 2
      %s429 = scalar_lea.vmem %s8, %s428
      %s430 = smul.u32 %s24, 2
      %s431 = sadd.s32 %s430, %s25
      %s432 = smul.u32 32, %s431
      %p433 = scmp.lt.s32.totalorder %s432, 127
      %s434 = scalar_select %p433, %s432, 127
      %s435 = smul.addr %s434, 8
      %s436 = scalar_lea.vmem %s0, %s435
      %s437 = smul.u32 %s24, 2
      %s438 = sadd.s32 %s437, %s25
      %s439 = smul.u32 32, %s438
      %s440 = smul.u32 %s24, 8
      %s441 = smul.u32 %s25, 4
      %s442 = sadd.s32 %s440, %s441
      %s443 = ssub.s32 %s442, 1
      %p444 = scmp.gt.s32.totalorder %s443, 0
      %s445 = scalar_select %p444, %s443, 0
      %s446 = smul.u32 8, %s445
      %p447 = scmp.lt.s32.totalorder %s446, 127
      %s448 = scalar_select %p447, %s446, 127
      %s449 = smul.addr %s448, 8
      %s450 = scalar_lea.vmem %s1, %s449
      %s451 = smul.u32 %s24, 8
      %s452 = smul.u32 %s25, 4
      %s453 = sadd.s32 %s451, %s452
      %s454 = ssub.s32 %s453, 1
      %p455 = scmp.gt.s32.totalorder %s454, 0
      %s456 = scalar_select %p455, %s454, 0
      %s457 = smul.u32 8, %s456
      %s458 = smul.u32 %s24, 8
      %s459 = smul.u32 %s25, 4
      %s460 = sadd.s32 %s458, %s459
      %s461 = sadd.s32 %s460, 4
      %p462 = scmp.lt.s32.totalorder %s461, 15
      %s463 = scalar_select %p462, %s461, 15
      %s464 = smul.u32 8, %s463
      %p465 = scmp.lt.s32.totalorder %s464, 127
      %s466 = scalar_select %p465, %s464, 127
      %s467 = smul.addr %s466, 8
      %s468 = scalar_lea.vmem %s2, %s467
      %s469 = smul.u32 %s24, 8
      %s470 = smul.u32 %s25, 4
      %s471 = sadd.s32 %s469, %s470
      %s472 = sadd.s32 %s471, 4
      %p473 = scmp.lt.s32.totalorder %s472, 15
      %s474 = scalar_select %p473, %s472, 15
      %s475 = smul.u32 8, %s474
      %s476 = smul.u32 %s24, 2
      %s477 = sadd.s32 %s476, %s25
      %s478 = smul.u32 32, %s477
      %p479 = scmp.lt.s32.totalorder %s478, 127
      %s480 = scalar_select %p479, %s478, 127
      %s481 = smul.addr %s480, 8
      %s482 = scalar_lea.vmem %s7, %s481
      %s483 = smul.u32 %s24, 2
      %s484 = sadd.s32 %s483, %s25
      %s485 = smul.u32 32, %s484
      %s486 = smul.u32 %s24, 2
      %s487 = sadd.s32 %s486, %s25
      %p488 = scmp.lt.s32.totalorder %s487, 3
      %s489 = scalar_select %p488, %s487, 3
      %s490 = smul.addr %s489, 2
      %s491 = scalar_lea.vmem %s8, %s490
      %s492 = smul.u32 %s24, 2
      %s493 = sadd.s32 %s492, %s25
      %v495 = vld [vmem:[%s3] sm:$0x1]
      %v496 = vld [vmem:[%s4] sm:$0x1]
      %v497 = vld [vmem:[%s436] sm:$0xff]
      %v498 = vld [vmem:[%s436 + $0x8] sm:$0xff]
      %v499 = vld [vmem:[%s436 + $0x10] sm:$0xff]
      %v500 = vld [vmem:[%s436 + $0x18] sm:$0xff]
      %v501 = vld [vmem:[%s436 + $0x20] sm:$0xff]
      %v502 = vld [vmem:[%s436 + $0x28] sm:$0xff]
      %v503 = vld [vmem:[%s436 + $0x30] sm:$0xff]
      %v504 = vld [vmem:[%s436 + $0x38] sm:$0xff]
      %v505 = vld [vmem:[%s436 + $0x40] sm:$0xff]
      %v506 = vld [vmem:[%s436 + $0x48] sm:$0xff]
      %v507 = vld [vmem:[%s436 + $0x50] sm:$0xff]
      %v508 = vld [vmem:[%s436 + $0x58] sm:$0xff]
      %v509 = vld [vmem:[%s436 + $0x60] sm:$0xff]
      %v510 = vld [vmem:[%s436 + $0x68] sm:$0xff]
      %v511 = vld [vmem:[%s436 + $0x70] sm:$0xff]
      %v512 = vld [vmem:[%s436 + $0x78] sm:$0xff]
      %v513 = vld [vmem:[%s436 + $0x80] sm:$0xff]
      %v514 = vld [vmem:[%s436 + $0x88] sm:$0xff]
      %v515 = vld [vmem:[%s436 + $0x90] sm:$0xff]
      %v516 = vld [vmem:[%s436 + $0x98] sm:$0xff]
      %v517 = vld [vmem:[%s436 + $0xa0] sm:$0xff]
      %v518 = vld [vmem:[%s436 + $0xa8] sm:$0xff]
      %v519 = vld [vmem:[%s436 + $0xb0] sm:$0xff]
      %v520 = vld [vmem:[%s436 + $0xb8] sm:$0xff]
      %v521 = vld [vmem:[%s436 + $0xc0] sm:$0xff]
      %v522 = vld [vmem:[%s436 + $0xc8] sm:$0xff]
      %v523 = vld [vmem:[%s436 + $0xd0] sm:$0xff]
      %v524 = vld [vmem:[%s436 + $0xd8] sm:$0xff]
      %v525 = vld [vmem:[%s436 + $0xe0] sm:$0xff]
      %v526 = vld [vmem:[%s436 + $0xe8] sm:$0xff]
      %v527 = vld [vmem:[%s436 + $0xf0] sm:$0xff]
      %v528 = vld [vmem:[%s436 + $0xf8] sm:$0xff]
      %v530 = vlaneseq
      %v531 = vshrl.u32 %v530, 7
      %v532 = vsub.s32 0, %v531
      %v533 = vrot.slane %v495, %v532
      %v535 = vmul.f32 %v497, %v533
      %v536 = vmul.f32 %v498, %v533
      %v537 = vmul.f32 %v499, %v533
      %v538 = vmul.f32 %v500, %v533
      %v539 = vmul.f32 %v501, %v533
      %v540 = vmul.f32 %v502, %v533
      %v541 = vmul.f32 %v503, %v533
      %v542 = vmul.f32 %v504, %v533
      %v543 = vmul.f32 %v505, %v533
      %v544 = vmul.f32 %v506, %v533
      %v545 = vmul.f32 %v507, %v533
      %v546 = vmul.f32 %v508, %v533
      %v547 = vmul.f32 %v509, %v533
      %v548 = vmul.f32 %v510, %v533
      %v549 = vmul.f32 %v511, %v533
      %v550 = vmul.f32 %v512, %v533
      %v551 = vmul.f32 %v513, %v533
      %v552 = vmul.f32 %v514, %v533
      %v553 = vmul.f32 %v515, %v533
      %v554 = vmul.f32 %v516, %v533
      %v555 = vmul.f32 %v517, %v533
      %v556 = vmul.f32 %v518, %v533
      %v557 = vmul.f32 %v519, %v533
      %v558 = vmul.f32 %v520, %v533
      %v559 = vmul.f32 %v521, %v533
      %v560 = vmul.f32 %v522, %v533
      %v561 = vmul.f32 %v523, %v533
      %v562 = vmul.f32 %v524, %v533
      %v563 = vmul.f32 %v525, %v533
      %v564 = vmul.f32 %v526, %v533
      %v565 = vmul.f32 %v527, %v533
      %v566 = vmul.f32 %v528, %v533
      %v568 = vlaneseq
      %v569 = vshrl.u32 %v568, 7
      %v570 = vsub.s32 0, %v569
      %v571 = vrot.slane %v496, %v570
      %v573 = vadd.f32 %v535, %v571
      %v574 = vadd.f32 %v536, %v571
      %v575 = vadd.f32 %v537, %v571
      %v576 = vadd.f32 %v538, %v571
      %v577 = vadd.f32 %v539, %v571
      %v578 = vadd.f32 %v540, %v571
      %v579 = vadd.f32 %v541, %v571
      %v580 = vadd.f32 %v542, %v571
      %v581 = vadd.f32 %v543, %v571
      %v582 = vadd.f32 %v544, %v571
      %v583 = vadd.f32 %v545, %v571
      %v584 = vadd.f32 %v546, %v571
      %v585 = vadd.f32 %v547, %v571
      %v586 = vadd.f32 %v548, %v571
      %v587 = vadd.f32 %v549, %v571
      %v588 = vadd.f32 %v550, %v571
      %v589 = vadd.f32 %v551, %v571
      %v590 = vadd.f32 %v552, %v571
      %v591 = vadd.f32 %v553, %v571
      %v592 = vadd.f32 %v554, %v571
      %v593 = vadd.f32 %v555, %v571
      %v594 = vadd.f32 %v556, %v571
      %v595 = vadd.f32 %v557, %v571
      %v596 = vadd.f32 %v558, %v571
      %v597 = vadd.f32 %v559, %v571
      %v598 = vadd.f32 %v560, %v571
      %v599 = vadd.f32 %v561, %v571
      %v600 = vadd.f32 %v562, %v571
      %v601 = vadd.f32 %v563, %v571
      %v602 = vadd.f32 %v564, %v571
      %v603 = vadd.f32 %v565, %v571
      %v604 = vadd.f32 %v566, %v571
      %v605 = vmax.f32 %v573, 0.0
      %v606 = vmax.f32 %v574, 0.0
      %v607 = vmax.f32 %v575, 0.0
      %v608 = vmax.f32 %v576, 0.0
      %v609 = vmax.f32 %v577, 0.0
      %v610 = vmax.f32 %v578, 0.0
      %v611 = vmax.f32 %v579, 0.0
      %v612 = vmax.f32 %v580, 0.0
      %v613 = vmax.f32 %v581, 0.0
      %v614 = vmax.f32 %v582, 0.0
      %v615 = vmax.f32 %v583, 0.0
      %v616 = vmax.f32 %v584, 0.0
      %v617 = vmax.f32 %v585, 0.0
      %v618 = vmax.f32 %v586, 0.0
      %v619 = vmax.f32 %v587, 0.0
      %v620 = vmax.f32 %v588, 0.0
      %v621 = vmax.f32 %v589, 0.0
      %v622 = vmax.f32 %v590, 0.0
      %v623 = vmax.f32 %v591, 0.0
      %v624 = vmax.f32 %v592, 0.0
      %v625 = vmax.f32 %v593, 0.0
      %v626 = vmax.f32 %v594, 0.0
      %v627 = vmax.f32 %v595, 0.0
      %v628 = vmax.f32 %v596, 0.0
      %v629 = vmax.f32 %v597, 0.0
      %v630 = vmax.f32 %v598, 0.0
      %v631 = vmax.f32 %v599, 0.0
      %v632 = vmax.f32 %v600, 0.0
      %v633 = vmax.f32 %v601, 0.0
      %v634 = vmax.f32 %v602, 0.0
      %v635 = vmax.f32 %v603, 0.0
      %v636 = vmax.f32 %v604, 0.0
      %v637 = vld [vmem:[%s450] sm:$0xff]
      %v638 = vld [vmem:[%s450 + $0x8] sm:$0xff]
      %v639 = vld [vmem:[%s450 + $0x10] sm:$0xff]
      %v640 = vld [vmem:[%s450 + $0x18] sm:$0xff]
      %v641 = vld [vmem:[%s450 + $0x20] sm:$0xff]
      %v642 = vld [vmem:[%s450 + $0x28] sm:$0xff]
      %v643 = vld [vmem:[%s450 + $0x30] sm:$0xff]
      %v644 = vld [vmem:[%s450 + $0x38] sm:$0xff]
      %v645 = vmul.f32 %v637, %v533
      %v646 = vmul.f32 %v638, %v533
      %v647 = vmul.f32 %v639, %v533
      %v648 = vmul.f32 %v640, %v533
      %v649 = vmul.f32 %v641, %v533
      %v650 = vmul.f32 %v642, %v533
      %v651 = vmul.f32 %v643, %v533
      %v652 = vmul.f32 %v644, %v533
      %v653 = vadd.f32 %v645, %v571
      %v654 = vadd.f32 %v646, %v571
      %v655 = vadd.f32 %v647, %v571
      %v656 = vadd.f32 %v648, %v571
      %v657 = vadd.f32 %v649, %v571
      %v658 = vadd.f32 %v650, %v571
      %v659 = vadd.f32 %v651, %v571
      %v660 = vadd.f32 %v652, %v571
      %v661 = vmax.f32 %v653, 0.0
      %v662 = vmax.f32 %v654, 0.0
      %v663 = vmax.f32 %v655, 0.0
      %v664 = vmax.f32 %v656, 0.0
      %v665 = vmax.f32 %v657, 0.0
      %v666 = vmax.f32 %v658, 0.0
      %v667 = vmax.f32 %v659, 0.0
      %v668 = vmax.f32 %v660, 0.0
      %v669 = vld [vmem:[%s468] sm:$0xff]
      %v670 = vld [vmem:[%s468 + $0x8] sm:$0xff]
      %v671 = vld [vmem:[%s468 + $0x10] sm:$0xff]
      %v672 = vld [vmem:[%s468 + $0x18] sm:$0xff]
      %v673 = vld [vmem:[%s468 + $0x20] sm:$0xff]
      %v674 = vld [vmem:[%s468 + $0x28] sm:$0xff]
      %v675 = vld [vmem:[%s468 + $0x30] sm:$0xff]
      %v676 = vld [vmem:[%s468 + $0x38] sm:$0xff]
      %v677 = vmul.f32 %v669, %v533
      %v678 = vmul.f32 %v670, %v533
      %v679 = vmul.f32 %v671, %v533
      %v680 = vmul.f32 %v672, %v533
      %v681 = vmul.f32 %v673, %v533
      %v682 = vmul.f32 %v674, %v533
      %v683 = vmul.f32 %v675, %v533
      %v684 = vmul.f32 %v676, %v533
      %v685 = vadd.f32 %v677, %v571
      %v686 = vadd.f32 %v678, %v571
      %v687 = vadd.f32 %v679, %v571
      %v688 = vadd.f32 %v680, %v571
      %v689 = vadd.f32 %v681, %v571
      %v690 = vadd.f32 %v682, %v571
      %v691 = vadd.f32 %v683, %v571
      %v692 = vadd.f32 %v684, %v571
      %v693 = vmax.f32 %v685, 0.0
      %v694 = vmax.f32 %v686, 0.0
      %v695 = vmax.f32 %v687, 0.0
      %v696 = vmax.f32 %v688, 0.0
      %v697 = vmax.f32 %v689, 0.0
      %v698 = vmax.f32 %v690, 0.0
      %v699 = vmax.f32 %v691, 0.0
      %v700 = vmax.f32 %v692, 0.0
      %p701 = scmp.eq.s32.totalorder %s25, 0
      %s702 = scalar_select %p701, 1, 0
      %v703 = vstv %s702
      %vm704 = vcmp.eq.s32.totalorder %v703, 1
      %v705 = vsel %vm704, 0.0, %v661
      %v706 = vsel %vm704, 0.0, %v662
      %v707 = vsel %vm704, 0.0, %v663
      %v708 = vsel %vm704, 0.0, %v664
      %v709 = vsel %vm704, 0.0, %v665
      %v710 = vsel %vm704, 0.0, %v666
      %v711 = vsel %vm704, 0.0, %v667
      %v712 = vsel %vm704, 0.0, %v668
      %p713 = scmp.eq.s32.totalorder %s25, 1
      %s714 = scalar_select %p713, 1, 0
      %v715 = vstv %s714
      %vm716 = vcmp.eq.s32.totalorder %v715, 1
      %v717 = vsel %vm716, 0.0, %v693
      %v718 = vsel %vm716, 0.0, %v694
      %v719 = vsel %vm716, 0.0, %v695
      %v720 = vsel %vm716, 0.0, %v696
      %v721 = vsel %vm716, 0.0, %v697
      %v722 = vsel %vm716, 0.0, %v698
      %v723 = vsel %vm716, 0.0, %v699
      %v724 = vsel %vm716, 0.0, %v700
      %v774 = vrot.slane 0.0, 7
      %v775 = vrot.slane %v705, 7
      %v776 = vrot.slane %v706, 7
      %v777 = vrot.slane %v707, 7
      %v778 = vrot.slane %v708, 7
      %v779 = vrot.slane %v709, 7
      %v780 = vrot.slane %v710, 7
      %v781 = vrot.slane %v711, 7
      %v782 = vrot.slane %v712, 7
      %v783 = vrot.slane %v605, 7
      %v784 = vrot.slane %v606, 7
      %v785 = vrot.slane %v607, 7
      %v786 = vrot.slane %v608, 7
      %v787 = vrot.slane %v609, 7
      %v788 = vrot.slane %v610, 7
      %v789 = vrot.slane %v611, 7
      %v790 = vrot.slane %v612, 7
      %v791 = vrot.slane %v613, 7
      %v792 = vrot.slane %v614, 7
      %v793 = vrot.slane %v615, 7
      %v794 = vrot.slane %v616, 7
      %v795 = vrot.slane %v617, 7
      %v796 = vrot.slane %v618, 7
      %v797 = vrot.slane %v619, 7
      %v798 = vrot.slane %v620, 7
      %v799 = vrot.slane %v621, 7
      %v800 = vrot.slane %v622, 7
      %v801 = vrot.slane %v623, 7
      %v802 = vrot.slane %v624, 7
      %v803 = vrot.slane %v625, 7
      %v804 = vrot.slane %v626, 7
      %v805 = vrot.slane %v627, 7
      %v806 = vrot.slane %v628, 7
      %v807 = vrot.slane %v629, 7
      %v808 = vrot.slane %v630, 7
      %v809 = vrot.slane %v631, 7
      %v810 = vrot.slane %v632, 7
      %v811 = vrot.slane %v633, 7
      %v812 = vrot.slane %v634, 7
      %v813 = vrot.slane %v635, 7
      %v814 = vrot.slane %v636, 7
      %v815 = vrot.slane %v717, 7
      %v816 = vrot.slane %v718, 7
      %v817 = vrot.slane %v719, 7
      %v818 = vrot.slane %v720, 7
      %v819 = vrot.slane %v721, 7
      %v820 = vrot.slane %v722, 7
      %v821 = vrot.slane %v723, 7
      %v822 = vrot.slane %v724, 7
      %vm872 = vcmask 1040384
      %v873 = vsel %vm872, 0.0, %v774
      %v874 = vsel %vm872, 0.0, %v775
      %v875 = vsel %vm872, 0.0, %v776
      %v876 = vsel %vm872, 0.0, %v777
      %v877 = vsel %vm872, 0.0, %v778
      %v878 = vsel %vm872, 0.0, %v779
      %v879 = vsel %vm872, 0.0, %v780
      %v880 = vsel %vm872, 0.0, %v781
      %v881 = vsel %vm872, 0.0, %v782
      %v882 = vsel %vm872, 0.0, %v783
      %v883 = vsel %vm872, 0.0, %v784
      %v884 = vsel %vm872, 0.0, %v785
      %v885 = vsel %vm872, 0.0, %v786
      %v886 = vsel %vm872, 0.0, %v787
      %v887 = vsel %vm872, 0.0, %v788
      %v888 = vsel %vm872, 0.0, %v789
      %v889 = vsel %vm872, 0.0, %v790
      %v890 = vsel %vm872, 0.0, %v791
      %v891 = vsel %vm872, 0.0, %v792
      %v892 = vsel %vm872, 0.0, %v793
      %v893 = vsel %vm872, 0.0, %v794
      %v894 = vsel %vm872, 0.0, %v795
      %v895 = vsel %vm872, 0.0, %v796
      %v896 = vsel %vm872, 0.0, %v797
      %v897 = vsel %vm872, 0.0, %v798
      %v898 = vsel %vm872, 0.0, %v799
      %v899 = vsel %vm872, 0.0, %v800
      %v900 = vsel %vm872, 0.0, %v801
      %v901 = vsel %vm872, 0.0, %v802
      %v902 = vsel %vm872, 0.0, %v803
      %v903 = vsel %vm872, 0.0, %v804
      %v904 = vsel %vm872, 0.0, %v805
      %v905 = vsel %vm872, 0.0, %v806
      %v906 = vsel %vm872, 0.0, %v807
      %v907 = vsel %vm872, 0.0, %v808
      %v908 = vsel %vm872, 0.0, %v809
      %v909 = vsel %vm872, 0.0, %v810
      %v910 = vsel %vm872, 0.0, %v811
      %v911 = vsel %vm872, 0.0, %v812
      %v912 = vsel %vm872, 0.0, %v813
      %v913 = vsel %vm872, 0.0, %v814
      %v914 = vsel %vm872, 0.0, %v815
      %v915 = vsel %vm872, 0.0, %v816
      %v916 = vsel %vm872, 0.0, %v817
      %v917 = vsel %vm872, 0.0, %v818
      %v918 = vsel %vm872, 0.0, %v819
      %v919 = vsel %vm872, 0.0, %v820
      %v920 = vsel %vm872, 0.0, %v821
      %v921 = vsel %vm872, 0.0, %v822
      %v922 = vsel %vm872, %v774, 0.0
      %v923 = vsel %vm872, %v775, 0.0
      %v924 = vsel %vm872, %v776, 0.0
      %v925 = vsel %vm872, %v777, 0.0
      %v926 = vsel %vm872, %v778, 0.0
      %v927 = vsel %vm872, %v779, 0.0
      %v928 = vsel %vm872, %v780, 0.0
      %v929 = vsel %vm872, %v781, 0.0
      %v930 = vsel %vm872, %v782, 0.0
      %v931 = vsel %vm872, %v783, 0.0
      %v932 = vsel %vm872, %v784, 0.0
      %v933 = vsel %vm872, %v785, 0.0
      %v934 = vsel %vm872, %v786, 0.0
      %v935 = vsel %vm872, %v787, 0.0
      %v936 = vsel %vm872, %v788, 0.0
      %v937 = vsel %vm872, %v789, 0.0
      %v938 = vsel %vm872, %v790, 0.0
      %v939 = vsel %vm872, %v791, 0.0
      %v940 = vsel %vm872, %v792, 0.0
      %v941 = vsel %vm872, %v793, 0.0
      %v942 = vsel %vm872, %v794, 0.0
      %v943 = vsel %vm872, %v795, 0.0
      %v944 = vsel %vm872, %v796, 0.0
      %v945 = vsel %vm872, %v797, 0.0
      %v946 = vsel %vm872, %v798, 0.0
      %v947 = vsel %vm872, %v799, 0.0
      %v948 = vsel %vm872, %v800, 0.0
      %v949 = vsel %vm872, %v801, 0.0
      %v950 = vsel %vm872, %v802, 0.0
      %v951 = vsel %vm872, %v803, 0.0
      %v952 = vsel %vm872, %v804, 0.0
      %v953 = vsel %vm872, %v805, 0.0
      %v954 = vsel %vm872, %v806, 0.0
      %v955 = vsel %vm872, %v807, 0.0
      %v956 = vsel %vm872, %v808, 0.0
      %v957 = vsel %vm872, %v809, 0.0
      %v958 = vsel %vm872, %v810, 0.0
      %v959 = vsel %vm872, %v811, 0.0
      %v960 = vsel %vm872, %v812, 0.0
      %v961 = vsel %vm872, %v813, 0.0
      %v962 = vsel %vm872, %v814, 0.0
      %v963 = vsel %vm872, %v815, 0.0
      %v964 = vsel %vm872, %v816, 0.0
      %v965 = vsel %vm872, %v817, 0.0
      %v966 = vsel %vm872, %v818, 0.0
      %v967 = vsel %vm872, %v819, 0.0
      %v968 = vsel %vm872, %v820, 0.0
      %v969 = vsel %vm872, %v821, 0.0
      %v970 = vsel %vm872, %v822, 0.0
      %vm1029 = vcmask 1046528
      %v1030 = vrot.slane %v873, 1
      %v1031 = vrot.slane %v922, 1
      %v1032 = vsel %vm1029, %v1030, %v1031
      %v1033 = vrot.slane %v874, 1
      %v1034 = vrot.slane %v923, 1
      %v1035 = vsel %vm1029, %v1033, %v1034
      %v1036 = vrot.slane %v875, 1
      %v1037 = vrot.slane %v924, 1
      %v1038 = vsel %vm1029, %v1036, %v1037
      %v1039 = vrot.slane %v876, 1
      %v1040 = vrot.slane %v925, 1
      %v1041 = vsel %vm1029, %v1039, %v1040
      %v1042 = vrot.slane %v877, 1
      %v1043 = vrot.slane %v926, 1
      %v1044 = vsel %vm1029, %v1042, %v1043
      %v1045 = vrot.slane %v878, 1
      %v1046 = vrot.slane %v927, 1
      %v1047 = vsel %vm1029, %v1045, %v1046
      %v1048 = vrot.slane %v879, 1
      %v1049 = vrot.slane %v928, 1
      %v1050 = vsel %vm1029, %v1048, %v1049
      %v1051 = vrot.slane %v880, 1
      %v1052 = vrot.slane %v929, 1
      %v1053 = vsel %vm1029, %v1051, %v1052
      %v1054 = vrot.slane %v882, 1
      %v1055 = vrot.slane %v931, 1
      %v1056 = vsel %vm1029, %v1054, %v1055
      %v1057 = vrot.slane %v883, 1
      %v1058 = vrot.slane %v932, 1
      %v1059 = vsel %vm1029, %v1057, %v1058
      %v1060 = vrot.slane %v884, 1
      %v1061 = vrot.slane %v933, 1
      %v1062 = vsel %vm1029, %v1060, %v1061
      %v1063 = vrot.slane %v885, 1
      %v1064 = vrot.slane %v934, 1
      %v1065 = vsel %vm1029, %v1063, %v1064
      %v1066 = vrot.slane %v886, 1
      %v1067 = vrot.slane %v935, 1
      %v1068 = vsel %vm1029, %v1066, %v1067
      %v1069 = vrot.slane %v887, 1
      %v1070 = vrot.slane %v936, 1
      %v1071 = vsel %vm1029, %v1069, %v1070
      %v1072 = vrot.slane %v888, 1
      %v1073 = vrot.slane %v937, 1
      %v1074 = vsel %vm1029, %v1072, %v1073
      %v1075 = vrot.slane %v890, 1
      %v1076 = vrot.slane %v939, 1
      %v1077 = vsel %vm1029, %v1075, %v1076
      %v1078 = vrot.slane %v891, 1
      %v1079 = vrot.slane %v940, 1
      %v1080 = vsel %vm1029, %v1078, %v1079
      %v1081 = vrot.slane %v892, 1
      %v1082 = vrot.slane %v941, 1
      %v1083 = vsel %vm1029, %v1081, %v1082
      %v1084 = vrot.slane %v893, 1
      %v1085 = vrot.slane %v942, 1
      %v1086 = vsel %vm1029, %v1084, %v1085
      %v1087 = vrot.slane %v894, 1
      %v1088 = vrot.slane %v943, 1
      %v1089 = vsel %vm1029, %v1087, %v1088
      %v1090 = vrot.slane %v895, 1
      %v1091 = vrot.slane %v944, 1
      %v1092 = vsel %vm1029, %v1090, %v1091
      %v1093 = vrot.slane %v896, 1
      %v1094 = vrot.slane %v945, 1
      %v1095 = vsel %vm1029, %v1093, %v1094
      %v1096 = vrot.slane %v898, 1
      %v1097 = vrot.slane %v947, 1
      %v1098 = vsel %vm1029, %v1096, %v1097
      %v1099 = vrot.slane %v899, 1
      %v1100 = vrot.slane %v948, 1
      %v1101 = vsel %vm1029, %v1099, %v1100
      %v1102 = vrot.slane %v900, 1
      %v1103 = vrot.slane %v949, 1
      %v1104 = vsel %vm1029, %v1102, %v1103
      %v1105 = vrot.slane %v901, 1
      %v1106 = vrot.slane %v950, 1
      %v1107 = vsel %vm1029, %v1105, %v1106
      %v1108 = vrot.slane %v902, 1
      %v1109 = vrot.slane %v951, 1
      %v1110 = vsel %vm1029, %v1108, %v1109
      %v1111 = vrot.slane %v903, 1
      %v1112 = vrot.slane %v952, 1
      %v1113 = vsel %vm1029, %v1111, %v1112
      %v1114 = vrot.slane %v904, 1
      %v1115 = vrot.slane %v953, 1
      %v1116 = vsel %vm1029, %v1114, %v1115
      %vm1117 = vcmask 1045504
      %v1118 = vrot.slane %v873, 2
      %v1119 = vrot.slane %v922, 2
      %v1120 = vsel %vm1117, %v1118, %v1119
      %v1121 = vrot.slane %v874, 2
      %v1122 = vrot.slane %v923, 2
      %v1123 = vsel %vm1117, %v1121, %v1122
      %v1124 = vrot.slane %v875, 2
      %v1125 = vrot.slane %v924, 2
      %v1126 = vsel %vm1117, %v1124, %v1125
      %v1127 = vrot.slane %v876, 2
      %v1128 = vrot.slane %v925, 2
      %v1129 = vsel %vm1117, %v1127, %v1128
      %v1130 = vrot.slane %v877, 2
      %v1131 = vrot.slane %v926, 2
      %v1132 = vsel %vm1117, %v1130, %v1131
      %v1133 = vrot.slane %v878, 2
      %v1134 = vrot.slane %v927, 2
      %v1135 = vsel %vm1117, %v1133, %v1134
      %v1136 = vrot.slane %v879, 2
      %v1137 = vrot.slane %v928, 2
      %v1138 = vsel %vm1117, %v1136, %v1137
      %v1139 = vrot.slane %v880, 2
      %v1140 = vrot.slane %v929, 2
      %v1141 = vsel %vm1117, %v1139, %v1140
      %v1142 = vrot.slane %v882, 2
      %v1143 = vrot.slane %v931, 2
      %v1144 = vsel %vm1117, %v1142, %v1143
      %v1145 = vrot.slane %v883, 2
      %v1146 = vrot.slane %v932, 2
      %v1147 = vsel %vm1117, %v1145, %v1146
      %v1148 = vrot.slane %v884, 2
      %v1149 = vrot.slane %v933, 2
      %v1150 = vsel %vm1117, %v1148, %v1149
      %v1151 = vrot.slane %v885, 2
      %v1152 = vrot.slane %v934, 2
      %v1153 = vsel %vm1117, %v1151, %v1152
      %v1154 = vrot.slane %v886, 2
      %v1155 = vrot.slane %v935, 2
      %v1156 = vsel %vm1117, %v1154, %v1155
      %v1157 = vrot.slane %v887, 2
      %v1158 = vrot.slane %v936, 2
      %v1159 = vsel %vm1117, %v1157, %v1158
      %v1160 = vrot.slane %v888, 2
      %v1161 = vrot.slane %v937, 2
      %v1162 = vsel %vm1117, %v1160, %v1161
      %v1163 = vrot.slane %v890, 2
      %v1164 = vrot.slane %v939, 2
      %v1165 = vsel %vm1117, %v1163, %v1164
      %v1166 = vrot.slane %v891, 2
      %v1167 = vrot.slane %v940, 2
      %v1168 = vsel %vm1117, %v1166, %v1167
      %v1169 = vrot.slane %v892, 2
      %v1170 = vrot.slane %v941, 2
      %v1171 = vsel %vm1117, %v1169, %v1170
      %v1172 = vrot.slane %v893, 2
      %v1173 = vrot.slane %v942, 2
      %v1174 = vsel %vm1117, %v1172, %v1173
      %v1175 = vrot.slane %v894, 2
      %v1176 = vrot.slane %v943, 2
      %v1177 = vsel %vm1117, %v1175, %v1176
      %v1178 = vrot.slane %v895, 2
      %v1179 = vrot.slane %v944, 2
      %v1180 = vsel %vm1117, %v1178, %v1179
      %v1181 = vrot.slane %v896, 2
      %v1182 = vrot.slane %v945, 2
      %v1183 = vsel %vm1117, %v1181, %v1182
      %v1184 = vrot.slane %v898, 2
      %v1185 = vrot.slane %v947, 2
      %v1186 = vsel %vm1117, %v1184, %v1185
      %v1187 = vrot.slane %v899, 2
      %v1188 = vrot.slane %v948, 2
      %v1189 = vsel %vm1117, %v1187, %v1188
      %v1190 = vrot.slane %v900, 2
      %v1191 = vrot.slane %v949, 2
      %v1192 = vsel %vm1117, %v1190, %v1191
      %v1193 = vrot.slane %v901, 2
      %v1194 = vrot.slane %v950, 2
      %v1195 = vsel %vm1117, %v1193, %v1194
      %v1196 = vrot.slane %v902, 2
      %v1197 = vrot.slane %v951, 2
      %v1198 = vsel %vm1117, %v1196, %v1197
      %v1199 = vrot.slane %v903, 2
      %v1200 = vrot.slane %v952, 2
      %v1201 = vsel %vm1117, %v1199, %v1200
      %v1202 = vrot.slane %v904, 2
      %v1203 = vrot.slane %v953, 2
      %v1204 = vsel %vm1117, %v1202, %v1203
      %v1213 = vrot.slane %v881, 1
      %v1214 = vrot.slane %v930, 1
      %v1215 = vsel %vm1029, %v1213, %v1214
      %v1216 = vrot.slane %v889, 1
      %v1217 = vrot.slane %v938, 1
      %v1218 = vsel %vm1029, %v1216, %v1217
      %v1219 = vrot.slane %v897, 1
      %v1220 = vrot.slane %v946, 1
      %v1221 = vsel %vm1029, %v1219, %v1220
      %v1222 = vrot.slane %v905, 1
      %v1223 = vrot.slane %v954, 1
      %v1224 = vsel %vm1029, %v1222, %v1223
      %v1225 = vrot.slane %v881, 2
      %v1226 = vrot.slane %v930, 2
      %v1227 = vsel %vm1117, %v1225, %v1226
      %v1228 = vrot.slane %v889, 2
      %v1229 = vrot.slane %v938, 2
      %v1230 = vsel %vm1117, %v1228, %v1229
      %v1231 = vrot.slane %v897, 2
      %v1232 = vrot.slane %v946, 2
      %v1233 = vsel %vm1117, %v1231, %v1232
      %v1234 = vrot.slane %v905, 2
      %v1235 = vrot.slane %v954, 2
      %v1236 = vsel %vm1117, %v1234, %v1235
      %v1251 = vrot.slane %v906, 1
      %v1252 = vrot.slane %v955, 1
      %v1253 = vsel %vm1029, %v1251, %v1252
      %v1254 = vrot.slane %v907, 1
      %v1255 = vrot.slane %v956, 1
      %v1256 = vsel %vm1029, %v1254, %v1255
      %v1257 = vrot.slane %v908, 1
      %v1258 = vrot.slane %v957, 1
      %v1259 = vsel %vm1029, %v1257, %v1258
      %v1260 = vrot.slane %v909, 1
      %v1261 = vrot.slane %v958, 1
      %v1262 = vsel %vm1029, %v1260, %v1261
      %v1263 = vrot.slane %v910, 1
      %v1264 = vrot.slane %v959, 1
      %v1265 = vsel %vm1029, %v1263, %v1264
      %v1266 = vrot.slane %v911, 1
      %v1267 = vrot.slane %v960, 1
      %v1268 = vsel %vm1029, %v1266, %v1267
      %v1269 = vrot.slane %v912, 1
      %v1270 = vrot.slane %v961, 1
      %v1271 = vsel %vm1029, %v1269, %v1270
      %v1272 = vrot.slane %v906, 2
      %v1273 = vrot.slane %v955, 2
      %v1274 = vsel %vm1117, %v1272, %v1273
      %v1275 = vrot.slane %v907, 2
      %v1276 = vrot.slane %v956, 2
      %v1277 = vsel %vm1117, %v1275, %v1276
      %v1278 = vrot.slane %v908, 2
      %v1279 = vrot.slane %v957, 2
      %v1280 = vsel %vm1117, %v1278, %v1279
      %v1281 = vrot.slane %v909, 2
      %v1282 = vrot.slane %v958, 2
      %v1283 = vsel %vm1117, %v1281, %v1282
      %v1284 = vrot.slane %v910, 2
      %v1285 = vrot.slane %v959, 2
      %v1286 = vsel %vm1117, %v1284, %v1285
      %v1287 = vrot.slane %v911, 2
      %v1288 = vrot.slane %v960, 2
      %v1289 = vsel %vm1117, %v1287, %v1288
      %v1290 = vrot.slane %v912, 2
      %v1291 = vrot.slane %v961, 2
      %v1292 = vsel %vm1117, %v1290, %v1291
      %v1295 = vrot.slane %v913, 1
      %v1296 = vrot.slane %v962, 1
      %v1297 = vsel %vm1029, %v1295, %v1296
      %v1298 = vrot.slane %v913, 2
      %v1299 = vrot.slane %v962, 2
      %v1300 = vsel %vm1117, %v1298, %v1299
      %v1344 = vrot.slane %v914, 1
      %v1345 = vrot.slane %v963, 1
      %v1346 = vsel %vm1029, %v1344, %v1345
      %v1347 = vrot.slane %v915, 1
      %v1348 = vrot.slane %v964, 1
      %v1349 = vsel %vm1029, %v1347, %v1348
      %v1350 = vrot.slane %v916, 1
      %v1351 = vrot.slane %v965, 1
      %v1352 = vsel %vm1029, %v1350, %v1351
      %v1353 = vrot.slane %v917, 1
      %v1354 = vrot.slane %v966, 1
      %v1355 = vsel %vm1029, %v1353, %v1354
      %v1356 = vrot.slane %v918, 1
      %v1357 = vrot.slane %v967, 1
      %v1358 = vsel %vm1029, %v1356, %v1357
      %v1359 = vrot.slane %v919, 1
      %v1360 = vrot.slane %v968, 1
      %v1361 = vsel %vm1029, %v1359, %v1360
      %v1362 = vrot.slane %v920, 1
      %v1363 = vrot.slane %v969, 1
      %v1364 = vsel %vm1029, %v1362, %v1363
      %v1365 = vrot.slane %v914, 2
      %v1366 = vrot.slane %v963, 2
      %v1367 = vsel %vm1117, %v1365, %v1366
      %v1368 = vrot.slane %v915, 2
      %v1369 = vrot.slane %v964, 2
      %v1370 = vsel %vm1117, %v1368, %v1369
      %v1371 = vrot.slane %v916, 2
      %v1372 = vrot.slane %v965, 2
      %v1373 = vsel %vm1117, %v1371, %v1372
      %v1374 = vrot.slane %v917, 2
      %v1375 = vrot.slane %v966, 2
      %v1376 = vsel %vm1117, %v1374, %v1375
      %v1377 = vrot.slane %v918, 2
      %v1378 = vrot.slane %v967, 2
      %v1379 = vsel %vm1117, %v1377, %v1378
      %v1380 = vrot.slane %v919, 2
      %v1381 = vrot.slane %v968, 2
      %v1382 = vsel %vm1117, %v1380, %v1381
      %v1383 = vrot.slane %v920, 2
      %v1384 = vrot.slane %v969, 2
      %v1385 = vsel %vm1117, %v1383, %v1384
      %v1388 = vrot.slane %v921, 1
      %v1389 = vrot.slane %v970, 1
      %v1390 = vsel %vm1029, %v1388, %v1389
      %v1391 = vrot.slane %v921, 2
      %v1392 = vrot.slane %v970, 2
      %v1393 = vsel %vm1117, %v1391, %v1392
      %1394 = vrot.lane.b32.xlu0 %v1032, 8
      %v1395 = vpop.permute.xlu0 %1394
      %1396 = vrot.lane.b32.xlu0 %v1035, 8
      %v1397 = vpop.permute.xlu0 %1396
      %1398 = vrot.lane.b32.xlu0 %v1038, 8
      %v1399 = vpop.permute.xlu0 %1398
      %1400 = vrot.lane.b32.xlu0 %v1041, 8
      %v1401 = vpop.permute.xlu0 %1400
      %1402 = vrot.lane.b32.xlu0 %v1044, 8
      %v1403 = vpop.permute.xlu0 %1402
      %1404 = vrot.lane.b32.xlu0 %v1047, 8
      %v1405 = vpop.permute.xlu0 %1404
      %1406 = vrot.lane.b32.xlu0 %v1050, 8
      %v1407 = vpop.permute.xlu0 %1406
      %1408 = vrot.lane.b32.xlu0 %v1053, 8
      %v1409 = vpop.permute.xlu0 %1408
      %1410 = vrot.lane.b32.xlu0 %v1056, 8
      %v1411 = vpop.permute.xlu0 %1410
      %1412 = vrot.lane.b32.xlu0 %v1059, 8
      %v1413 = vpop.permute.xlu0 %1412
      %1414 = vrot.lane.b32.xlu0 %v1062, 8
      %v1415 = vpop.permute.xlu0 %1414
      %1416 = vrot.lane.b32.xlu0 %v1065, 8
      %v1417 = vpop.permute.xlu0 %1416
      %1418 = vrot.lane.b32.xlu0 %v1068, 8
      %v1419 = vpop.permute.xlu0 %1418
      %1420 = vrot.lane.b32.xlu0 %v1071, 8
      %v1421 = vpop.permute.xlu0 %1420
      %1422 = vrot.lane.b32.xlu0 %v1074, 8
      %v1423 = vpop.permute.xlu0 %1422
      %1424 = vrot.lane.b32.xlu0 %v1077, 8
      %v1425 = vpop.permute.xlu0 %1424
      %1426 = vrot.lane.b32.xlu0 %v1080, 8
      %v1427 = vpop.permute.xlu0 %1426
      %1428 = vrot.lane.b32.xlu0 %v1083, 8
      %v1429 = vpop.permute.xlu0 %1428
      %1430 = vrot.lane.b32.xlu0 %v1086, 8
      %v1431 = vpop.permute.xlu0 %1430
      %1432 = vrot.lane.b32.xlu0 %v1089, 8
      %v1433 = vpop.permute.xlu0 %1432
      %1434 = vrot.lane.b32.xlu0 %v1092, 8
      %v1435 = vpop.permute.xlu0 %1434
      %1436 = vrot.lane.b32.xlu0 %v1095, 8
      %v1437 = vpop.permute.xlu0 %1436
      %1438 = vrot.lane.b32.xlu0 %v1098, 8
      %v1439 = vpop.permute.xlu0 %1438
      %1440 = vrot.lane.b32.xlu0 %v1101, 8
      %v1441 = vpop.permute.xlu0 %1440
      %1442 = vrot.lane.b32.xlu0 %v1104, 8
      %v1443 = vpop.permute.xlu0 %1442
      %1444 = vrot.lane.b32.xlu0 %v1107, 8
      %v1445 = vpop.permute.xlu0 %1444
      %1446 = vrot.lane.b32.xlu0 %v1110, 8
      %v1447 = vpop.permute.xlu0 %1446
      %1448 = vrot.lane.b32.xlu0 %v1113, 8
      %v1449 = vpop.permute.xlu0 %1448
      %1450 = vrot.lane.b32.xlu0 %v1116, 8
      %v1451 = vpop.permute.xlu0 %1450
      %1481 = vrot.lane.b32.xlu0 %v1120, 16
      %v1482 = vpop.permute.xlu0 %1481
      %1483 = vrot.lane.b32.xlu0 %v1123, 16
      %v1484 = vpop.permute.xlu0 %1483
      %1485 = vrot.lane.b32.xlu0 %v1126, 16
      %v1486 = vpop.permute.xlu0 %1485
      %1487 = vrot.lane.b32.xlu0 %v1129, 16
      %v1488 = vpop.permute.xlu0 %1487
      %1489 = vrot.lane.b32.xlu0 %v1132, 16
      %v1490 = vpop.permute.xlu0 %1489
      %1491 = vrot.lane.b32.xlu0 %v1135, 16
      %v1492 = vpop.permute.xlu0 %1491
      %1493 = vrot.lane.b32.xlu0 %v1138, 16
      %v1494 = vpop.permute.xlu0 %1493
      %1495 = vrot.lane.b32.xlu0 %v1141, 16
      %v1496 = vpop.permute.xlu0 %1495
      %1497 = vrot.lane.b32.xlu0 %v1144, 16
      %v1498 = vpop.permute.xlu0 %1497
      %1499 = vrot.lane.b32.xlu0 %v1147, 16
      %v1500 = vpop.permute.xlu0 %1499
      %1501 = vrot.lane.b32.xlu0 %v1150, 16
      %v1502 = vpop.permute.xlu0 %1501
      %1503 = vrot.lane.b32.xlu0 %v1153, 16
      %v1504 = vpop.permute.xlu0 %1503
      %1505 = vrot.lane.b32.xlu0 %v1156, 16
      %v1506 = vpop.permute.xlu0 %1505
      %1507 = vrot.lane.b32.xlu0 %v1159, 16
      %v1508 = vpop.permute.xlu0 %1507
      %1509 = vrot.lane.b32.xlu0 %v1162, 16
      %v1510 = vpop.permute.xlu0 %1509
      %1511 = vrot.lane.b32.xlu0 %v1165, 16
      %v1512 = vpop.permute.xlu0 %1511
      %1513 = vrot.lane.b32.xlu0 %v1168, 16
      %v1514 = vpop.permute.xlu0 %1513
      %1515 = vrot.lane.b32.xlu0 %v1171, 16
      %v1516 = vpop.permute.xlu0 %1515
      %1517 = vrot.lane.b32.xlu0 %v1174, 16
      %v1518 = vpop.permute.xlu0 %1517
      %1519 = vrot.lane.b32.xlu0 %v1177, 16
      %v1520 = vpop.permute.xlu0 %1519
      %1521 = vrot.lane.b32.xlu0 %v1180, 16
      %v1522 = vpop.permute.xlu0 %1521
      %1523 = vrot.lane.b32.xlu0 %v1183, 16
      %v1524 = vpop.permute.xlu0 %1523
      %1525 = vrot.lane.b32.xlu0 %v1186, 16
      %v1526 = vpop.permute.xlu0 %1525
      %1527 = vrot.lane.b32.xlu0 %v1189, 16
      %v1528 = vpop.permute.xlu0 %1527
      %1529 = vrot.lane.b32.xlu0 %v1192, 16
      %v1530 = vpop.permute.xlu0 %1529
      %1531 = vrot.lane.b32.xlu0 %v1195, 16
      %v1532 = vpop.permute.xlu0 %1531
      %1533 = vrot.lane.b32.xlu0 %v1198, 16
      %v1534 = vpop.permute.xlu0 %1533
      %1535 = vrot.lane.b32.xlu0 %v1201, 16
      %v1536 = vpop.permute.xlu0 %1535
      %1537 = vrot.lane.b32.xlu0 %v1204, 16
      %v1538 = vpop.permute.xlu0 %1537
      %1568 = vrot.lane.b32.xlu0 %v874, 24
      %v1569 = vpop.permute.xlu0 %1568
      %1570 = vrot.lane.b32.xlu0 %v875, 24
      %v1571 = vpop.permute.xlu0 %1570
      %1572 = vrot.lane.b32.xlu0 %v876, 24
      %v1573 = vpop.permute.xlu0 %1572
      %1574 = vrot.lane.b32.xlu0 %v877, 24
      %v1575 = vpop.permute.xlu0 %1574
      %1576 = vrot.lane.b32.xlu0 %v878, 24
      %v1577 = vpop.permute.xlu0 %1576
      %1578 = vrot.lane.b32.xlu0 %v879, 24
      %v1579 = vpop.permute.xlu0 %1578
      %1580 = vrot.lane.b32.xlu0 %v880, 24
      %v1581 = vpop.permute.xlu0 %1580
      %1582 = vrot.lane.b32.xlu0 %v881, 24
      %v1583 = vpop.permute.xlu0 %1582
      %1584 = vrot.lane.b32.xlu0 %v882, 24
      %v1585 = vpop.permute.xlu0 %1584
      %1586 = vrot.lane.b32.xlu0 %v883, 24
      %v1587 = vpop.permute.xlu0 %1586
      %1588 = vrot.lane.b32.xlu0 %v884, 24
      %v1589 = vpop.permute.xlu0 %1588
      %1590 = vrot.lane.b32.xlu0 %v885, 24
      %v1591 = vpop.permute.xlu0 %1590
      %1592 = vrot.lane.b32.xlu0 %v886, 24
      %v1593 = vpop.permute.xlu0 %1592
      %1594 = vrot.lane.b32.xlu0 %v887, 24
      %v1595 = vpop.permute.xlu0 %1594
      %1596 = vrot.lane.b32.xlu0 %v888, 24
      %v1597 = vpop.permute.xlu0 %1596
      %1598 = vrot.lane.b32.xlu0 %v889, 24
      %v1599 = vpop.permute.xlu0 %1598
      %1600 = vrot.lane.b32.xlu0 %v890, 24
      %v1601 = vpop.permute.xlu0 %1600
      %1602 = vrot.lane.b32.xlu0 %v891, 24
      %v1603 = vpop.permute.xlu0 %1602
      %1604 = vrot.lane.b32.xlu0 %v892, 24
      %v1605 = vpop.permute.xlu0 %1604
      %1606 = vrot.lane.b32.xlu0 %v893, 24
      %v1607 = vpop.permute.xlu0 %1606
      %1608 = vrot.lane.b32.xlu0 %v894, 24
      %v1609 = vpop.permute.xlu0 %1608
      %1610 = vrot.lane.b32.xlu0 %v895, 24
      %v1611 = vpop.permute.xlu0 %1610
      %1612 = vrot.lane.b32.xlu0 %v896, 24
      %v1613 = vpop.permute.xlu0 %1612
      %1614 = vrot.lane.b32.xlu0 %v897, 24
      %v1615 = vpop.permute.xlu0 %1614
      %1616 = vrot.lane.b32.xlu0 %v898, 24
      %v1617 = vpop.permute.xlu0 %1616
      %1618 = vrot.lane.b32.xlu0 %v899, 24
      %v1619 = vpop.permute.xlu0 %1618
      %1620 = vrot.lane.b32.xlu0 %v900, 24
      %v1621 = vpop.permute.xlu0 %1620
      %1622 = vrot.lane.b32.xlu0 %v901, 24
      %v1623 = vpop.permute.xlu0 %1622
      %1624 = vrot.lane.b32.xlu0 %v902, 24
      %v1625 = vpop.permute.xlu0 %1624
      %1626 = vrot.lane.b32.xlu0 %v903, 24
      %v1627 = vpop.permute.xlu0 %1626
      %1628 = vrot.lane.b32.xlu0 %v904, 24
      %v1629 = vpop.permute.xlu0 %1628
      %1630 = vrot.lane.b32.xlu0 %v905, 24
      %v1631 = vpop.permute.xlu0 %1630
      %1664 = vrot.lane.b32.xlu0 %v1035, 32
      %v1665 = vpop.permute.xlu0 %1664
      %1666 = vrot.lane.b32.xlu0 %v1038, 32
      %v1667 = vpop.permute.xlu0 %1666
      %1668 = vrot.lane.b32.xlu0 %v1041, 32
      %v1669 = vpop.permute.xlu0 %1668
      %1670 = vrot.lane.b32.xlu0 %v1044, 32
      %v1671 = vpop.permute.xlu0 %1670
      %1672 = vrot.lane.b32.xlu0 %v1047, 32
      %v1673 = vpop.permute.xlu0 %1672
      %1674 = vrot.lane.b32.xlu0 %v1050, 32
      %v1675 = vpop.permute.xlu0 %1674
      %1676 = vrot.lane.b32.xlu0 %v1053, 32
      %v1677 = vpop.permute.xlu0 %1676
      %1678 = vrot.lane.b32.xlu0 %v1215, 32
      %v1679 = vpop.permute.xlu0 %1678
      %1680 = vrot.lane.b32.xlu0 %v1056, 32
      %v1681 = vpop.permute.xlu0 %1680
      %1682 = vrot.lane.b32.xlu0 %v1059, 32
      %v1683 = vpop.permute.xlu0 %1682
      %1684 = vrot.lane.b32.xlu0 %v1062, 32
      %v1685 = vpop.permute.xlu0 %1684
      %1686 = vrot.lane.b32.xlu0 %v1065, 32
      %v1687 = vpop.permute.xlu0 %1686
      %1688 = vrot.lane.b32.xlu0 %v1068, 32
      %v1689 = vpop.permute.xlu0 %1688
      %1690 = vrot.lane.b32.xlu0 %v1071, 32
      %v1691 = vpop.permute.xlu0 %1690
      %1692 = vrot.lane.b32.xlu0 %v1074, 32
      %v1693 = vpop.permute.xlu0 %1692
      %1694 = vrot.lane.b32.xlu0 %v1218, 32
      %v1695 = vpop.permute.xlu0 %1694
      %1696 = vrot.lane.b32.xlu0 %v1077, 32
      %v1697 = vpop.permute.xlu0 %1696
      %1698 = vrot.lane.b32.xlu0 %v1080, 32
      %v1699 = vpop.permute.xlu0 %1698
      %1700 = vrot.lane.b32.xlu0 %v1083, 32
      %v1701 = vpop.permute.xlu0 %1700
      %1702 = vrot.lane.b32.xlu0 %v1086, 32
      %v1703 = vpop.permute.xlu0 %1702
      %1704 = vrot.lane.b32.xlu0 %v1089, 32
      %v1705 = vpop.permute.xlu0 %1704
      %1706 = vrot.lane.b32.xlu0 %v1092, 32
      %v1707 = vpop.permute.xlu0 %1706
      %1708 = vrot.lane.b32.xlu0 %v1095, 32
      %v1709 = vpop.permute.xlu0 %1708
      %1710 = vrot.lane.b32.xlu0 %v1221, 32
      %v1711 = vpop.permute.xlu0 %1710
      %1712 = vrot.lane.b32.xlu0 %v1098, 32
      %v1713 = vpop.permute.xlu0 %1712
      %1714 = vrot.lane.b32.xlu0 %v1101, 32
      %v1715 = vpop.permute.xlu0 %1714
      %1716 = vrot.lane.b32.xlu0 %v1104, 32
      %v1717 = vpop.permute.xlu0 %1716
      %1718 = vrot.lane.b32.xlu0 %v1107, 32
      %v1719 = vpop.permute.xlu0 %1718
      %1720 = vrot.lane.b32.xlu0 %v1110, 32
      %v1721 = vpop.permute.xlu0 %1720
      %1722 = vrot.lane.b32.xlu0 %v1113, 32
      %v1723 = vpop.permute.xlu0 %1722
      %1724 = vrot.lane.b32.xlu0 %v1116, 32
      %v1725 = vpop.permute.xlu0 %1724
      %1726 = vrot.lane.b32.xlu0 %v1224, 32
      %v1727 = vpop.permute.xlu0 %1726
      %1760 = vrot.lane.b32.xlu0 %v1123, 40
      %v1761 = vpop.permute.xlu0 %1760
      %1762 = vrot.lane.b32.xlu0 %v1126, 40
      %v1763 = vpop.permute.xlu0 %1762
      %1764 = vrot.lane.b32.xlu0 %v1129, 40
      %v1765 = vpop.permute.xlu0 %1764
      %1766 = vrot.lane.b32.xlu0 %v1132, 40
      %v1767 = vpop.permute.xlu0 %1766
      %1768 = vrot.lane.b32.xlu0 %v1135, 40
      %v1769 = vpop.permute.xlu0 %1768
      %1770 = vrot.lane.b32.xlu0 %v1138, 40
      %v1771 = vpop.permute.xlu0 %1770
      %1772 = vrot.lane.b32.xlu0 %v1141, 40
      %v1773 = vpop.permute.xlu0 %1772
      %1774 = vrot.lane.b32.xlu0 %v1227, 40
      %v1775 = vpop.permute.xlu0 %1774
      %1776 = vrot.lane.b32.xlu0 %v1144, 40
      %v1777 = vpop.permute.xlu0 %1776
      %1778 = vrot.lane.b32.xlu0 %v1147, 40
      %v1779 = vpop.permute.xlu0 %1778
      %1780 = vrot.lane.b32.xlu0 %v1150, 40
      %v1781 = vpop.permute.xlu0 %1780
      %1782 = vrot.lane.b32.xlu0 %v1153, 40
      %v1783 = vpop.permute.xlu0 %1782
      %1784 = vrot.lane.b32.xlu0 %v1156, 40
      %v1785 = vpop.permute.xlu0 %1784
      %1786 = vrot.lane.b32.xlu0 %v1159, 40
      %v1787 = vpop.permute.xlu0 %1786
      %1788 = vrot.lane.b32.xlu0 %v1162, 40
      %v1789 = vpop.permute.xlu0 %1788
      %1790 = vrot.lane.b32.xlu0 %v1230, 40
      %v1791 = vpop.permute.xlu0 %1790
      %1792 = vrot.lane.b32.xlu0 %v1165, 40
      %v1793 = vpop.permute.xlu0 %1792
      %1794 = vrot.lane.b32.xlu0 %v1168, 40
      %v1795 = vpop.permute.xlu0 %1794
      %1796 = vrot.lane.b32.xlu0 %v1171, 40
      %v1797 = vpop.permute.xlu0 %1796
      %1798 = vrot.lane.b32.xlu0 %v1174, 40
      %v1799 = vpop.permute.xlu0 %1798
      %1800 = vrot.lane.b32.xlu0 %v1177, 40
      %v1801 = vpop.permute.xlu0 %1800
      %1802 = vrot.lane.b32.xlu0 %v1180, 40
      %v1803 = vpop.permute.xlu0 %1802
      %1804 = vrot.lane.b32.xlu0 %v1183, 40
      %v1805 = vpop.permute.xlu0 %1804
      %1806 = vrot.lane.b32.xlu0 %v1233, 40
      %v1807 = vpop.permute.xlu0 %1806
      %1808 = vrot.lane.b32.xlu0 %v1186, 40
      %v1809 = vpop.permute.xlu0 %1808
      %1810 = vrot.lane.b32.xlu0 %v1189, 40
      %v1811 = vpop.permute.xlu0 %1810
      %1812 = vrot.lane.b32.xlu0 %v1192, 40
      %v1813 = vpop.permute.xlu0 %1812
      %1814 = vrot.lane.b32.xlu0 %v1195, 40
      %v1815 = vpop.permute.xlu0 %1814
      %1816 = vrot.lane.b32.xlu0 %v1198, 40
      %v1817 = vpop.permute.xlu0 %1816
      %1818 = vrot.lane.b32.xlu0 %v1201, 40
      %v1819 = vpop.permute.xlu0 %1818
      %1820 = vrot.lane.b32.xlu0 %v1204, 40
      %v1821 = vpop.permute.xlu0 %1820
      %1822 = vrot.lane.b32.xlu0 %v1236, 40
      %v1823 = vpop.permute.xlu0 %1822
      %1856 = vrot.lane.b32.xlu0 %v875, 48
      %v1857 = vpop.permute.xlu0 %1856
      %1858 = vrot.lane.b32.xlu0 %v876, 48
      %v1859 = vpop.permute.xlu0 %1858
      %1860 = vrot.lane.b32.xlu0 %v877, 48
      %v1861 = vpop.permute.xlu0 %1860
      %1862 = vrot.lane.b32.xlu0 %v878, 48
      %v1863 = vpop.permute.xlu0 %1862
      %1864 = vrot.lane.b32.xlu0 %v879, 48
      %v1865 = vpop.permute.xlu0 %1864
      %1866 = vrot.lane.b32.xlu0 %v880, 48
      %v1867 = vpop.permute.xlu0 %1866
      %1868 = vrot.lane.b32.xlu0 %v881, 48
      %v1869 = vpop.permute.xlu0 %1868
      %1870 = vrot.lane.b32.xlu0 %v873, 48
      %v1871 = vpop.permute.xlu0 %1870
      %1872 = vrot.lane.b32.xlu0 %v883, 48
      %v1873 = vpop.permute.xlu0 %1872
      %1874 = vrot.lane.b32.xlu0 %v884, 48
      %v1875 = vpop.permute.xlu0 %1874
      %1876 = vrot.lane.b32.xlu0 %v885, 48
      %v1877 = vpop.permute.xlu0 %1876
      %1878 = vrot.lane.b32.xlu0 %v886, 48
      %v1879 = vpop.permute.xlu0 %1878
      %1880 = vrot.lane.b32.xlu0 %v887, 48
      %v1881 = vpop.permute.xlu0 %1880
      %1882 = vrot.lane.b32.xlu0 %v888, 48
      %v1883 = vpop.permute.xlu0 %1882
      %1884 = vrot.lane.b32.xlu0 %v889, 48
      %v1885 = vpop.permute.xlu0 %1884
      %1886 = vrot.lane.b32.xlu0 %v891, 48
      %v1887 = vpop.permute.xlu0 %1886
      %1888 = vrot.lane.b32.xlu0 %v892, 48
      %v1889 = vpop.permute.xlu0 %1888
      %1890 = vrot.lane.b32.xlu0 %v893, 48
      %v1891 = vpop.permute.xlu0 %1890
      %1892 = vrot.lane.b32.xlu0 %v894, 48
      %v1893 = vpop.permute.xlu0 %1892
      %1894 = vrot.lane.b32.xlu0 %v895, 48
      %v1895 = vpop.permute.xlu0 %1894
      %1896 = vrot.lane.b32.xlu0 %v896, 48
      %v1897 = vpop.permute.xlu0 %1896
      %1898 = vrot.lane.b32.xlu0 %v897, 48
      %v1899 = vpop.permute.xlu0 %1898
      %1900 = vrot.lane.b32.xlu0 %v899, 48
      %v1901 = vpop.permute.xlu0 %1900
      %1902 = vrot.lane.b32.xlu0 %v900, 48
      %v1903 = vpop.permute.xlu0 %1902
      %1904 = vrot.lane.b32.xlu0 %v901, 48
      %v1905 = vpop.permute.xlu0 %1904
      %1906 = vrot.lane.b32.xlu0 %v902, 48
      %v1907 = vpop.permute.xlu0 %1906
      %1908 = vrot.lane.b32.xlu0 %v903, 48
      %v1909 = vpop.permute.xlu0 %1908
      %1910 = vrot.lane.b32.xlu0 %v904, 48
      %v1911 = vpop.permute.xlu0 %1910
      %1912 = vrot.lane.b32.xlu0 %v905, 48
      %v1913 = vpop.permute.xlu0 %1912
      %1943 = vrot.lane.b32.xlu0 %v1038, 56
      %v1944 = vpop.permute.xlu0 %1943
      %1945 = vrot.lane.b32.xlu0 %v1041, 56
      %v1946 = vpop.permute.xlu0 %1945
      %1947 = vrot.lane.b32.xlu0 %v1044, 56
      %v1948 = vpop.permute.xlu0 %1947
      %1949 = vrot.lane.b32.xlu0 %v1047, 56
      %v1950 = vpop.permute.xlu0 %1949
      %1951 = vrot.lane.b32.xlu0 %v1050, 56
      %v1952 = vpop.permute.xlu0 %1951
      %1953 = vrot.lane.b32.xlu0 %v1053, 56
      %v1954 = vpop.permute.xlu0 %1953
      %1955 = vrot.lane.b32.xlu0 %v1215, 56
      %v1956 = vpop.permute.xlu0 %1955
      %1957 = vrot.lane.b32.xlu0 %v1032, 56
      %v1958 = vpop.permute.xlu0 %1957
      %1959 = vrot.lane.b32.xlu0 %v1059, 56
      %v1960 = vpop.permute.xlu0 %1959
      %1961 = vrot.lane.b32.xlu0 %v1062, 56
      %v1962 = vpop.permute.xlu0 %1961
      %1963 = vrot.lane.b32.xlu0 %v1065, 56
      %v1964 = vpop.permute.xlu0 %1963
      %1965 = vrot.lane.b32.xlu0 %v1068, 56
      %v1966 = vpop.permute.xlu0 %1965
      %1967 = vrot.lane.b32.xlu0 %v1071, 56
      %v1968 = vpop.permute.xlu0 %1967
      %1969 = vrot.lane.b32.xlu0 %v1074, 56
      %v1970 = vpop.permute.xlu0 %1969
      %1971 = vrot.lane.b32.xlu0 %v1218, 56
      %v1972 = vpop.permute.xlu0 %1971
      %1973 = vrot.lane.b32.xlu0 %v1080, 56
      %v1974 = vpop.permute.xlu0 %1973
      %1975 = vrot.lane.b32.xlu0 %v1083, 56
      %v1976 = vpop.permute.xlu0 %1975
      %1977 = vrot.lane.b32.xlu0 %v1086, 56
      %v1978 = vpop.permute.xlu0 %1977
      %1979 = vrot.lane.b32.xlu0 %v1089, 56
      %v1980 = vpop.permute.xlu0 %1979
      %1981 = vrot.lane.b32.xlu0 %v1092, 56
      %v1982 = vpop.permute.xlu0 %1981
      %1983 = vrot.lane.b32.xlu0 %v1095, 56
      %v1984 = vpop.permute.xlu0 %1983
      %1985 = vrot.lane.b32.xlu0 %v1221, 56
      %v1986 = vpop.permute.xlu0 %1985
      %1987 = vrot.lane.b32.xlu0 %v1101, 56
      %v1988 = vpop.permute.xlu0 %1987
      %1989 = vrot.lane.b32.xlu0 %v1104, 56
      %v1990 = vpop.permute.xlu0 %1989
      %1991 = vrot.lane.b32.xlu0 %v1107, 56
      %v1992 = vpop.permute.xlu0 %1991
      %1993 = vrot.lane.b32.xlu0 %v1110, 56
      %v1994 = vpop.permute.xlu0 %1993
      %1995 = vrot.lane.b32.xlu0 %v1113, 56
      %v1996 = vpop.permute.xlu0 %1995
      %1997 = vrot.lane.b32.xlu0 %v1116, 56
      %v1998 = vpop.permute.xlu0 %1997
      %1999 = vrot.lane.b32.xlu0 %v1224, 56
      %v2000 = vpop.permute.xlu0 %1999
      %2030 = vrot.lane.b32.xlu0 %v1126, 64
      %v2031 = vpop.permute.xlu0 %2030
      %2032 = vrot.lane.b32.xlu0 %v1129, 64
      %v2033 = vpop.permute.xlu0 %2032
      %2034 = vrot.lane.b32.xlu0 %v1132, 64
      %v2035 = vpop.permute.xlu0 %2034
      %2036 = vrot.lane.b32.xlu0 %v1135, 64
      %v2037 = vpop.permute.xlu0 %2036
      %2038 = vrot.lane.b32.xlu0 %v1138, 64
      %v2039 = vpop.permute.xlu0 %2038
      %2040 = vrot.lane.b32.xlu0 %v1141, 64
      %v2041 = vpop.permute.xlu0 %2040
      %2042 = vrot.lane.b32.xlu0 %v1227, 64
      %v2043 = vpop.permute.xlu0 %2042
      %2044 = vrot.lane.b32.xlu0 %v1120, 64
      %v2045 = vpop.permute.xlu0 %2044
      %2046 = vrot.lane.b32.xlu0 %v1147, 64
      %v2047 = vpop.permute.xlu0 %2046
      %2048 = vrot.lane.b32.xlu0 %v1150, 64
      %v2049 = vpop.permute.xlu0 %2048
      %2050 = vrot.lane.b32.xlu0 %v1153, 64
      %v2051 = vpop.permute.xlu0 %2050
      %2052 = vrot.lane.b32.xlu0 %v1156, 64
      %v2053 = vpop.permute.xlu0 %2052
      %2054 = vrot.lane.b32.xlu0 %v1159, 64
      %v2055 = vpop.permute.xlu0 %2054
      %2056 = vrot.lane.b32.xlu0 %v1162, 64
      %v2057 = vpop.permute.xlu0 %2056
      %2058 = vrot.lane.b32.xlu0 %v1230, 64
      %v2059 = vpop.permute.xlu0 %2058
      %2060 = vrot.lane.b32.xlu0 %v1168, 64
      %v2061 = vpop.permute.xlu0 %2060
      %2062 = vrot.lane.b32.xlu0 %v1171, 64
      %v2063 = vpop.permute.xlu0 %2062
      %2064 = vrot.lane.b32.xlu0 %v1174, 64
      %v2065 = vpop.permute.xlu0 %2064
      %2066 = vrot.lane.b32.xlu0 %v1177, 64
      %v2067 = vpop.permute.xlu0 %2066
      %2068 = vrot.lane.b32.xlu0 %v1180, 64
      %v2069 = vpop.permute.xlu0 %2068
      %2070 = vrot.lane.b32.xlu0 %v1183, 64
      %v2071 = vpop.permute.xlu0 %2070
      %2072 = vrot.lane.b32.xlu0 %v1233, 64
      %v2073 = vpop.permute.xlu0 %2072
      %2074 = vrot.lane.b32.xlu0 %v1189, 64
      %v2075 = vpop.permute.xlu0 %2074
      %2076 = vrot.lane.b32.xlu0 %v1192, 64
      %v2077 = vpop.permute.xlu0 %2076
      %2078 = vrot.lane.b32.xlu0 %v1195, 64
      %v2079 = vpop.permute.xlu0 %2078
      %2080 = vrot.lane.b32.xlu0 %v1198, 64
      %v2081 = vpop.permute.xlu0 %2080
      %2082 = vrot.lane.b32.xlu0 %v1201, 64
      %v2083 = vpop.permute.xlu0 %2082
      %2084 = vrot.lane.b32.xlu0 %v1204, 64
      %v2085 = vpop.permute.xlu0 %2084
      %2086 = vrot.lane.b32.xlu0 %v1236, 64
      %v2087 = vpop.permute.xlu0 %2086
      %2117 = vrot.lane.b32.xlu0 %v873, 72
      %v2118 = vpop.permute.xlu0 %2117
      %2119 = vrot.lane.b32.xlu0 %v882, 72
      %v2120 = vpop.permute.xlu0 %2119
      %2121 = vrot.lane.b32.xlu0 %v883, 72
      %v2122 = vpop.permute.xlu0 %2121
      %2123 = vrot.lane.b32.xlu0 %v884, 72
      %v2124 = vpop.permute.xlu0 %2123
      %2125 = vrot.lane.b32.xlu0 %v885, 72
      %v2126 = vpop.permute.xlu0 %2125
      %2127 = vrot.lane.b32.xlu0 %v886, 72
      %v2128 = vpop.permute.xlu0 %2127
      %2129 = vrot.lane.b32.xlu0 %v887, 72
      %v2130 = vpop.permute.xlu0 %2129
      %2131 = vrot.lane.b32.xlu0 %v888, 72
      %v2132 = vpop.permute.xlu0 %2131
      %2133 = vrot.lane.b32.xlu0 %v890, 72
      %v2134 = vpop.permute.xlu0 %2133
      %2135 = vrot.lane.b32.xlu0 %v891, 72
      %v2136 = vpop.permute.xlu0 %2135
      %2137 = vrot.lane.b32.xlu0 %v892, 72
      %v2138 = vpop.permute.xlu0 %2137
      %2139 = vrot.lane.b32.xlu0 %v893, 72
      %v2140 = vpop.permute.xlu0 %2139
      %2141 = vrot.lane.b32.xlu0 %v894, 72
      %v2142 = vpop.permute.xlu0 %2141
      %2143 = vrot.lane.b32.xlu0 %v895, 72
      %v2144 = vpop.permute.xlu0 %2143
      %2145 = vrot.lane.b32.xlu0 %v896, 72
      %v2146 = vpop.permute.xlu0 %2145
      %2147 = vrot.lane.b32.xlu0 %v898, 72
      %v2148 = vpop.permute.xlu0 %2147
      %2149 = vrot.lane.b32.xlu0 %v899, 72
      %v2150 = vpop.permute.xlu0 %2149
      %2151 = vrot.lane.b32.xlu0 %v900, 72
      %v2152 = vpop.permute.xlu0 %2151
      %2153 = vrot.lane.b32.xlu0 %v901, 72
      %v2154 = vpop.permute.xlu0 %2153
      %2155 = vrot.lane.b32.xlu0 %v902, 72
      %v2156 = vpop.permute.xlu0 %2155
      %2157 = vrot.lane.b32.xlu0 %v903, 72
      %v2158 = vpop.permute.xlu0 %2157
      %2159 = vrot.lane.b32.xlu0 %v904, 72
      %v2160 = vpop.permute.xlu0 %2159
      %2161 = vrot.lane.b32.xlu0 %v906, 72
      %v2162 = vpop.permute.xlu0 %2161
      %2163 = vrot.lane.b32.xlu0 %v907, 72
      %v2164 = vpop.permute.xlu0 %2163
      %2165 = vrot.lane.b32.xlu0 %v908, 72
      %v2166 = vpop.permute.xlu0 %2165
      %2167 = vrot.lane.b32.xlu0 %v909, 72
      %v2168 = vpop.permute.xlu0 %2167
      %2169 = vrot.lane.b32.xlu0 %v910, 72
      %v2170 = vpop.permute.xlu0 %2169
      %2171 = vrot.lane.b32.xlu0 %v911, 72
      %v2172 = vpop.permute.xlu0 %2171
      %2173 = vrot.lane.b32.xlu0 %v912, 72
      %v2174 = vpop.permute.xlu0 %2173
      %2204 = vrot.lane.b32.xlu0 %v1032, 80
      %v2205 = vpop.permute.xlu0 %2204
      %2206 = vrot.lane.b32.xlu0 %v1056, 80
      %v2207 = vpop.permute.xlu0 %2206
      %2208 = vrot.lane.b32.xlu0 %v1059, 80
      %v2209 = vpop.permute.xlu0 %2208
      %2210 = vrot.lane.b32.xlu0 %v1062, 80
      %v2211 = vpop.permute.xlu0 %2210
      %2212 = vrot.lane.b32.xlu0 %v1065, 80
      %v2213 = vpop.permute.xlu0 %2212
      %2214 = vrot.lane.b32.xlu0 %v1068, 80
      %v2215 = vpop.permute.xlu0 %2214
      %2216 = vrot.lane.b32.xlu0 %v1071, 80
      %v2217 = vpop.permute.xlu0 %2216
      %2218 = vrot.lane.b32.xlu0 %v1074, 80
      %v2219 = vpop.permute.xlu0 %2218
      %2220 = vrot.lane.b32.xlu0 %v1077, 80
      %v2221 = vpop.permute.xlu0 %2220
      %2222 = vrot.lane.b32.xlu0 %v1080, 80
      %v2223 = vpop.permute.xlu0 %2222
      %2224 = vrot.lane.b32.xlu0 %v1083, 80
      %v2225 = vpop.permute.xlu0 %2224
      %2226 = vrot.lane.b32.xlu0 %v1086, 80
      %v2227 = vpop.permute.xlu0 %2226
      %2228 = vrot.lane.b32.xlu0 %v1089, 80
      %v2229 = vpop.permute.xlu0 %2228
      %2230 = vrot.lane.b32.xlu0 %v1092, 80
      %v2231 = vpop.permute.xlu0 %2230
      %2232 = vrot.lane.b32.xlu0 %v1095, 80
      %v2233 = vpop.permute.xlu0 %2232
      %2234 = vrot.lane.b32.xlu0 %v1098, 80
      %v2235 = vpop.permute.xlu0 %2234
      %2236 = vrot.lane.b32.xlu0 %v1101, 80
      %v2237 = vpop.permute.xlu0 %2236
      %2238 = vrot.lane.b32.xlu0 %v1104, 80
      %v2239 = vpop.permute.xlu0 %2238
      %2240 = vrot.lane.b32.xlu0 %v1107, 80
      %v2241 = vpop.permute.xlu0 %2240
      %2242 = vrot.lane.b32.xlu0 %v1110, 80
      %v2243 = vpop.permute.xlu0 %2242
      %2244 = vrot.lane.b32.xlu0 %v1113, 80
      %v2245 = vpop.permute.xlu0 %2244
      %2246 = vrot.lane.b32.xlu0 %v1116, 80
      %v2247 = vpop.permute.xlu0 %2246
      %2248 = vrot.lane.b32.xlu0 %v1253, 80
      %v2249 = vpop.permute.xlu0 %2248
      %2250 = vrot.lane.b32.xlu0 %v1256, 80
      %v2251 = vpop.permute.xlu0 %2250
      %2252 = vrot.lane.b32.xlu0 %v1259, 80
      %v2253 = vpop.permute.xlu0 %2252
      %2254 = vrot.lane.b32.xlu0 %v1262, 80
      %v2255 = vpop.permute.xlu0 %2254
      %2256 = vrot.lane.b32.xlu0 %v1265, 80
      %v2257 = vpop.permute.xlu0 %2256
      %2258 = vrot.lane.b32.xlu0 %v1268, 80
      %v2259 = vpop.permute.xlu0 %2258
      %2260 = vrot.lane.b32.xlu0 %v1271, 80
      %v2261 = vpop.permute.xlu0 %2260
      %2291 = vrot.lane.b32.xlu0 %v1120, 88
      %v2292 = vpop.permute.xlu0 %2291
      %2293 = vrot.lane.b32.xlu0 %v1144, 88
      %v2294 = vpop.permute.xlu0 %2293
      %2295 = vrot.lane.b32.xlu0 %v1147, 88
      %v2296 = vpop.permute.xlu0 %2295
      %2297 = vrot.lane.b32.xlu0 %v1150, 88
      %v2298 = vpop.permute.xlu0 %2297
      %2299 = vrot.lane.b32.xlu0 %v1153, 88
      %v2300 = vpop.permute.xlu0 %2299
      %2301 = vrot.lane.b32.xlu0 %v1156, 88
      %v2302 = vpop.permute.xlu0 %2301
      %2303 = vrot.lane.b32.xlu0 %v1159, 88
      %v2304 = vpop.permute.xlu0 %2303
      %2305 = vrot.lane.b32.xlu0 %v1162, 88
      %v2306 = vpop.permute.xlu0 %2305
      %2307 = vrot.lane.b32.xlu0 %v1165, 88
      %v2308 = vpop.permute.xlu0 %2307
      %2309 = vrot.lane.b32.xlu0 %v1168, 88
      %v2310 = vpop.permute.xlu0 %2309
      %2311 = vrot.lane.b32.xlu0 %v1171, 88
      %v2312 = vpop.permute.xlu0 %2311
      %2313 = vrot.lane.b32.xlu0 %v1174, 88
      %v2314 = vpop.permute.xlu0 %2313
      %2315 = vrot.lane.b32.xlu0 %v1177, 88
      %v2316 = vpop.permute.xlu0 %2315
      %2317 = vrot.lane.b32.xlu0 %v1180, 88
      %v2318 = vpop.permute.xlu0 %2317
      %2319 = vrot.lane.b32.xlu0 %v1183, 88
      %v2320 = vpop.permute.xlu0 %2319
      %2321 = vrot.lane.b32.xlu0 %v1186, 88
      %v2322 = vpop.permute.xlu0 %2321
      %2323 = vrot.lane.b32.xlu0 %v1189, 88
      %v2324 = vpop.permute.xlu0 %2323
      %2325 = vrot.lane.b32.xlu0 %v1192, 88
      %v2326 = vpop.permute.xlu0 %2325
      %2327 = vrot.lane.b32.xlu0 %v1195, 88
      %v2328 = vpop.permute.xlu0 %2327
      %2329 = vrot.lane.b32.xlu0 %v1198, 88
      %v2330 = vpop.permute.xlu0 %2329
      %2331 = vrot.lane.b32.xlu0 %v1201, 88
      %v2332 = vpop.permute.xlu0 %2331
      %2333 = vrot.lane.b32.xlu0 %v1204, 88
      %v2334 = vpop.permute.xlu0 %2333
      %2335 = vrot.lane.b32.xlu0 %v1274, 88
      %v2336 = vpop.permute.xlu0 %2335
      %2337 = vrot.lane.b32.xlu0 %v1277, 88
      %v2338 = vpop.permute.xlu0 %2337
      %2339 = vrot.lane.b32.xlu0 %v1280, 88
      %v2340 = vpop.permute.xlu0 %2339
      %2341 = vrot.lane.b32.xlu0 %v1283, 88
      %v2342 = vpop.permute.xlu0 %2341
      %2343 = vrot.lane.b32.xlu0 %v1286, 88
      %v2344 = vpop.permute.xlu0 %2343
      %2345 = vrot.lane.b32.xlu0 %v1289, 88
      %v2346 = vpop.permute.xlu0 %2345
      %2347 = vrot.lane.b32.xlu0 %v1292, 88
      %v2348 = vpop.permute.xlu0 %2347
      %2378 = vrot.lane.b32.xlu0 %v882, 96
      %v2379 = vpop.permute.xlu0 %2378
      %2380 = vrot.lane.b32.xlu0 %v883, 96
      %v2381 = vpop.permute.xlu0 %2380
      %2382 = vrot.lane.b32.xlu0 %v884, 96
      %v2383 = vpop.permute.xlu0 %2382
      %2384 = vrot.lane.b32.xlu0 %v885, 96
      %v2385 = vpop.permute.xlu0 %2384
      %2386 = vrot.lane.b32.xlu0 %v886, 96
      %v2387 = vpop.permute.xlu0 %2386
      %2388 = vrot.lane.b32.xlu0 %v887, 96
      %v2389 = vpop.permute.xlu0 %2388
      %2390 = vrot.lane.b32.xlu0 %v888, 96
      %v2391 = vpop.permute.xlu0 %2390
      %2392 = vrot.lane.b32.xlu0 %v889, 96
      %v2393 = vpop.permute.xlu0 %2392
      %2394 = vrot.lane.b32.xlu0 %v890, 96
      %v2395 = vpop.permute.xlu0 %2394
      %2396 = vrot.lane.b32.xlu0 %v891, 96
      %v2397 = vpop.permute.xlu0 %2396
      %2398 = vrot.lane.b32.xlu0 %v892, 96
      %v2399 = vpop.permute.xlu0 %2398
      %2400 = vrot.lane.b32.xlu0 %v893, 96
      %v2401 = vpop.permute.xlu0 %2400
      %2402 = vrot.lane.b32.xlu0 %v894, 96
      %v2403 = vpop.permute.xlu0 %2402
      %2404 = vrot.lane.b32.xlu0 %v895, 96
      %v2405 = vpop.permute.xlu0 %2404
      %2406 = vrot.lane.b32.xlu0 %v896, 96
      %v2407 = vpop.permute.xlu0 %2406
      %2408 = vrot.lane.b32.xlu0 %v897, 96
      %v2409 = vpop.permute.xlu0 %2408
      %2410 = vrot.lane.b32.xlu0 %v898, 96
      %v2411 = vpop.permute.xlu0 %2410
      %2412 = vrot.lane.b32.xlu0 %v899, 96
      %v2413 = vpop.permute.xlu0 %2412
      %2414 = vrot.lane.b32.xlu0 %v900, 96
      %v2415 = vpop.permute.xlu0 %2414
      %2416 = vrot.lane.b32.xlu0 %v901, 96
      %v2417 = vpop.permute.xlu0 %2416
      %2418 = vrot.lane.b32.xlu0 %v902, 96
      %v2419 = vpop.permute.xlu0 %2418
      %2420 = vrot.lane.b32.xlu0 %v903, 96
      %v2421 = vpop.permute.xlu0 %2420
      %2422 = vrot.lane.b32.xlu0 %v904, 96
      %v2423 = vpop.permute.xlu0 %2422
      %2424 = vrot.lane.b32.xlu0 %v905, 96
      %v2425 = vpop.permute.xlu0 %2424
      %2426 = vrot.lane.b32.xlu0 %v906, 96
      %v2427 = vpop.permute.xlu0 %2426
      %2428 = vrot.lane.b32.xlu0 %v907, 96
      %v2429 = vpop.permute.xlu0 %2428
      %2430 = vrot.lane.b32.xlu0 %v908, 96
      %v2431 = vpop.permute.xlu0 %2430
      %2432 = vrot.lane.b32.xlu0 %v909, 96
      %v2433 = vpop.permute.xlu0 %2432
      %2434 = vrot.lane.b32.xlu0 %v910, 96
      %v2435 = vpop.permute.xlu0 %2434
      %2436 = vrot.lane.b32.xlu0 %v911, 96
      %v2437 = vpop.permute.xlu0 %2436
      %2438 = vrot.lane.b32.xlu0 %v912, 96
      %v2439 = vpop.permute.xlu0 %2438
      %2440 = vrot.lane.b32.xlu0 %v913, 96
      %v2441 = vpop.permute.xlu0 %2440
      %2474 = vrot.lane.b32.xlu0 %v1056, 104
      %v2475 = vpop.permute.xlu0 %2474
      %2476 = vrot.lane.b32.xlu0 %v1059, 104
      %v2477 = vpop.permute.xlu0 %2476
      %2478 = vrot.lane.b32.xlu0 %v1062, 104
      %v2479 = vpop.permute.xlu0 %2478
      %2480 = vrot.lane.b32.xlu0 %v1065, 104
      %v2481 = vpop.permute.xlu0 %2480
      %2482 = vrot.lane.b32.xlu0 %v1068, 104
      %v2483 = vpop.permute.xlu0 %2482
      %2484 = vrot.lane.b32.xlu0 %v1071, 104
      %v2485 = vpop.permute.xlu0 %2484
      %2486 = vrot.lane.b32.xlu0 %v1074, 104
      %v2487 = vpop.permute.xlu0 %2486
      %2488 = vrot.lane.b32.xlu0 %v1218, 104
      %v2489 = vpop.permute.xlu0 %2488
      %2490 = vrot.lane.b32.xlu0 %v1077, 104
      %v2491 = vpop.permute.xlu0 %2490
      %2492 = vrot.lane.b32.xlu0 %v1080, 104
      %v2493 = vpop.permute.xlu0 %2492
      %2494 = vrot.lane.b32.xlu0 %v1083, 104
      %v2495 = vpop.permute.xlu0 %2494
      %2496 = vrot.lane.b32.xlu0 %v1086, 104
      %v2497 = vpop.permute.xlu0 %2496
      %2498 = vrot.lane.b32.xlu0 %v1089, 104
      %v2499 = vpop.permute.xlu0 %2498
      %2500 = vrot.lane.b32.xlu0 %v1092, 104
      %v2501 = vpop.permute.xlu0 %2500
      %2502 = vrot.lane.b32.xlu0 %v1095, 104
      %v2503 = vpop.permute.xlu0 %2502
      %2504 = vrot.lane.b32.xlu0 %v1221, 104
      %v2505 = vpop.permute.xlu0 %2504
      %2506 = vrot.lane.b32.xlu0 %v1098, 104
      %v2507 = vpop.permute.xlu0 %2506
      %2508 = vrot.lane.b32.xlu0 %v1101, 104
      %v2509 = vpop.permute.xlu0 %2508
      %2510 = vrot.lane.b32.xlu0 %v1104, 104
      %v2511 = vpop.permute.xlu0 %2510
      %2512 = vrot.lane.b32.xlu0 %v1107, 104
      %v2513 = vpop.permute.xlu0 %2512
      %2514 = vrot.lane.b32.xlu0 %v1110, 104
      %v2515 = vpop.permute.xlu0 %2514
      %2516 = vrot.lane.b32.xlu0 %v1113, 104
      %v2517 = vpop.permute.xlu0 %2516
      %2518 = vrot.lane.b32.xlu0 %v1116, 104
      %v2519 = vpop.permute.xlu0 %2518
      %2520 = vrot.lane.b32.xlu0 %v1224, 104
      %v2521 = vpop.permute.xlu0 %2520
      %2522 = vrot.lane.b32.xlu0 %v1253, 104
      %v2523 = vpop.permute.xlu0 %2522
      %2524 = vrot.lane.b32.xlu0 %v1256, 104
      %v2525 = vpop.permute.xlu0 %2524
      %2526 = vrot.lane.b32.xlu0 %v1259, 104
      %v2527 = vpop.permute.xlu0 %2526
      %2528 = vrot.lane.b32.xlu0 %v1262, 104
      %v2529 = vpop.permute.xlu0 %2528
      %2530 = vrot.lane.b32.xlu0 %v1265, 104
      %v2531 = vpop.permute.xlu0 %2530
      %2532 = vrot.lane.b32.xlu0 %v1268, 104
      %v2533 = vpop.permute.xlu0 %2532
      %2534 = vrot.lane.b32.xlu0 %v1271, 104
      %v2535 = vpop.permute.xlu0 %2534
      %2536 = vrot.lane.b32.xlu0 %v1297, 104
      %v2537 = vpop.permute.xlu0 %2536
      %2570 = vrot.lane.b32.xlu0 %v1144, 112
      %v2571 = vpop.permute.xlu0 %2570
      %2572 = vrot.lane.b32.xlu0 %v1147, 112
      %v2573 = vpop.permute.xlu0 %2572
      %2574 = vrot.lane.b32.xlu0 %v1150, 112
      %v2575 = vpop.permute.xlu0 %2574
      %2576 = vrot.lane.b32.xlu0 %v1153, 112
      %v2577 = vpop.permute.xlu0 %2576
      %2578 = vrot.lane.b32.xlu0 %v1156, 112
      %v2579 = vpop.permute.xlu0 %2578
      %2580 = vrot.lane.b32.xlu0 %v1159, 112
      %v2581 = vpop.permute.xlu0 %2580
      %2582 = vrot.lane.b32.xlu0 %v1162, 112
      %v2583 = vpop.permute.xlu0 %2582
      %2584 = vrot.lane.b32.xlu0 %v1230, 112
      %v2585 = vpop.permute.xlu0 %2584
      %2586 = vrot.lane.b32.xlu0 %v1165, 112
      %v2587 = vpop.permute.xlu0 %2586
      %2588 = vrot.lane.b32.xlu0 %v1168, 112
      %v2589 = vpop.permute.xlu0 %2588
      %2590 = vrot.lane.b32.xlu0 %v1171, 112
      %v2591 = vpop.permute.xlu0 %2590
      %2592 = vrot.lane.b32.xlu0 %v1174, 112
      %v2593 = vpop.permute.xlu0 %2592
      %2594 = vrot.lane.b32.xlu0 %v1177, 112
      %v2595 = vpop.permute.xlu0 %2594
      %2596 = vrot.lane.b32.xlu0 %v1180, 112
      %v2597 = vpop.permute.xlu0 %2596
      %2598 = vrot.lane.b32.xlu0 %v1183, 112
      %v2599 = vpop.permute.xlu0 %2598
      %2600 = vrot.lane.b32.xlu0 %v1233, 112
      %v2601 = vpop.permute.xlu0 %2600
      %2602 = vrot.lane.b32.xlu0 %v1186, 112
      %v2603 = vpop.permute.xlu0 %2602
      %2604 = vrot.lane.b32.xlu0 %v1189, 112
      %v2605 = vpop.permute.xlu0 %2604
      %2606 = vrot.lane.b32.xlu0 %v1192, 112
      %v2607 = vpop.permute.xlu0 %2606
      %2608 = vrot.lane.b32.xlu0 %v1195, 112
      %v2609 = vpop.permute.xlu0 %2608
      %2610 = vrot.lane.b32.xlu0 %v1198, 112
      %v2611 = vpop.permute.xlu0 %2610
      %2612 = vrot.lane.b32.xlu0 %v1201, 112
      %v2613 = vpop.permute.xlu0 %2612
      %2614 = vrot.lane.b32.xlu0 %v1204, 112
      %v2615 = vpop.permute.xlu0 %2614
      %2616 = vrot.lane.b32.xlu0 %v1236, 112
      %v2617 = vpop.permute.xlu0 %2616
      %2618 = vrot.lane.b32.xlu0 %v1274, 112
      %v2619 = vpop.permute.xlu0 %2618
      %2620 = vrot.lane.b32.xlu0 %v1277, 112
      %v2621 = vpop.permute.xlu0 %2620
      %2622 = vrot.lane.b32.xlu0 %v1280, 112
      %v2623 = vpop.permute.xlu0 %2622
      %2624 = vrot.lane.b32.xlu0 %v1283, 112
      %v2625 = vpop.permute.xlu0 %2624
      %2626 = vrot.lane.b32.xlu0 %v1286, 112
      %v2627 = vpop.permute.xlu0 %2626
      %2628 = vrot.lane.b32.xlu0 %v1289, 112
      %v2629 = vpop.permute.xlu0 %2628
      %2630 = vrot.lane.b32.xlu0 %v1292, 112
      %v2631 = vpop.permute.xlu0 %2630
      %2632 = vrot.lane.b32.xlu0 %v1300, 112
      %v2633 = vpop.permute.xlu0 %2632
      %2666 = vrot.lane.b32.xlu0 %v883, 120
      %v2667 = vpop.permute.xlu0 %2666
      %2668 = vrot.lane.b32.xlu0 %v884, 120
      %v2669 = vpop.permute.xlu0 %2668
      %2670 = vrot.lane.b32.xlu0 %v885, 120
      %v2671 = vpop.permute.xlu0 %2670
      %2672 = vrot.lane.b32.xlu0 %v886, 120
      %v2673 = vpop.permute.xlu0 %2672
      %2674 = vrot.lane.b32.xlu0 %v887, 120
      %v2675 = vpop.permute.xlu0 %2674
      %2676 = vrot.lane.b32.xlu0 %v888, 120
      %v2677 = vpop.permute.xlu0 %2676
      %2678 = vrot.lane.b32.xlu0 %v889, 120
      %v2679 = vpop.permute.xlu0 %2678
      %2680 = vrot.lane.b32.xlu0 %v873, 120
      %v2681 = vpop.permute.xlu0 %2680
      %2682 = vrot.lane.b32.xlu0 %v891, 120
      %v2683 = vpop.permute.xlu0 %2682
      %2684 = vrot.lane.b32.xlu0 %v892, 120
      %v2685 = vpop.permute.xlu0 %2684
      %2686 = vrot.lane.b32.xlu0 %v893, 120
      %v2687 = vpop.permute.xlu0 %2686
      %2688 = vrot.lane.b32.xlu0 %v894, 120
      %v2689 = vpop.permute.xlu0 %2688
      %2690 = vrot.lane.b32.xlu0 %v895, 120
      %v2691 = vpop.permute.xlu0 %2690
      %2692 = vrot.lane.b32.xlu0 %v896, 120
      %v2693 = vpop.permute.xlu0 %2692
      %2694 = vrot.lane.b32.xlu0 %v897, 120
      %v2695 = vpop.permute.xlu0 %2694
      %2696 = vrot.lane.b32.xlu0 %v899, 120
      %v2697 = vpop.permute.xlu0 %2696
      %2698 = vrot.lane.b32.xlu0 %v900, 120
      %v2699 = vpop.permute.xlu0 %2698
      %2700 = vrot.lane.b32.xlu0 %v901, 120
      %v2701 = vpop.permute.xlu0 %2700
      %2702 = vrot.lane.b32.xlu0 %v902, 120
      %v2703 = vpop.permute.xlu0 %2702
      %2704 = vrot.lane.b32.xlu0 %v903, 120
      %v2705 = vpop.permute.xlu0 %2704
      %2706 = vrot.lane.b32.xlu0 %v904, 120
      %v2707 = vpop.permute.xlu0 %2706
      %2708 = vrot.lane.b32.xlu0 %v905, 120
      %v2709 = vpop.permute.xlu0 %2708
      %2710 = vrot.lane.b32.xlu0 %v907, 120
      %v2711 = vpop.permute.xlu0 %2710
      %2712 = vrot.lane.b32.xlu0 %v908, 120
      %v2713 = vpop.permute.xlu0 %2712
      %2714 = vrot.lane.b32.xlu0 %v909, 120
      %v2715 = vpop.permute.xlu0 %2714
      %2716 = vrot.lane.b32.xlu0 %v910, 120
      %v2717 = vpop.permute.xlu0 %2716
      %2718 = vrot.lane.b32.xlu0 %v911, 120
      %v2719 = vpop.permute.xlu0 %2718
      %2720 = vrot.lane.b32.xlu0 %v912, 120
      %v2721 = vpop.permute.xlu0 %2720
      %2722 = vrot.lane.b32.xlu0 %v913, 120
      %v2723 = vpop.permute.xlu0 %2722
      %vm2753 = vcmask 64512
      %v2754 = vsel %vm2753, %v873, %v1395
      %v2755 = vsel %vm2753, %v874, %v1397
      %v2756 = vsel %vm2753, %v875, %v1399
      %v2757 = vsel %vm2753, %v876, %v1401
      %v2758 = vsel %vm2753, %v877, %v1403
      %v2759 = vsel %vm2753, %v878, %v1405
      %v2760 = vsel %vm2753, %v879, %v1407
      %v2761 = vsel %vm2753, %v880, %v1409
      %v2762 = vsel %vm2753, %v882, %v1411
      %v2763 = vsel %vm2753, %v883, %v1413
      %v2764 = vsel %vm2753, %v884, %v1415
      %v2765 = vsel %vm2753, %v885, %v1417
      %v2766 = vsel %vm2753, %v886, %v1419
      %v2767 = vsel %vm2753, %v887, %v1421
      %v2768 = vsel %vm2753, %v888, %v1423
      %v2769 = vsel %vm2753, %v890, %v1425
      %v2770 = vsel %vm2753, %v891, %v1427
      %v2771 = vsel %vm2753, %v892, %v1429
      %v2772 = vsel %vm2753, %v893, %v1431
      %v2773 = vsel %vm2753, %v894, %v1433
      %v2774 = vsel %vm2753, %v895, %v1435
      %v2775 = vsel %vm2753, %v896, %v1437
      %v2776 = vsel %vm2753, %v898, %v1439
      %v2777 = vsel %vm2753, %v899, %v1441
      %v2778 = vsel %vm2753, %v900, %v1443
      %v2779 = vsel %vm2753, %v901, %v1445
      %v2780 = vsel %vm2753, %v902, %v1447
      %v2781 = vsel %vm2753, %v903, %v1449
      %v2782 = vsel %vm2753, %v904, %v1451
      %vm2783 = vcmask 130048
      %v2784 = vsel %vm2783, %v2754, %v1482
      %v2785 = vsel %vm2783, %v2755, %v1484
      %v2786 = vsel %vm2783, %v2756, %v1486
      %v2787 = vsel %vm2783, %v2757, %v1488
      %v2788 = vsel %vm2783, %v2758, %v1490
      %v2789 = vsel %vm2783, %v2759, %v1492
      %v2790 = vsel %vm2783, %v2760, %v1494
      %v2791 = vsel %vm2783, %v2761, %v1496
      %v2792 = vsel %vm2783, %v2762, %v1498
      %v2793 = vsel %vm2783, %v2763, %v1500
      %v2794 = vsel %vm2783, %v2764, %v1502
      %v2795 = vsel %vm2783, %v2765, %v1504
      %v2796 = vsel %vm2783, %v2766, %v1506
      %v2797 = vsel %vm2783, %v2767, %v1508
      %v2798 = vsel %vm2783, %v2768, %v1510
      %v2799 = vsel %vm2783, %v2769, %v1512
      %v2800 = vsel %vm2783, %v2770, %v1514
      %v2801 = vsel %vm2783, %v2771, %v1516
      %v2802 = vsel %vm2783, %v2772, %v1518
      %v2803 = vsel %vm2783, %v2773, %v1520
      %v2804 = vsel %vm2783, %v2774, %v1522
      %v2805 = vsel %vm2783, %v2775, %v1524
      %v2806 = vsel %vm2783, %v2776, %v1526
      %v2807 = vsel %vm2783, %v2777, %v1528
      %v2808 = vsel %vm2783, %v2778, %v1530
      %v2809 = vsel %vm2783, %v2779, %v1532
      %v2810 = vsel %vm2783, %v2780, %v1534
      %v2811 = vsel %vm2783, %v2781, %v1536
      %v2812 = vsel %vm2783, %v2782, %v1538
      %vm2813 = vcmask 195584
      %v2814 = vsel %vm2813, %v2784, %v1569
      %v2815 = vsel %vm2813, %v2785, %v1571
      %v2816 = vsel %vm2813, %v2786, %v1573
      %v2817 = vsel %vm2813, %v2787, %v1575
      %v2818 = vsel %vm2813, %v2788, %v1577
      %v2819 = vsel %vm2813, %v2789, %v1579
      %v2820 = vsel %vm2813, %v2790, %v1581
      %v2821 = vsel %vm2813, %v2791, %v1583
      %v2822 = vsel %vm2813, %v2784, %v1585
      %v2823 = vsel %vm2813, %v2792, %v1587
      %v2824 = vsel %vm2813, %v2793, %v1589
      %v2825 = vsel %vm2813, %v2794, %v1591
      %v2826 = vsel %vm2813, %v2795, %v1593
      %v2827 = vsel %vm2813, %v2796, %v1595
      %v2828 = vsel %vm2813, %v2797, %v1597
      %v2829 = vsel %vm2813, %v2798, %v1599
      %v2830 = vsel %vm2813, %v2784, %v1601
      %v2831 = vsel %vm2813, %v2799, %v1603
      %v2832 = vsel %vm2813, %v2800, %v1605
      %v2833 = vsel %vm2813, %v2801, %v1607
      %v2834 = vsel %vm2813, %v2802, %v1609
      %v2835 = vsel %vm2813, %v2803, %v1611
      %v2836 = vsel %vm2813, %v2804, %v1613
      %v2837 = vsel %vm2813, %v2805, %v1615
      %v2838 = vsel %vm2813, %v2784, %v1617
      %v2839 = vsel %vm2813, %v2806, %v1619
      %v2840 = vsel %vm2813, %v2807, %v1621
      %v2841 = vsel %vm2813, %v2808, %v1623
      %v2842 = vsel %vm2813, %v2809, %v1625
      %v2843 = vsel %vm2813, %v2810, %v1627
      %v2844 = vsel %vm2813, %v2811, %v1629
      %v2845 = vsel %vm2813, %v2812, %v1631
      %vm2846 = vcmask 261120
      %v2847 = vsel %vm2846, %v2814, %v1665
      %v2848 = vsel %vm2846, %v2815, %v1667
      %v2849 = vsel %vm2846, %v2816, %v1669
      %v2850 = vsel %vm2846, %v2817, %v1671
      %v2851 = vsel %vm2846, %v2818, %v1673
      %v2852 = vsel %vm2846, %v2819, %v1675
      %v2853 = vsel %vm2846, %v2820, %v1677
      %v2854 = vsel %vm2846, %v2821, %v1679
      %v2855 = vsel %vm2846, %v2822, %v1681
      %v2856 = vsel %vm2846, %v2823, %v1683
      %v2857 = vsel %vm2846, %v2824, %v1685
      %v2858 = vsel %vm2846, %v2825, %v1687
      %v2859 = vsel %vm2846, %v2826, %v1689
      %v2860 = vsel %vm2846, %v2827, %v1691
      %v2861 = vsel %vm2846, %v2828, %v1693
      %v2862 = vsel %vm2846, %v2829, %v1695
      %v2863 = vsel %vm2846, %v2830, %v1697
      %v2864 = vsel %vm2846, %v2831, %v1699
      %v2865 = vsel %vm2846, %v2832, %v1701
      %v2866 = vsel %vm2846, %v2833, %v1703
      %v2867 = vsel %vm2846, %v2834, %v1705
      %v2868 = vsel %vm2846, %v2835, %v1707
      %v2869 = vsel %vm2846, %v2836, %v1709
      %v2870 = vsel %vm2846, %v2837, %v1711
      %v2871 = vsel %vm2846, %v2838, %v1713
      %v2872 = vsel %vm2846, %v2839, %v1715
      %v2873 = vsel %vm2846, %v2840, %v1717
      %v2874 = vsel %vm2846, %v2841, %v1719
      %v2875 = vsel %vm2846, %v2842, %v1721
      %v2876 = vsel %vm2846, %v2843, %v1723
      %v2877 = vsel %vm2846, %v2844, %v1725
      %v2878 = vsel %vm2846, %v2845, %v1727
      %vm2879 = vcmask 326656
      %v2880 = vsel %vm2879, %v2847, %v1761
      %v2881 = vsel %vm2879, %v2848, %v1763
      %v2882 = vsel %vm2879, %v2849, %v1765
      %v2883 = vsel %vm2879, %v2850, %v1767
      %v2884 = vsel %vm2879, %v2851, %v1769
      %v2885 = vsel %vm2879, %v2852, %v1771
      %v2886 = vsel %vm2879, %v2853, %v1773
      %v2887 = vsel %vm2879, %v2854, %v1775
      %v2888 = vsel %vm2879, %v2855, %v1777
      %v2889 = vsel %vm2879, %v2856, %v1779
      %v2890 = vsel %vm2879, %v2857, %v1781
      %v2891 = vsel %vm2879, %v2858, %v1783
      %v2892 = vsel %vm2879, %v2859, %v1785
      %v2893 = vsel %vm2879, %v2860, %v1787
      %v2894 = vsel %vm2879, %v2861, %v1789
      %v2895 = vsel %vm2879, %v2862, %v1791
      %v2896 = vsel %vm2879, %v2863, %v1793
      %v2897 = vsel %vm2879, %v2864, %v1795
      %v2898 = vsel %vm2879, %v2865, %v1797
      %v2899 = vsel %vm2879, %v2866, %v1799
      %v2900 = vsel %vm2879, %v2867, %v1801
      %v2901 = vsel %vm2879, %v2868, %v1803
      %v2902 = vsel %vm2879, %v2869, %v1805
      %v2903 = vsel %vm2879, %v2870, %v1807
      %v2904 = vsel %vm2879, %v2871, %v1809
      %v2905 = vsel %vm2879, %v2872, %v1811
      %v2906 = vsel %vm2879, %v2873, %v1813
      %v2907 = vsel %vm2879, %v2874, %v1815
      %v2908 = vsel %vm2879, %v2875, %v1817
      %v2909 = vsel %vm2879, %v2876, %v1819
      %v2910 = vsel %vm2879, %v2877, %v1821
      %v2911 = vsel %vm2879, %v2878, %v1823
      %vm2912 = vcmask 392192
      %v2913 = vsel %vm2912, %v2880, %v1857
      %v2914 = vsel %vm2912, %v2881, %v1859
      %v2915 = vsel %vm2912, %v2882, %v1861
      %v2916 = vsel %vm2912, %v2883, %v1863
      %v2917 = vsel %vm2912, %v2884, %v1865
      %v2918 = vsel %vm2912, %v2885, %v1867
      %v2919 = vsel %vm2912, %v2886, %v1869
      %v2920 = vsel %vm2912, %v2887, %v1871
      %v2921 = vsel %vm2912, %v2888, %v1873
      %v2922 = vsel %vm2912, %v2889, %v1875
      %v2923 = vsel %vm2912, %v2890, %v1877
      %v2924 = vsel %vm2912, %v2891, %v1879
      %v2925 = vsel %vm2912, %v2892, %v1881
      %v2926 = vsel %vm2912, %v2893, %v1883
      %v2927 = vsel %vm2912, %v2894, %v1885
      %v2928 = vsel %vm2912, %v2895, %v1871
      %v2929 = vsel %vm2912, %v2896, %v1887
      %v2930 = vsel %vm2912, %v2897, %v1889
      %v2931 = vsel %vm2912, %v2898, %v1891
      %v2932 = vsel %vm2912, %v2899, %v1893
      %v2933 = vsel %vm2912, %v2900, %v1895
      %v2934 = vsel %vm2912, %v2901, %v1897
      %v2935 = vsel %vm2912, %v2902, %v1899
      %v2936 = vsel %vm2912, %v2903, %v1871
      %v2937 = vsel %vm2912, %v2904, %v1901
      %v2938 = vsel %vm2912, %v2905, %v1903
      %v2939 = vsel %vm2912, %v2906, %v1905
      %v2940 = vsel %vm2912, %v2907, %v1907
      %v2941 = vsel %vm2912, %v2908, %v1909
      %v2942 = vsel %vm2912, %v2909, %v1911
      %v2943 = vsel %vm2912, %v2910, %v1913
      %v2944 = vsel %vm2912, %v2911, %v1871
      %vm2945 = vcmask 457728
      %v2946 = vsel %vm2945, %v2913, %v1944
      %v2947 = vsel %vm2945, %v2914, %v1946
      %v2948 = vsel %vm2945, %v2915, %v1948
      %v2949 = vsel %vm2945, %v2916, %v1950
      %v2950 = vsel %vm2945, %v2917, %v1952
      %v2951 = vsel %vm2945, %v2918, %v1954
      %v2952 = vsel %vm2945, %v2919, %v1956
      %v2953 = vsel %vm2945, %v2920, %v1958
      %v2954 = vsel %vm2945, %v2921, %v1960
      %v2955 = vsel %vm2945, %v2922, %v1962
      %v2956 = vsel %vm2945, %v2923, %v1964
      %v2957 = vsel %vm2945, %v2924, %v1966
      %v2958 = vsel %vm2945, %v2925, %v1968
      %v2959 = vsel %vm2945, %v2926, %v1970
      %v2960 = vsel %vm2945, %v2927, %v1972
      %v2961 = vsel %vm2945, %v2928, %v1958
      %v2962 = vsel %vm2945, %v2929, %v1974
      %v2963 = vsel %vm2945, %v2930, %v1976
      %v2964 = vsel %vm2945, %v2931, %v1978
      %v2965 = vsel %vm2945, %v2932, %v1980
      %v2966 = vsel %vm2945, %v2933, %v1982
      %v2967 = vsel %vm2945, %v2934, %v1984
      %v2968 = vsel %vm2945, %v2935, %v1986
      %v2969 = vsel %vm2945, %v2936, %v1958
      %v2970 = vsel %vm2945, %v2937, %v1988
      %v2971 = vsel %vm2945, %v2938, %v1990
      %v2972 = vsel %vm2945, %v2939, %v1992
      %v2973 = vsel %vm2945, %v2940, %v1994
      %v2974 = vsel %vm2945, %v2941, %v1996
      %v2975 = vsel %vm2945, %v2942, %v1998
      %v2976 = vsel %vm2945, %v2943, %v2000
      %v2977 = vsel %vm2945, %v2944, %v1958
      %vm2978 = vcmask 523264
      %v2979 = vsel %vm2978, %v2946, %v2031
      %v2980 = vsel %vm2978, %v2947, %v2033
      %v2981 = vsel %vm2978, %v2948, %v2035
      %v2982 = vsel %vm2978, %v2949, %v2037
      %v2983 = vsel %vm2978, %v2950, %v2039
      %v2984 = vsel %vm2978, %v2951, %v2041
      %v2985 = vsel %vm2978, %v2952, %v2043
      %v2986 = vsel %vm2978, %v2953, %v2045
      %v2987 = vsel %vm2978, %v2954, %v2047
      %v2988 = vsel %vm2978, %v2955, %v2049
      %v2989 = vsel %vm2978, %v2956, %v2051
      %v2990 = vsel %vm2978, %v2957, %v2053
      %v2991 = vsel %vm2978, %v2958, %v2055
      %v2992 = vsel %vm2978, %v2959, %v2057
      %v2993 = vsel %vm2978, %v2960, %v2059
      %v2994 = vsel %vm2978, %v2961, %v2045
      %v2995 = vsel %vm2978, %v2962, %v2061
      %v2996 = vsel %vm2978, %v2963, %v2063
      %v2997 = vsel %vm2978, %v2964, %v2065
      %v2998 = vsel %vm2978, %v2965, %v2067
      %v2999 = vsel %vm2978, %v2966, %v2069
      %v3000 = vsel %vm2978, %v2967, %v2071
      %v3001 = vsel %vm2978, %v2968, %v2073
      %v3002 = vsel %vm2978, %v2969, %v2045
      %v3003 = vsel %vm2978, %v2970, %v2075
      %v3004 = vsel %vm2978, %v2971, %v2077
      %v3005 = vsel %vm2978, %v2972, %v2079
      %v3006 = vsel %vm2978, %v2973, %v2081
      %v3007 = vsel %vm2978, %v2974, %v2083
      %v3008 = vsel %vm2978, %v2975, %v2085
      %v3009 = vsel %vm2978, %v2976, %v2087
      %v3010 = vsel %vm2978, %v2977, %v2045
      %vm3011 = vcmask 588800
      %v3012 = vsel %vm3011, %v2979, %v2118
      %v3013 = vsel %vm3011, %v2980, %v2120
      %v3014 = vsel %vm3011, %v2981, %v2122
      %v3015 = vsel %vm3011, %v2982, %v2124
      %v3016 = vsel %vm3011, %v2983, %v2126
      %v3017 = vsel %vm3011, %v2984, %v2128
      %v3018 = vsel %vm3011, %v2985, %v2130
      %v3019 = vsel %vm3011, %v2986, %v2132
      %v3020 = vsel %vm3011, %v2987, %v2118
      %v3021 = vsel %vm3011, %v2988, %v2134
      %v3022 = vsel %vm3011, %v2989, %v2136
      %v3023 = vsel %vm3011, %v2990, %v2138
      %v3024 = vsel %vm3011, %v2991, %v2140
      %v3025 = vsel %vm3011, %v2992, %v2142
      %v3026 = vsel %vm3011, %v2993, %v2144
      %v3027 = vsel %vm3011, %v2994, %v2146
      %v3028 = vsel %vm3011, %v2995, %v2118
      %v3029 = vsel %vm3011, %v2996, %v2148
      %v3030 = vsel %vm3011, %v2997, %v2150
      %v3031 = vsel %vm3011, %v2998, %v2152
      %v3032 = vsel %vm3011, %v2999, %v2154
      %v3033 = vsel %vm3011, %v3000, %v2156
      %v3034 = vsel %vm3011, %v3001, %v2158
      %v3035 = vsel %vm3011, %v3002, %v2160
      %v3036 = vsel %vm3011, %v3003, %v2118
      %v3037 = vsel %vm3011, %v3004, %v2162
      %v3038 = vsel %vm3011, %v3005, %v2164
      %v3039 = vsel %vm3011, %v3006, %v2166
      %v3040 = vsel %vm3011, %v3007, %v2168
      %v3041 = vsel %vm3011, %v3008, %v2170
      %v3042 = vsel %vm3011, %v3009, %v2172
      %v3043 = vsel %vm3011, %v3010, %v2174
      %vm3044 = vcmask 654336
      %v3045 = vsel %vm3044, %v3012, %v2205
      %v3046 = vsel %vm3044, %v3013, %v2207
      %v3047 = vsel %vm3044, %v3014, %v2209
      %v3048 = vsel %vm3044, %v3015, %v2211
      %v3049 = vsel %vm3044, %v3016, %v2213
      %v3050 = vsel %vm3044, %v3017, %v2215
      %v3051 = vsel %vm3044, %v3018, %v2217
      %v3052 = vsel %vm3044, %v3019, %v2219
      %v3053 = vsel %vm3044, %v3020, %v2205
      %v3054 = vsel %vm3044, %v3021, %v2221
      %v3055 = vsel %vm3044, %v3022, %v2223
      %v3056 = vsel %vm3044, %v3023, %v2225
      %v3057 = vsel %vm3044, %v3024, %v2227
      %v3058 = vsel %vm3044, %v3025, %v2229
      %v3059 = vsel %vm3044, %v3026, %v2231
      %v3060 = vsel %vm3044, %v3027, %v2233
      %v3061 = vsel %vm3044, %v3028, %v2205
      %v3062 = vsel %vm3044, %v3029, %v2235
      %v3063 = vsel %vm3044, %v3030, %v2237
      %v3064 = vsel %vm3044, %v3031, %v2239
      %v3065 = vsel %vm3044, %v3032, %v2241
      %v3066 = vsel %vm3044, %v3033, %v2243
      %v3067 = vsel %vm3044, %v3034, %v2245
      %v3068 = vsel %vm3044, %v3035, %v2247
      %v3069 = vsel %vm3044, %v3036, %v2205
      %v3070 = vsel %vm3044, %v3037, %v2249
      %v3071 = vsel %vm3044, %v3038, %v2251
      %v3072 = vsel %vm3044, %v3039, %v2253
      %v3073 = vsel %vm3044, %v3040, %v2255
      %v3074 = vsel %vm3044, %v3041, %v2257
      %v3075 = vsel %vm3044, %v3042, %v2259
      %v3076 = vsel %vm3044, %v3043, %v2261
      %vm3077 = vcmask 719872
      %v3078 = vsel %vm3077, %v3045, %v2292
      %v3079 = vsel %vm3077, %v3046, %v2294
      %v3080 = vsel %vm3077, %v3047, %v2296
      %v3081 = vsel %vm3077, %v3048, %v2298
      %v3082 = vsel %vm3077, %v3049, %v2300
      %v3083 = vsel %vm3077, %v3050, %v2302
      %v3084 = vsel %vm3077, %v3051, %v2304
      %v3085 = vsel %vm3077, %v3052, %v2306
      %v3086 = vsel %vm3077, %v3053, %v2292
      %v3087 = vsel %vm3077, %v3054, %v2308
      %v3088 = vsel %vm3077, %v3055, %v2310
      %v3089 = vsel %vm3077, %v3056, %v2312
      %v3090 = vsel %vm3077, %v3057, %v2314
      %v3091 = vsel %vm3077, %v3058, %v2316
      %v3092 = vsel %vm3077, %v3059, %v2318
      %v3093 = vsel %vm3077, %v3060, %v2320
      %v3094 = vsel %vm3077, %v3061, %v2292
      %v3095 = vsel %vm3077, %v3062, %v2322
      %v3096 = vsel %vm3077, %v3063, %v2324
      %v3097 = vsel %vm3077, %v3064, %v2326
      %v3098 = vsel %vm3077, %v3065, %v2328
      %v3099 = vsel %vm3077, %v3066, %v2330
      %v3100 = vsel %vm3077, %v3067, %v2332
      %v3101 = vsel %vm3077, %v3068, %v2334
      %v3102 = vsel %vm3077, %v3069, %v2292
      %v3103 = vsel %vm3077, %v3070, %v2336
      %v3104 = vsel %vm3077, %v3071, %v2338
      %v3105 = vsel %vm3077, %v3072, %v2340
      %v3106 = vsel %vm3077, %v3073, %v2342
      %v3107 = vsel %vm3077, %v3074, %v2344
      %v3108 = vsel %vm3077, %v3075, %v2346
      %v3109 = vsel %vm3077, %v3076, %v2348
      %vm3110 = vcmask 785408
      %v3111 = vsel %vm3110, %v3078, %v2379
      %v3112 = vsel %vm3110, %v3079, %v2381
      %v3113 = vsel %vm3110, %v3080, %v2383
      %v3114 = vsel %vm3110, %v3081, %v2385
      %v3115 = vsel %vm3110, %v3082, %v2387
      %v3116 = vsel %vm3110, %v3083, %v2389
      %v3117 = vsel %vm3110, %v3084, %v2391
      %v3118 = vsel %vm3110, %v3085, %v2393
      %v3119 = vsel %vm3110, %v3086, %v2395
      %v3120 = vsel %vm3110, %v3087, %v2397
      %v3121 = vsel %vm3110, %v3088, %v2399
      %v3122 = vsel %vm3110, %v3089, %v2401
      %v3123 = vsel %vm3110, %v3090, %v2403
      %v3124 = vsel %vm3110, %v3091, %v2405
      %v3125 = vsel %vm3110, %v3092, %v2407
      %v3126 = vsel %vm3110, %v3093, %v2409
      %v3127 = vsel %vm3110, %v3094, %v2411
      %v3128 = vsel %vm3110, %v3095, %v2413
      %v3129 = vsel %vm3110, %v3096, %v2415
      %v3130 = vsel %vm3110, %v3097, %v2417
      %v3131 = vsel %vm3110, %v3098, %v2419
      %v3132 = vsel %vm3110, %v3099, %v2421
      %v3133 = vsel %vm3110, %v3100, %v2423
      %v3134 = vsel %vm3110, %v3101, %v2425
      %v3135 = vsel %vm3110, %v3102, %v2427
      %v3136 = vsel %vm3110, %v3103, %v2429
      %v3137 = vsel %vm3110, %v3104, %v2431
      %v3138 = vsel %vm3110, %v3105, %v2433
      %v3139 = vsel %vm3110, %v3106, %v2435
      %v3140 = vsel %vm3110, %v3107, %v2437
      %v3141 = vsel %vm3110, %v3108, %v2439
      %v3142 = vsel %vm3110, %v3109, %v2441
      %vm3143 = vcmask 850944
      %v3144 = vsel %vm3143, %v3111, %v2475
      %v3145 = vsel %vm3143, %v3112, %v2477
      %v3146 = vsel %vm3143, %v3113, %v2479
      %v3147 = vsel %vm3143, %v3114, %v2481
      %v3148 = vsel %vm3143, %v3115, %v2483
      %v3149 = vsel %vm3143, %v3116, %v2485
      %v3150 = vsel %vm3143, %v3117, %v2487
      %v3151 = vsel %vm3143, %v3118, %v2489
      %v3152 = vsel %vm3143, %v3119, %v2491
      %v3153 = vsel %vm3143, %v3120, %v2493
      %v3154 = vsel %vm3143, %v3121, %v2495
      %v3155 = vsel %vm3143, %v3122, %v2497
      %v3156 = vsel %vm3143, %v3123, %v2499
      %v3157 = vsel %vm3143, %v3124, %v2501
      %v3158 = vsel %vm3143, %v3125, %v2503
      %v3159 = vsel %vm3143, %v3126, %v2505
      %v3160 = vsel %vm3143, %v3127, %v2507
      %v3161 = vsel %vm3143, %v3128, %v2509
      %v3162 = vsel %vm3143, %v3129, %v2511
      %v3163 = vsel %vm3143, %v3130, %v2513
      %v3164 = vsel %vm3143, %v3131, %v2515
      %v3165 = vsel %vm3143, %v3132, %v2517
      %v3166 = vsel %vm3143, %v3133, %v2519
      %v3167 = vsel %vm3143, %v3134, %v2521
      %v3168 = vsel %vm3143, %v3135, %v2523
      %v3169 = vsel %vm3143, %v3136, %v2525
      %v3170 = vsel %vm3143, %v3137, %v2527
      %v3171 = vsel %vm3143, %v3138, %v2529
      %v3172 = vsel %vm3143, %v3139, %v2531
      %v3173 = vsel %vm3143, %v3140, %v2533
      %v3174 = vsel %vm3143, %v3141, %v2535
      %v3175 = vsel %vm3143, %v3142, %v2537
      %vm3176 = vcmask 916480
      %v3177 = vsel %vm3176, %v3144, %v2571
      %v3178 = vsel %vm3176, %v3145, %v2573
      %v3179 = vsel %vm3176, %v3146, %v2575
      %v3180 = vsel %vm3176, %v3147, %v2577
      %v3181 = vsel %vm3176, %v3148, %v2579
      %v3182 = vsel %vm3176, %v3149, %v2581
      %v3183 = vsel %vm3176, %v3150, %v2583
      %v3184 = vsel %vm3176, %v3151, %v2585
      %v3185 = vsel %vm3176, %v3152, %v2587
      %v3186 = vsel %vm3176, %v3153, %v2589
      %v3187 = vsel %vm3176, %v3154, %v2591
      %v3188 = vsel %vm3176, %v3155, %v2593
      %v3189 = vsel %vm3176, %v3156, %v2595
      %v3190 = vsel %vm3176, %v3157, %v2597
      %v3191 = vsel %vm3176, %v3158, %v2599
      %v3192 = vsel %vm3176, %v3159, %v2601
      %v3193 = vsel %vm3176, %v3160, %v2603
      %v3194 = vsel %vm3176, %v3161, %v2605
      %v3195 = vsel %vm3176, %v3162, %v2607
      %v3196 = vsel %vm3176, %v3163, %v2609
      %v3197 = vsel %vm3176, %v3164, %v2611
      %v3198 = vsel %vm3176, %v3165, %v2613
      %v3199 = vsel %vm3176, %v3166, %v2615
      %v3200 = vsel %vm3176, %v3167, %v2617
      %v3201 = vsel %vm3176, %v3168, %v2619
      %v3202 = vsel %vm3176, %v3169, %v2621
      %v3203 = vsel %vm3176, %v3170, %v2623
      %v3204 = vsel %vm3176, %v3171, %v2625
      %v3205 = vsel %vm3176, %v3172, %v2627
      %v3206 = vsel %vm3176, %v3173, %v2629
      %v3207 = vsel %vm3176, %v3174, %v2631
      %v3208 = vsel %vm3176, %v3175, %v2633
      %vm3209 = vcmask 982016
      %v3210 = vsel %vm3209, %v3177, %v2667
      %v3211 = vsel %vm3209, %v3178, %v2669
      %v3212 = vsel %vm3209, %v3179, %v2671
      %v3213 = vsel %vm3209, %v3180, %v2673
      %v3214 = vsel %vm3209, %v3181, %v2675
      %v3215 = vsel %vm3209, %v3182, %v2677
      %v3216 = vsel %vm3209, %v3183, %v2679
      %v3217 = vsel %vm3209, %v3184, %v2681
      %v3218 = vsel %vm3209, %v3185, %v2683
      %v3219 = vsel %vm3209, %v3186, %v2685
      %v3220 = vsel %vm3209, %v3187, %v2687
      %v3221 = vsel %vm3209, %v3188, %v2689
      %v3222 = vsel %vm3209, %v3189, %v2691
      %v3223 = vsel %vm3209, %v3190, %v2693
      %v3224 = vsel %vm3209, %v3191, %v2695
      %v3225 = vsel %vm3209, %v3192, %v2681
      %v3226 = vsel %vm3209, %v3193, %v2697
      %v3227 = vsel %vm3209, %v3194, %v2699
      %v3228 = vsel %vm3209, %v3195, %v2701
      %v3229 = vsel %vm3209, %v3196, %v2703
      %v3230 = vsel %vm3209, %v3197, %v2705
      %v3231 = vsel %vm3209, %v3198, %v2707
      %v3232 = vsel %vm3209, %v3199, %v2709
      %v3233 = vsel %vm3209, %v3200, %v2681
      %v3234 = vsel %vm3209, %v3201, %v2711
      %v3235 = vsel %vm3209, %v3202, %v2713
      %v3236 = vsel %vm3209, %v3203, %v2715
      %v3237 = vsel %vm3209, %v3204, %v2717
      %v3238 = vsel %vm3209, %v3205, %v2719
      %v3239 = vsel %vm3209, %v3206, %v2721
      %v3240 = vsel %vm3209, %v3207, %v2723
      %v3241 = vsel %vm3209, %v3208, %v2681
      %3242 = vrot.lane.b32.xlu0 %v1147, 8
      %v3243 = vpop.permute.xlu0 %3242
      %3244 = vrot.lane.b32.xlu0 %v1150, 8
      %v3245 = vpop.permute.xlu0 %3244
      %3246 = vrot.lane.b32.xlu0 %v1153, 8
      %v3247 = vpop.permute.xlu0 %3246
      %3248 = vrot.lane.b32.xlu0 %v1156, 8
      %v3249 = vpop.permute.xlu0 %3248
      %3250 = vrot.lane.b32.xlu0 %v1159, 8
      %v3251 = vpop.permute.xlu0 %3250
      %3252 = vrot.lane.b32.xlu0 %v1162, 8
      %v3253 = vpop.permute.xlu0 %3252
      %3254 = vrot.lane.b32.xlu0 %v1230, 8
      %v3255 = vpop.permute.xlu0 %3254
      %3256 = vrot.lane.b32.xlu0 %v1120, 8
      %v3257 = vpop.permute.xlu0 %3256
      %3258 = vrot.lane.b32.xlu0 %v1168, 8
      %v3259 = vpop.permute.xlu0 %3258
      %3260 = vrot.lane.b32.xlu0 %v1171, 8
      %v3261 = vpop.permute.xlu0 %3260
      %3262 = vrot.lane.b32.xlu0 %v1174, 8
      %v3263 = vpop.permute.xlu0 %3262
      %3264 = vrot.lane.b32.xlu0 %v1177, 8
      %v3265 = vpop.permute.xlu0 %3264
      %3266 = vrot.lane.b32.xlu0 %v1180, 8
      %v3267 = vpop.permute.xlu0 %3266
      %3268 = vrot.lane.b32.xlu0 %v1183, 8
      %v3269 = vpop.permute.xlu0 %3268
      %3270 = vrot.lane.b32.xlu0 %v1233, 8
      %v3271 = vpop.permute.xlu0 %3270
      %3272 = vrot.lane.b32.xlu0 %v1189, 8
      %v3273 = vpop.permute.xlu0 %3272
      %3274 = vrot.lane.b32.xlu0 %v1192, 8
      %v3275 = vpop.permute.xlu0 %3274
      %3276 = vrot.lane.b32.xlu0 %v1195, 8
      %v3277 = vpop.permute.xlu0 %3276
      %3278 = vrot.lane.b32.xlu0 %v1198, 8
      %v3279 = vpop.permute.xlu0 %3278
      %3280 = vrot.lane.b32.xlu0 %v1201, 8
      %v3281 = vpop.permute.xlu0 %3280
      %3282 = vrot.lane.b32.xlu0 %v1204, 8
      %v3283 = vpop.permute.xlu0 %3282
      %3284 = vrot.lane.b32.xlu0 %v1236, 8
      %v3285 = vpop.permute.xlu0 %3284
      %3286 = vrot.lane.b32.xlu0 %v1277, 8
      %v3287 = vpop.permute.xlu0 %3286
      %3288 = vrot.lane.b32.xlu0 %v1280, 8
      %v3289 = vpop.permute.xlu0 %3288
      %3290 = vrot.lane.b32.xlu0 %v1283, 8
      %v3291 = vpop.permute.xlu0 %3290
      %3292 = vrot.lane.b32.xlu0 %v1286, 8
      %v3293 = vpop.permute.xlu0 %3292
      %3294 = vrot.lane.b32.xlu0 %v1289, 8
      %v3295 = vpop.permute.xlu0 %3294
      %3296 = vrot.lane.b32.xlu0 %v1292, 8
      %v3297 = vpop.permute.xlu0 %3296
      %3298 = vrot.lane.b32.xlu0 %v1300, 8
      %v3299 = vpop.permute.xlu0 %3298
      %3329 = vrot.lane.b32.xlu0 %v873, 16
      %v3330 = vpop.permute.xlu0 %3329
      %3331 = vrot.lane.b32.xlu0 %v890, 16
      %v3332 = vpop.permute.xlu0 %3331
      %3333 = vrot.lane.b32.xlu0 %v891, 16
      %v3334 = vpop.permute.xlu0 %3333
      %3335 = vrot.lane.b32.xlu0 %v892, 16
      %v3336 = vpop.permute.xlu0 %3335
      %3337 = vrot.lane.b32.xlu0 %v893, 16
      %v3338 = vpop.permute.xlu0 %3337
      %3339 = vrot.lane.b32.xlu0 %v894, 16
      %v3340 = vpop.permute.xlu0 %3339
      %3341 = vrot.lane.b32.xlu0 %v895, 16
      %v3342 = vpop.permute.xlu0 %3341
      %3343 = vrot.lane.b32.xlu0 %v896, 16
      %v3344 = vpop.permute.xlu0 %3343
      %3345 = vrot.lane.b32.xlu0 %v898, 16
      %v3346 = vpop.permute.xlu0 %3345
      %3347 = vrot.lane.b32.xlu0 %v899, 16
      %v3348 = vpop.permute.xlu0 %3347
      %3349 = vrot.lane.b32.xlu0 %v900, 16
      %v3350 = vpop.permute.xlu0 %3349
      %3351 = vrot.lane.b32.xlu0 %v901, 16
      %v3352 = vpop.permute.xlu0 %3351
      %3353 = vrot.lane.b32.xlu0 %v902, 16
      %v3354 = vpop.permute.xlu0 %3353
      %3355 = vrot.lane.b32.xlu0 %v903, 16
      %v3356 = vpop.permute.xlu0 %3355
      %3357 = vrot.lane.b32.xlu0 %v904, 16
      %v3358 = vpop.permute.xlu0 %3357
      %3359 = vrot.lane.b32.xlu0 %v906, 16
      %v3360 = vpop.permute.xlu0 %3359
      %3361 = vrot.lane.b32.xlu0 %v907, 16
      %v3362 = vpop.permute.xlu0 %3361
      %3363 = vrot.lane.b32.xlu0 %v908, 16
      %v3364 = vpop.permute.xlu0 %3363
      %3365 = vrot.lane.b32.xlu0 %v909, 16
      %v3366 = vpop.permute.xlu0 %3365
      %3367 = vrot.lane.b32.xlu0 %v910, 16
      %v3368 = vpop.permute.xlu0 %3367
      %3369 = vrot.lane.b32.xlu0 %v911, 16
      %v3370 = vpop.permute.xlu0 %3369
      %3371 = vrot.lane.b32.xlu0 %v912, 16
      %v3372 = vpop.permute.xlu0 %3371
      %3373 = vrot.lane.b32.xlu0 %v914, 16
      %v3374 = vpop.permute.xlu0 %3373
      %3375 = vrot.lane.b32.xlu0 %v915, 16
      %v3376 = vpop.permute.xlu0 %3375
      %3377 = vrot.lane.b32.xlu0 %v916, 16
      %v3378 = vpop.permute.xlu0 %3377
      %3379 = vrot.lane.b32.xlu0 %v917, 16
      %v3380 = vpop.permute.xlu0 %3379
      %3381 = vrot.lane.b32.xlu0 %v918, 16
      %v3382 = vpop.permute.xlu0 %3381
      %3383 = vrot.lane.b32.xlu0 %v919, 16
      %v3384 = vpop.permute.xlu0 %3383
      %3385 = vrot.lane.b32.xlu0 %v920, 16
      %v3386 = vpop.permute.xlu0 %3385
      %3416 = vrot.lane.b32.xlu0 %v1032, 24
      %v3417 = vpop.permute.xlu0 %3416
      %3418 = vrot.lane.b32.xlu0 %v1077, 24
      %v3419 = vpop.permute.xlu0 %3418
      %3420 = vrot.lane.b32.xlu0 %v1080, 24
      %v3421 = vpop.permute.xlu0 %3420
      %3422 = vrot.lane.b32.xlu0 %v1083, 24
      %v3423 = vpop.permute.xlu0 %3422
      %3424 = vrot.lane.b32.xlu0 %v1086, 24
      %v3425 = vpop.permute.xlu0 %3424
      %3426 = vrot.lane.b32.xlu0 %v1089, 24
      %v3427 = vpop.permute.xlu0 %3426
      %3428 = vrot.lane.b32.xlu0 %v1092, 24
      %v3429 = vpop.permute.xlu0 %3428
      %3430 = vrot.lane.b32.xlu0 %v1095, 24
      %v3431 = vpop.permute.xlu0 %3430
      %3432 = vrot.lane.b32.xlu0 %v1098, 24
      %v3433 = vpop.permute.xlu0 %3432
      %3434 = vrot.lane.b32.xlu0 %v1101, 24
      %v3435 = vpop.permute.xlu0 %3434
      %3436 = vrot.lane.b32.xlu0 %v1104, 24
      %v3437 = vpop.permute.xlu0 %3436
      %3438 = vrot.lane.b32.xlu0 %v1107, 24
      %v3439 = vpop.permute.xlu0 %3438
      %3440 = vrot.lane.b32.xlu0 %v1110, 24
      %v3441 = vpop.permute.xlu0 %3440
      %3442 = vrot.lane.b32.xlu0 %v1113, 24
      %v3443 = vpop.permute.xlu0 %3442
      %3444 = vrot.lane.b32.xlu0 %v1116, 24
      %v3445 = vpop.permute.xlu0 %3444
      %3446 = vrot.lane.b32.xlu0 %v1253, 24
      %v3447 = vpop.permute.xlu0 %3446
      %3448 = vrot.lane.b32.xlu0 %v1256, 24
      %v3449 = vpop.permute.xlu0 %3448
      %3450 = vrot.lane.b32.xlu0 %v1259, 24
      %v3451 = vpop.permute.xlu0 %3450
      %3452 = vrot.lane.b32.xlu0 %v1262, 24
      %v3453 = vpop.permute.xlu0 %3452
      %3454 = vrot.lane.b32.xlu0 %v1265, 24
      %v3455 = vpop.permute.xlu0 %3454
      %3456 = vrot.lane.b32.xlu0 %v1268, 24
      %v3457 = vpop.permute.xlu0 %3456
      %3458 = vrot.lane.b32.xlu0 %v1271, 24
      %v3459 = vpop.permute.xlu0 %3458
      %3460 = vrot.lane.b32.xlu0 %v1346, 24
      %v3461 = vpop.permute.xlu0 %3460
      %3462 = vrot.lane.b32.xlu0 %v1349, 24
      %v3463 = vpop.permute.xlu0 %3462
      %3464 = vrot.lane.b32.xlu0 %v1352, 24
      %v3465 = vpop.permute.xlu0 %3464
      %3466 = vrot.lane.b32.xlu0 %v1355, 24
      %v3467 = vpop.permute.xlu0 %3466
      %3468 = vrot.lane.b32.xlu0 %v1358, 24
      %v3469 = vpop.permute.xlu0 %3468
      %3470 = vrot.lane.b32.xlu0 %v1361, 24
      %v3471 = vpop.permute.xlu0 %3470
      %3472 = vrot.lane.b32.xlu0 %v1364, 24
      %v3473 = vpop.permute.xlu0 %3472
      %3503 = vrot.lane.b32.xlu0 %v1120, 32
      %v3504 = vpop.permute.xlu0 %3503
      %3505 = vrot.lane.b32.xlu0 %v1165, 32
      %v3506 = vpop.permute.xlu0 %3505
      %3507 = vrot.lane.b32.xlu0 %v1168, 32
      %v3508 = vpop.permute.xlu0 %3507
      %3509 = vrot.lane.b32.xlu0 %v1171, 32
      %v3510 = vpop.permute.xlu0 %3509
      %3511 = vrot.lane.b32.xlu0 %v1174, 32
      %v3512 = vpop.permute.xlu0 %3511
      %3513 = vrot.lane.b32.xlu0 %v1177, 32
      %v3514 = vpop.permute.xlu0 %3513
      %3515 = vrot.lane.b32.xlu0 %v1180, 32
      %v3516 = vpop.permute.xlu0 %3515
      %3517 = vrot.lane.b32.xlu0 %v1183, 32
      %v3518 = vpop.permute.xlu0 %3517
      %3519 = vrot.lane.b32.xlu0 %v1186, 32
      %v3520 = vpop.permute.xlu0 %3519
      %3521 = vrot.lane.b32.xlu0 %v1189, 32
      %v3522 = vpop.permute.xlu0 %3521
      %3523 = vrot.lane.b32.xlu0 %v1192, 32
      %v3524 = vpop.permute.xlu0 %3523
      %3525 = vrot.lane.b32.xlu0 %v1195, 32
      %v3526 = vpop.permute.xlu0 %3525
      %3527 = vrot.lane.b32.xlu0 %v1198, 32
      %v3528 = vpop.permute.xlu0 %3527
      %3529 = vrot.lane.b32.xlu0 %v1201, 32
      %v3530 = vpop.permute.xlu0 %3529
      %3531 = vrot.lane.b32.xlu0 %v1204, 32
      %v3532 = vpop.permute.xlu0 %3531
      %3533 = vrot.lane.b32.xlu0 %v1274, 32
      %v3534 = vpop.permute.xlu0 %3533
      %3535 = vrot.lane.b32.xlu0 %v1277, 32
      %v3536 = vpop.permute.xlu0 %3535
      %3537 = vrot.lane.b32.xlu0 %v1280, 32
      %v3538 = vpop.permute.xlu0 %3537
      %3539 = vrot.lane.b32.xlu0 %v1283, 32
      %v3540 = vpop.permute.xlu0 %3539
      %3541 = vrot.lane.b32.xlu0 %v1286, 32
      %v3542 = vpop.permute.xlu0 %3541
      %3543 = vrot.lane.b32.xlu0 %v1289, 32
      %v3544 = vpop.permute.xlu0 %3543
      %3545 = vrot.lane.b32.xlu0 %v1292, 32
      %v3546 = vpop.permute.xlu0 %3545
      %3547 = vrot.lane.b32.xlu0 %v1367, 32
      %v3548 = vpop.permute.xlu0 %3547
      %3549 = vrot.lane.b32.xlu0 %v1370, 32
      %v3550 = vpop.permute.xlu0 %3549
      %3551 = vrot.lane.b32.xlu0 %v1373, 32
      %v3552 = vpop.permute.xlu0 %3551
      %3553 = vrot.lane.b32.xlu0 %v1376, 32
      %v3554 = vpop.permute.xlu0 %3553
      %3555 = vrot.lane.b32.xlu0 %v1379, 32
      %v3556 = vpop.permute.xlu0 %3555
      %3557 = vrot.lane.b32.xlu0 %v1382, 32
      %v3558 = vpop.permute.xlu0 %3557
      %3559 = vrot.lane.b32.xlu0 %v1385, 32
      %v3560 = vpop.permute.xlu0 %3559
      %3590 = vrot.lane.b32.xlu0 %v890, 40
      %v3591 = vpop.permute.xlu0 %3590
      %3592 = vrot.lane.b32.xlu0 %v891, 40
      %v3593 = vpop.permute.xlu0 %3592
      %3594 = vrot.lane.b32.xlu0 %v892, 40
      %v3595 = vpop.permute.xlu0 %3594
      %3596 = vrot.lane.b32.xlu0 %v893, 40
      %v3597 = vpop.permute.xlu0 %3596
      %3598 = vrot.lane.b32.xlu0 %v894, 40
      %v3599 = vpop.permute.xlu0 %3598
      %3600 = vrot.lane.b32.xlu0 %v895, 40
      %v3601 = vpop.permute.xlu0 %3600
      %3602 = vrot.lane.b32.xlu0 %v896, 40
      %v3603 = vpop.permute.xlu0 %3602
      %3604 = vrot.lane.b32.xlu0 %v897, 40
      %v3605 = vpop.permute.xlu0 %3604
      %3606 = vrot.lane.b32.xlu0 %v898, 40
      %v3607 = vpop.permute.xlu0 %3606
      %3608 = vrot.lane.b32.xlu0 %v899, 40
      %v3609 = vpop.permute.xlu0 %3608
      %3610 = vrot.lane.b32.xlu0 %v900, 40
      %v3611 = vpop.permute.xlu0 %3610
      %3612 = vrot.lane.b32.xlu0 %v901, 40
      %v3613 = vpop.permute.xlu0 %3612
      %3614 = vrot.lane.b32.xlu0 %v902, 40
      %v3615 = vpop.permute.xlu0 %3614
      %3616 = vrot.lane.b32.xlu0 %v903, 40
      %v3617 = vpop.permute.xlu0 %3616
      %3618 = vrot.lane.b32.xlu0 %v904, 40
      %v3619 = vpop.permute.xlu0 %3618
      %3620 = vrot.lane.b32.xlu0 %v905, 40
      %v3621 = vpop.permute.xlu0 %3620
      %3622 = vrot.lane.b32.xlu0 %v906, 40
      %v3623 = vpop.permute.xlu0 %3622
      %3624 = vrot.lane.b32.xlu0 %v907, 40
      %v3625 = vpop.permute.xlu0 %3624
      %3626 = vrot.lane.b32.xlu0 %v908, 40
      %v3627 = vpop.permute.xlu0 %3626
      %3628 = vrot.lane.b32.xlu0 %v909, 40
      %v3629 = vpop.permute.xlu0 %3628
      %3630 = vrot.lane.b32.xlu0 %v910, 40
      %v3631 = vpop.permute.xlu0 %3630
      %3632 = vrot.lane.b32.xlu0 %v911, 40
      %v3633 = vpop.permute.xlu0 %3632
      %3634 = vrot.lane.b32.xlu0 %v912, 40
      %v3635 = vpop.permute.xlu0 %3634
      %3636 = vrot.lane.b32.xlu0 %v913, 40
      %v3637 = vpop.permute.xlu0 %3636
      %3638 = vrot.lane.b32.xlu0 %v914, 40
      %v3639 = vpop.permute.xlu0 %3638
      %3640 = vrot.lane.b32.xlu0 %v915, 40
      %v3641 = vpop.permute.xlu0 %3640
      %3642 = vrot.lane.b32.xlu0 %v916, 40
      %v3643 = vpop.permute.xlu0 %3642
      %3644 = vrot.lane.b32.xlu0 %v917, 40
      %v3645 = vpop.permute.xlu0 %3644
      %3646 = vrot.lane.b32.xlu0 %v918, 40
      %v3647 = vpop.permute.xlu0 %3646
      %3648 = vrot.lane.b32.xlu0 %v919, 40
      %v3649 = vpop.permute.xlu0 %3648
      %3650 = vrot.lane.b32.xlu0 %v920, 40
      %v3651 = vpop.permute.xlu0 %3650
      %3652 = vrot.lane.b32.xlu0 %v921, 40
      %v3653 = vpop.permute.xlu0 %3652
      %3686 = vrot.lane.b32.xlu0 %v1077, 48
      %v3687 = vpop.permute.xlu0 %3686
      %3688 = vrot.lane.b32.xlu0 %v1080, 48
      %v3689 = vpop.permute.xlu0 %3688
      %3690 = vrot.lane.b32.xlu0 %v1083, 48
      %v3691 = vpop.permute.xlu0 %3690
      %3692 = vrot.lane.b32.xlu0 %v1086, 48
      %v3693 = vpop.permute.xlu0 %3692
      %3694 = vrot.lane.b32.xlu0 %v1089, 48
      %v3695 = vpop.permute.xlu0 %3694
      %3696 = vrot.lane.b32.xlu0 %v1092, 48
      %v3697 = vpop.permute.xlu0 %3696
      %3698 = vrot.lane.b32.xlu0 %v1095, 48
      %v3699 = vpop.permute.xlu0 %3698
      %3700 = vrot.lane.b32.xlu0 %v1221, 48
      %v3701 = vpop.permute.xlu0 %3700
      %3702 = vrot.lane.b32.xlu0 %v1098, 48
      %v3703 = vpop.permute.xlu0 %3702
      %3704 = vrot.lane.b32.xlu0 %v1101, 48
      %v3705 = vpop.permute.xlu0 %3704
      %3706 = vrot.lane.b32.xlu0 %v1104, 48
      %v3707 = vpop.permute.xlu0 %3706
      %3708 = vrot.lane.b32.xlu0 %v1107, 48
      %v3709 = vpop.permute.xlu0 %3708
      %3710 = vrot.lane.b32.xlu0 %v1110, 48
      %v3711 = vpop.permute.xlu0 %3710
      %3712 = vrot.lane.b32.xlu0 %v1113, 48
      %v3713 = vpop.permute.xlu0 %3712
      %3714 = vrot.lane.b32.xlu0 %v1116, 48
      %v3715 = vpop.permute.xlu0 %3714
      %3716 = vrot.lane.b32.xlu0 %v1224, 48
      %v3717 = vpop.permute.xlu0 %3716
      %3718 = vrot.lane.b32.xlu0 %v1253, 48
      %v3719 = vpop.permute.xlu0 %3718
      %3720 = vrot.lane.b32.xlu0 %v1256, 48
      %v3721 = vpop.permute.xlu0 %3720
      %3722 = vrot.lane.b32.xlu0 %v1259, 48
      %v3723 = vpop.permute.xlu0 %3722
      %3724 = vrot.lane.b32.xlu0 %v1262, 48
      %v3725 = vpop.permute.xlu0 %3724
      %3726 = vrot.lane.b32.xlu0 %v1265, 48
      %v3727 = vpop.permute.xlu0 %3726
      %3728 = vrot.lane.b32.xlu0 %v1268, 48
      %v3729 = vpop.permute.xlu0 %3728
      %3730 = vrot.lane.b32.xlu0 %v1271, 48
      %v3731 = vpop.permute.xlu0 %3730
      %3732 = vrot.lane.b32.xlu0 %v1297, 48
      %v3733 = vpop.permute.xlu0 %3732
      %3734 = vrot.lane.b32.xlu0 %v1346, 48
      %v3735 = vpop.permute.xlu0 %3734
      %3736 = vrot.lane.b32.xlu0 %v1349, 48
      %v3737 = vpop.permute.xlu0 %3736
      %3738 = vrot.lane.b32.xlu0 %v1352, 48
      %v3739 = vpop.permute.xlu0 %3738
      %3740 = vrot.lane.b32.xlu0 %v1355, 48
      %v3741 = vpop.permute.xlu0 %3740
      %3742 = vrot.lane.b32.xlu0 %v1358, 48
      %v3743 = vpop.permute.xlu0 %3742
      %3744 = vrot.lane.b32.xlu0 %v1361, 48
      %v3745 = vpop.permute.xlu0 %3744
      %3746 = vrot.lane.b32.xlu0 %v1364, 48
      %v3747 = vpop.permute.xlu0 %3746
      %3748 = vrot.lane.b32.xlu0 %v1390, 48
      %v3749 = vpop.permute.xlu0 %3748
      %3782 = vrot.lane.b32.xlu0 %v1165, 56
      %v3783 = vpop.permute.xlu0 %3782
      %3784 = vrot.lane.b32.xlu0 %v1168, 56
      %v3785 = vpop.permute.xlu0 %3784
      %3786 = vrot.lane.b32.xlu0 %v1171, 56
      %v3787 = vpop.permute.xlu0 %3786
      %3788 = vrot.lane.b32.xlu0 %v1174, 56
      %v3789 = vpop.permute.xlu0 %3788
      %3790 = vrot.lane.b32.xlu0 %v1177, 56
      %v3791 = vpop.permute.xlu0 %3790
      %3792 = vrot.lane.b32.xlu0 %v1180, 56
      %v3793 = vpop.permute.xlu0 %3792
      %3794 = vrot.lane.b32.xlu0 %v1183, 56
      %v3795 = vpop.permute.xlu0 %3794
      %3796 = vrot.lane.b32.xlu0 %v1233, 56
      %v3797 = vpop.permute.xlu0 %3796
      %3798 = vrot.lane.b32.xlu0 %v1186, 56
      %v3799 = vpop.permute.xlu0 %3798
      %3800 = vrot.lane.b32.xlu0 %v1189, 56
      %v3801 = vpop.permute.xlu0 %3800
      %3802 = vrot.lane.b32.xlu0 %v1192, 56
      %v3803 = vpop.permute.xlu0 %3802
      %3804 = vrot.lane.b32.xlu0 %v1195, 56
      %v3805 = vpop.permute.xlu0 %3804
      %3806 = vrot.lane.b32.xlu0 %v1198, 56
      %v3807 = vpop.permute.xlu0 %3806
      %3808 = vrot.lane.b32.xlu0 %v1201, 56
      %v3809 = vpop.permute.xlu0 %3808
      %3810 = vrot.lane.b32.xlu0 %v1204, 56
      %v3811 = vpop.permute.xlu0 %3810
      %3812 = vrot.lane.b32.xlu0 %v1236, 56
      %v3813 = vpop.permute.xlu0 %3812
      %3814 = vrot.lane.b32.xlu0 %v1274, 56
      %v3815 = vpop.permute.xlu0 %3814
      %3816 = vrot.lane.b32.xlu0 %v1277, 56
      %v3817 = vpop.permute.xlu0 %3816
      %3818 = vrot.lane.b32.xlu0 %v1280, 56
      %v3819 = vpop.permute.xlu0 %3818
      %3820 = vrot.lane.b32.xlu0 %v1283, 56
      %v3821 = vpop.permute.xlu0 %3820
      %3822 = vrot.lane.b32.xlu0 %v1286, 56
      %v3823 = vpop.permute.xlu0 %3822
      %3824 = vrot.lane.b32.xlu0 %v1289, 56
      %v3825 = vpop.permute.xlu0 %3824
      %3826 = vrot.lane.b32.xlu0 %v1292, 56
      %v3827 = vpop.permute.xlu0 %3826
      %3828 = vrot.lane.b32.xlu0 %v1300, 56
      %v3829 = vpop.permute.xlu0 %3828
      %3830 = vrot.lane.b32.xlu0 %v1367, 56
      %v3831 = vpop.permute.xlu0 %3830
      %3832 = vrot.lane.b32.xlu0 %v1370, 56
      %v3833 = vpop.permute.xlu0 %3832
      %3834 = vrot.lane.b32.xlu0 %v1373, 56
      %v3835 = vpop.permute.xlu0 %3834
      %3836 = vrot.lane.b32.xlu0 %v1376, 56
      %v3837 = vpop.permute.xlu0 %3836
      %3838 = vrot.lane.b32.xlu0 %v1379, 56
      %v3839 = vpop.permute.xlu0 %3838
      %3840 = vrot.lane.b32.xlu0 %v1382, 56
      %v3841 = vpop.permute.xlu0 %3840
      %3842 = vrot.lane.b32.xlu0 %v1385, 56
      %v3843 = vpop.permute.xlu0 %3842
      %3844 = vrot.lane.b32.xlu0 %v1393, 56
      %v3845 = vpop.permute.xlu0 %3844
      %3878 = vrot.lane.b32.xlu0 %v891, 64
      %v3879 = vpop.permute.xlu0 %3878
      %3880 = vrot.lane.b32.xlu0 %v892, 64
      %v3881 = vpop.permute.xlu0 %3880
      %3882 = vrot.lane.b32.xlu0 %v893, 64
      %v3883 = vpop.permute.xlu0 %3882
      %3884 = vrot.lane.b32.xlu0 %v894, 64
      %v3885 = vpop.permute.xlu0 %3884
      %3886 = vrot.lane.b32.xlu0 %v895, 64
      %v3887 = vpop.permute.xlu0 %3886
      %3888 = vrot.lane.b32.xlu0 %v896, 64
      %v3889 = vpop.permute.xlu0 %3888
      %3890 = vrot.lane.b32.xlu0 %v897, 64
      %v3891 = vpop.permute.xlu0 %3890
      %3892 = vrot.lane.b32.xlu0 %v873, 64
      %v3893 = vpop.permute.xlu0 %3892
      %3894 = vrot.lane.b32.xlu0 %v899, 64
      %v3895 = vpop.permute.xlu0 %3894
      %3896 = vrot.lane.b32.xlu0 %v900, 64
      %v3897 = vpop.permute.xlu0 %3896
      %3898 = vrot.lane.b32.xlu0 %v901, 64
      %v3899 = vpop.permute.xlu0 %3898
      %3900 = vrot.lane.b32.xlu0 %v902, 64
      %v3901 = vpop.permute.xlu0 %3900
      %3902 = vrot.lane.b32.xlu0 %v903, 64
      %v3903 = vpop.permute.xlu0 %3902
      %3904 = vrot.lane.b32.xlu0 %v904, 64
      %v3905 = vpop.permute.xlu0 %3904
      %3906 = vrot.lane.b32.xlu0 %v905, 64
      %v3907 = vpop.permute.xlu0 %3906
      %3908 = vrot.lane.b32.xlu0 %v907, 64
      %v3909 = vpop.permute.xlu0 %3908
      %3910 = vrot.lane.b32.xlu0 %v908, 64
      %v3911 = vpop.permute.xlu0 %3910
      %3912 = vrot.lane.b32.xlu0 %v909, 64
      %v3913 = vpop.permute.xlu0 %3912
      %3914 = vrot.lane.b32.xlu0 %v910, 64
      %v3915 = vpop.permute.xlu0 %3914
      %3916 = vrot.lane.b32.xlu0 %v911, 64
      %v3917 = vpop.permute.xlu0 %3916
      %3918 = vrot.lane.b32.xlu0 %v912, 64
      %v3919 = vpop.permute.xlu0 %3918
      %3920 = vrot.lane.b32.xlu0 %v913, 64
      %v3921 = vpop.permute.xlu0 %3920
      %3922 = vrot.lane.b32.xlu0 %v915, 64
      %v3923 = vpop.permute.xlu0 %3922
      %3924 = vrot.lane.b32.xlu0 %v916, 64
      %v3925 = vpop.permute.xlu0 %3924
      %3926 = vrot.lane.b32.xlu0 %v917, 64
      %v3927 = vpop.permute.xlu0 %3926
      %3928 = vrot.lane.b32.xlu0 %v918, 64
      %v3929 = vpop.permute.xlu0 %3928
      %3930 = vrot.lane.b32.xlu0 %v919, 64
      %v3931 = vpop.permute.xlu0 %3930
      %3932 = vrot.lane.b32.xlu0 %v920, 64
      %v3933 = vpop.permute.xlu0 %3932
      %3934 = vrot.lane.b32.xlu0 %v921, 64
      %v3935 = vpop.permute.xlu0 %3934
      %3965 = vrot.lane.b32.xlu0 %v1080, 72
      %v3966 = vpop.permute.xlu0 %3965
      %3967 = vrot.lane.b32.xlu0 %v1083, 72
      %v3968 = vpop.permute.xlu0 %3967
      %3969 = vrot.lane.b32.xlu0 %v1086, 72
      %v3970 = vpop.permute.xlu0 %3969
      %3971 = vrot.lane.b32.xlu0 %v1089, 72
      %v3972 = vpop.permute.xlu0 %3971
      %3973 = vrot.lane.b32.xlu0 %v1092, 72
      %v3974 = vpop.permute.xlu0 %3973
      %3975 = vrot.lane.b32.xlu0 %v1095, 72
      %v3976 = vpop.permute.xlu0 %3975
      %3977 = vrot.lane.b32.xlu0 %v1221, 72
      %v3978 = vpop.permute.xlu0 %3977
      %3979 = vrot.lane.b32.xlu0 %v1032, 72
      %v3980 = vpop.permute.xlu0 %3979
      %3981 = vrot.lane.b32.xlu0 %v1101, 72
      %v3982 = vpop.permute.xlu0 %3981
      %3983 = vrot.lane.b32.xlu0 %v1104, 72
      %v3984 = vpop.permute.xlu0 %3983
      %3985 = vrot.lane.b32.xlu0 %v1107, 72
      %v3986 = vpop.permute.xlu0 %3985
      %3987 = vrot.lane.b32.xlu0 %v1110, 72
      %v3988 = vpop.permute.xlu0 %3987
      %3989 = vrot.lane.b32.xlu0 %v1113, 72
      %v3990 = vpop.permute.xlu0 %3989
      %3991 = vrot.lane.b32.xlu0 %v1116, 72
      %v3992 = vpop.permute.xlu0 %3991
      %3993 = vrot.lane.b32.xlu0 %v1224, 72
      %v3994 = vpop.permute.xlu0 %3993
      %3995 = vrot.lane.b32.xlu0 %v1256, 72
      %v3996 = vpop.permute.xlu0 %3995
      %3997 = vrot.lane.b32.xlu0 %v1259, 72
      %v3998 = vpop.permute.xlu0 %3997
      %3999 = vrot.lane.b32.xlu0 %v1262, 72
      %v4000 = vpop.permute.xlu0 %3999
      %4001 = vrot.lane.b32.xlu0 %v1265, 72
      %v4002 = vpop.permute.xlu0 %4001
      %4003 = vrot.lane.b32.xlu0 %v1268, 72
      %v4004 = vpop.permute.xlu0 %4003
      %4005 = vrot.lane.b32.xlu0 %v1271, 72
      %v4006 = vpop.permute.xlu0 %4005
      %4007 = vrot.lane.b32.xlu0 %v1297, 72
      %v4008 = vpop.permute.xlu0 %4007
      %4009 = vrot.lane.b32.xlu0 %v1349, 72
      %v4010 = vpop.permute.xlu0 %4009
      %4011 = vrot.lane.b32.xlu0 %v1352, 72
      %v4012 = vpop.permute.xlu0 %4011
      %4013 = vrot.lane.b32.xlu0 %v1355, 72
      %v4014 = vpop.permute.xlu0 %4013
      %4015 = vrot.lane.b32.xlu0 %v1358, 72
      %v4016 = vpop.permute.xlu0 %4015
      %4017 = vrot.lane.b32.xlu0 %v1361, 72
      %v4018 = vpop.permute.xlu0 %4017
      %4019 = vrot.lane.b32.xlu0 %v1364, 72
      %v4020 = vpop.permute.xlu0 %4019
      %4021 = vrot.lane.b32.xlu0 %v1390, 72
      %v4022 = vpop.permute.xlu0 %4021
      %4052 = vrot.lane.b32.xlu0 %v1168, 80
      %v4053 = vpop.permute.xlu0 %4052
      %4054 = vrot.lane.b32.xlu0 %v1171, 80
      %v4055 = vpop.permute.xlu0 %4054
      %4056 = vrot.lane.b32.xlu0 %v1174, 80
      %v4057 = vpop.permute.xlu0 %4056
      %4058 = vrot.lane.b32.xlu0 %v1177, 80
      %v4059 = vpop.permute.xlu0 %4058
      %4060 = vrot.lane.b32.xlu0 %v1180, 80
      %v4061 = vpop.permute.xlu0 %4060
      %4062 = vrot.lane.b32.xlu0 %v1183, 80
      %v4063 = vpop.permute.xlu0 %4062
      %4064 = vrot.lane.b32.xlu0 %v1233, 80
      %v4065 = vpop.permute.xlu0 %4064
      %4066 = vrot.lane.b32.xlu0 %v1120, 80
      %v4067 = vpop.permute.xlu0 %4066
      %4068 = vrot.lane.b32.xlu0 %v1189, 80
      %v4069 = vpop.permute.xlu0 %4068
      %4070 = vrot.lane.b32.xlu0 %v1192, 80
      %v4071 = vpop.permute.xlu0 %4070
      %4072 = vrot.lane.b32.xlu0 %v1195, 80
      %v4073 = vpop.permute.xlu0 %4072
      %4074 = vrot.lane.b32.xlu0 %v1198, 80
      %v4075 = vpop.permute.xlu0 %4074
      %4076 = vrot.lane.b32.xlu0 %v1201, 80
      %v4077 = vpop.permute.xlu0 %4076
      %4078 = vrot.lane.b32.xlu0 %v1204, 80
      %v4079 = vpop.permute.xlu0 %4078
      %4080 = vrot.lane.b32.xlu0 %v1236, 80
      %v4081 = vpop.permute.xlu0 %4080
      %4082 = vrot.lane.b32.xlu0 %v1277, 80
      %v4083 = vpop.permute.xlu0 %4082
      %4084 = vrot.lane.b32.xlu0 %v1280, 80
      %v4085 = vpop.permute.xlu0 %4084
      %4086 = vrot.lane.b32.xlu0 %v1283, 80
      %v4087 = vpop.permute.xlu0 %4086
      %4088 = vrot.lane.b32.xlu0 %v1286, 80
      %v4089 = vpop.permute.xlu0 %4088
      %4090 = vrot.lane.b32.xlu0 %v1289, 80
      %v4091 = vpop.permute.xlu0 %4090
      %4092 = vrot.lane.b32.xlu0 %v1292, 80
      %v4093 = vpop.permute.xlu0 %4092
      %4094 = vrot.lane.b32.xlu0 %v1300, 80
      %v4095 = vpop.permute.xlu0 %4094
      %4096 = vrot.lane.b32.xlu0 %v1370, 80
      %v4097 = vpop.permute.xlu0 %4096
      %4098 = vrot.lane.b32.xlu0 %v1373, 80
      %v4099 = vpop.permute.xlu0 %4098
      %4100 = vrot.lane.b32.xlu0 %v1376, 80
      %v4101 = vpop.permute.xlu0 %4100
      %4102 = vrot.lane.b32.xlu0 %v1379, 80
      %v4103 = vpop.permute.xlu0 %4102
      %4104 = vrot.lane.b32.xlu0 %v1382, 80
      %v4105 = vpop.permute.xlu0 %4104
      %4106 = vrot.lane.b32.xlu0 %v1385, 80
      %v4107 = vpop.permute.xlu0 %4106
      %4108 = vrot.lane.b32.xlu0 %v1393, 80
      %v4109 = vpop.permute.xlu0 %4108
      %v4139 = vsel %vm2753, %v1059, %v3243
      %v4140 = vsel %vm2753, %v1062, %v3245
      %v4141 = vsel %vm2753, %v1065, %v3247
      %v4142 = vsel %vm2753, %v1068, %v3249
      %v4143 = vsel %vm2753, %v1071, %v3251
      %v4144 = vsel %vm2753, %v1074, %v3253
      %v4145 = vsel %vm2753, %v1218, %v3255
      %v4146 = vsel %vm2753, %v1032, %v3257
      %v4147 = vsel %vm2753, %v1080, %v3259
      %v4148 = vsel %vm2753, %v1083, %v3261
      %v4149 = vsel %vm2753, %v1086, %v3263
      %v4150 = vsel %vm2753, %v1089, %v3265
      %v4151 = vsel %vm2753, %v1092, %v3267
      %v4152 = vsel %vm2753, %v1095, %v3269
      %v4153 = vsel %vm2753, %v1221, %v3271
      %v4154 = vsel %vm2753, %v1101, %v3273
      %v4155 = vsel %vm2753, %v1104, %v3275
      %v4156 = vsel %vm2753, %v1107, %v3277
      %v4157 = vsel %vm2753, %v1110, %v3279
      %v4158 = vsel %vm2753, %v1113, %v3281
      %v4159 = vsel %vm2753, %v1116, %v3283
      %v4160 = vsel %vm2753, %v1224, %v3285
      %v4161 = vsel %vm2753, %v1256, %v3287
      %v4162 = vsel %vm2753, %v1259, %v3289
      %v4163 = vsel %vm2753, %v1262, %v3291
      %v4164 = vsel %vm2753, %v1265, %v3293
      %v4165 = vsel %vm2753, %v1268, %v3295
      %v4166 = vsel %vm2753, %v1271, %v3297
      %v4167 = vsel %vm2753, %v1297, %v3299
      %v4168 = vsel %vm2783, %v4139, %v3330
      %v4169 = vsel %vm2783, %v4140, %v3332
      %v4170 = vsel %vm2783, %v4141, %v3334
      %v4171 = vsel %vm2783, %v4142, %v3336
      %v4172 = vsel %vm2783, %v4143, %v3338
      %v4173 = vsel %vm2783, %v4144, %v3340
      %v4174 = vsel %vm2783, %v4145, %v3342
      %v4175 = vsel %vm2783, %v4146, %v3344
      %v4176 = vsel %vm2783, %v4147, %v3330
      %v4177 = vsel %vm2783, %v4148, %v3346
      %v4178 = vsel %vm2783, %v4149, %v3348
      %v4179 = vsel %vm2783, %v4150, %v3350
      %v4180 = vsel %vm2783, %v4151, %v3352
      %v4181 = vsel %vm2783, %v4152, %v3354
      %v4182 = vsel %vm2783, %v4153, %v3356
      %v4183 = vsel %vm2783, %v4146, %v3358
      %v4184 = vsel %vm2783, %v4154, %v3330
      %v4185 = vsel %vm2783, %v4155, %v3360
      %v4186 = vsel %vm2783, %v4156, %v3362
      %v4187 = vsel %vm2783, %v4157, %v3364
      %v4188 = vsel %vm2783, %v4158, %v3366
      %v4189 = vsel %vm2783, %v4159, %v3368
      %v4190 = vsel %vm2783, %v4160, %v3370
      %v4191 = vsel %vm2783, %v4146, %v3372
      %v4192 = vsel %vm2783, %v4161, %v3330
      %v4193 = vsel %vm2783, %v4162, %v3374
      %v4194 = vsel %vm2783, %v4163, %v3376
      %v4195 = vsel %vm2783, %v4164, %v3378
      %v4196 = vsel %vm2783, %v4165, %v3380
      %v4197 = vsel %vm2783, %v4166, %v3382
      %v4198 = vsel %vm2783, %v4167, %v3384
      %v4199 = vsel %vm2783, %v4146, %v3386
      %v4200 = vsel %vm2813, %v4168, %v3417
      %v4201 = vsel %vm2813, %v4169, %v3419
      %v4202 = vsel %vm2813, %v4170, %v3421
      %v4203 = vsel %vm2813, %v4171, %v3423
      %v4204 = vsel %vm2813, %v4172, %v3425
      %v4205 = vsel %vm2813, %v4173, %v3427
      %v4206 = vsel %vm2813, %v4174, %v3429
      %v4207 = vsel %vm2813, %v4175, %v3431
      %v4208 = vsel %vm2813, %v4176, %v3417
      %v4209 = vsel %vm2813, %v4177, %v3433
      %v4210 = vsel %vm2813, %v4178, %v3435
      %v4211 = vsel %vm2813, %v4179, %v3437
      %v4212 = vsel %vm2813, %v4180, %v3439
      %v4213 = vsel %vm2813, %v4181, %v3441
      %v4214 = vsel %vm2813, %v4182, %v3443
      %v4215 = vsel %vm2813, %v4183, %v3445
      %v4216 = vsel %vm2813, %v4184, %v3417
      %v4217 = vsel %vm2813, %v4185, %v3447
      %v4218 = vsel %vm2813, %v4186, %v3449
      %v4219 = vsel %vm2813, %v4187, %v3451
      %v4220 = vsel %vm2813, %v4188, %v3453
      %v4221 = vsel %vm2813, %v4189, %v3455
      %v4222 = vsel %vm2813, %v4190, %v3457
      %v4223 = vsel %vm2813, %v4191, %v3459
      %v4224 = vsel %vm2813, %v4192, %v3417
      %v4225 = vsel %vm2813, %v4193, %v3461
      %v4226 = vsel %vm2813, %v4194, %v3463
      %v4227 = vsel %vm2813, %v4195, %v3465
      %v4228 = vsel %vm2813, %v4196, %v3467
      %v4229 = vsel %vm2813, %v4197, %v3469
      %v4230 = vsel %vm2813, %v4198, %v3471
      %v4231 = vsel %vm2813, %v4199, %v3473
      %v4232 = vsel %vm2846, %v4200, %v3504
      %v4233 = vsel %vm2846, %v4201, %v3506
      %v4234 = vsel %vm2846, %v4202, %v3508
      %v4235 = vsel %vm2846, %v4203, %v3510
      %v4236 = vsel %vm2846, %v4204, %v3512
      %v4237 = vsel %vm2846, %v4205, %v3514
      %v4238 = vsel %vm2846, %v4206, %v3516
      %v4239 = vsel %vm2846, %v4207, %v3518
      %v4240 = vsel %vm2846, %v4208, %v3504
      %v4241 = vsel %vm2846, %v4209, %v3520
      %v4242 = vsel %vm2846, %v4210, %v3522
      %v4243 = vsel %vm2846, %v4211, %v3524
      %v4244 = vsel %vm2846, %v4212, %v3526
      %v4245 = vsel %vm2846, %v4213, %v3528
      %v4246 = vsel %vm2846, %v4214, %v3530
      %v4247 = vsel %vm2846, %v4215, %v3532
      %v4248 = vsel %vm2846, %v4216, %v3504
      %v4249 = vsel %vm2846, %v4217, %v3534
      %v4250 = vsel %vm2846, %v4218, %v3536
      %v4251 = vsel %vm2846, %v4219, %v3538
      %v4252 = vsel %vm2846, %v4220, %v3540
      %v4253 = vsel %vm2846, %v4221, %v3542
      %v4254 = vsel %vm2846, %v4222, %v3544
      %v4255 = vsel %vm2846, %v4223, %v3546
      %v4256 = vsel %vm2846, %v4224, %v3504
      %v4257 = vsel %vm2846, %v4225, %v3548
      %v4258 = vsel %vm2846, %v4226, %v3550
      %v4259 = vsel %vm2846, %v4227, %v3552
      %v4260 = vsel %vm2846, %v4228, %v3554
      %v4261 = vsel %vm2846, %v4229, %v3556
      %v4262 = vsel %vm2846, %v4230, %v3558
      %v4263 = vsel %vm2846, %v4231, %v3560
      %v4264 = vsel %vm2879, %v4232, %v3591
      %v4265 = vsel %vm2879, %v4233, %v3593
      %v4266 = vsel %vm2879, %v4234, %v3595
      %v4267 = vsel %vm2879, %v4235, %v3597
      %v4268 = vsel %vm2879, %v4236, %v3599
      %v4269 = vsel %vm2879, %v4237, %v3601
      %v4270 = vsel %vm2879, %v4238, %v3603
      %v4271 = vsel %vm2879, %v4239, %v3605
      %v4272 = vsel %vm2879, %v4240, %v3607
      %v4273 = vsel %vm2879, %v4241, %v3609
      %v4274 = vsel %vm2879, %v4242, %v3611
      %v4275 = vsel %vm2879, %v4243, %v3613
      %v4276 = vsel %vm2879, %v4244, %v3615
      %v4277 = vsel %vm2879, %v4245, %v3617
      %v4278 = vsel %vm2879, %v4246, %v3619
      %v4279 = vsel %vm2879, %v4247, %v3621
      %v4280 = vsel %vm2879, %v4248, %v3623
      %v4281 = vsel %vm2879, %v4249, %v3625
      %v4282 = vsel %vm2879, %v4250, %v3627
      %v4283 = vsel %vm2879, %v4251, %v3629
      %v4284 = vsel %vm2879, %v4252, %v3631
      %v4285 = vsel %vm2879, %v4253, %v3633
      %v4286 = vsel %vm2879, %v4254, %v3635
      %v4287 = vsel %vm2879, %v4255, %v3637
      %v4288 = vsel %vm2879, %v4256, %v3639
      %v4289 = vsel %vm2879, %v4257, %v3641
      %v4290 = vsel %vm2879, %v4258, %v3643
      %v4291 = vsel %vm2879, %v4259, %v3645
      %v4292 = vsel %vm2879, %v4260, %v3647
      %v4293 = vsel %vm2879, %v4261, %v3649
      %v4294 = vsel %vm2879, %v4262, %v3651
      %v4295 = vsel %vm2879, %v4263, %v3653
      %v4296 = vsel %vm2912, %v4264, %v3687
      %v4297 = vsel %vm2912, %v4265, %v3689
      %v4298 = vsel %vm2912, %v4266, %v3691
      %v4299 = vsel %vm2912, %v4267, %v3693
      %v4300 = vsel %vm2912, %v4268, %v3695
      %v4301 = vsel %vm2912, %v4269, %v3697
      %v4302 = vsel %vm2912, %v4270, %v3699
      %v4303 = vsel %vm2912, %v4271, %v3701
      %v4304 = vsel %vm2912, %v4272, %v3703
      %v4305 = vsel %vm2912, %v4273, %v3705
      %v4306 = vsel %vm2912, %v4274, %v3707
      %v4307 = vsel %vm2912, %v4275, %v3709
      %v4308 = vsel %vm2912, %v4276, %v3711
      %v4309 = vsel %vm2912, %v4277, %v3713
      %v4310 = vsel %vm2912, %v4278, %v3715
      %v4311 = vsel %vm2912, %v4279, %v3717
      %v4312 = vsel %vm2912, %v4280, %v3719
      %v4313 = vsel %vm2912, %v4281, %v3721
      %v4314 = vsel %vm2912, %v4282, %v3723
      %v4315 = vsel %vm2912, %v4283, %v3725
      %v4316 = vsel %vm2912, %v4284, %v3727
      %v4317 = vsel %vm2912, %v4285, %v3729
      %v4318 = vsel %vm2912, %v4286, %v3731
      %v4319 = vsel %vm2912, %v4287, %v3733
      %v4320 = vsel %vm2912, %v4288, %v3735
      %v4321 = vsel %vm2912, %v4289, %v3737
      %v4322 = vsel %vm2912, %v4290, %v3739
      %v4323 = vsel %vm2912, %v4291, %v3741
      %v4324 = vsel %vm2912, %v4292, %v3743
      %v4325 = vsel %vm2912, %v4293, %v3745
      %v4326 = vsel %vm2912, %v4294, %v3747
      %v4327 = vsel %vm2912, %v4295, %v3749
      %v4328 = vsel %vm2945, %v4296, %v3783
      %v4329 = vsel %vm2945, %v4297, %v3785
      %v4330 = vsel %vm2945, %v4298, %v3787
      %v4331 = vsel %vm2945, %v4299, %v3789
      %v4332 = vsel %vm2945, %v4300, %v3791
      %v4333 = vsel %vm2945, %v4301, %v3793
      %v4334 = vsel %vm2945, %v4302, %v3795
      %v4335 = vsel %vm2945, %v4303, %v3797
      %v4336 = vsel %vm2945, %v4304, %v3799
      %v4337 = vsel %vm2945, %v4305, %v3801
      %v4338 = vsel %vm2945, %v4306, %v3803
      %v4339 = vsel %vm2945, %v4307, %v3805
      %v4340 = vsel %vm2945, %v4308, %v3807
      %v4341 = vsel %vm2945, %v4309, %v3809
      %v4342 = vsel %vm2945, %v4310, %v3811
      %v4343 = vsel %vm2945, %v4311, %v3813
      %v4344 = vsel %vm2945, %v4312, %v3815
      %v4345 = vsel %vm2945, %v4313, %v3817
      %v4346 = vsel %vm2945, %v4314, %v3819
      %v4347 = vsel %vm2945, %v4315, %v3821
      %v4348 = vsel %vm2945, %v4316, %v3823
      %v4349 = vsel %vm2945, %v4317, %v3825
      %v4350 = vsel %vm2945, %v4318, %v3827
      %v4351 = vsel %vm2945, %v4319, %v3829
      %v4352 = vsel %vm2945, %v4320, %v3831
      %v4353 = vsel %vm2945, %v4321, %v3833
      %v4354 = vsel %vm2945, %v4322, %v3835
      %v4355 = vsel %vm2945, %v4323, %v3837
      %v4356 = vsel %vm2945, %v4324, %v3839
      %v4357 = vsel %vm2945, %v4325, %v3841
      %v4358 = vsel %vm2945, %v4326, %v3843
      %v4359 = vsel %vm2945, %v4327, %v3845
      %v4360 = vsel %vm2978, %v4328, %v3879
      %v4361 = vsel %vm2978, %v4329, %v3881
      %v4362 = vsel %vm2978, %v4330, %v3883
      %v4363 = vsel %vm2978, %v4331, %v3885
      %v4364 = vsel %vm2978, %v4332, %v3887
      %v4365 = vsel %vm2978, %v4333, %v3889
      %v4366 = vsel %vm2978, %v4334, %v3891
      %v4367 = vsel %vm2978, %v4335, %v3893
      %v4368 = vsel %vm2978, %v4336, %v3895
      %v4369 = vsel %vm2978, %v4337, %v3897
      %v4370 = vsel %vm2978, %v4338, %v3899
      %v4371 = vsel %vm2978, %v4339, %v3901
      %v4372 = vsel %vm2978, %v4340, %v3903
      %v4373 = vsel %vm2978, %v4341, %v3905
      %v4374 = vsel %vm2978, %v4342, %v3907
      %v4375 = vsel %vm2978, %v4343, %v3893
      %v4376 = vsel %vm2978, %v4344, %v3909
      %v4377 = vsel %vm2978, %v4345, %v3911
      %v4378 = vsel %vm2978, %v4346, %v3913
      %v4379 = vsel %vm2978, %v4347, %v3915
      %v4380 = vsel %vm2978, %v4348, %v3917
      %v4381 = vsel %vm2978, %v4349, %v3919
      %v4382 = vsel %vm2978, %v4350, %v3921
      %v4383 = vsel %vm2978, %v4351, %v3893
      %v4384 = vsel %vm2978, %v4352, %v3923
      %v4385 = vsel %vm2978, %v4353, %v3925
      %v4386 = vsel %vm2978, %v4354, %v3927
      %v4387 = vsel %vm2978, %v4355, %v3929
      %v4388 = vsel %vm2978, %v4356, %v3931
      %v4389 = vsel %vm2978, %v4357, %v3933
      %v4390 = vsel %vm2978, %v4358, %v3935
      %v4391 = vsel %vm2978, %v4359, %v3893
      %v4392 = vsel %vm3011, %v4360, %v3966
      %v4393 = vsel %vm3011, %v4361, %v3968
      %v4394 = vsel %vm3011, %v4362, %v3970
      %v4395 = vsel %vm3011, %v4363, %v3972
      %v4396 = vsel %vm3011, %v4364, %v3974
      %v4397 = vsel %vm3011, %v4365, %v3976
      %v4398 = vsel %vm3011, %v4366, %v3978
      %v4399 = vsel %vm3011, %v4367, %v3980
      %v4400 = vsel %vm3011, %v4368, %v3982
      %v4401 = vsel %vm3011, %v4369, %v3984
      %v4402 = vsel %vm3011, %v4370, %v3986
      %v4403 = vsel %vm3011, %v4371, %v3988
      %v4404 = vsel %vm3011, %v4372, %v3990
      %v4405 = vsel %vm3011, %v4373, %v3992
      %v4406 = vsel %vm3011, %v4374, %v3994
      %v4407 = vsel %vm3011, %v4375, %v3980
      %v4408 = vsel %vm3011, %v4376, %v3996
      %v4409 = vsel %vm3011, %v4377, %v3998
      %v4410 = vsel %vm3011, %v4378, %v4000
      %v4411 = vsel %vm3011, %v4379, %v4002
      %v4412 = vsel %vm3011, %v4380, %v4004
      %v4413 = vsel %vm3011, %v4381, %v4006
      %v4414 = vsel %vm3011, %v4382, %v4008
      %v4415 = vsel %vm3011, %v4383, %v3980
      %v4416 = vsel %vm3011, %v4384, %v4010
      %v4417 = vsel %vm3011, %v4385, %v4012
      %v4418 = vsel %vm3011, %v4386, %v4014
      %v4419 = vsel %vm3011, %v4387, %v4016
      %v4420 = vsel %vm3011, %v4388, %v4018
      %v4421 = vsel %vm3011, %v4389, %v4020
      %v4422 = vsel %vm3011, %v4390, %v4022
      %v4423 = vsel %vm3011, %v4391, %v3980
      %v4424 = vsel %vm3044, %v4392, %v4053
      %v4425 = vsel %vm3044, %v4393, %v4055
      %v4426 = vsel %vm3044, %v4394, %v4057
      %v4427 = vsel %vm3044, %v4395, %v4059
      %v4428 = vsel %vm3044, %v4396, %v4061
      %v4429 = vsel %vm3044, %v4397, %v4063
      %v4430 = vsel %vm3044, %v4398, %v4065
      %v4431 = vsel %vm3044, %v4399, %v4067
      %v4432 = vsel %vm3044, %v4400, %v4069
      %v4433 = vsel %vm3044, %v4401, %v4071
      %v4434 = vsel %vm3044, %v4402, %v4073
      %v4435 = vsel %vm3044, %v4403, %v4075
      %v4436 = vsel %vm3044, %v4404, %v4077
      %v4437 = vsel %vm3044, %v4405, %v4079
      %v4438 = vsel %vm3044, %v4406, %v4081
      %v4439 = vsel %vm3044, %v4407, %v4067
      %v4440 = vsel %vm3044, %v4408, %v4083
      %v4441 = vsel %vm3044, %v4409, %v4085
      %v4442 = vsel %vm3044, %v4410, %v4087
      %v4443 = vsel %vm3044, %v4411, %v4089
      %v4444 = vsel %vm3044, %v4412, %v4091
      %v4445 = vsel %vm3044, %v4413, %v4093
      %v4446 = vsel %vm3044, %v4414, %v4095
      %v4447 = vsel %vm3044, %v4415, %v4067
      %v4448 = vsel %vm3044, %v4416, %v4097
      %v4449 = vsel %vm3044, %v4417, %v4099
      %v4450 = vsel %vm3044, %v4418, %v4101
      %v4451 = vsel %vm3044, %v4419, %v4103
      %v4452 = vsel %vm3044, %v4420, %v4105
      %v4453 = vsel %vm3044, %v4421, %v4107
      %v4454 = vsel %vm3044, %v4422, %v4109
      %v4455 = vsel %vm3044, %v4423, %v4067
      %v4456 = vpack.c.bf16 %v3211, %v3210
      %v4457 = vpack.c.bf16 %v4425, %v4424
      %v4458 = vpack.c.bf16 %v3213, %v3212
      %v4459 = vpack.c.bf16 %v4427, %v4426
      %v4460 = vpack.c.bf16 %v3215, %v3214
      %v4461 = vpack.c.bf16 %v4429, %v4428
      %v4462 = vpack.c.bf16 %v3217, %v3216
      %v4463 = vpack.c.bf16 %v4431, %v4430
      %v4464 = vpack.c.bf16 %v3219, %v3218
      %v4465 = vpack.c.bf16 %v4433, %v4432
      %v4466 = vpack.c.bf16 %v3221, %v3220
      %v4467 = vpack.c.bf16 %v4435, %v4434
      %v4468 = vpack.c.bf16 %v3223, %v3222
      %v4469 = vpack.c.bf16 %v4437, %v4436
      %v4470 = vpack.c.bf16 %v3225, %v3224
      %v4471 = vpack.c.bf16 %v4439, %v4438
      %v4472 = vpack.c.bf16 %v3227, %v3226
      %v4473 = vpack.c.bf16 %v4441, %v4440
      %v4474 = vpack.c.bf16 %v3229, %v3228
      %v4475 = vpack.c.bf16 %v4443, %v4442
      %v4476 = vpack.c.bf16 %v3231, %v3230
      %v4477 = vpack.c.bf16 %v4445, %v4444
      %v4478 = vpack.c.bf16 %v3233, %v3232
      %v4479 = vpack.c.bf16 %v4447, %v4446
      %v4480 = vpack.c.bf16 %v3235, %v3234
      %v4481 = vpack.c.bf16 %v4449, %v4448
      %v4482 = vpack.c.bf16 %v3237, %v3236
      %v4483 = vpack.c.bf16 %v4451, %v4450
      %v4484 = vpack.c.bf16 %v3239, %v3238
      %v4485 = vpack.c.bf16 %v4453, %v4452
      %v4486 = vpack.c.bf16 %v3241, %v3240
      %v4487 = vpack.c.bf16 %v4455, %v4454
      %v4488 = vld [vmem:[%s5] sm:$0xf]
      %v4489 = vld [vmem:[%s5 + $0x4] sm:$0xf]
      %v4490 = vld [vmem:[%s5 + $0x8] sm:$0xf]
      %v4491 = vld [vmem:[%s5 + $0xc] sm:$0xf]
      %v4492 = vld [vmem:[%s5 + $0x10] sm:$0xf]
      %v4493 = vld [vmem:[%s5 + $0x14] sm:$0xf]
      %v4494 = vld [vmem:[%s5 + $0x18] sm:$0xf]
      %v4495 = vld [vmem:[%s5 + $0x1c] sm:$0xf]
      %v4496 = vld [vmem:[%s5 + $0x20] sm:$0xf]
      %v4497 = vld [vmem:[%s5 + $0x24] sm:$0xf]
      %v4498 = vld [vmem:[%s5 + $0x28] sm:$0xf]
      %v4499 = vld [vmem:[%s5 + $0x2c] sm:$0xf]
      %v4500 = vld [vmem:[%s5 + $0x30] sm:$0xf]
      %v4501 = vld [vmem:[%s5 + $0x34] sm:$0xf]
      %v4502 = vld [vmem:[%s5 + $0x38] sm:$0xf]
      %v4503 = vld [vmem:[%s5 + $0x3c] sm:$0xf]
      %v4504 = vld [vmem:[%s5 + $0x40] sm:$0xf]
      %v4505 = vld [vmem:[%s5 + $0x44] sm:$0xf]
      %v4506 = vld [vmem:[%s5 + $0x48] sm:$0xf]
      %v4507 = vld [vmem:[%s5 + $0x4c] sm:$0xf]
      %v4508 = vld [vmem:[%s5 + $0x50] sm:$0xf]
      %v4509 = vld [vmem:[%s5 + $0x54] sm:$0xf]
      %v4510 = vld [vmem:[%s5 + $0x58] sm:$0xf]
      %v4511 = vld [vmem:[%s5 + $0x5c] sm:$0xf]
      %v4512 = vld [vmem:[%s5 + $0x60] sm:$0xf]
      %v4513 = vld [vmem:[%s5 + $0x64] sm:$0xf]
      %v4514 = vld [vmem:[%s5 + $0x68] sm:$0xf]
      %v4515 = vld [vmem:[%s6] sm:$0x1]
      %v4517 = vlaneseq
      %v4518 = vshrl.u32 %v4517, 7
      %v4519 = vsub.s32 0, %v4518
      %v4520 = vrot.slane %v4515, %v4519
      %v4549 = vunpack.c.l.b16 %v4488
      %v4550 = vunpack.c.l.b16 %v4489
      %v4551 = vunpack.c.l.b16 %v4490
      %v4552 = vunpack.c.l.b16 %v4491
      %v4553 = vunpack.c.l.b16 %v4492
      %v4554 = vunpack.c.l.b16 %v4493
      %v4555 = vunpack.c.l.b16 %v4494
      %v4556 = vunpack.c.l.b16 %v4495
      %v4557 = vunpack.c.l.b16 %v4496
      %v4558 = vunpack.c.l.b16 %v4497
      %v4559 = vunpack.c.l.b16 %v4498
      %v4560 = vunpack.c.l.b16 %v4499
      %v4561 = vunpack.c.l.b16 %v4500
      %v4562 = vunpack.c.l.b16 %v4501
      %v4563 = vunpack.c.l.b16 %v4502
      %v4564 = vunpack.c.l.b16 %v4503
      %v4565 = vunpack.c.l.b16 %v4504
      %v4566 = vunpack.c.l.b16 %v4505
      %v4567 = vunpack.c.l.b16 %v4506
      %v4568 = vunpack.c.l.b16 %v4507
      %v4569 = vunpack.c.l.b16 %v4508
      %v4570 = vunpack.c.l.b16 %v4509
      %v4571 = vunpack.c.l.b16 %v4510
      %v4572 = vunpack.c.l.b16 %v4511
      %v4573 = vunpack.c.l.b16 %v4512
      %v4574 = vunpack.c.l.b16 %v4513
      %v4575 = vunpack.c.l.b16 %v4514
      %v4576 = vpack.c.b16 %v4550, %v4549
      %v4577 = vpack.c.b16 %v4552, %v4551
      %v4578 = vpack.c.b16 %v4554, %v4553
      %v4579 = vpack.c.b16 %v4556, %v4555
      %v4580 = vpack.c.b16 %v4558, %v4557
      %v4581 = vpack.c.b16 %v4560, %v4559
      %v4582 = vpack.c.b16 %v4562, %v4561
      %v4583 = vpack.c.b16 %v4564, %v4563
      %v4584 = vpack.c.b16 %v4566, %v4565
      %v4585 = vpack.c.b16 %v4568, %v4567
      %v4586 = vpack.c.b16 %v4570, %v4569
      %v4587 = vpack.c.b16 %v4572, %v4571
      %v4588 = vpack.c.b16 %v4574, %v4573
      %v4589 = vpack.c.b16 %v4575, %v4575
      %v4604 = vsel %vm3077, %v4457, 0
      %v4607 = vsel %vm3077, %v4459, 0
      %v4610 = vsel %vm3077, %v4461, 0
      %v4613 = vsel %vm3077, %v4463, 0
      %v4616 = vsel %vm3077, %v4465, 0
      %v4619 = vsel %vm3077, %v4467, 0
      %v4622 = vsel %vm3077, %v4469, 0
      %v4625 = vsel %vm3077, %v4471, 0
      %v4628 = vsel %vm3077, %v4473, 0
      %v4631 = vsel %vm3077, %v4475, 0
      %v4634 = vsel %vm3077, %v4477, 0
      %v4637 = vsel %vm3077, %v4479, 0
      %v4640 = vsel %vm3077, %v4481, 0
      %v4643 = vsel %vm3077, %v4483, 0
      %v4646 = vsel %vm3077, %v4485, 0
      %v4649 = vsel %vm3077, %v4487, 0
      %vm4651 = vcmask 1043456
      %v4653 = vsel %vm4651, %v4589, 0
      %4655 = vmatprep.subr.bf16.mxu0 0
      %4656 = vmatpush1.bf16.msra.mxu0 %v4583
      %4657 = vmatprep.subr.bf16.mxu0 0
      %4658 = vmatpush1.bf16.msra.mxu0 %v4582
      %4659 = vmatprep.subr.bf16.mxu0 0
      %4660 = vmatpush1.bf16.msra.mxu0 %v4581
      %4661 = vmatprep.subr.bf16.mxu0 0
      %4662 = vmatpush1.bf16.msra.mxu0 %v4580
      %4663 = vmatprep.subr.bf16.mxu0 0
      %4664 = vmatpush1.bf16.msra.mxu0 %v4579
      %4665 = vmatprep.subr.bf16.mxu0 0
      %4666 = vmatpush1.bf16.msra.mxu0 %v4578
      %4667 = vmatprep.subr.bf16.mxu0 0
      %4668 = vmatpush1.bf16.msra.mxu0 %v4577
      %4669 = vmatprep.subr.bf16.mxu0 0
      %4670 = vmatpush1.bf16.msra.mxu0 %v4576
      %4671 = vmatprep.subr.bf16.mxu0 0
      %4672 = vmatpush2.bf16.msra.mxu0 0
      %4673 = vmatprep.subr.bf16.mxu0 0
      %4674 = vmatpush2.bf16.msra.mxu0 0
      %4675 = vmatprep.subr.bf16.mxu0 0
      %4676 = vmatpush2.bf16.msra.mxu0 %v4653
      %4677 = vmatprep.subr.bf16.mxu0 0
      %4678 = vmatpush2.bf16.msra.mxu0 %v4588
      %4679 = vmatprep.subr.bf16.mxu0 0
      %4680 = vmatpush2.bf16.msra.mxu0 %v4587
      %4681 = vmatprep.subr.bf16.mxu0 0
      %4682 = vmatpush2.bf16.msra.mxu0 %v4586
      %4683 = vmatprep.subr.bf16.mxu0 0
      %4684 = vmatpush2.bf16.msra.mxu0 %v4585
      %4685 = vmatprep.subr.bf16.mxu0 0
      %4686 = vmatpush2.bf16.msra.mxu0 %v4584
      %4687 = vmatprep.mubr.bf16.mxu0 %v4604
      %4688 = vmatmul.mubr.bf16.gmra.mxu0 %v4456
      %v4689 = vpop.f32.mrf.mxu0
      %v4690 = vadd.f32 %v4520, %v4689
      %v4691 = vpop.f32.mrf.mxu0
      %v4692 = vpop.f32.mrf.mxu0
      %v4693 = vadd.f32 %v4520, %v4692
      %v4694 = vpop.f32.mrf.mxu0
      %4695 = vmatprep.mubr.bf16.mxu0 %v4607
      %4696 = vmatmul.mubr.bf16.gmra.mxu0 %v4458
      %v4697 = vpop.f32.mrf.mxu0
      %v4698 = vadd.f32 %v4520, %v4697
      %v4699 = vpop.f32.mrf.mxu0
      %v4700 = vpop.f32.mrf.mxu0
      %v4701 = vadd.f32 %v4520, %v4700
      %v4702 = vpop.f32.mrf.mxu0
      %4703 = vmatprep.mubr.bf16.mxu0 %v4610
      %4704 = vmatmul.mubr.bf16.gmra.mxu0 %v4460
      %v4705 = vpop.f32.mrf.mxu0
      %v4706 = vadd.f32 %v4520, %v4705
      %v4707 = vpop.f32.mrf.mxu0
      %v4708 = vpop.f32.mrf.mxu0
      %v4709 = vadd.f32 %v4520, %v4708
      %v4710 = vpop.f32.mrf.mxu0
      %4711 = vmatprep.mubr.bf16.mxu0 %v4613
      %4712 = vmatmul.mubr.bf16.gmra.mxu0 %v4462
      %v4713 = vpop.f32.mrf.mxu0
      %v4714 = vadd.f32 %v4520, %v4713
      %v4715 = vpop.f32.mrf.mxu0
      %v4716 = vpop.f32.mrf.mxu0
      %v4717 = vadd.f32 %v4520, %v4716
      %v4718 = vpop.f32.mrf.mxu0
      %4719 = vmatprep.mubr.bf16.mxu0 %v4616
      %4720 = vmatmul.mubr.bf16.gmra.mxu0 %v4464
      %v4721 = vpop.f32.mrf.mxu0
      %v4722 = vadd.f32 %v4520, %v4721
      %v4723 = vpop.f32.mrf.mxu0
      %v4724 = vpop.f32.mrf.mxu0
      %v4725 = vadd.f32 %v4520, %v4724
      %v4726 = vpop.f32.mrf.mxu0
      %4727 = vmatprep.mubr.bf16.mxu0 %v4619
      %4728 = vmatmul.mubr.bf16.gmra.mxu0 %v4466
      %v4729 = vpop.f32.mrf.mxu0
      %v4730 = vadd.f32 %v4520, %v4729
      %v4731 = vpop.f32.mrf.mxu0
      %v4732 = vpop.f32.mrf.mxu0
      %v4733 = vadd.f32 %v4520, %v4732
      %v4734 = vpop.f32.mrf.mxu0
      %4735 = vmatprep.mubr.bf16.mxu0 %v4622
      %4736 = vmatmul.mubr.bf16.gmra.mxu0 %v4468
      %v4737 = vpop.f32.mrf.mxu0
      %v4738 = vadd.f32 %v4520, %v4737
      %v4739 = vpop.f32.mrf.mxu0
      %v4740 = vpop.f32.mrf.mxu0
      %v4741 = vadd.f32 %v4520, %v4740
      %v4742 = vpop.f32.mrf.mxu0
      %4743 = vmatprep.mubr.bf16.mxu0 %v4625
      %4744 = vmatmul.mubr.bf16.gmra.mxu0 %v4470
      %v4745 = vpop.f32.mrf.mxu0
      %v4746 = vadd.f32 %v4520, %v4745
      %v4747 = vpop.f32.mrf.mxu0
      %v4748 = vpop.f32.mrf.mxu0
      %v4749 = vadd.f32 %v4520, %v4748
      %v4750 = vpop.f32.mrf.mxu0
      %4751 = vmatprep.mubr.bf16.mxu0 %v4628
      %4752 = vmatmul.mubr.bf16.gmra.mxu0 %v4472
      %v4753 = vpop.f32.mrf.mxu0
      %v4754 = vadd.f32 %v4520, %v4753
      %v4755 = vpop.f32.mrf.mxu0
      %v4756 = vpop.f32.mrf.mxu0
      %v4757 = vadd.f32 %v4520, %v4756
      %v4758 = vpop.f32.mrf.mxu0
      %4759 = vmatprep.mubr.bf16.mxu0 %v4631
      %4760 = vmatmul.mubr.bf16.gmra.mxu0 %v4474
      %v4761 = vpop.f32.mrf.mxu0
      %v4762 = vadd.f32 %v4520, %v4761
      %v4763 = vpop.f32.mrf.mxu0
      %v4764 = vpop.f32.mrf.mxu0
      %v4765 = vadd.f32 %v4520, %v4764
      %v4766 = vpop.f32.mrf.mxu0
      %4767 = vmatprep.mubr.bf16.mxu0 %v4634
      %4768 = vmatmul.mubr.bf16.gmra.mxu0 %v4476
      %v4769 = vpop.f32.mrf.mxu0
      %v4770 = vadd.f32 %v4520, %v4769
      %v4771 = vpop.f32.mrf.mxu0
      %v4772 = vpop.f32.mrf.mxu0
      %v4773 = vadd.f32 %v4520, %v4772
      %v4774 = vpop.f32.mrf.mxu0
      %4775 = vmatprep.mubr.bf16.mxu0 %v4637
      %4776 = vmatmul.mubr.bf16.gmra.mxu0 %v4478
      %v4777 = vpop.f32.mrf.mxu0
      %v4778 = vadd.f32 %v4520, %v4777
      %v4779 = vpop.f32.mrf.mxu0
      %v4780 = vpop.f32.mrf.mxu0
      %v4781 = vadd.f32 %v4520, %v4780
      %v4782 = vpop.f32.mrf.mxu0
      %4783 = vmatprep.mubr.bf16.mxu0 %v4640
      %4784 = vmatmul.mubr.bf16.gmra.mxu0 %v4480
      %v4785 = vpop.f32.mrf.mxu0
      %v4786 = vadd.f32 %v4520, %v4785
      %v4787 = vpop.f32.mrf.mxu0
      %v4788 = vpop.f32.mrf.mxu0
      %v4789 = vadd.f32 %v4520, %v4788
      %v4790 = vpop.f32.mrf.mxu0
      %4791 = vmatprep.mubr.bf16.mxu0 %v4643
      %4792 = vmatmul.mubr.bf16.gmra.mxu0 %v4482
      %v4793 = vpop.f32.mrf.mxu0
      %v4794 = vadd.f32 %v4520, %v4793
      %v4795 = vpop.f32.mrf.mxu0
      %v4796 = vpop.f32.mrf.mxu0
      %v4797 = vadd.f32 %v4520, %v4796
      %v4798 = vpop.f32.mrf.mxu0
      %4799 = vmatprep.mubr.bf16.mxu0 %v4646
      %4800 = vmatmul.mubr.bf16.gmra.mxu0 %v4484
      %v4801 = vpop.f32.mrf.mxu0
      %v4802 = vadd.f32 %v4520, %v4801
      %v4803 = vpop.f32.mrf.mxu0
      %v4804 = vpop.f32.mrf.mxu0
      %v4805 = vadd.f32 %v4520, %v4804
      %v4806 = vpop.f32.mrf.mxu0
      %4807 = vmatprep.mubr.bf16.mxu0 %v4649
      %4808 = vmatmul.mubr.bf16.gmra.mxu0 %v4486
      %v4809 = vpop.f32.mrf.mxu0
      %v4810 = vadd.f32 %v4520, %v4809
      %v4811 = vpop.f32.mrf.mxu0
      %v4812 = vpop.f32.mrf.mxu0
      %v4813 = vadd.f32 %v4520, %v4812
      %v4814 = vpop.f32.mrf.mxu0
      %4815 = vdwg.mxu0
      %4816 = vst.msk [vmem:[%s482] sm:$0xff] %vm2846, %v4690
      %4817 = vst.msk [vmem:[%s482 + $0x8] sm:$0xff] %vm2846, %v4693
      %4818 = vst.msk [vmem:[%s482 + $0x10] sm:$0xff] %vm2846, %v4698
      %4819 = vst.msk [vmem:[%s482 + $0x18] sm:$0xff] %vm2846, %v4701
      %4820 = vst.msk [vmem:[%s482 + $0x20] sm:$0xff] %vm2846, %v4706
      %4821 = vst.msk [vmem:[%s482 + $0x28] sm:$0xff] %vm2846, %v4709
      %4822 = vst.msk [vmem:[%s482 + $0x30] sm:$0xff] %vm2846, %v4714
      %4823 = vst.msk [vmem:[%s482 + $0x38] sm:$0xff] %vm2846, %v4717
      %4824 = vst.msk [vmem:[%s482 + $0x40] sm:$0xff] %vm2846, %v4722
      %4825 = vst.msk [vmem:[%s482 + $0x48] sm:$0xff] %vm2846, %v4725
      %4826 = vst.msk [vmem:[%s482 + $0x50] sm:$0xff] %vm2846, %v4730
      %4827 = vst.msk [vmem:[%s482 + $0x58] sm:$0xff] %vm2846, %v4733
      %4828 = vst.msk [vmem:[%s482 + $0x60] sm:$0xff] %vm2846, %v4738
      %4829 = vst.msk [vmem:[%s482 + $0x68] sm:$0xff] %vm2846, %v4741
      %4830 = vst.msk [vmem:[%s482 + $0x70] sm:$0xff] %vm2846, %v4746
      %4831 = vst.msk [vmem:[%s482 + $0x78] sm:$0xff] %vm2846, %v4749
      %4832 = vst.msk [vmem:[%s482 + $0x80] sm:$0xff] %vm2846, %v4754
      %4833 = vst.msk [vmem:[%s482 + $0x88] sm:$0xff] %vm2846, %v4757
      %4834 = vst.msk [vmem:[%s482 + $0x90] sm:$0xff] %vm2846, %v4762
      %4835 = vst.msk [vmem:[%s482 + $0x98] sm:$0xff] %vm2846, %v4765
      %4836 = vst.msk [vmem:[%s482 + $0xa0] sm:$0xff] %vm2846, %v4770
      %4837 = vst.msk [vmem:[%s482 + $0xa8] sm:$0xff] %vm2846, %v4773
      %4838 = vst.msk [vmem:[%s482 + $0xb0] sm:$0xff] %vm2846, %v4778
      %4839 = vst.msk [vmem:[%s482 + $0xb8] sm:$0xff] %vm2846, %v4781
      %4840 = vst.msk [vmem:[%s482 + $0xc0] sm:$0xff] %vm2846, %v4786
      %4841 = vst.msk [vmem:[%s482 + $0xc8] sm:$0xff] %vm2846, %v4789
      %4842 = vst.msk [vmem:[%s482 + $0xd0] sm:$0xff] %vm2846, %v4794
      %4843 = vst.msk [vmem:[%s482 + $0xd8] sm:$0xff] %vm2846, %v4797
      %4844 = vst.msk [vmem:[%s482 + $0xe0] sm:$0xff] %vm2846, %v4802
      %4845 = vst.msk [vmem:[%s482 + $0xe8] sm:$0xff] %vm2846, %v4805
      %4846 = vst.msk [vmem:[%s482 + $0xf0] sm:$0xff] %vm2846, %v4810
      %4847 = vst.msk [vmem:[%s482 + $0xf8] sm:$0xff] %vm2846, %v4813
      %v4848 = vsel %vm2846, %v4690, 0.0
      %v4849 = vsel %vm2846, %v4693, 0.0
      %v4850 = vadd.f32 %v4848, %v4849
      %v4851 = vsel %vm2846, %v4698, 0.0
      %v4852 = vadd.f32 %v4850, %v4851
      %v4853 = vsel %vm2846, %v4701, 0.0
      %v4854 = vadd.f32 %v4852, %v4853
      %v4855 = vsel %vm2846, %v4706, 0.0
      %v4856 = vadd.f32 %v4854, %v4855
      %v4857 = vsel %vm2846, %v4709, 0.0
      %v4858 = vadd.f32 %v4856, %v4857
      %v4859 = vsel %vm2846, %v4714, 0.0
      %v4860 = vadd.f32 %v4858, %v4859
      %v4861 = vsel %vm2846, %v4717, 0.0
      %v4862 = vadd.f32 %v4860, %v4861
      %v4863 = vsel %vm2846, %v4722, 0.0
      %v4864 = vadd.f32 %v4862, %v4863
      %v4865 = vsel %vm2846, %v4725, 0.0
      %v4866 = vadd.f32 %v4864, %v4865
      %v4867 = vsel %vm2846, %v4730, 0.0
      %v4868 = vadd.f32 %v4866, %v4867
      %v4869 = vsel %vm2846, %v4733, 0.0
      %v4870 = vadd.f32 %v4868, %v4869
      %v4871 = vsel %vm2846, %v4738, 0.0
      %v4872 = vadd.f32 %v4870, %v4871
      %v4873 = vsel %vm2846, %v4741, 0.0
      %v4874 = vadd.f32 %v4872, %v4873
      %v4875 = vsel %vm2846, %v4746, 0.0
      %v4876 = vadd.f32 %v4874, %v4875
      %v4877 = vsel %vm2846, %v4749, 0.0
      %v4878 = vadd.f32 %v4876, %v4877
      %v4879 = vsel %vm2846, %v4754, 0.0
      %v4880 = vadd.f32 %v4878, %v4879
      %v4881 = vsel %vm2846, %v4757, 0.0
      %v4882 = vadd.f32 %v4880, %v4881
      %v4883 = vsel %vm2846, %v4762, 0.0
      %v4884 = vadd.f32 %v4882, %v4883
      %v4885 = vsel %vm2846, %v4765, 0.0
      %v4886 = vadd.f32 %v4884, %v4885
      %v4887 = vsel %vm2846, %v4770, 0.0
      %v4888 = vadd.f32 %v4886, %v4887
      %v4889 = vsel %vm2846, %v4773, 0.0
      %v4890 = vadd.f32 %v4888, %v4889
      %v4891 = vsel %vm2846, %v4778, 0.0
      %v4892 = vadd.f32 %v4890, %v4891
      %v4893 = vsel %vm2846, %v4781, 0.0
      %v4894 = vadd.f32 %v4892, %v4893
      %v4895 = vsel %vm2846, %v4786, 0.0
      %v4896 = vadd.f32 %v4894, %v4895
      %v4897 = vsel %vm2846, %v4789, 0.0
      %v4898 = vadd.f32 %v4896, %v4897
      %v4899 = vsel %vm2846, %v4794, 0.0
      %v4900 = vadd.f32 %v4898, %v4899
      %v4901 = vsel %vm2846, %v4797, 0.0
      %v4902 = vadd.f32 %v4900, %v4901
      %v4903 = vsel %vm2846, %v4802, 0.0
      %v4904 = vadd.f32 %v4902, %v4903
      %v4905 = vsel %vm2846, %v4805, 0.0
      %v4906 = vadd.f32 %v4904, %v4905
      %v4907 = vsel %vm2846, %v4810, 0.0
      %v4908 = vadd.f32 %v4906, %v4907
      %v4909 = vsel %vm2846, %v4813, 0.0
      %v4910 = vadd.f32 %v4908, %v4909
      %v4911 = vrot.slane %v4910, 4
      %v4912 = vadd.f32 %v4910, %v4911
      %v4913 = vrot.slane %v4912, 2
      %v4914 = vadd.f32 %v4912, %v4913
      %v4915 = vrot.slane %v4914, 1
      %v4916 = vadd.f32 %v4914, %v4915
      %v4917 = vmul.f32 %v4690, %v4690
      %v4918 = vmul.f32 %v4693, %v4693
      %v4919 = vmul.f32 %v4698, %v4698
      %v4920 = vmul.f32 %v4701, %v4701
      %v4921 = vmul.f32 %v4706, %v4706
      %v4922 = vmul.f32 %v4709, %v4709
      %v4923 = vmul.f32 %v4714, %v4714
      %v4924 = vmul.f32 %v4717, %v4717
      %v4925 = vmul.f32 %v4722, %v4722
      %v4926 = vmul.f32 %v4725, %v4725
      %v4927 = vmul.f32 %v4730, %v4730
      %v4928 = vmul.f32 %v4733, %v4733
      %v4929 = vmul.f32 %v4738, %v4738
      %v4930 = vmul.f32 %v4741, %v4741
      %v4931 = vmul.f32 %v4746, %v4746
      %v4932 = vmul.f32 %v4749, %v4749
      %v4933 = vmul.f32 %v4754, %v4754
      %v4934 = vmul.f32 %v4757, %v4757
      %v4935 = vmul.f32 %v4762, %v4762
      %v4936 = vmul.f32 %v4765, %v4765
      %v4937 = vmul.f32 %v4770, %v4770
      %v4938 = vmul.f32 %v4773, %v4773
      %v4939 = vmul.f32 %v4778, %v4778
      %v4940 = vmul.f32 %v4781, %v4781
      %v4941 = vmul.f32 %v4786, %v4786
      %v4942 = vmul.f32 %v4789, %v4789
      %v4943 = vmul.f32 %v4794, %v4794
      %v4944 = vmul.f32 %v4797, %v4797
      %v4945 = vmul.f32 %v4802, %v4802
      %v4946 = vmul.f32 %v4805, %v4805
      %v4947 = vmul.f32 %v4810, %v4810
      %v4948 = vmul.f32 %v4813, %v4813
      %v4949 = vsel %vm2846, %v4917, 0.0
      %v4950 = vsel %vm2846, %v4918, 0.0
      %v4951 = vadd.f32 %v4949, %v4950
      %v4952 = vsel %vm2846, %v4919, 0.0
      %v4953 = vadd.f32 %v4951, %v4952
      %v4954 = vsel %vm2846, %v4920, 0.0
      %v4955 = vadd.f32 %v4953, %v4954
      %v4956 = vsel %vm2846, %v4921, 0.0
      %v4957 = vadd.f32 %v4955, %v4956
      %v4958 = vsel %vm2846, %v4922, 0.0
      %v4959 = vadd.f32 %v4957, %v4958
      %v4960 = vsel %vm2846, %v4923, 0.0
      %v4961 = vadd.f32 %v4959, %v4960
      %v4962 = vsel %vm2846, %v4924, 0.0
      %v4963 = vadd.f32 %v4961, %v4962
      %v4964 = vsel %vm2846, %v4925, 0.0
      %v4965 = vadd.f32 %v4963, %v4964
      %v4966 = vsel %vm2846, %v4926, 0.0
      %v4967 = vadd.f32 %v4965, %v4966
      %v4968 = vsel %vm2846, %v4927, 0.0
      %v4969 = vadd.f32 %v4967, %v4968
      %v4970 = vsel %vm2846, %v4928, 0.0
      %v4971 = vadd.f32 %v4969, %v4970
      %v4972 = vsel %vm2846, %v4929, 0.0
      %v4973 = vadd.f32 %v4971, %v4972
      %v4974 = vsel %vm2846, %v4930, 0.0
      %v4975 = vadd.f32 %v4973, %v4974
      %v4976 = vsel %vm2846, %v4931, 0.0
      %v4977 = vadd.f32 %v4975, %v4976
      %v4978 = vsel %vm2846, %v4932, 0.0
      %v4979 = vadd.f32 %v4977, %v4978
      %v4980 = vsel %vm2846, %v4933, 0.0
      %v4981 = vadd.f32 %v4979, %v4980
      %v4982 = vsel %vm2846, %v4934, 0.0
      %v4983 = vadd.f32 %v4981, %v4982
      %v4984 = vsel %vm2846, %v4935, 0.0
      %v4985 = vadd.f32 %v4983, %v4984
      %v4986 = vsel %vm2846, %v4936, 0.0
      %v4987 = vadd.f32 %v4985, %v4986
      %v4988 = vsel %vm2846, %v4937, 0.0
      %v4989 = vadd.f32 %v4987, %v4988
      %v4990 = vsel %vm2846, %v4938, 0.0
      %v4991 = vadd.f32 %v4989, %v4990
      %v4992 = vsel %vm2846, %v4939, 0.0
      %v4993 = vadd.f32 %v4991, %v4992
      %v4994 = vsel %vm2846, %v4940, 0.0
      %v4995 = vadd.f32 %v4993, %v4994
      %v4996 = vsel %vm2846, %v4941, 0.0
      %v4997 = vadd.f32 %v4995, %v4996
      %v4998 = vsel %vm2846, %v4942, 0.0
      %v4999 = vadd.f32 %v4997, %v4998
      %v5000 = vsel %vm2846, %v4943, 0.0
      %v5001 = vadd.f32 %v4999, %v5000
      %v5002 = vsel %vm2846, %v4944, 0.0
      %v5003 = vadd.f32 %v5001, %v5002
      %v5004 = vsel %vm2846, %v4945, 0.0
      %v5005 = vadd.f32 %v5003, %v5004
      %v5006 = vsel %vm2846, %v4946, 0.0
      %v5007 = vadd.f32 %v5005, %v5006
      %v5008 = vsel %vm2846, %v4947, 0.0
      %v5009 = vadd.f32 %v5007, %v5008
      %v5010 = vsel %vm2846, %v4948, 0.0
      %v5011 = vadd.f32 %v5009, %v5010
      %v5012 = vrot.slane %v5011, 4
      %v5013 = vadd.f32 %v5011, %v5012
      %v5014 = vrot.slane %v5013, 2
      %v5015 = vadd.f32 %v5013, %v5014
      %v5016 = vrot.slane %v5015, 1
      %v5017 = vadd.f32 %v5015, %v5016
      %v5018 = vsel %vm872, %v4916, %v5017
      %vm5019 = vcmask 254976
      %5020 = vst.msk [vmem:[%s491] sm:$0x3] %vm5019, %v5018
      %s5021 = smul.u32 %s24, 2
      %s5022 = sadd.s32 %s5021, %s25
      %s5023 = smul.u32 32, %s5022
      %p5024 = scmp.lt.s32.totalorder %s5023, 127
      %s5025 = scalar_select %p5024, %s5023, 127
      %s5026 = smul.addr %s5025, 8
      %s5027 = scalar_lea.vmem %s7, %s5026
      %s5028 = smul.u32 %s24, 2
      %s5029 = sadd.s32 %s5028, %s25
      %p5030 = scmp.lt.s32.totalorder %s5029, 3
      %s5031 = scalar_select %p5030, %s5029, 3
      %s5032 = smul.addr %s5031, 2
      %s5033 = scalar_lea.vmem %s8, %s5032
      // Predicated region
      $region49: #{decoder_block3d.3} parent=47 // pred_check
        %p5034 = pneg %p244
      $region50: #{decoder_block3d.3} parent=47 // pred_check_branch
        %5036 = sbr.rel (%p5034) target = $region52
      $region51: #{decoder_block3d.3} parent=47 // pred_region
        %s5037 = smul.u32 %s24, 2
        %s5038 = sadd.s32 %s5037, %s25
        %s5039 = smul.u32 32, %s5038
      $region52: #{decoder_block3d.3} parent=47 // pred_fallthru
        _
      // Predicated region
      $region53: #{decoder_block3d.3} parent=47 // pred_check
        %p5040 = pneg %p274
      $region54: #{decoder_block3d.3} parent=47 // pred_check_branch
        %5042 = sbr.rel (%p5040) target = $region56
      $region55: #{decoder_block3d.3} parent=47 // pred_region
        %s5043 = smul.u32 %s24, 2
        %s5044 = sadd.s32 %s5043, %s25
      $region56: #{decoder_block3d.3} parent=47 // pred_fallthru
        _
    $region48: #{decoder_block3d.3} parent=5 // pred_fallthru
      _
    %p5045 = scmp.le.s32.totalorder 2, %s15
    // Predicated region
    $region57: #{decoder_block3d.3} parent=5 // pred_check
      %p5046 = pneg %p5045
    $region58: #{decoder_block3d.3} parent=5 // pred_check_branch
      %5048 = sbr.rel (%p5046) target = $region60
    $region59: #{decoder_block3d.3} parent=5 // pred_region
      %s5049 = ssub.s32 %s15, 2
      // Predicated region
      $region61: #{decoder_block3d.3} parent=59 // pred_check
        %p5050 = pneg %p250
      $region62: #{decoder_block3d.3} parent=59 // pred_check_branch
        %5052 = sbr.rel (%p5050) target = $region64
      $region63: #{decoder_block3d.3} parent=59 // pred_region
        %s5053 = smul.u32 %s26, 2
        %s5054 = sadd.s32 %s5053, %s27
        %s5055 = smul.u32 32, %s5054
        %p5056 = scmp.lt.s32.totalorder %s5055, 127
        %s5057 = scalar_select %p5056, %s5055, 127
        %s5058 = smul.addr %s5057, 8
        %s5059 = scalar_lea.vmem %s7, %s5058
      $region64: #{decoder_block3d.3} parent=59 // pred_fallthru
        _
      // Predicated region
      $region65: #{decoder_block3d.3} parent=59 // pred_check
        %p5060 = pneg %p280
      $region66: #{decoder_block3d.3} parent=59 // pred_check_branch
        %5062 = sbr.rel (%p5060) target = $region68
      $region67: #{decoder_block3d.3} parent=59 // pred_region
        %s5063 = smul.u32 %s26, 2
        %s5064 = sadd.s32 %s5063, %s27
        %p5065 = scmp.lt.s32.totalorder %s5064, 3
        %s5066 = scalar_select %p5065, %s5064, 3
        %s5067 = smul.addr %s5066, 2
        %s5068 = scalar_lea.vmem %s8, %s5067
      $region68: #{decoder_block3d.3} parent=59 // pred_fallthru
        _
    $region60: #{decoder_block3d.3} parent=5 // pred_fallthru
      _
  $region6: #{decoder_block3d.3} parent=0 // loop_footer
    %s19 = sadd.s32 1, %s15
  $region7: #{decoder_block3d.3} parent=0 // loop_footer_branch
    %14 = sbr.rel target = $region3
  $region8: #{decoder_block3d.3} parent=0 // loop_exit
    _

// kernel: decoder_block3d.2
$region0: #{decoder_block3d.2}
  #allocation0 [shape = 'u32[]', space=smem, size = 0x4, offset = 0x4, fixed_abs, tag = 'smem constant byte address 0x4 - core index']
  #allocation1 [shape = 'u32[144,128]{1,0:T(1,128)}', space=vmem, size = 0x12000, scoped, tag = 'internal scratch']
  %s0 = inlined_call_operand.vmem [shape: bf16[1024,4], index: 0, kind: input, shape index: {}, may-alias: {0,1,2}]
  %s1 = inlined_call_operand.vmem [shape: bf16[1024,4], index: 1, kind: input, shape index: {}, may-alias: {0,1,2}]
  %s2 = inlined_call_operand.vmem [shape: bf16[1024,4], index: 2, kind: input, shape index: {}, may-alias: {0,1,2}]
  %s3 = inlined_call_operand.vmem [shape: bf16[108,8], index: 3, kind: input, shape index: {}]
  %s4 = inlined_call_operand.hbm [shape: f32[1,8], index: 4, kind: input, shape index: {}]
  %s5 = inlined_call_operand.vmem [shape: f32[1024,8], index: 5, kind: output, shape index: {0}]
  %s6 = inlined_call_operand.vmem [shape: f32[4,2,8], index: 6, kind: output, shape index: {1}]
  %7 = xla_tuple %s5, %s6
  %s8 = sld [smem:[#allocation0]]
  $region65: #{decoder_block3d.2} parent=0
    _
  %s10 = ssub.s32 1, %s8
  %s11 = scalar_select 0, %s10, %s8
  $region1: #{decoder_block3d.2} parent=0
    #allocation2 [shape = 'u8[512]{0}', space=vmem, size = 0x400, scoped, tag = 'input window, operand 4, single buffered']
    #allocation3 [shape = 's32[2]{0}', space=sflag, size = 0x8, scoped, tag = 'scoped memory for decoder_block3d.2']
    %12 = vsyncpa [#allocation3], 0
    loop: start=0, step=1, limit=6
    $region2: #{decoder_block3d.2} parent=1 // loop_pre_header
      _
    $region3: #{decoder_block3d.2} parent=1 // loop_header
      %s14 = sphi 0, %s18
      %p15 = scmp.ge.s32.totalorder %s14, 6
      %s21 = sphi 0, %s33
      %s22 = sphi 0, %s29
      %s23 = sphi 0, %s21
      %s24 = sphi 0, %s22
      %s25 = sphi 0, %s23
      %s26 = sphi 0, %s24
      %s40 = sphi 0, %s42
      %s43 = sphi 0, %s40
      %s44 = sphi 0, %s43
      %s60 = sphi 0, %s44
      %s78 = sphi 0, %s80
      %s81 = sphi 0, %s78
      %s82 = sphi 0, %s81
      %s98 = sphi 0, %s82
      %s116 = sphi 0, %s118
      %s119 = sphi 0, %s116
      %s120 = sphi 0, %s119
      %s136 = sphi 0, %s120
      %s140 = sphi 0, %s140
      %s142 = sphi 0, %s140
      %s143 = sphi 0, %s142
      %s157 = sphi 0, %s143
      %s161 = sphi 0, %s161
      %s163 = sphi 0, %s161
      %s164 = sphi 0, %s163
      %s178 = sphi 0, %s164
      %s188 = sphi 0, %s190
      %s191 = sphi 0, %s188
      %s192 = sphi 0, %s191
      %s208 = sphi 0, %s192
      %s218 = sphi 0, %s220
      %s221 = sphi 0, %s218
      %s222 = sphi 0, %s221
      %s238 = sphi 0, %s222
    $region4: #{decoder_block3d.2} parent=1 // loop_header_branch
      %17 = sbr.rel (%p15) target = $region8
    $region5: #{decoder_block3d.2} parent=1 // loop_body
      %s19 = ssub.s32 %s14, 1
      %s20 = ssub.s32 %s14, 2
      %s27 = sadd.s32 1, %s22
      %p28 = scmp.ge.s32.totalorder %s27, 2
      %s29 = scalar_select %p28, 0, %s27
      %s30 = sadd.s32 1, %s21
      %s31 = scalar_select %p28, %s30, %s21
      %p32 = scmp.ge.s32.totalorder %s31, 2
      %s33 = scalar_select %p32, 0, %s31
      %s34 = smul.u32 %s21, 2
      %s35 = sadd.s32 %s34, %s22
      %s36 = smul.u32 %s33, 2
      %s37 = sadd.s32 %s36, %s29
      %s38 = ssub.s32 %s35, %s37
      %p39 = scmp.eq.s32.totalorder %s38, 0
      %s41 = sadd.s32 %s40, 1
      %s42 = scalar_select %p39, %s40, %s41
      %p45 = pneg %p39
      %p46 = scmp.eq.s32.totalorder %s14, 3
      %p47 = por %p45, %p46
      %p48 = scmp.ne.s32.totalorder %s40, %s43
      %p49 = scmp.eq.s32.totalorder %s14, 0
      %p50 = por %p48, %p49
      %p51 = scmp.ne.s32.totalorder %s40, %s43
      %p52 = scmp.eq.s32.totalorder %s19, 3
      %p53 = por %p51, %p52
      %p54 = scmp.ne.s32.totalorder %s43, %s44
      %p55 = scmp.eq.s32.totalorder %s19, 0
      %p56 = por %p54, %p55
      %p57 = scmp.ne.s32.totalorder %s43, %s44
      %p58 = scmp.eq.s32.totalorder %s20, 3
      %p59 = por %p57, %p58
      %p61 = scmp.ne.s32.totalorder %s44, %s60
      %p62 = scmp.eq.s32.totalorder %s20, 0
      %p63 = por %p61, %p62
      %s64 = smul.u32 %s21, 8
      %s65 = smul.u32 %s22, 4
      %s66 = sadd.s32 %s64, %s65
      %s67 = ssub.s32 %s66, 1
      %p68 = scmp.gt.s32.totalorder %s67, 0
      %s69 = scalar_select %p68, %s67, 0
      %s70 = smul.u32 %s33, 8
      %s71 = smul.u32 %s29, 4
      %s72 = sadd.s32 %s70, %s71
      %s73 = ssub.s32 %s72, 1
      %p74 = scmp.gt.s32.totalorder %s73, 0
      %s75 = scalar_select %p74, %s73, 0
      %s76 = ssub.s32 %s69, %s75
      %p77 = scmp.eq.s32.totalorder %s76, 0
      %s79 = sadd.s32 %s78, 1
      %s80 = scalar_select %p77, %s78, %s79
      %p83 = pneg %p77
      %p84 = scmp.eq.s32.totalorder %s14, 3
      %p85 = por %p83, %p84
      %p86 = scmp.ne.s32.totalorder %s78, %s81
      %p87 = scmp.eq.s32.totalorder %s14, 0
      %p88 = por %p86, %p87
      %p89 = scmp.ne.s32.totalorder %s78, %s81
      %p90 = scmp.eq.s32.totalorder %s19, 3
      %p91 = por %p89, %p90
      %p92 = scmp.ne.s32.totalorder %s81, %s82
      %p93 = scmp.eq.s32.totalorder %s19, 0
      %p94 = por %p92, %p93
      %p95 = scmp.ne.s32.totalorder %s81, %s82
      %p96 = scmp.eq.s32.totalorder %s20, 3
      %p97 = por %p95, %p96
      %p99 = scmp.ne.s32.totalorder %s82, %s98
      %p100 = scmp.eq.s32.totalorder %s20, 0
      %p101 = por %p99, %p100
      %s102 = smul.u32 %s21, 8
      %s103 = smul.u32 %s22, 4
      %s104 = sadd.s32 %s102, %s103
      %s105 = sadd.s32 %s104, 4
      %p106 = scmp.lt.s32.totalorder %s105, 15
      %s107 = scalar_select %p106, %s105, 15
      %s108 = smul.u32 %s33, 8
      %s109 = smul.u32 %s29, 4
      %s110 = sadd.s32 %s108, %s109
      %s111 = sadd.s32 %s110, 4
      %p112 = scmp.lt.s32.totalorder %s111, 15
      %s113 = scalar_select %p112, %s111, 15
      %s114 = ssub.s32 %s107, %s113
      %p115 = scmp.eq.s32.totalorder %s114, 0
      %s117 = sadd.s32 %s116, 1
      %s118 = scalar_select %p115, %s116, %s117
      %p121 = pneg %p115
      %p122 = scmp.eq.s32.totalorder %s14, 3
      %p123 = por %p121, %p122
      %p124 = scmp.ne.s32.totalorder %s116, %s119
      %p125 = scmp.eq.s32.totalorder %s14, 0
      %p126 = por %p124, %p125
      %p127 = scmp.ne.s32.totalorder %s116, %s119
      %p128 = scmp.eq.s32.totalorder %s19, 3
      %p129 = por %p127, %p128
      %p130 = scmp.ne.s32.totalorder %s119, %s120
      %p131 = scmp.eq.s32.totalorder %s19, 0
      %p132 = por %p130, %p131
      %p133 = scmp.ne.s32.totalorder %s119, %s120
      %p134 = scmp.eq.s32.totalorder %s20, 3
      %p135 = por %p133, %p134
      %p137 = scmp.ne.s32.totalorder %s120, %s136
      %p138 = scmp.eq.s32.totalorder %s20, 0
      %p139 = por %p137, %p138
      %s141 = sadd.s32 %s140, 1
      %p144 = scmp.eq.s32.totalorder %s14, 3
      %p145 = scmp.ne.s32.totalorder %s140, %s142
      %p146 = scmp.eq.s32.totalorder %s14, 0
      %p147 = por %p145, %p146
      %p148 = scmp.ne.s32.totalorder %s140, %s142
      %p149 = scmp.eq.s32.totalorder %s19, 3
      %p150 = por %p148, %p149
      %p151 = scmp.ne.s32.totalorder %s142, %s143
      %p152 = scmp.eq.s32.totalorder %s19, 0
      %p153 = por %p151, %p152
      %p154 = scmp.ne.s32.totalorder %s142, %s143
      %p155 = scmp.eq.s32.totalorder %s20, 3
      %p156 = por %p154, %p155
      %p158 = scmp.ne.s32.totalorder %s143, %s157
      %p159 = scmp.eq.s32.totalorder %s20, 0
      %p160 = por %p158, %p159
      %s162 = sadd.s32 %s161, 1
      %p165 = scmp.eq.s32.totalorder %s14, 3
      %p166 = scmp.ne.s32.totalorder %s161, %s163
      %p167 = scmp.eq.s32.totalorder %s14, 0
      %p168 = por %p166, %p167
      %p169 = scmp.ne.s32.totalorder %s161, %s163
      %p170 = scmp.eq.s32.totalorder %s19, 3
      %p171 = por %p169, %p170
      %p172 = scmp.ne.s32.totalorder %s163, %s164
      %p173 = scmp.eq.s32.totalorder %s19, 0
      %p174 = por %p172, %p173
      %p175 = scmp.ne.s32.totalorder %s163, %s164
      %p176 = scmp.eq.s32.totalorder %s20, 3
      %p177 = por %p175, %p176
      %p179 = scmp.ne.s32.totalorder %s164, %s178
      %p180 = scmp.eq.s32.totalorder %s20, 0
      %p181 = por %p179, %p180
      %s182 = smul.u32 %s21, 2
      %s183 = sadd.s32 %s182, %s22
      %s184 = smul.u32 %s33, 2
      %s185 = sadd.s32 %s184, %s29
      %s186 = ssub.s32 %s183, %s185
      %p187 = scmp.eq.s32.totalorder %s186, 0
      %s189 = sadd.s32 %s188, 1
      %s190 = scalar_select %p187, %s188, %s189
      %p193 = pneg %p187
      %p194 = scmp.eq.s32.totalorder %s14, 3
      %p195 = por %p193, %p194
      %p196 = scmp.ne.s32.totalorder %s188, %s191
      %p197 = scmp.eq.s32.totalorder %s14, 0
      %p198 = por %p196, %p197
      %p199 = scmp.ne.s32.totalorder %s188, %s191
      %p200 = scmp.eq.s32.totalorder %s19, 3
      %p201 = por %p199, %p200
      %p202 = scmp.ne.s32.totalorder %s191, %s192
      %p203 = scmp.eq.s32.totalorder %s19, 0
      %p204 = por %p202, %p203
      %p205 = scmp.ne.s32.totalorder %s191, %s192
      %p206 = scmp.eq.s32.totalorder %s20, 3
      %p207 = por %p205, %p206
      %p209 = scmp.ne.s32.totalorder %s192, %s208
      %p210 = scmp.eq.s32.totalorder %s20, 0
      %p211 = por %p209, %p210
      %s212 = smul.u32 %s21, 2
      %s213 = sadd.s32 %s212, %s22
      %s214 = smul.u32 %s33, 2
      %s215 = sadd.s32 %s214, %s29
      %s216 = ssub.s32 %s213, %s215
      %p217 = scmp.eq.s32.totalorder %s216, 0
      %s219 = sadd.s32 %s218, 1
      %s220 = scalar_select %p217, %s218, %s219
      %p223 = pneg %p217
      %p224 = scmp.eq.s32.totalorder %s14, 3
      %p225 = por %p223, %p224
      %p226 = scmp.ne.s32.totalorder %s218, %s221
      %p227 = scmp.eq.s32.totalorder %s14, 0
      %p228 = por %p226, %p227
      %p229 = scmp.ne.s32.totalorder %s218, %s221
      %p230 = scmp.eq.s32.totalorder %s19, 3
      %p231 = por %p229, %p230
      %p232 = scmp.ne.s32.totalorder %s221, %s222
      %p233 = scmp.eq.s32.totalorder %s19, 0
      %p234 = por %p232, %p233
      %p235 = scmp.ne.s32.totalorder %s221, %s222
      %p236 = scmp.eq.s32.totalorder %s20, 3
      %p237 = por %p235, %p236
      %p239 = scmp.ne.s32.totalorder %s222, %s238
      %p240 = scmp.eq.s32.totalorder %s20, 0
      %p241 = por %p239, %p240
      %p242 = scmp.le.s32.totalorder 1, %s14
      %p243 = scmp.lt.s32.totalorder %s14, 5
      %p244 = pnand %p242, %p243
      %p245 = pneg %p244
      // Predicated region
      $region9: #{decoder_block3d.2} parent=5 // pred_check
        _
      $region10: #{decoder_block3d.2} parent=5 // pred_check_branch
        %247 = sbr.rel (%p244) target = $region12
      $region11: #{decoder_block3d.2} parent=5 // pred_region
        %s248 = ssub.s32 %s14, 1
        // Predicated region
        $region13: #{decoder_block3d.2} parent=11 // pred_check
          %p249 = pneg %p153
        $region14: #{decoder_block3d.2} parent=11 // pred_check_branch
          %251 = sbr.rel (%p249) target = $region16
        $region15: #{decoder_block3d.2} parent=11 // pred_region
          _
        $region16: #{decoder_block3d.2} parent=11 // pred_fallthru
          _
        // Predicated region
        $region17: #{decoder_block3d.2} parent=11 // pred_check
          %p252 = pneg %p174
        $region18: #{decoder_block3d.2} parent=11 // pred_check_branch
          %254 = sbr.rel (%p252) target = $region20
        $region19: #{decoder_block3d.2} parent=11 // pred_region
          %s256 = ssub.s32 16, 16
          %257 = vsyncadd [#allocation3], %s256
          %s259 = sshll.u32 [#allocation2], 4
          %s260 = int_to_ptr.vmem [resolvable:$true] %s259
          %262 = dma.hbm_to_vmem [thread:$0]  %s4, 16, %s260, [#allocation3]
        $region20: #{decoder_block3d.2} parent=11 // pred_fallthru
          _
      $region12: #{decoder_block3d.2} parent=5 // pred_fallthru
        _
      %p263 = scmp.lt.s32.totalorder %s14, 4
      // Predicated region
      $region21: #{decoder_block3d.2} parent=5 // pred_check
        %p264 = pneg %p263
      $region22: #{decoder_block3d.2} parent=5 // pred_check_branch
        %266 = sbr.rel (%p264) target = $region24
      $region23: #{decoder_block3d.2} parent=5 // pred_region
        // Predicated region
        $region25: #{decoder_block3d.2} parent=23 // pred_check
          %p267 = pneg %p50
        $region26: #{decoder_block3d.2} parent=23 // pred_check_branch
          %269 = sbr.rel (%p267) target = $region28
        $region27: #{decoder_block3d.2} parent=23 // pred_region
          %s270 = smul.u32 %s21, 2
          %s271 = sadd.s32 %s270, %s22
          %s272 = smul.u32 32, %s271
          %p273 = scmp.lt.s32.totalorder %s272, 127
          %s274 = scalar_select %p273, %s272, 127
          %s275 = smul.addr %s274, 4
          %s276 = scalar_lea.vmem %s0, %s275
          %s277 = smul.u32 %s21, 2
          %s278 = sadd.s32 %s277, %s22
          %s279 = smul.u32 32, %s278
        $region28: #{decoder_block3d.2} parent=23 // pred_fallthru
          _
        // Predicated region
        $region29: #{decoder_block3d.2} parent=23 // pred_check
          %p280 = pneg %p88
        $region30: #{decoder_block3d.2} parent=23 // pred_check_branch
          %282 = sbr.rel (%p280) target = $region32
        $region31: #{decoder_block3d.2} parent=23 // pred_region
          %s283 = smul.u32 %s21, 8
          %s284 = smul.u32 %s22, 4
          %s285 = sadd.s32 %s283, %s284
          %s286 = ssub.s32 %s285, 1
          %p287 = scmp.gt.s32.totalorder %s286, 0
          %s288 = scalar_select %p287, %s286, 0
          %s289 = smul.u32 8, %s288
          %p290 = scmp.lt.s32.totalorder %s289, 127
          %s291 = scalar_select %p290, %s289, 127
          %s292 = smul.addr %s291, 4
          %s293 = scalar_lea.vmem %s1, %s292
          %s294 = smul.u32 %s21, 8
          %s295 = smul.u32 %s22, 4
          %s296 = sadd.s32 %s294, %s295
          %s297 = ssub.s32 %s296, 1
          %p298 = scmp.gt.s32.totalorder %s297, 0
          %s299 = scalar_select %p298, %s297, 0
          %s300 = smul.u32 8, %s299
        $region32: #{decoder_block3d.2} parent=23 // pred_fallthru
          _
        // Predicated region
        $region33: #{decoder_block3d.2} parent=23 // pred_check
          %p301 = pneg %p126
        $region34: #{decoder_block3d.2} parent=23 // pred_check_branch
          %303 = sbr.rel (%p301) target = $region36
        $region35: #{decoder_block3d.2} parent=23 // pred_region
          %s304 = smul.u32 %s21, 8
          %s305 = smul.u32 %s22, 4
          %s306 = sadd.s32 %s304, %s305
          %s307 = sadd.s32 %s306, 4
          %p308 = scmp.lt.s32.totalorder %s307, 15
          %s309 = scalar_select %p308, %s307, 15
          %s310 = smul.u32 8, %s309
          %p311 = scmp.lt.s32.totalorder %s310, 127
          %s312 = scalar_select %p311, %s310, 127
          %s313 = smul.addr %s312, 4
          %s314 = scalar_lea.vmem %s2, %s313
          %s315 = smul.u32 %s21, 8
          %s316 = smul.u32 %s22, 4
          %s317 = sadd.s32 %s315, %s316
          %s318 = sadd.s32 %s317, 4
          %p319 = scmp.lt.s32.totalorder %s318, 15
          %s320 = scalar_select %p319, %s318, 15
          %s321 = smul.u32 8, %s320
        $region36: #{decoder_block3d.2} parent=23 // pred_fallthru
          _
      $region24: #{decoder_block3d.2} parent=5 // pred_fallthru
        _
      %p322 = scmp.le.s32.totalorder 1, %s14
      %p323 = scmp.lt.s32.totalorder %s14, 5
      %p324 = pnand %p322, %p323
      %p325 = pneg %p324
      // Predicated region
      $region37: #{decoder_block3d.2} parent=5 // pred_check
        _
      $region38: #{decoder_block3d.2} parent=5 // pred_check_branch
        %327 = sbr.rel (%p324) target = $region40
      $region39: #{decoder_block3d.2} parent=5 // pred_region
        %s328 = ssub.s32 %s14, 1
        // Predicated region
        $region41: #{decoder_block3d.2} parent=39 // pred_check
          %p329 = pneg %p174
        $region42: #{decoder_block3d.2} parent=39 // pred_check_branch
          %331 = sbr.rel (%p329) target = $region44
        $region43: #{decoder_block3d.2} parent=39 // pred_region
          %332 = dma.done [#allocation3], 16
        $region44: #{decoder_block3d.2} parent=39 // pred_fallthru
          _
        %s333 = smul.u32 %s23, 2
        %s334 = sadd.s32 %s333, %s24
        %s335 = smul.u32 32, %s334
        %p336 = scmp.lt.s32.totalorder %s335, 127
        %s337 = scalar_select %p336, %s335, 127
        %s338 = smul.addr %s337, 4
        %s339 = scalar_lea.vmem %s0, %s338
        %p340 = pneg %p56
        %p341 = pneg %p53
        %s342 = smul.u32 %s23, 8
        %s343 = smul.u32 %s24, 4
        %s344 = sadd.s32 %s342, %s343
        %s345 = ssub.s32 %s344, 1
        %p346 = scmp.gt.s32.totalorder %s345, 0
        %s347 = scalar_select %p346, %s345, 0
        %s348 = smul.u32 8, %s347
        %p349 = scmp.lt.s32.totalorder %s348, 127
        %s350 = scalar_select %p349, %s348, 127
        %s351 = smul.addr %s350, 4
        %s352 = scalar_lea.vmem %s1, %s351
        %p353 = pneg %p94
        %p354 = pneg %p91
        %s355 = smul.u32 %s23, 8
        %s356 = smul.u32 %s24, 4
        %s357 = sadd.s32 %s355, %s356
        %s358 = sadd.s32 %s357, 4
        %p359 = scmp.lt.s32.totalorder %s358, 15
        %s360 = scalar_select %p359, %s358, 15
        %s361 = smul.u32 8, %s360
        %p362 = scmp.lt.s32.totalorder %s361, 127
        %s363 = scalar_select %p362, %s361, 127
        %s364 = smul.addr %s363, 4
        %s365 = scalar_lea.vmem %s2, %s364
        %p366 = pneg %p132
        %p367 = pneg %p129
        %p368 = pneg %p153
        %p369 = pneg %p150
        %p370 = pneg %p174
        %p371 = pneg %p171
        %p372 = pneg %p204
        %p373 = pneg %p201
        %s374 = smul.u32 %s23, 2
        %s375 = sadd.s32 %s374, %s24
        %s376 = smul.u32 32, %s375
        %p377 = scmp.lt.s32.totalorder %s376, 127
        %s378 = scalar_select %p377, %s376, 127
        %s379 = smul.addr %s378, 8
        %s380 = scalar_lea.vmem %s5, %s379
        %p381 = pneg %p234
        %p382 = pneg %p231
        %s383 = smul.u32 %s23, 2
        %s384 = sadd.s32 %s383, %s24
        %p385 = scmp.lt.s32.totalorder %s384, 3
        %s386 = scalar_select %p385, %s384, 3
        %s387 = smul.addr %s386, 2
        %s388 = scalar_lea.vmem %s6, %s387
        %s389 = smul.u32 %s23, 2
        %s390 = sadd.s32 %s389, %s24
        %s391 = smul.u32 32, %s390
        %p392 = scmp.lt.s32.totalorder %s391, 127
        %s393 = scalar_select %p392, %s391, 127
        %s394 = smul.addr %s393, 4
        %s395 = scalar_lea.vmem %s0, %s394
        %s396 = smul.u32 %s23, 2
        %s397 = sadd.s32 %s396, %s24
        %s398 = smul.u32 32, %s397
        %s399 = smul.u32 %s23, 8
        %s400 = smul.u32 %s24, 4
        %s401 = sadd.s32 %s399, %s400
        %s402 = ssub.s32 %s401, 1
        %p403 = scmp.gt.s32.totalorder %s402, 0
        %s404 = scalar_select %p403, %s402, 0
        %s405 = smul.u32 8, %s404
        %p406 = scmp.lt.s32.totalorder %s405, 127
        %s407 = scalar_select %p406, %s405, 127
        %s408 = smul.addr %s407, 4
        %s409 = scalar_lea.vmem %s1, %s408
        %s410 = smul.u32 %s23, 8
        %s411 = smul.u32 %s24, 4
        %s412 = sadd.s32 %s410, %s411
        %s413 = ssub.s32 %s412, 1
        %p414 = scmp.gt.s32.totalorder %s413, 0
        %s415 = scalar_select %p414, %s413, 0
        %s416 = smul.u32 8, %s415
        %s417 = smul.u32 %s23, 8
        %s418 = smul.u32 %s24, 4
        %s419 = sadd.s32 %s417, %s418
        %s420 = sadd.s32 %s419, 4
        %p421 = scmp.lt.s32.totalorder %s420, 15
        %s422 = scalar_select %p421, %s420, 15
        %s423 = smul.u32 8, %s422
        %p424 = scmp.lt.s32.totalorder %s423, 127
        %s425 = scalar_select %p424, %s423, 127
        %s426 = smul.addr %s425, 4
        %s427 = scalar_lea.vmem %s2, %s426
        %s428 = smul.u32 %s23, 8
        %s429 = smul.u32 %s24, 4
        %s430 = sadd.s32 %s428, %s429
        %s431 = sadd.s32 %s430, 4
        %p432 = scmp.lt.s32.totalorder %s431, 15
        %s433 = scalar_select %p432, %s431, 15
        %s434 = smul.u32 8, %s433
        %s435 = smul.u32 %s23, 2
        %s436 = sadd.s32 %s435, %s24
        %s437 = smul.u32 32, %s436
        %p438 = scmp.lt.s32.totalorder %s437, 127
        %s439 = scalar_select %p438, %s437, 127
        %s440 = smul.addr %s439, 8
        %s441 = scalar_lea.vmem %s5, %s440
        %s442 = smul.u32 %s23, 2
        %s443 = sadd.s32 %s442, %s24
        %s444 = smul.u32 32, %s443
        %s445 = smul.u32 %s23, 2
        %s446 = sadd.s32 %s445, %s24
        %p447 = scmp.lt.s32.totalorder %s446, 3
        %s448 = scalar_select %p447, %s446, 3
        %s449 = smul.addr %s448, 2
        %s450 = scalar_lea.vmem %s6, %s449
        %s451 = smul.u32 %s23, 2
        %s452 = sadd.s32 %s451, %s24
        %v454 = vld [vmem:[%s395] sm:$0xf]
        %v455 = vld [vmem:[%s395 + $0x4] sm:$0xf]
        %v456 = vld [vmem:[%s395 + $0x8] sm:$0xf]
        %v457 = vld [vmem:[%s395 + $0xc] sm:$0xf]
        %v458 = vld [vmem:[%s395 + $0x10] sm:$0xf]
        %v459 = vld [vmem:[%s395 + $0x14] sm:$0xf]
        %v460 = vld [vmem:[%s395 + $0x18] sm:$0xf]
        %v461 = vld [vmem:[%s395 + $0x1c] sm:$0xf]
        %v462 = vld [vmem:[%s395 + $0x20] sm:$0xf]
        %v463 = vld [vmem:[%s395 + $0x24] sm:$0xf]
        %v464 = vld [vmem:[%s395 + $0x28] sm:$0xf]
        %v465 = vld [vmem:[%s395 + $0x2c] sm:$0xf]
        %v466 = vld [vmem:[%s395 + $0x30] sm:$0xf]
        %v467 = vld [vmem:[%s395 + $0x34] sm:$0xf]
        %v468 = vld [vmem:[%s395 + $0x38] sm:$0xf]
        %v469 = vld [vmem:[%s395 + $0x3c] sm:$0xf]
        %v470 = vld [vmem:[%s395 + $0x40] sm:$0xf]
        %v471 = vld [vmem:[%s395 + $0x44] sm:$0xf]
        %v472 = vld [vmem:[%s395 + $0x48] sm:$0xf]
        %v473 = vld [vmem:[%s395 + $0x4c] sm:$0xf]
        %v474 = vld [vmem:[%s395 + $0x50] sm:$0xf]
        %v475 = vld [vmem:[%s395 + $0x54] sm:$0xf]
        %v476 = vld [vmem:[%s395 + $0x58] sm:$0xf]
        %v477 = vld [vmem:[%s395 + $0x5c] sm:$0xf]
        %v478 = vld [vmem:[%s395 + $0x60] sm:$0xf]
        %v479 = vld [vmem:[%s395 + $0x64] sm:$0xf]
        %v480 = vld [vmem:[%s395 + $0x68] sm:$0xf]
        %v481 = vld [vmem:[%s395 + $0x6c] sm:$0xf]
        %v482 = vld [vmem:[%s395 + $0x70] sm:$0xf]
        %v483 = vld [vmem:[%s395 + $0x74] sm:$0xf]
        %v484 = vld [vmem:[%s395 + $0x78] sm:$0xf]
        %v485 = vld [vmem:[%s395 + $0x7c] sm:$0xf]
        %v486 = vunpack.c.l.bf16 %v454
        %v487 = vunpack.c.l.bf16 %v455
        %v488 = vunpack.c.l.bf16 %v456
        %v489 = vunpack.c.l.bf16 %v457
        %v490 = vunpack.c.l.bf16 %v458
        %v491 = vunpack.c.l.bf16 %v459
        %v492 = vunpack.c.l.bf16 %v460
        %v493 = vunpack.c.l.bf16 %v461
        %v494 = vunpack.c.l.bf16 %v462
        %v495 = vunpack.c.l.bf16 %v463
        %v496 = vunpack.c.l.bf16 %v464
        %v497 = vunpack.c.l.bf16 %v465
        %v498 = vunpack.c.l.bf16 %v466
        %v499 = vunpack.c.l.bf16 %v467
        %v500 = vunpack.c.l.bf16 %v468
        %v501 = vunpack.c.l.bf16 %v469
        %v502 = vunpack.c.l.bf16 %v470
        %v503 = vunpack.c.l.bf16 %v471
        %v504 = vunpack.c.l.bf16 %v472
        %v505 = vunpack.c.l.bf16 %v473
        %v506 = vunpack.c.l.bf16 %v474
        %v507 = vunpack.c.l.bf16 %v475
        %v508 = vunpack.c.l.bf16 %v476
        %v509 = vunpack.c.l.bf16 %v477
        %v510 = vunpack.c.l.bf16 %v478
        %v511 = vunpack.c.l.bf16 %v479
        %v512 = vunpack.c.l.bf16 %v480
        %v513 = vunpack.c.l.bf16 %v481
        %v514 = vunpack.c.l.bf16 %v482
        %v515 = vunpack.c.l.bf16 %v483
        %v516 = vunpack.c.l.bf16 %v484
        %v517 = vunpack.c.l.bf16 %v485
        %v518 = vld [vmem:[%s409] sm:$0xf]
        %v519 = vld [vmem:[%s409 + $0x4] sm:$0xf]
        %v520 = vld [vmem:[%s409 + $0x8] sm:$0xf]
        %v521 = vld [vmem:[%s409 + $0xc] sm:$0xf]
        %v522 = vld [vmem:[%s409 + $0x10] sm:$0xf]
        %v523 = vld [vmem:[%s409 + $0x14] sm:$0xf]
        %v524 = vld [vmem:[%s409 + $0x18] sm:$0xf]
        %v525 = vld [vmem:[%s409 + $0x1c] sm:$0xf]
        %v526 = vunpack.c.l.bf16 %v518
        %v527 = vunpack.c.l.bf16 %v519
        %v528 = vunpack.c.l.bf16 %v520
        %v529 = vunpack.c.l.bf16 %v521
        %v530 = vunpack.c.l.bf16 %v522
        %v531 = vunpack.c.l.bf16 %v523
        %v532 = vunpack.c.l.bf16 %v524
        %v533 = vunpack.c.l.bf16 %v525
        %v534 = vld [vmem:[%s427] sm:$0xf]
        %v535 = vld [vmem:[%s427 + $0x4] sm:$0xf]
        %v536 = vld [vmem:[%s427 + $0x8] sm:$0xf]
        %v537 = vld [vmem:[%s427 + $0xc] sm:$0xf]
        %v538 = vld [vmem:[%s427 + $0x10] sm:$0xf]
        %v539 = vld [vmem:[%s427 + $0x14] sm:$0xf]
        %v540 = vld [vmem:[%s427 + $0x18] sm:$0xf]
        %v541 = vld [vmem:[%s427 + $0x1c] sm:$0xf]
        %v542 = vunpack.c.l.bf16 %v534
        %v543 = vunpack.c.l.bf16 %v535
        %v544 = vunpack.c.l.bf16 %v536
        %v545 = vunpack.c.l.bf16 %v537
        %v546 = vunpack.c.l.bf16 %v538
        %v547 = vunpack.c.l.bf16 %v539
        %v548 = vunpack.c.l.bf16 %v540
        %v549 = vunpack.c.l.bf16 %v541
        %p550 = scmp.eq.s32.totalorder %s24, 0
        %s551 = scalar_select %p550, 1, 0
        %v552 = vstv %s551
        %vm553 = vcmp.eq.s32.totalorder %v552, 1
        %v554 = vsel %vm553, 0.0, %v526
        %v555 = vsel %vm553, 0.0, %v527
        %v556 = vsel %vm553, 0.0, %v528
        %v557 = vsel %vm553, 0.0, %v529
        %v558 = vsel %vm553, 0.0, %v530
        %v559 = vsel %vm553, 0.0, %v531
        %v560 = vsel %vm553, 0.0, %v532
        %v561 = vsel %vm553, 0.0, %v533
        %p562 = scmp.eq.s32.totalorder %s24, 1
        %s563 = scalar_select %p562, 1, 0
        %v564 = vstv %s563
        %vm565 = vcmp.eq.s32.totalorder %v564, 1
        %v566 = vsel %vm565, 0.0, %v542
        %v567 = vsel %vm565, 0.0, %v543
        %v568 = vsel %vm565, 0.0, %v544
        %v569 = vsel %vm565, 0.0, %v545
        %v570 = vsel %vm565, 0.0, %v546
        %v571 = vsel %vm565, 0.0, %v547
        %v572 = vsel %vm565, 0.0, %v548
        %v573 = vsel %vm565, 0.0, %v549
        %v623 = vrot.slane 0.0, 7
        %v624 = vrot.slane %v554, 7
        %v625 = vrot.slane %v555, 7
        %v626 = vrot.slane %v556, 7
        %v627 = vrot.slane %v557, 7
        %v628 = vrot.slane %v558, 7
        %v629 = vrot.slane %v559, 7
        %v630 = vrot.slane %v560, 7
        %v631 = vrot.slane %v561, 7
        %v632 = vrot.slane %v486, 7
        %v633 = vrot.slane %v487, 7
        %v634 = vrot.slane %v488, 7
        %v635 = vrot.slane %v489, 7
        %v636 = vrot.slane %v490, 7
        %v637 = vrot.slane %v491, 7
        %v638 = vrot.slane %v492, 7
        %v639 = vrot.slane %v493, 7
        %v640 = vrot.slane %v494, 7
        %v641 = vrot.slane %v495, 7
        %v642 = vrot.slane %v496, 7
        %v643 = vrot.slane %v497, 7
        %v644 = vrot.slane %v498, 7
        %v645 = vrot.slane %v499, 7
        %v646 = vrot.slane %v500, 7
        %v647 = vrot.slane %v501, 7
        %v648 = vrot.slane %v502, 7
        %v649 = vrot.slane %v503, 7
        %v650 = vrot.slane %v504, 7
        %v651 = vrot.slane %v505, 7
        %v652 = vrot.slane %v506, 7
        %v653 = vrot.slane %v507, 7
        %v654 = vrot.slane %v508, 7
        %v655 = vrot.slane %v509, 7
        %v656 = vrot.slane %v510, 7
        %v657 = vrot.slane %v511, 7
        %v658 = vrot.slane %v512, 7
        %v659 = vrot.slane %v513, 7
        %v660 = vrot.slane %v514, 7
        %v661 = vrot.slane %v515, 7
        %v662 = vrot.slane %v516, 7
        %v663 = vrot.slane %v517, 7
        %v664 = vrot.slane %v566, 7
        %v665 = vrot.slane %v567, 7
        %v666 = vrot.slane %v568, 7
        %v667 = vrot.slane %v569, 7
        %v668 = vrot.slane %v570, 7
        %v669 = vrot.slane %v571, 7
        %v670 = vrot.slane %v572, 7
        %v671 = vrot.slane %v573, 7
        %vm721 = vcmask 1040384
        %v722 = vsel %vm721, 0.0, %v623
        %v723 = vsel %vm721, 0.0, %v624
        %v724 = vsel %vm721, 0.0, %v625
        %v725 = vsel %vm721, 0.0, %v626
        %v726 = vsel %vm721, 0.0, %v627
        %v727 = vsel %vm721, 0.0, %v628
        %v728 = vsel %vm721, 0.0, %v629
        %v729 = vsel %vm721, 0.0, %v630
        %v730 = vsel %vm721, 0.0, %v631
        %v731 = vsel %vm721, 0.0, %v632
        %v732 = vsel %vm721, 0.0, %v633
        %v733 = vsel %vm721, 0.0, %v634
        %v734 = vsel %vm721, 0.0, %v635
        %v735 = vsel %vm721, 0.0, %v636
        %v736 = vsel %vm721, 0.0, %v637
        %v737 = vsel %vm721, 0.0, %v638
        %v738 = vsel %vm721, 0.0, %v639
        %v739 = vsel %vm721, 0.0, %v640
        %v740 = vsel %vm721, 0.0, %v641
        %v741 = vsel %vm721, 0.0, %v642
        %v742 = vsel %vm721, 0.0, %v643
        %v743 = vsel %vm721, 0.0, %v644
        %v744 = vsel %vm721, 0.0, %v645
        %v745 = vsel %vm721, 0.0, %v646
        %v746 = vsel %vm721, 0.0, %v647
        %v747 = vsel %vm721, 0.0, %v648
        %v748 = vsel %vm721, 0.0, %v649
        %v749 = vsel %vm721, 0.0, %v650
        %v750 = vsel %vm721, 0.0, %v651
        %v751 = vsel %vm721, 0.0, %v652
        %v752 = vsel %vm721, 0.0, %v653
        %v753 = vsel %vm721, 0.0, %v654
        %v754 = vsel %vm721, 0.0, %v655
        %v755 = vsel %vm721, 0.0, %v656
        %v756 = vsel %vm721, 0.0, %v657
        %v757 = vsel %vm721, 0.0, %v658
        %v758 = vsel %vm721, 0.0, %v659
        %v759 = vsel %vm721, 0.0, %v660
        %v760 = vsel %vm721, 0.0, %v661
        %v761 = vsel %vm721, 0.0, %v662
        %v762 = vsel %vm721, 0.0, %v663
        %v763 = vsel %vm721, 0.0, %v664
        %v764 = vsel %vm721, 0.0, %v665
        %v765 = vsel %vm721, 0.0, %v666
        %v766 = vsel %vm721, 0.0, %v667
        %v767 = vsel %vm721, 0.0, %v668
        %v768 = vsel %vm721, 0.0, %v669
        %v769 = vsel %vm721, 0.0, %v670
        %v770 = vsel %vm721, 0.0, %v671
        %v771 = vsel %vm721, %v623, 0.0
        %v772 = vsel %vm721, %v624, 0.0
        %v773 = vsel %vm721, %v625, 0.0
        %v774 = vsel %vm721, %v626, 0.0
        %v775 = vsel %vm721, %v627, 0.0
        %v776 = vsel %vm721, %v628, 0.0
        %v777 = vsel %vm721, %v629, 0.0
        %v778 = vsel %vm721, %v630, 0.0
        %v779 = vsel %vm721, %v631, 0.0
        %v780 = vsel %vm721, %v632, 0.0
        %v781 = vsel %vm721, %v633, 0.0
        %v782 = vsel %vm721, %v634, 0.0
        %v783 = vsel %vm721, %v635, 0.0
        %v784 = vsel %vm721, %v636, 0.0
        %v785 = vsel %vm721, %v637, 0.0
        %v786 = vsel %vm721, %v638, 0.0
        %v787 = vsel %vm721, %v639, 0.0
        %v788 = vsel %vm721, %v640, 0.0
        %v789 = vsel %vm721, %v641, 0.0
        %v790 = vsel %vm721, %v642, 0.0
        %v791 = vsel %vm721, %v643, 0.0
        %v792 = vsel %vm721, %v644, 0.0
        %v793 = vsel %vm721, %v645, 0.0
        %v794 = vsel %vm721, %v646, 0.0
        %v795 = vsel %vm721, %v647, 0.0
        %v796 = vsel %vm721, %v648, 0.0
        %v797 = vsel %vm721, %v649, 0.0
        %v798 = vsel %vm721, %v650, 0.0
        %v799 = vsel %vm721, %v651, 0.0
        %v800 = vsel %vm721, %v652, 0.0
        %v801 = vsel %vm721, %v653, 0.0
        %v802 = vsel %vm721, %v654, 0.0
        %v803 = vsel %vm721, %v655, 0.0
        %v804 = vsel %vm721, %v656, 0.0
        %v805 = vsel %vm721, %v657, 0.0
        %v806 = vsel %vm721, %v658, 0.0
        %v807 = vsel %vm721, %v659, 0.0
        %v808 = vsel %vm721, %v660, 0.0
        %v809 = vsel %vm721, %v661, 0.0
        %v810 = vsel %vm721, %v662, 0.0
        %v811 = vsel %vm721, %v663, 0.0
        %v812 = vsel %vm721, %v664, 0.0
        %v813 = vsel %vm721, %v665, 0.0
        %v814 = vsel %vm721, %v666, 0.0
        %v815 = vsel %vm721, %v667, 0.0
        %v816 = vsel %vm721, %v668, 0.0
        %v817 = vsel %vm721, %v669, 0.0
        %v818 = vsel %vm721, %v670, 0.0
        %v819 = vsel %vm721, %v671, 0.0
        %vm878 = vcmask 1046528
        %v879 = vrot.slane %v722, 1
        %v880 = vrot.slane %v771, 1
        %v881 = vsel %vm878, %v879, %v880
        %v882 = vrot.slane %v723, 1
        %v883 = vrot.slane %v772, 1
        %v884 = vsel %vm878, %v882, %v883
        %v885 = vrot.slane %v724, 1
        %v886 = vrot.slane %v773, 1
        %v887 = vsel %vm878, %v885, %v886
        %v888 = vrot.slane %v725, 1
        %v889 = vrot.slane %v774, 1
        %v890 = vsel %vm878, %v888, %v889
        %v891 = vrot.slane %v726, 1
        %v892 = vrot.slane %v775, 1
        %v893 = vsel %vm878, %v891, %v892
        %v894 = vrot.slane %v727, 1
        %v895 = vrot.slane %v776, 1
        %v896 = vsel %vm878, %v894, %v895
        %v897 = vrot.slane %v728, 1
        %v898 = vrot.slane %v777, 1
        %v899 = vsel %vm878, %v897, %v898
        %v900 = vrot.slane %v729, 1
        %v901 = vrot.slane %v778, 1
        %v902 = vsel %vm878, %v900, %v901
        %v903 = vrot.slane %v731, 1
        %v904 = vrot.slane %v780, 1
        %v905 = vsel %vm878, %v903, %v904
        %v906 = vrot.slane %v732, 1
        %v907 = vrot.slane %v781, 1
        %v908 = vsel %vm878, %v906, %v907
        %v909 = vrot.slane %v733, 1
        %v910 = vrot.slane %v782, 1
        %v911 = vsel %vm878, %v909, %v910
        %v912 = vrot.slane %v734, 1
        %v913 = vrot.slane %v783, 1
        %v914 = vsel %vm878, %v912, %v913
        %v915 = vrot.slane %v735, 1
        %v916 = vrot.slane %v784, 1
        %v917 = vsel %vm878, %v915, %v916
        %v918 = vrot.slane %v736, 1
        %v919 = vrot.slane %v785, 1
        %v920 = vsel %vm878, %v918, %v919
        %v921 = vrot.slane %v737, 1
        %v922 = vrot.slane %v786, 1
        %v923 = vsel %vm878, %v921, %v922
        %v924 = vrot.slane %v739, 1
        %v925 = vrot.slane %v788, 1
        %v926 = vsel %vm878, %v924, %v925
        %v927 = vrot.slane %v740, 1
        %v928 = vrot.slane %v789, 1
        %v929 = vsel %vm878, %v927, %v928
        %v930 = vrot.slane %v741, 1
        %v931 = vrot.slane %v790, 1
        %v932 = vsel %vm878, %v930, %v931
        %v933 = vrot.slane %v742, 1
        %v934 = vrot.slane %v791, 1
        %v935 = vsel %vm878, %v933, %v934
        %v936 = vrot.slane %v743, 1
        %v937 = vrot.slane %v792, 1
        %v938 = vsel %vm878, %v936, %v937
        %v939 = vrot.slane %v744, 1
        %v940 = vrot.slane %v793, 1
        %v941 = vsel %vm878, %v939, %v940
        %v942 = vrot.slane %v745, 1
        %v943 = vrot.slane %v794, 1
        %v944 = vsel %vm878, %v942, %v943
        %v945 = vrot.slane %v747, 1
        %v946 = vrot.slane %v796, 1
        %v947 = vsel %vm878, %v945, %v946
        %v948 = vrot.slane %v748, 1
        %v949 = vrot.slane %v797, 1
        %v950 = vsel %vm878, %v948, %v949
        %v951 = vrot.slane %v749, 1
        %v952 = vrot.slane %v798, 1
        %v953 = vsel %vm878, %v951, %v952
        %v954 = vrot.slane %v750, 1
        %v955 = vrot.slane %v799, 1
        %v956 = vsel %vm878, %v954, %v955
        %v957 = vrot.slane %v751, 1
        %v958 = vrot.slane %v800, 1
        %v959 = vsel %vm878, %v957, %v958
        %v960 = vrot.slane %v752, 1
        %v961 = vrot.slane %v801, 1
        %v962 = vsel %vm878, %v960, %v961
        %v963 = vrot.slane %v753, 1
        %v964 = vrot.slane %v802, 1
        %v965 = vsel %vm878, %v963, %v964
        %vm966 = vcmask 1045504
        %v967 = vrot.slane %v722, 2
        %v968 = vrot.slane %v771, 2
        %v969 = vsel %vm966, %v967, %v968
        %v970 = vrot.slane %v723, 2
        %v971 = vrot.slane %v772, 2
        %v972 = vsel %vm966, %v970, %v971
        %v973 = vrot.slane %v724, 2
        %v974 = vrot.slane %v773, 2
        %v975 = vsel %vm966, %v973, %v974
        %v976 = vrot.slane %v725, 2
        %v977 = vrot.slane %v774, 2
        %v978 = vsel %vm966, %v976, %v977
        %v979 = vrot.slane %v726, 2
        %v980 = vrot.slane %v775, 2
        %v981 = vsel %vm966, %v979, %v980
        %v982 = vrot.slane %v727, 2
        %v983 = vrot.slane %v776, 2
        %v984 = vsel %vm966, %v982, %v983
        %v985 = vrot.slane %v728, 2
        %v986 = vrot.slane %v777, 2
        %v987 = vsel %vm966, %v985, %v986
        %v988 = vrot.slane %v729, 2
        %v989 = vrot.slane %v778, 2
        %v990 = vsel %vm966, %v988, %v989
        %v991 = vrot.slane %v731, 2
        %v992 = vrot.slane %v780, 2
        %v993 = vsel %vm966, %v991, %v992
        %v994 = vrot.slane %v732, 2
        %v995 = vrot.slane %v781, 2
        %v996 = vsel %vm966, %v994, %v995
        %v997 = vrot.slane %v733, 2
        %v998 = vrot.slane %v782, 2
        %v999 = vsel %vm966, %v997, %v998
        %v1000 = vrot.slane %v734, 2
        %v1001 = vrot.slane %v783, 2
        %v1002 = vsel %vm966, %v1000, %v1001
        %v1003 = vrot.slane %v735, 2
        %v1004 = vrot.slane %v784, 2
        %v1005 = vsel %vm966, %v1003, %v1004
        %v1006 = vrot.slane %v736, 2
        %v1007 = vrot.slane %v785, 2
        %v1008 = vsel %vm966, %v1006, %v1007
        %v1009 = vrot.slane %v737, 2
        %v1010 = vrot.slane %v786, 2
        %v1011 = vsel %vm966, %v1009, %v1010
        %v1012 = vrot.slane %v739, 2
        %v1013 = vrot.slane %v788, 2
        %v1014 = vsel %vm966, %v1012, %v1013
        %v1015 = vrot.slane %v740, 2
        %v1016 = vrot.slane %v789, 2
        %v1017 = vsel %vm966, %v1015, %v1016
        %v1018 = vrot.slane %v741, 2
        %v1019 = vrot.slane %v790, 2
        %v1020 = vsel %vm966, %v1018, %v1019
        %v1021 = vrot.slane %v742, 2
        %v1022 = vrot.slane %v791, 2
        %v1023 = vsel %vm966, %v1021, %v1022
        %v1024 = vrot.slane %v743, 2
        %v1025 = vrot.slane %v792, 2
        %v1026 = vsel %vm966, %v1024, %v1025
        %v1027 = vrot.slane %v744, 2
        %v1028 = vrot.slane %v793, 2
        %v1029 = vsel %vm966, %v1027, %v1028
        %v1030 = vrot.slane %v745, 2
        %v1031 = vrot.slane %v794, 2
        %v1032 = vsel %vm966, %v1030, %v1031
        %v1033 = vrot.slane %v747, 2
        %v1034 = vrot.slane %v796, 2
        %v1035 = vsel %vm966, %v1033, %v1034
        %v1036 = vrot.slane %v748, 2
        %v1037 = vrot.slane %v797, 2
        %v1038 = vsel %vm966, %v1036, %v1037
        %v1039 = vrot.slane %v749, 2
        %v1040 = vrot.slane %v798, 2
        %v1041 = vsel %vm966, %v1039, %v1040
        %v1042 = vrot.slane %v750, 2
        %v1043 = vrot.slane %v799, 2
        %v1044 = vsel %vm966, %v1042, %v1043
        %v1045 = vrot.slane %v751, 2
        %v1046 = vrot.slane %v800, 2
        %v1047 = vsel %vm966, %v1045, %v1046
        %v1048 = vrot.slane %v752, 2
        %v1049 = vrot.slane %v801, 2
        %v1050 = vsel %vm966, %v1048, %v1049
        %v1051 = vrot.slane %v753, 2
        %v1052 = vrot.slane %v802, 2
        %v1053 = vsel %vm966, %v1051, %v1052
        %v1062 = vrot.slane %v730, 1
        %v1063 = vrot.slane %v779, 1
        %v1064 = vsel %vm878, %v1062, %v1063
        %v1065 = vrot.slane %v738, 1
        %v1066 = vrot.slane %v787, 1
        %v1067 = vsel %vm878, %v1065, %v1066
        %v1068 = vrot.slane %v746, 1
        %v1069 = vrot.slane %v795, 1
        %v1070 = vsel %vm878, %v1068, %v1069
        %v1071 = vrot.slane %v754, 1
        %v1072 = vrot.slane %v803, 1
        %v1073 = vsel %vm878, %v1071, %v1072
        %v1074 = vrot.slane %v730, 2
        %v1075 = vrot.slane %v779, 2
        %v1076 = vsel %vm966, %v1074, %v1075
        %v1077 = vrot.slane %v738, 2
        %v1078 = vrot.slane %v787, 2
        %v1079 = vsel %vm966, %v1077, %v1078
        %v1080 = vrot.slane %v746, 2
        %v1081 = vrot.slane %v795, 2
        %v1082 = vsel %vm966, %v1080, %v1081
        %v1083 = vrot.slane %v754, 2
        %v1084 = vrot.slane %v803, 2
        %v1085 = vsel %vm966, %v1083, %v1084
        %v1100 = vrot.slane %v755, 1
        %v1101 = vrot.slane %v804, 1
        %v1102 = vsel %vm878, %v1100, %v1101
        %v1103 = vrot.slane %v756, 1
        %v1104 = vrot.slane %v805, 1
        %v1105 = vsel %vm878, %v1103, %v1104
        %v1106 = vrot.slane %v757, 1
        %v1107 = vrot.slane %v806, 1
        %v1108 = vsel %vm878, %v1106, %v1107
        %v1109 = vrot.slane %v758, 1
        %v1110 = vrot.slane %v807, 1
        %v1111 = vsel %vm878, %v1109, %v1110
        %v1112 = vrot.slane %v759, 1
        %v1113 = vrot.slane %v808, 1
        %v1114 = vsel %vm878, %v1112, %v1113
        %v1115 = vrot.slane %v760, 1
        %v1116 = vrot.slane %v809, 1
        %v1117 = vsel %vm878, %v1115, %v1116
        %v1118 = vrot.slane %v761, 1
        %v1119 = vrot.slane %v810, 1
        %v1120 = vsel %vm878, %v1118, %v1119
        %v1121 = vrot.slane %v755, 2
        %v1122 = vrot.slane %v804, 2
        %v1123 = vsel %vm966, %v1121, %v1122
        %v1124 = vrot.slane %v756, 2
        %v1125 = vrot.slane %v805, 2
        %v1126 = vsel %vm966, %v1124, %v1125
        %v1127 = vrot.slane %v757, 2
        %v1128 = vrot.slane %v806, 2
        %v1129 = vsel %vm966, %v1127, %v1128
        %v1130 = vrot.slane %v758, 2
        %v1131 = vrot.slane %v807, 2
        %v1132 = vsel %vm966, %v1130, %v1131
        %v1133 = vrot.slane %v759, 2
        %v1134 = vrot.slane %v808, 2
        %v1135 = vsel %vm966, %v1133, %v1134
        %v1136 = vrot.slane %v760, 2
        %v1137 = vrot.slane %v809, 2
        %v1138 = vsel %vm966, %v1136, %v1137
        %v1139 = vrot.slane %v761, 2
        %v1140 = vrot.slane %v810, 2
        %v1141 = vsel %vm966, %v1139, %v1140
        %v1144 = vrot.slane %v762, 1
        %v1145 = vrot.slane %v811, 1
        %v1146 = vsel %vm878, %v1144, %v1145
        %v1147 = vrot.slane %v762, 2
        %v1148 = vrot.slane %v811, 2
        %v1149 = vsel %vm966, %v1147, %v1148
        %v1193 = vrot.slane %v763, 1
        %v1194 = vrot.slane %v812, 1
        %v1195 = vsel %vm878, %v1193, %v1194
        %v1196 = vrot.slane %v764, 1
        %v1197 = vrot.slane %v813, 1
        %v1198 = vsel %vm878, %v1196, %v1197
        %v1199 = vrot.slane %v765, 1
        %v1200 = vrot.slane %v814, 1
        %v1201 = vsel %vm878, %v1199, %v1200
        %v1202 = vrot.slane %v766, 1
        %v1203 = vrot.slane %v815, 1
        %v1204 = vsel %vm878, %v1202, %v1203
        %v1205 = vrot.slane %v767, 1
        %v1206 = vrot.slane %v816, 1
        %v1207 = vsel %vm878, %v1205, %v1206
        %v1208 = vrot.slane %v768, 1
        %v1209 = vrot.slane %v817, 1
        %v1210 = vsel %vm878, %v1208, %v1209
        %v1211 = vrot.slane %v769, 1
        %v1212 = vrot.slane %v818, 1
        %v1213 = vsel %vm878, %v1211, %v1212
        %v1214 = vrot.slane %v763, 2
        %v1215 = vrot.slane %v812, 2
        %v1216 = vsel %vm966, %v1214, %v1215
        %v1217 = vrot.slane %v764, 2
        %v1218 = vrot.slane %v813, 2
        %v1219 = vsel %vm966, %v1217, %v1218
        %v1220 = vrot.slane %v765, 2
        %v1221 = vrot.slane %v814, 2
        %v1222 = vsel %vm966, %v1220, %v1221
        %v1223 = vrot.slane %v766, 2
        %v1224 = vrot.slane %v815, 2
        %v1225 = vsel %vm966, %v1223, %v1224
        %v1226 = vrot.slane %v767, 2
        %v1227 = vrot.slane %v816, 2
        %v1228 = vsel %vm966, %v1226, %v1227
        %v1229 = vrot.slane %v768, 2
        %v1230 = vrot.slane %v817, 2
        %v1231 = vsel %vm966, %v1229, %v1230
        %v1232 = vrot.slane %v769, 2
        %v1233 = vrot.slane %v818, 2
        %v1234 = vsel %vm966, %v1232, %v1233
        %v1237 = vrot.slane %v770, 1
        %v1238 = vrot.slane %v819, 1
        %v1239 = vsel %vm878, %v1237, %v1238
        %v1240 = vrot.slane %v770, 2
        %v1241 = vrot.slane %v819, 2
        %v1242 = vsel %vm966, %v1240, %v1241
        %1243 = vrot.lane.b32.xlu0 %v881, 4
        %v1244 = vpop.permute.xlu0 %1243
        %1245 = vrot.lane.b32.xlu0 %v884, 4
        %v1246 = vpop.permute.xlu0 %1245
        %1247 = vrot.lane.b32.xlu0 %v887, 4
        %v1248 = vpop.permute.xlu0 %1247
        %1249 = vrot.lane.b32.xlu0 %v890, 4
        %v1250 = vpop.permute.xlu0 %1249
        %1251 = vrot.lane.b32.xlu0 %v893, 4
        %v1252 = vpop.permute.xlu0 %1251
        %1253 = vrot.lane.b32.xlu0 %v896, 4
        %v1254 = vpop.permute.xlu0 %1253
        %1255 = vrot.lane.b32.xlu0 %v899, 4
        %v1256 = vpop.permute.xlu0 %1255
        %1257 = vrot.lane.b32.xlu0 %v902, 4
        %v1258 = vpop.permute.xlu0 %1257
        %1259 = vrot.lane.b32.xlu0 %v905, 4
        %v1260 = vpop.permute.xlu0 %1259
        %1261 = vrot.lane.b32.xlu0 %v908, 4
        %v1262 = vpop.permute.xlu0 %1261
        %1263 = vrot.lane.b32.xlu0 %v911, 4
        %v1264 = vpop.permute.xlu0 %1263
        %1265 = vrot.lane.b32.xlu0 %v914, 4
        %v1266 = vpop.permute.xlu0 %1265
        %1267 = vrot.lane.b32.xlu0 %v917, 4
        %v1268 = vpop.permute.xlu0 %1267
        %1269 = vrot.lane.b32.xlu0 %v920, 4
        %v1270 = vpop.permute.xlu0 %1269
        %1271 = vrot.lane.b32.xlu0 %v923, 4
        %v1272 = vpop.permute.xlu0 %1271
        %1273 = vrot.lane.b32.xlu0 %v926, 4
        %v1274 = vpop.permute.xlu0 %1273
        %1275 = vrot.lane.b32.xlu0 %v929, 4
        %v1276 = vpop.permute.xlu0 %1275
        %1277 = vrot.lane.b32.xlu0 %v932, 4
        %v1278 = vpop.permute.xlu0 %1277
        %1279 = vrot.lane.b32.xlu0 %v935, 4
        %v1280 = vpop.permute.xlu0 %1279
        %1281 = vrot.lane.b32.xlu0 %v938, 4
        %v1282 = vpop.permute.xlu0 %1281
        %1283 = vrot.lane.b32.xlu0 %v941, 4
        %v1284 = vpop.permute.xlu0 %1283
        %1285 = vrot.lane.b32.xlu0 %v944, 4
        %v1286 = vpop.permute.xlu0 %1285
        %1287 = vrot.lane.b32.xlu0 %v947, 4
        %v1288 = vpop.permute.xlu0 %1287
        %1289 = vrot.lane.b32.xlu0 %v950, 4
        %v1290 = vpop.permute.xlu0 %1289
        %1291 = vrot.lane.b32.xlu0 %v953, 4
        %v1292 = vpop.permute.xlu0 %1291
        %1293 = vrot.lane.b32.xlu0 %v956, 4
        %v1294 = vpop.permute.xlu0 %1293
        %1295 = vrot.lane.b32.xlu0 %v959, 4
        %v1296 = vpop.permute.xlu0 %1295
        %1297 = vrot.lane.b32.xlu0 %v962, 4
        %v1298 = vpop.permute.xlu0 %1297
        %1299 = vrot.lane.b32.xlu0 %v965, 4
        %v1300 = vpop.permute.xlu0 %1299
        %1330 = vrot.lane.b32.xlu0 %v969, 8
        %v1331 = vpop.permute.xlu0 %1330
        %1332 = vrot.lane.b32.xlu0 %v972, 8
        %v1333 = vpop.permute.xlu0 %1332
        %1334 = vrot.lane.b32.xlu0 %v975, 8
        %v1335 = vpop.permute.xlu0 %1334
        %1336 = vrot.lane.b32.xlu0 %v978, 8
        %v1337 = vpop.permute.xlu0 %1336
        %1338 = vrot.lane.b32.xlu0 %v981, 8
        %v1339 = vpop.permute.xlu0 %1338
        %1340 = vrot.lane.b32.xlu0 %v984, 8
        %v1341 = vpop.permute.xlu0 %1340
        %1342 = vrot.lane.b32.xlu0 %v987, 8
        %v1343 = vpop.permute.xlu0 %1342
        %1344 = vrot.lane.b32.xlu0 %v990, 8
        %v1345 = vpop.permute.xlu0 %1344
        %1346 = vrot.lane.b32.xlu0 %v993, 8
        %v1347 = vpop.permute.xlu0 %1346
        %1348 = vrot.lane.b32.xlu0 %v996, 8
        %v1349 = vpop.permute.xlu0 %1348
        %1350 = vrot.lane.b32.xlu0 %v999, 8
        %v1351 = vpop.permute.xlu0 %1350
        %1352 = vrot.lane.b32.xlu0 %v1002, 8
        %v1353 = vpop.permute.xlu0 %1352
        %1354 = vrot.lane.b32.xlu0 %v1005, 8
        %v1355 = vpop.permute.xlu0 %1354
        %1356 = vrot.lane.b32.xlu0 %v1008, 8
        %v1357 = vpop.permute.xlu0 %1356
        %1358 = vrot.lane.b32.xlu0 %v1011, 8
        %v1359 = vpop.permute.xlu0 %1358
        %1360 = vrot.lane.b32.xlu0 %v1014, 8
        %v1361 = vpop.permute.xlu0 %1360
        %1362 = vrot.lane.b32.xlu0 %v1017, 8
        %v1363 = vpop.permute.xlu0 %1362
        %1364 = vrot.lane.b32.xlu0 %v1020, 8
        %v1365 = vpop.permute.xlu0 %1364
        %1366 = vrot.lane.b32.xlu0 %v1023, 8
        %v1367 = vpop.permute.xlu0 %1366
        %1368 = vrot.lane.b32.xlu0 %v1026, 8
        %v1369 = vpop.permute.xlu0 %1368
        %1370 = vrot.lane.b32.xlu0 %v1029, 8
        %v1371 = vpop.permute.xlu0 %1370
        %1372 = vrot.lane.b32.xlu0 %v1032, 8
        %v1373 = vpop.permute.xlu0 %1372
        %1374 = vrot.lane.b32.xlu0 %v1035, 8
        %v1375 = vpop.permute.xlu0 %1374
        %1376 = vrot.lane.b32.xlu0 %v1038, 8
        %v1377 = vpop.permute.xlu0 %1376
        %1378 = vrot.lane.b32.xlu0 %v1041, 8
        %v1379 = vpop.permute.xlu0 %1378
        %1380 = vrot.lane.b32.xlu0 %v1044, 8
        %v1381 = vpop.permute.xlu0 %1380
        %1382 = vrot.lane.b32.xlu0 %v1047, 8
        %v1383 = vpop.permute.xlu0 %1382
        %1384 = vrot.lane.b32.xlu0 %v1050, 8
        %v1385 = vpop.permute.xlu0 %1384
        %1386 = vrot.lane.b32.xlu0 %v1053, 8
        %v1387 = vpop.permute.xlu0 %1386
        %1417 = vrot.lane.b32.xlu0 %v723, 12
        %v1418 = vpop.permute.xlu0 %1417
        %1419 = vrot.lane.b32.xlu0 %v724, 12
        %v1420 = vpop.permute.xlu0 %1419
        %1421 = vrot.lane.b32.xlu0 %v725, 12
        %v1422 = vpop.permute.xlu0 %1421
        %1423 = vrot.lane.b32.xlu0 %v726, 12
        %v1424 = vpop.permute.xlu0 %1423
        %1425 = vrot.lane.b32.xlu0 %v727, 12
        %v1426 = vpop.permute.xlu0 %1425
        %1427 = vrot.lane.b32.xlu0 %v728, 12
        %v1428 = vpop.permute.xlu0 %1427
        %1429 = vrot.lane.b32.xlu0 %v729, 12
        %v1430 = vpop.permute.xlu0 %1429
        %1431 = vrot.lane.b32.xlu0 %v730, 12
        %v1432 = vpop.permute.xlu0 %1431
        %1433 = vrot.lane.b32.xlu0 %v731, 12
        %v1434 = vpop.permute.xlu0 %1433
        %1435 = vrot.lane.b32.xlu0 %v732, 12
        %v1436 = vpop.permute.xlu0 %1435
        %1437 = vrot.lane.b32.xlu0 %v733, 12
        %v1438 = vpop.permute.xlu0 %1437
        %1439 = vrot.lane.b32.xlu0 %v734, 12
        %v1440 = vpop.permute.xlu0 %1439
        %1441 = vrot.lane.b32.xlu0 %v735, 12
        %v1442 = vpop.permute.xlu0 %1441
        %1443 = vrot.lane.b32.xlu0 %v736, 12
        %v1444 = vpop.permute.xlu0 %1443
        %1445 = vrot.lane.b32.xlu0 %v737, 12
        %v1446 = vpop.permute.xlu0 %1445
        %1447 = vrot.lane.b32.xlu0 %v738, 12
        %v1448 = vpop.permute.xlu0 %1447
        %1449 = vrot.lane.b32.xlu0 %v739, 12
        %v1450 = vpop.permute.xlu0 %1449
        %1451 = vrot.lane.b32.xlu0 %v740, 12
        %v1452 = vpop.permute.xlu0 %1451
        %1453 = vrot.lane.b32.xlu0 %v741, 12
        %v1454 = vpop.permute.xlu0 %1453
        %1455 = vrot.lane.b32.xlu0 %v742, 12
        %v1456 = vpop.permute.xlu0 %1455
        %1457 = vrot.lane.b32.xlu0 %v743, 12
        %v1458 = vpop.permute.xlu0 %1457
        %1459 = vrot.lane.b32.xlu0 %v744, 12
        %v1460 = vpop.permute.xlu0 %1459
        %1461 = vrot.lane.b32.xlu0 %v745, 12
        %v1462 = vpop.permute.xlu0 %1461
        %1463 = vrot.lane.b32.xlu0 %v746, 12
        %v1464 = vpop.permute.xlu0 %1463
        %1465 = vrot.lane.b32.xlu0 %v747, 12
        %v1466 = vpop.permute.xlu0 %1465
        %1467 = vrot.lane.b32.xlu0 %v748, 12
        %v1468 = vpop.permute.xlu0 %1467
        %1469 = vrot.lane.b32.xlu0 %v749, 12
        %v1470 = vpop.permute.xlu0 %1469
        %1471 = vrot.lane.b32.xlu0 %v750, 12
        %v1472 = vpop.permute.xlu0 %1471
        %1473 = vrot.lane.b32.xlu0 %v751, 12
        %v1474 = vpop.permute.xlu0 %1473
        %1475 = vrot.lane.b32.xlu0 %v752, 12
        %v1476 = vpop.permute.xlu0 %1475
        %1477 = vrot.lane.b32.xlu0 %v753, 12
        %v1478 = vpop.permute.xlu0 %1477
        %1479 = vrot.lane.b32.xlu0 %v754, 12
        %v1480 = vpop.permute.xlu0 %1479
        %1513 = vrot.lane.b32.xlu0 %v884, 16
        %v1514 = vpop.permute.xlu0 %1513
        %1515 = vrot.lane.b32.xlu0 %v887, 16
        %v1516 = vpop.permute.xlu0 %1515
        %1517 = vrot.lane.b32.xlu0 %v890, 16
        %v1518 = vpop.permute.xlu0 %1517
        %1519 = vrot.lane.b32.xlu0 %v893, 16
        %v1520 = vpop.permute.xlu0 %1519
        %1521 = vrot.lane.b32.xlu0 %v896, 16
        %v1522 = vpop.permute.xlu0 %1521
        %1523 = vrot.lane.b32.xlu0 %v899, 16
        %v1524 = vpop.permute.xlu0 %1523
        %1525 = vrot.lane.b32.xlu0 %v902, 16
        %v1526 = vpop.permute.xlu0 %1525
        %1527 = vrot.lane.b32.xlu0 %v1064, 16
        %v1528 = vpop.permute.xlu0 %1527
        %1529 = vrot.lane.b32.xlu0 %v905, 16
        %v1530 = vpop.permute.xlu0 %1529
        %1531 = vrot.lane.b32.xlu0 %v908, 16
        %v1532 = vpop.permute.xlu0 %1531
        %1533 = vrot.lane.b32.xlu0 %v911, 16
        %v1534 = vpop.permute.xlu0 %1533
        %1535 = vrot.lane.b32.xlu0 %v914, 16
        %v1536 = vpop.permute.xlu0 %1535
        %1537 = vrot.lane.b32.xlu0 %v917, 16
        %v1538 = vpop.permute.xlu0 %1537
        %1539 = vrot.lane.b32.xlu0 %v920, 16
        %v1540 = vpop.permute.xlu0 %1539
        %1541 = vrot.lane.b32.xlu0 %v923, 16
        %v1542 = vpop.permute.xlu0 %1541
        %1543 = vrot.lane.b32.xlu0 %v1067, 16
        %v1544 = vpop.permute.xlu0 %1543
        %1545 = vrot.lane.b32.xlu0 %v926, 16
        %v1546 = vpop.permute.xlu0 %1545
        %1547 = vrot.lane.b32.xlu0 %v929, 16
        %v1548 = vpop.permute.xlu0 %1547
        %1549 = vrot.lane.b32.xlu0 %v932, 16
        %v1550 = vpop.permute.xlu0 %1549
        %1551 = vrot.lane.b32.xlu0 %v935, 16
        %v1552 = vpop.permute.xlu0 %1551
        %1553 = vrot.lane.b32.xlu0 %v938, 16
        %v1554 = vpop.permute.xlu0 %1553
        %1555 = vrot.lane.b32.xlu0 %v941, 16
        %v1556 = vpop.permute.xlu0 %1555
        %1557 = vrot.lane.b32.xlu0 %v944, 16
        %v1558 = vpop.permute.xlu0 %1557
        %1559 = vrot.lane.b32.xlu0 %v1070, 16
        %v1560 = vpop.permute.xlu0 %1559
        %1561 = vrot.lane.b32.xlu0 %v947, 16
        %v1562 = vpop.permute.xlu0 %1561
        %1563 = vrot.lane.b32.xlu0 %v950, 16
        %v1564 = vpop.permute.xlu0 %1563
        %1565 = vrot.lane.b32.xlu0 %v953, 16
        %v1566 = vpop.permute.xlu0 %1565
        %1567 = vrot.lane.b32.xlu0 %v956, 16
        %v1568 = vpop.permute.xlu0 %1567
        %1569 = vrot.lane.b32.xlu0 %v959, 16
        %v1570 = vpop.permute.xlu0 %1569
        %1571 = vrot.lane.b32.xlu0 %v962, 16
        %v1572 = vpop.permute.xlu0 %1571
        %1573 = vrot.lane.b32.xlu0 %v965, 16
        %v1574 = vpop.permute.xlu0 %1573
        %1575 = vrot.lane.b32.xlu0 %v1073, 16
        %v1576 = vpop.permute.xlu0 %1575
        %1609 = vrot.lane.b32.xlu0 %v972, 20
        %v1610 = vpop.permute.xlu0 %1609
        %1611 = vrot.lane.b32.xlu0 %v975, 20
        %v1612 = vpop.permute.xlu0 %1611
        %1613 = vrot.lane.b32.xlu0 %v978, 20
        %v1614 = vpop.permute.xlu0 %1613
        %1615 = vrot.lane.b32.xlu0 %v981, 20
        %v1616 = vpop.permute.xlu0 %1615
        %1617 = vrot.lane.b32.xlu0 %v984, 20
        %v1618 = vpop.permute.xlu0 %1617
        %1619 = vrot.lane.b32.xlu0 %v987, 20
        %v1620 = vpop.permute.xlu0 %1619
        %1621 = vrot.lane.b32.xlu0 %v990, 20
        %v1622 = vpop.permute.xlu0 %1621
        %1623 = vrot.lane.b32.xlu0 %v1076, 20
        %v1624 = vpop.permute.xlu0 %1623
        %1625 = vrot.lane.b32.xlu0 %v993, 20
        %v1626 = vpop.permute.xlu0 %1625
        %1627 = vrot.lane.b32.xlu0 %v996, 20
        %v1628 = vpop.permute.xlu0 %1627
        %1629 = vrot.lane.b32.xlu0 %v999, 20
        %v1630 = vpop.permute.xlu0 %1629
        %1631 = vrot.lane.b32.xlu0 %v1002, 20
        %v1632 = vpop.permute.xlu0 %1631
        %1633 = vrot.lane.b32.xlu0 %v1005, 20
        %v1634 = vpop.permute.xlu0 %1633
        %1635 = vrot.lane.b32.xlu0 %v1008, 20
        %v1636 = vpop.permute.xlu0 %1635
        %1637 = vrot.lane.b32.xlu0 %v1011, 20
        %v1638 = vpop.permute.xlu0 %1637
        %1639 = vrot.lane.b32.xlu0 %v1079, 20
        %v1640 = vpop.permute.xlu0 %1639
        %1641 = vrot.lane.b32.xlu0 %v1014, 20
        %v1642 = vpop.permute.xlu0 %1641
        %1643 = vrot.lane.b32.xlu0 %v1017, 20
        %v1644 = vpop.permute.xlu0 %1643
        %1645 = vrot.lane.b32.xlu0 %v1020, 20
        %v1646 = vpop.permute.xlu0 %1645
        %1647 = vrot.lane.b32.xlu0 %v1023, 20
        %v1648 = vpop.permute.xlu0 %1647
        %1649 = vrot.lane.b32.xlu0 %v1026, 20
        %v1650 = vpop.permute.xlu0 %1649
        %1651 = vrot.lane.b32.xlu0 %v1029, 20
        %v1652 = vpop.permute.xlu0 %1651
        %1653 = vrot.lane.b32.xlu0 %v1032, 20
        %v1654 = vpop.permute.xlu0 %1653
        %1655 = vrot.lane.b32.xlu0 %v1082, 20
        %v1656 = vpop.permute.xlu0 %1655
        %1657 = vrot.lane.b32.xlu0 %v1035, 20
        %v1658 = vpop.permute.xlu0 %1657
        %1659 = vrot.lane.b32.xlu0 %v1038, 20
        %v1660 = vpop.permute.xlu0 %1659
        %1661 = vrot.lane.b32.xlu0 %v1041, 20
        %v1662 = vpop.permute.xlu0 %1661
        %1663 = vrot.lane.b32.xlu0 %v1044, 20
        %v1664 = vpop.permute.xlu0 %1663
        %1665 = vrot.lane.b32.xlu0 %v1047, 20
        %v1666 = vpop.permute.xlu0 %1665
        %1667 = vrot.lane.b32.xlu0 %v1050, 20
        %v1668 = vpop.permute.xlu0 %1667
        %1669 = vrot.lane.b32.xlu0 %v1053, 20
        %v1670 = vpop.permute.xlu0 %1669
        %1671 = vrot.lane.b32.xlu0 %v1085, 20
        %v1672 = vpop.permute.xlu0 %1671
        %1705 = vrot.lane.b32.xlu0 %v724, 24
        %v1706 = vpop.permute.xlu0 %1705
        %1707 = vrot.lane.b32.xlu0 %v725, 24
        %v1708 = vpop.permute.xlu0 %1707
        %1709 = vrot.lane.b32.xlu0 %v726, 24
        %v1710 = vpop.permute.xlu0 %1709
        %1711 = vrot.lane.b32.xlu0 %v727, 24
        %v1712 = vpop.permute.xlu0 %1711
        %1713 = vrot.lane.b32.xlu0 %v728, 24
        %v1714 = vpop.permute.xlu0 %1713
        %1715 = vrot.lane.b32.xlu0 %v729, 24
        %v1716 = vpop.permute.xlu0 %1715
        %1717 = vrot.lane.b32.xlu0 %v730, 24
        %v1718 = vpop.permute.xlu0 %1717
        %1719 = vrot.lane.b32.xlu0 %v722, 24
        %v1720 = vpop.permute.xlu0 %1719
        %1721 = vrot.lane.b32.xlu0 %v732, 24
        %v1722 = vpop.permute.xlu0 %1721
        %1723 = vrot.lane.b32.xlu0 %v733, 24
        %v1724 = vpop.permute.xlu0 %1723
        %1725 = vrot.lane.b32.xlu0 %v734, 24
        %v1726 = vpop.permute.xlu0 %1725
        %1727 = vrot.lane.b32.xlu0 %v735, 24
        %v1728 = vpop.permute.xlu0 %1727
        %1729 = vrot.lane.b32.xlu0 %v736, 24
        %v1730 = vpop.permute.xlu0 %1729
        %1731 = vrot.lane.b32.xlu0 %v737, 24
        %v1732 = vpop.permute.xlu0 %1731
        %1733 = vrot.lane.b32.xlu0 %v738, 24
        %v1734 = vpop.permute.xlu0 %1733
        %1735 = vrot.lane.b32.xlu0 %v740, 24
        %v1736 = vpop.permute.xlu0 %1735
        %1737 = vrot.lane.b32.xlu0 %v741, 24
        %v1738 = vpop.permute.xlu0 %1737
        %1739 = vrot.lane.b32.xlu0 %v742, 24
        %v1740 = vpop.permute.xlu0 %1739
        %1741 = vrot.lane.b32.xlu0 %v743, 24
        %v1742 = vpop.permute.xlu0 %1741
        %1743 = vrot.lane.b32.xlu0 %v744, 24
        %v1744 = vpop.permute.xlu0 %1743
        %1745 = vrot.lane.b32.xlu0 %v745, 24
        %v1746 = vpop.permute.xlu0 %1745
        %1747 = vrot.lane.b32.xlu0 %v746, 24
        %v1748 = vpop.permute.xlu0 %1747
        %1749 = vrot.lane.b32.xlu0 %v748, 24
        %v1750 = vpop.permute.xlu0 %1749
        %1751 = vrot.lane.b32.xlu0 %v749, 24
        %v1752 = vpop.permute.xlu0 %1751
        %1753 = vrot.lane.b32.xlu0 %v750, 24
        %v1754 = vpop.permute.xlu0 %1753
        %1755 = vrot.lane.b32.xlu0 %v751, 24
        %v1756 = vpop.permute.xlu0 %1755
        %1757 = vrot.lane.b32.xlu0 %v752, 24
        %v1758 = vpop.permute.xlu0 %1757
        %1759 = vrot.lane.b32.xlu0 %v753, 24
        %v1760 = vpop.permute.xlu0 %1759
        %1761 = vrot.lane.b32.xlu0 %v754, 24
        %v1762 = vpop.permute.xlu0 %1761
        %1792 = vrot.lane.b32.xlu0 %v887, 28
        %v1793 = vpop.permute.xlu0 %1792
        %1794 = vrot.lane.b32.xlu0 %v890, 28
        %v1795 = vpop.permute.xlu0 %1794
        %1796 = vrot.lane.b32.xlu0 %v893, 28
        %v1797 = vpop.permute.xlu0 %1796
        %1798 = vrot.lane.b32.xlu0 %v896, 28
        %v1799 = vpop.permute.xlu0 %1798
        %1800 = vrot.lane.b32.xlu0 %v899, 28
        %v1801 = vpop.permute.xlu0 %1800
        %1802 = vrot.lane.b32.xlu0 %v902, 28
        %v1803 = vpop.permute.xlu0 %1802
        %1804 = vrot.lane.b32.xlu0 %v1064, 28
        %v1805 = vpop.permute.xlu0 %1804
        %1806 = vrot.lane.b32.xlu0 %v881, 28
        %v1807 = vpop.permute.xlu0 %1806
        %1808 = vrot.lane.b32.xlu0 %v908, 28
        %v1809 = vpop.permute.xlu0 %1808
        %1810 = vrot.lane.b32.xlu0 %v911, 28
        %v1811 = vpop.permute.xlu0 %1810
        %1812 = vrot.lane.b32.xlu0 %v914, 28
        %v1813 = vpop.permute.xlu0 %1812
        %1814 = vrot.lane.b32.xlu0 %v917, 28
        %v1815 = vpop.permute.xlu0 %1814
        %1816 = vrot.lane.b32.xlu0 %v920, 28
        %v1817 = vpop.permute.xlu0 %1816
        %1818 = vrot.lane.b32.xlu0 %v923, 28
        %v1819 = vpop.permute.xlu0 %1818
        %1820 = vrot.lane.b32.xlu0 %v1067, 28
        %v1821 = vpop.permute.xlu0 %1820
        %1822 = vrot.lane.b32.xlu0 %v929, 28
        %v1823 = vpop.permute.xlu0 %1822
        %1824 = vrot.lane.b32.xlu0 %v932, 28
        %v1825 = vpop.permute.xlu0 %1824
        %1826 = vrot.lane.b32.xlu0 %v935, 28
        %v1827 = vpop.permute.xlu0 %1826
        %1828 = vrot.lane.b32.xlu0 %v938, 28
        %v1829 = vpop.permute.xlu0 %1828
        %1830 = vrot.lane.b32.xlu0 %v941, 28
        %v1831 = vpop.permute.xlu0 %1830
        %1832 = vrot.lane.b32.xlu0 %v944, 28
        %v1833 = vpop.permute.xlu0 %1832
        %1834 = vrot.lane.b32.xlu0 %v1070, 28
        %v1835 = vpop.permute.xlu0 %1834
        %1836 = vrot.lane.b32.xlu0 %v950, 28
        %v1837 = vpop.permute.xlu0 %1836
        %1838 = vrot.lane.b32.xlu0 %v953, 28
        %v1839 = vpop.permute.xlu0 %1838
        %1840 = vrot.lane.b32.xlu0 %v956, 28
        %v1841 = vpop.permute.xlu0 %1840
        %1842 = vrot.lane.b32.xlu0 %v959, 28
        %v1843 = vpop.permute.xlu0 %1842
        %1844 = vrot.lane.b32.xlu0 %v962, 28
        %v1845 = vpop.permute.xlu0 %1844
        %1846 = vrot.lane.b32.xlu0 %v965, 28
        %v1847 = vpop.permute.xlu0 %1846
        %1848 = vrot.lane.b32.xlu0 %v1073, 28
        %v1849 = vpop.permute.xlu0 %1848
        %1879 = vrot.lane.b32.xlu0 %v975, 32
        %v1880 = vpop.permute.xlu0 %1879
        %1881 = vrot.lane.b32.xlu0 %v978, 32
        %v1882 = vpop.permute.xlu0 %1881
        %1883 = vrot.lane.b32.xlu0 %v981, 32
        %v1884 = vpop.permute.xlu0 %1883
        %1885 = vrot.lane.b32.xlu0 %v984, 32
        %v1886 = vpop.permute.xlu0 %1885
        %1887 = vrot.lane.b32.xlu0 %v987, 32
        %v1888 = vpop.permute.xlu0 %1887
        %1889 = vrot.lane.b32.xlu0 %v990, 32
        %v1890 = vpop.permute.xlu0 %1889
        %1891 = vrot.lane.b32.xlu0 %v1076, 32
        %v1892 = vpop.permute.xlu0 %1891
        %1893 = vrot.lane.b32.xlu0 %v969, 32
        %v1894 = vpop.permute.xlu0 %1893
        %1895 = vrot.lane.b32.xlu0 %v996, 32
        %v1896 = vpop.permute.xlu0 %1895
        %1897 = vrot.lane.b32.xlu0 %v999, 32
        %v1898 = vpop.permute.xlu0 %1897
        %1899 = vrot.lane.b32.xlu0 %v1002, 32
        %v1900 = vpop.permute.xlu0 %1899
        %1901 = vrot.lane.b32.xlu0 %v1005, 32
        %v1902 = vpop.permute.xlu0 %1901
        %1903 = vrot.lane.b32.xlu0 %v1008, 32
        %v1904 = vpop.permute.xlu0 %1903
        %1905 = vrot.lane.b32.xlu0 %v1011, 32
        %v1906 = vpop.permute.xlu0 %1905
        %1907 = vrot.lane.b32.xlu0 %v1079, 32
        %v1908 = vpop.permute.xlu0 %1907
        %1909 = vrot.lane.b32.xlu0 %v1017, 32
        %v1910 = vpop.permute.xlu0 %1909
        %1911 = vrot.lane.b32.xlu0 %v1020, 32
        %v1912 = vpop.permute.xlu0 %1911
        %1913 = vrot.lane.b32.xlu0 %v1023, 32
        %v1914 = vpop.permute.xlu0 %1913
        %1915 = vrot.lane.b32.xlu0 %v1026, 32
        %v1916 = vpop.permute.xlu0 %1915
        %1917 = vrot.lane.b32.xlu0 %v1029, 32
        %v1918 = vpop.permute.xlu0 %1917
        %1919 = vrot.lane.b32.xlu0 %v1032, 32
        %v1920 = vpop.permute.xlu0 %1919
        %1921 = vrot.lane.b32.xlu0 %v1082, 32
        %v1922 = vpop.permute.xlu0 %1921
        %1923 = vrot.lane.b32.xlu0 %v1038, 32
        %v1924 = vpop.permute.xlu0 %1923
        %1925 = vrot.lane.b32.xlu0 %v1041, 32
        %v1926 = vpop.permute.xlu0 %1925
        %1927 = vrot.lane.b32.xlu0 %v1044, 32
        %v1928 = vpop.permute.xlu0 %1927
        %1929 = vrot.lane.b32.xlu0 %v1047, 32
        %v1930 = vpop.permute.xlu0 %1929
        %1931 = vrot.lane.b32.xlu0 %v1050, 32
        %v1932 = vpop.permute.xlu0 %1931
        %1933 = vrot.lane.b32.xlu0 %v1053, 32
        %v1934 = vpop.permute.xlu0 %1933
        %1935 = vrot.lane.b32.xlu0 %v1085, 32
        %v1936 = vpop.permute.xlu0 %1935
        %1966 = vrot.lane.b32.xlu0 %v722, 36
        %v1967 = vpop.permute.xlu0 %1966
        %1968 = vrot.lane.b32.xlu0 %v731, 36
        %v1969 = vpop.permute.xlu0 %1968
        %1970 = vrot.lane.b32.xlu0 %v732, 36
        %v1971 = vpop.permute.xlu0 %1970
        %1972 = vrot.lane.b32.xlu0 %v733, 36
        %v1973 = vpop.permute.xlu0 %1972
        %1974 = vrot.lane.b32.xlu0 %v734, 36
        %v1975 = vpop.permute.xlu0 %1974
        %1976 = vrot.lane.b32.xlu0 %v735, 36
        %v1977 = vpop.permute.xlu0 %1976
        %1978 = vrot.lane.b32.xlu0 %v736, 36
        %v1979 = vpop.permute.xlu0 %1978
        %1980 = vrot.lane.b32.xlu0 %v737, 36
        %v1981 = vpop.permute.xlu0 %1980
        %1982 = vrot.lane.b32.xlu0 %v739, 36
        %v1983 = vpop.permute.xlu0 %1982
        %1984 = vrot.lane.b32.xlu0 %v740, 36
        %v1985 = vpop.permute.xlu0 %1984
        %1986 = vrot.lane.b32.xlu0 %v741, 36
        %v1987 = vpop.permute.xlu0 %1986
        %1988 = vrot.lane.b32.xlu0 %v742, 36
        %v1989 = vpop.permute.xlu0 %1988
        %1990 = vrot.lane.b32.xlu0 %v743, 36
        %v1991 = vpop.permute.xlu0 %1990
        %1992 = vrot.lane.b32.xlu0 %v744, 36
        %v1993 = vpop.permute.xlu0 %1992
        %1994 = vrot.lane.b32.xlu0 %v745, 36
        %v1995 = vpop.permute.xlu0 %1994
        %1996 = vrot.lane.b32.xlu0 %v747, 36
        %v1997 = vpop.permute.xlu0 %1996
        %1998 = vrot.lane.b32.xlu0 %v748, 36
        %v1999 = vpop.permute.xlu0 %1998
        %2000 = vrot.lane.b32.xlu0 %v749, 36
        %v2001 = vpop.permute.xlu0 %2000
        %2002 = vrot.lane.b32.xlu0 %v750, 36
        %v2003 = vpop.permute.xlu0 %2002
        %2004 = vrot.lane.b32.xlu0 %v751, 36
        %v2005 = vpop.permute.xlu0 %2004
        %2006 = vrot.lane.b32.xlu0 %v752, 36
        %v2007 = vpop.permute.xlu0 %2006
        %2008 = vrot.lane.b32.xlu0 %v753, 36
        %v2009 = vpop.permute.xlu0 %2008
        %2010 = vrot.lane.b32.xlu0 %v755, 36
        %v2011 = vpop.permute.xlu0 %2010
        %2012 = vrot.lane.b32.xlu0 %v756, 36
        %v2013 = vpop.permute.xlu0 %2012
        %2014 = vrot.lane.b32.xlu0 %v757, 36
        %v2015 = vpop.permute.xlu0 %2014
        %2016 = vrot.lane.b32.xlu0 %v758, 36
        %v2017 = vpop.permute.xlu0 %2016
        %2018 = vrot.lane.b32.xlu0 %v759, 36
        %v2019 = vpop.permute.xlu0 %2018
        %2020 = vrot.lane.b32.xlu0 %v760, 36
        %v2021 = vpop.permute.xlu0 %2020
        %2022 = vrot.lane.b32.xlu0 %v761, 36
        %v2023 = vpop.permute.xlu0 %2022
        %2053 = vrot.lane.b32.xlu0 %v881, 40
        %v2054 = vpop.permute.xlu0 %2053
        %2055 = vrot.lane.b32.xlu0 %v905, 40
        %v2056 = vpop.permute.xlu0 %2055
        %2057 = vrot.lane.b32.xlu0 %v908, 40
        %v2058 = vpop.permute.xlu0 %2057
        %2059 = vrot.lane.b32.xlu0 %v911, 40
        %v2060 = vpop.permute.xlu0 %2059
        %2061 = vrot.lane.b32.xlu0 %v914, 40
        %v2062 = vpop.permute.xlu0 %2061
        %2063 = vrot.lane.b32.xlu0 %v917, 40
        %v2064 = vpop.permute.xlu0 %2063
        %2065 = vrot.lane.b32.xlu0 %v920, 40
        %v2066 = vpop.permute.xlu0 %2065
        %2067 = vrot.lane.b32.xlu0 %v923, 40
        %v2068 = vpop.permute.xlu0 %2067
        %2069 = vrot.lane.b32.xlu0 %v926, 40
        %v2070 = vpop.permute.xlu0 %2069
        %2071 = vrot.lane.b32.xlu0 %v929, 40
        %v2072 = vpop.permute.xlu0 %2071
        %2073 = vrot.lane.b32.xlu0 %v932, 40
        %v2074 = vpop.permute.xlu0 %2073
        %2075 = vrot.lane.b32.xlu0 %v935, 40
        %v2076 = vpop.permute.xlu0 %2075
        %2077 = vrot.lane.b32.xlu0 %v938, 40
        %v2078 = vpop.permute.xlu0 %2077
        %2079 = vrot.lane.b32.xlu0 %v941, 40
        %v2080 = vpop.permute.xlu0 %2079
        %2081 = vrot.lane.b32.xlu0 %v944, 40
        %v2082 = vpop.permute.xlu0 %2081
        %2083 = vrot.lane.b32.xlu0 %v947, 40
        %v2084 = vpop.permute.xlu0 %2083
        %2085 = vrot.lane.b32.xlu0 %v950, 40
        %v2086 = vpop.permute.xlu0 %2085
        %2087 = vrot.lane.b32.xlu0 %v953, 40
        %v2088 = vpop.permute.xlu0 %2087
        %2089 = vrot.lane.b32.xlu0 %v956, 40
        %v2090 = vpop.permute.xlu0 %2089
        %2091 = vrot.lane.b32.xlu0 %v959, 40
        %v2092 = vpop.permute.xlu0 %2091
        %2093 = vrot.lane.b32.xlu0 %v962, 40
        %v2094 = vpop.permute.xlu0 %2093
        %2095 = vrot.lane.b32.xlu0 %v965, 40
        %v2096 = vpop.permute.xlu0 %2095
        %2097 = vrot.lane.b32.xlu0 %v1102, 40
        %v2098 = vpop.permute.xlu0 %2097
        %2099 = vrot.lane.b32.xlu0 %v1105, 40
        %v2100 = vpop.permute.xlu0 %2099
        %2101 = vrot.lane.b32.xlu0 %v1108, 40
        %v2102 = vpop.permute.xlu0 %2101
        %2103 = vrot.lane.b32.xlu0 %v1111, 40
        %v2104 = vpop.permute.xlu0 %2103
        %2105 = vrot.lane.b32.xlu0 %v1114, 40
        %v2106 = vpop.permute.xlu0 %2105
        %2107 = vrot.lane.b32.xlu0 %v1117, 40
        %v2108 = vpop.permute.xlu0 %2107
        %2109 = vrot.lane.b32.xlu0 %v1120, 40
        %v2110 = vpop.permute.xlu0 %2109
        %2140 = vrot.lane.b32.xlu0 %v969, 44
        %v2141 = vpop.permute.xlu0 %2140
        %2142 = vrot.lane.b32.xlu0 %v993, 44
        %v2143 = vpop.permute.xlu0 %2142
        %2144 = vrot.lane.b32.xlu0 %v996, 44
        %v2145 = vpop.permute.xlu0 %2144
        %2146 = vrot.lane.b32.xlu0 %v999, 44
        %v2147 = vpop.permute.xlu0 %2146
        %2148 = vrot.lane.b32.xlu0 %v1002, 44
        %v2149 = vpop.permute.xlu0 %2148
        %2150 = vrot.lane.b32.xlu0 %v1005, 44
        %v2151 = vpop.permute.xlu0 %2150
        %2152 = vrot.lane.b32.xlu0 %v1008, 44
        %v2153 = vpop.permute.xlu0 %2152
        %2154 = vrot.lane.b32.xlu0 %v1011, 44
        %v2155 = vpop.permute.xlu0 %2154
        %2156 = vrot.lane.b32.xlu0 %v1014, 44
        %v2157 = vpop.permute.xlu0 %2156
        %2158 = vrot.lane.b32.xlu0 %v1017, 44
        %v2159 = vpop.permute.xlu0 %2158
        %2160 = vrot.lane.b32.xlu0 %v1020, 44
        %v2161 = vpop.permute.xlu0 %2160
        %2162 = vrot.lane.b32.xlu0 %v1023, 44
        %v2163 = vpop.permute.xlu0 %2162
        %2164 = vrot.lane.b32.xlu0 %v1026, 44
        %v2165 = vpop.permute.xlu0 %2164
        %2166 = vrot.lane.b32.xlu0 %v1029, 44
        %v2167 = vpop.permute.xlu0 %2166
        %2168 = vrot.lane.b32.xlu0 %v1032, 44
        %v2169 = vpop.permute.xlu0 %2168
        %2170 = vrot.lane.b32.xlu0 %v1035, 44
        %v2171 = vpop.permute.xlu0 %2170
        %2172 = vrot.lane.b32.xlu0 %v1038, 44
        %v2173 = vpop.permute.xlu0 %2172
        %2174 = vrot.lane.b32.xlu0 %v1041, 44
        %v2175 = vpop.permute.xlu0 %2174
        %2176 = vrot.lane.b32.xlu0 %v1044, 44
        %v2177 = vpop.permute.xlu0 %2176
        %2178 = vrot.lane.b32.xlu0 %v1047, 44
        %v2179 = vpop.permute.xlu0 %2178
        %2180 = vrot.lane.b32.xlu0 %v1050, 44
        %v2181 = vpop.permute.xlu0 %2180
        %2182 = vrot.lane.b32.xlu0 %v1053, 44
        %v2183 = vpop.permute.xlu0 %2182
        %2184 = vrot.lane.b32.xlu0 %v1123, 44
        %v2185 = vpop.permute.xlu0 %2184
        %2186 = vrot.lane.b32.xlu0 %v1126, 44
        %v2187 = vpop.permute.xlu0 %2186
        %2188 = vrot.lane.b32.xlu0 %v1129, 44
        %v2189 = vpop.permute.xlu0 %2188
        %2190 = vrot.lane.b32.xlu0 %v1132, 44
        %v2191 = vpop.permute.xlu0 %2190
        %2192 = vrot.lane.b32.xlu0 %v1135, 44
        %v2193 = vpop.permute.xlu0 %2192
        %2194 = vrot.lane.b32.xlu0 %v1138, 44
        %v2195 = vpop.permute.xlu0 %2194
        %2196 = vrot.lane.b32.xlu0 %v1141, 44
        %v2197 = vpop.permute.xlu0 %2196
        %2227 = vrot.lane.b32.xlu0 %v731, 48
        %v2228 = vpop.permute.xlu0 %2227
        %2229 = vrot.lane.b32.xlu0 %v732, 48
        %v2230 = vpop.permute.xlu0 %2229
        %2231 = vrot.lane.b32.xlu0 %v733, 48
        %v2232 = vpop.permute.xlu0 %2231
        %2233 = vrot.lane.b32.xlu0 %v734, 48
        %v2234 = vpop.permute.xlu0 %2233
        %2235 = vrot.lane.b32.xlu0 %v735, 48
        %v2236 = vpop.permute.xlu0 %2235
        %2237 = vrot.lane.b32.xlu0 %v736, 48
        %v2238 = vpop.permute.xlu0 %2237
        %2239 = vrot.lane.b32.xlu0 %v737, 48
        %v2240 = vpop.permute.xlu0 %2239
        %2241 = vrot.lane.b32.xlu0 %v738, 48
        %v2242 = vpop.permute.xlu0 %2241
        %2243 = vrot.lane.b32.xlu0 %v739, 48
        %v2244 = vpop.permute.xlu0 %2243
        %2245 = vrot.lane.b32.xlu0 %v740, 48
        %v2246 = vpop.permute.xlu0 %2245
        %2247 = vrot.lane.b32.xlu0 %v741, 48
        %v2248 = vpop.permute.xlu0 %2247
        %2249 = vrot.lane.b32.xlu0 %v742, 48
        %v2250 = vpop.permute.xlu0 %2249
        %2251 = vrot.lane.b32.xlu0 %v743, 48
        %v2252 = vpop.permute.xlu0 %2251
        %2253 = vrot.lane.b32.xlu0 %v744, 48
        %v2254 = vpop.permute.xlu0 %2253
        %2255 = vrot.lane.b32.xlu0 %v745, 48
        %v2256 = vpop.permute.xlu0 %2255
        %2257 = vrot.lane.b32.xlu0 %v746, 48
        %v2258 = vpop.permute.xlu0 %2257
        %2259 = vrot.lane.b32.xlu0 %v747, 48
        %v2260 = vpop.permute.xlu0 %2259
        %2261 = vrot.lane.b32.xlu0 %v748, 48
        %v2262 = vpop.permute.xlu0 %2261
        %2263 = vrot.lane.b32.xlu0 %v749, 48
        %v2264 = vpop.permute.xlu0 %2263
        %2265 = vrot.lane.b32.xlu0 %v750, 48
        %v2266 = vpop.permute.xlu0 %2265
        %2267 = vrot.lane.b32.xlu0 %v751, 48
        %v2268 = vpop.permute.xlu0 %2267
        %2269 = vrot.lane.b32.xlu0 %v752, 48
        %v2270 = vpop.permute.xlu0 %2269
        %2271 = vrot.lane.b32.xlu0 %v753, 48
        %v2272 = vpop.permute.xlu0 %2271
        %2273 = vrot.lane.b32.xlu0 %v754, 48
        %v2274 = vpop.permute.xlu0 %2273
        %2275 = vrot.lane.b32.xlu0 %v755, 48
        %v2276 = vpop.permute.xlu0 %2275
        %2277 = vrot.lane.b32.xlu0 %v756, 48
        %v2278 = vpop.permute.xlu0 %2277
        %2279 = vrot.lane.b32.xlu0 %v757, 48
        %v2280 = vpop.permute.xlu0 %2279
        %2281 = vrot.lane.b32.xlu0 %v758, 48
        %v2282 = vpop.permute.xlu0 %2281
        %2283 = vrot.lane.b32.xlu0 %v759, 48
        %v2284 = vpop.permute.xlu0 %2283
        %2285 = vrot.lane.b32.xlu0 %v760, 48
        %v2286 = vpop.permute.xlu0 %2285
        %2287 = vrot.lane.b32.xlu0 %v761, 48
        %v2288 = vpop.permute.xlu0 %2287
        %2289 = vrot.lane.b32.xlu0 %v762, 48
        %v2290 = vpop.permute.xlu0 %2289
        %2323 = vrot.lane.b32.xlu0 %v905, 52
        %v2324 = vpop.permute.xlu0 %2323
        %2325 = vrot.lane.b32.xlu0 %v908, 52
        %v2326 = vpop.permute.xlu0 %2325
        %2327 = vrot.lane.b32.xlu0 %v911, 52
        %v2328 = vpop.permute.xlu0 %2327
        %2329 = vrot.lane.b32.xlu0 %v914, 52
        %v2330 = vpop.permute.xlu0 %2329
        %2331 = vrot.lane.b32.xlu0 %v917, 52
        %v2332 = vpop.permute.xlu0 %2331
        %2333 = vrot.lane.b32.xlu0 %v920, 52
        %v2334 = vpop.permute.xlu0 %2333
        %2335 = vrot.lane.b32.xlu0 %v923, 52
        %v2336 = vpop.permute.xlu0 %2335
        %2337 = vrot.lane.b32.xlu0 %v1067, 52
        %v2338 = vpop.permute.xlu0 %2337
        %2339 = vrot.lane.b32.xlu0 %v926, 52
        %v2340 = vpop.permute.xlu0 %2339
        %2341 = vrot.lane.b32.xlu0 %v929, 52
        %v2342 = vpop.permute.xlu0 %2341
        %2343 = vrot.lane.b32.xlu0 %v932, 52
        %v2344 = vpop.permute.xlu0 %2343
        %2345 = vrot.lane.b32.xlu0 %v935, 52
        %v2346 = vpop.permute.xlu0 %2345
        %2347 = vrot.lane.b32.xlu0 %v938, 52
        %v2348 = vpop.permute.xlu0 %2347
        %2349 = vrot.lane.b32.xlu0 %v941, 52
        %v2350 = vpop.permute.xlu0 %2349
        %2351 = vrot.lane.b32.xlu0 %v944, 52
        %v2352 = vpop.permute.xlu0 %2351
        %2353 = vrot.lane.b32.xlu0 %v1070, 52
        %v2354 = vpop.permute.xlu0 %2353
        %2355 = vrot.lane.b32.xlu0 %v947, 52
        %v2356 = vpop.permute.xlu0 %2355
        %2357 = vrot.lane.b32.xlu0 %v950, 52
        %v2358 = vpop.permute.xlu0 %2357
        %2359 = vrot.lane.b32.xlu0 %v953, 52
        %v2360 = vpop.permute.xlu0 %2359
        %2361 = vrot.lane.b32.xlu0 %v956, 52
        %v2362 = vpop.permute.xlu0 %2361
        %2363 = vrot.lane.b32.xlu0 %v959, 52
        %v2364 = vpop.permute.xlu0 %2363
        %2365 = vrot.lane.b32.xlu0 %v962, 52
        %v2366 = vpop.permute.xlu0 %2365
        %2367 = vrot.lane.b32.xlu0 %v965, 52
        %v2368 = vpop.permute.xlu0 %2367
        %2369 = vrot.lane.b32.xlu0 %v1073, 52
        %v2370 = vpop.permute.xlu0 %2369
        %2371 = vrot.lane.b32.xlu0 %v1102, 52
        %v2372 = vpop.permute.xlu0 %2371
        %2373 = vrot.lane.b32.xlu0 %v1105, 52
        %v2374 = vpop.permute.xlu0 %2373
        %2375 = vrot.lane.b32.xlu0 %v1108, 52
        %v2376 = vpop.permute.xlu0 %2375
        %2377 = vrot.lane.b32.xlu0 %v1111, 52
        %v2378 = vpop.permute.xlu0 %2377
        %2379 = vrot.lane.b32.xlu0 %v1114, 52
        %v2380 = vpop.permute.xlu0 %2379
        %2381 = vrot.lane.b32.xlu0 %v1117, 52
        %v2382 = vpop.permute.xlu0 %2381
        %2383 = vrot.lane.b32.xlu0 %v1120, 52
        %v2384 = vpop.permute.xlu0 %2383
        %2385 = vrot.lane.b32.xlu0 %v1146, 52
        %v2386 = vpop.permute.xlu0 %2385
        %2419 = vrot.lane.b32.xlu0 %v993, 56
        %v2420 = vpop.permute.xlu0 %2419
        %2421 = vrot.lane.b32.xlu0 %v996, 56
        %v2422 = vpop.permute.xlu0 %2421
        %2423 = vrot.lane.b32.xlu0 %v999, 56
        %v2424 = vpop.permute.xlu0 %2423
        %2425 = vrot.lane.b32.xlu0 %v1002, 56
        %v2426 = vpop.permute.xlu0 %2425
        %2427 = vrot.lane.b32.xlu0 %v1005, 56
        %v2428 = vpop.permute.xlu0 %2427
        %2429 = vrot.lane.b32.xlu0 %v1008, 56
        %v2430 = vpop.permute.xlu0 %2429
        %2431 = vrot.lane.b32.xlu0 %v1011, 56
        %v2432 = vpop.permute.xlu0 %2431
        %2433 = vrot.lane.b32.xlu0 %v1079, 56
        %v2434 = vpop.permute.xlu0 %2433
        %2435 = vrot.lane.b32.xlu0 %v1014, 56
        %v2436 = vpop.permute.xlu0 %2435
        %2437 = vrot.lane.b32.xlu0 %v1017, 56
        %v2438 = vpop.permute.xlu0 %2437
        %2439 = vrot.lane.b32.xlu0 %v1020, 56
        %v2440 = vpop.permute.xlu0 %2439
        %2441 = vrot.lane.b32.xlu0 %v1023, 56
        %v2442 = vpop.permute.xlu0 %2441
        %2443 = vrot.lane.b32.xlu0 %v1026, 56
        %v2444 = vpop.permute.xlu0 %2443
        %2445 = vrot.lane.b32.xlu0 %v1029, 56
        %v2446 = vpop.permute.xlu0 %2445
        %2447 = vrot.lane.b32.xlu0 %v1032, 56
        %v2448 = vpop.permute.xlu0 %2447
        %2449 = vrot.lane.b32.xlu0 %v1082, 56
        %v2450 = vpop.permute.xlu0 %2449
        %2451 = vrot.lane.b32.xlu0 %v1035, 56
        %v2452 = vpop.permute.xlu0 %2451
        %2453 = vrot.lane.b32.xlu0 %v1038, 56
        %v2454 = vpop.permute.xlu0 %2453
        %2455 = vrot.lane.b32.xlu0 %v1041, 56
        %v2456 = vpop.permute.xlu0 %2455
        %2457 = vrot.lane.b32.xlu0 %v1044, 56
        %v2458 = vpop.permute.xlu0 %2457
        %2459 = vrot.lane.b32.xlu0 %v1047, 56
        %v2460 = vpop.permute.xlu0 %2459
        %2461 = vrot.lane.b32.xlu0 %v1050, 56
        %v2462 = vpop.permute.xlu0 %2461
        %2463 = vrot.lane.b32.xlu0 %v1053, 56
        %v2464 = vpop.permute.xlu0 %2463
        %2465 = vrot.lane.b32.xlu0 %v1085, 56
        %v2466 = vpop.permute.xlu0 %2465
        %2467 = vrot.lane.b32.xlu0 %v1123, 56
        %v2468 = vpop.permute.xlu0 %2467
        %2469 = vrot.lane.b32.xlu0 %v1126, 56
        %v2470 = vpop.permute.xlu0 %2469
        %2471 = vrot.lane.b32.xlu0 %v1129, 56
        %v2472 = vpop.permute.xlu0 %2471
        %2473 = vrot.lane.b32.xlu0 %v1132, 56
        %v2474 = vpop.permute.xlu0 %2473
        %2475 = vrot.lane.b32.xlu0 %v1135, 56
        %v2476 = vpop.permute.xlu0 %2475
        %2477 = vrot.lane.b32.xlu0 %v1138, 56
        %v2478 = vpop.permute.xlu0 %2477
        %2479 = vrot.lane.b32.xlu0 %v1141, 56
        %v2480 = vpop.permute.xlu0 %2479
        %2481 = vrot.lane.b32.xlu0 %v1149, 56
        %v2482 = vpop.permute.xlu0 %2481
        %2515 = vrot.lane.b32.xlu0 %v732, 60
        %v2516 = vpop.permute.xlu0 %2515
        %2517 = vrot.lane.b32.xlu0 %v733, 60
        %v2518 = vpop.permute.xlu0 %2517
        %2519 = vrot.lane.b32.xlu0 %v734, 60
        %v2520 = vpop.permute.xlu0 %2519
        %2521 = vrot.lane.b32.xlu0 %v735, 60
        %v2522 = vpop.permute.xlu0 %2521
        %2523 = vrot.lane.b32.xlu0 %v736, 60
        %v2524 = vpop.permute.xlu0 %2523
        %2525 = vrot.lane.b32.xlu0 %v737, 60
        %v2526 = vpop.permute.xlu0 %2525
        %2527 = vrot.lane.b32.xlu0 %v738, 60
        %v2528 = vpop.permute.xlu0 %2527
        %2529 = vrot.lane.b32.xlu0 %v722, 60
        %v2530 = vpop.permute.xlu0 %2529
        %2531 = vrot.lane.b32.xlu0 %v740, 60
        %v2532 = vpop.permute.xlu0 %2531
        %2533 = vrot.lane.b32.xlu0 %v741, 60
        %v2534 = vpop.permute.xlu0 %2533
        %2535 = vrot.lane.b32.xlu0 %v742, 60
        %v2536 = vpop.permute.xlu0 %2535
        %2537 = vrot.lane.b32.xlu0 %v743, 60
        %v2538 = vpop.permute.xlu0 %2537
        %2539 = vrot.lane.b32.xlu0 %v744, 60
        %v2540 = vpop.permute.xlu0 %2539
        %2541 = vrot.lane.b32.xlu0 %v745, 60
        %v2542 = vpop.permute.xlu0 %2541
        %2543 = vrot.lane.b32.xlu0 %v746, 60
        %v2544 = vpop.permute.xlu0 %2543
        %2545 = vrot.lane.b32.xlu0 %v748, 60
        %v2546 = vpop.permute.xlu0 %2545
        %2547 = vrot.lane.b32.xlu0 %v749, 60
        %v2548 = vpop.permute.xlu0 %2547
        %2549 = vrot.lane.b32.xlu0 %v750, 60
        %v2550 = vpop.permute.xlu0 %2549
        %2551 = vrot.lane.b32.xlu0 %v751, 60
        %v2552 = vpop.permute.xlu0 %2551
        %2553 = vrot.lane.b32.xlu0 %v752, 60
        %v2554 = vpop.permute.xlu0 %2553
        %2555 = vrot.lane.b32.xlu0 %v753, 60
        %v2556 = vpop.permute.xlu0 %2555
        %2557 = vrot.lane.b32.xlu0 %v754, 60
        %v2558 = vpop.permute.xlu0 %2557
        %2559 = vrot.lane.b32.xlu0 %v756, 60
        %v2560 = vpop.permute.xlu0 %2559
        %2561 = vrot.lane.b32.xlu0 %v757, 60
        %v2562 = vpop.permute.xlu0 %2561
        %2563 = vrot.lane.b32.xlu0 %v758, 60
        %v2564 = vpop.permute.xlu0 %2563
        %2565 = vrot.lane.b32.xlu0 %v759, 60
        %v2566 = vpop.permute.xlu0 %2565
        %2567 = vrot.lane.b32.xlu0 %v760, 60
        %v2568 = vpop.permute.xlu0 %2567
        %2569 = vrot.lane.b32.xlu0 %v761, 60
        %v2570 = vpop.permute.xlu0 %2569
        %2571 = vrot.lane.b32.xlu0 %v762, 60
        %v2572 = vpop.permute.xlu0 %2571
        %vm2602 = vcmask 31744
        %v2603 = vsel %vm2602, %v722, %v1244
        %v2604 = vsel %vm2602, %v723, %v1246
        %v2605 = vsel %vm2602, %v724, %v1248
        %v2606 = vsel %vm2602, %v725, %v1250
        %v2607 = vsel %vm2602, %v726, %v1252
        %v2608 = vsel %vm2602, %v727, %v1254
        %v2609 = vsel %vm2602, %v728, %v1256
        %v2610 = vsel %vm2602, %v729, %v1258
        %v2611 = vsel %vm2602, %v731, %v1260
        %v2612 = vsel %vm2602, %v732, %v1262
        %v2613 = vsel %vm2602, %v733, %v1264
        %v2614 = vsel %vm2602, %v734, %v1266
        %v2615 = vsel %vm2602, %v735, %v1268
        %v2616 = vsel %vm2602, %v736, %v1270
        %v2617 = vsel %vm2602, %v737, %v1272
        %v2618 = vsel %vm2602, %v739, %v1274
        %v2619 = vsel %vm2602, %v740, %v1276
        %v2620 = vsel %vm2602, %v741, %v1278
        %v2621 = vsel %vm2602, %v742, %v1280
        %v2622 = vsel %vm2602, %v743, %v1282
        %v2623 = vsel %vm2602, %v744, %v1284
        %v2624 = vsel %vm2602, %v745, %v1286
        %v2625 = vsel %vm2602, %v747, %v1288
        %v2626 = vsel %vm2602, %v748, %v1290
        %v2627 = vsel %vm2602, %v749, %v1292
        %v2628 = vsel %vm2602, %v750, %v1294
        %v2629 = vsel %vm2602, %v751, %v1296
        %v2630 = vsel %vm2602, %v752, %v1298
        %v2631 = vsel %vm2602, %v753, %v1300
        %vm2632 = vcmask 64512
        %v2633 = vsel %vm2632, %v2603, %v1331
        %v2634 = vsel %vm2632, %v2604, %v1333
        %v2635 = vsel %vm2632, %v2605, %v1335
        %v2636 = vsel %vm2632, %v2606, %v1337
        %v2637 = vsel %vm2632, %v2607, %v1339
        %v2638 = vsel %vm2632, %v2608, %v1341
        %v2639 = vsel %vm2632, %v2609, %v1343
        %v2640 = vsel %vm2632, %v2610, %v1345
        %v2641 = vsel %vm2632, %v2611, %v1347
        %v2642 = vsel %vm2632, %v2612, %v1349
        %v2643 = vsel %vm2632, %v2613, %v1351
        %v2644 = vsel %vm2632, %v2614, %v1353
        %v2645 = vsel %vm2632, %v2615, %v1355
        %v2646 = vsel %vm2632, %v2616, %v1357
        %v2647 = vsel %vm2632, %v2617, %v1359
        %v2648 = vsel %vm2632, %v2618, %v1361
        %v2649 = vsel %vm2632, %v2619, %v1363
        %v2650 = vsel %vm2632, %v2620, %v1365
        %v2651 = vsel %vm2632, %v2621, %v1367
        %v2652 = vsel %vm2632, %v2622, %v1369
        %v2653 = vsel %vm2632, %v2623, %v1371
        %v2654 = vsel %vm2632, %v2624, %v1373
        %v2655 = vsel %vm2632, %v2625, %v1375
        %v2656 = vsel %vm2632, %v2626, %v1377
        %v2657 = vsel %vm2632, %v2627, %v1379
        %v2658 = vsel %vm2632, %v2628, %v1381
        %v2659 = vsel %vm2632, %v2629, %v1383
        %v2660 = vsel %vm2632, %v2630, %v1385
        %v2661 = vsel %vm2632, %v2631, %v1387
        %vm2662 = vcmask 97280
        %v2663 = vsel %vm2662, %v2633, %v1418
        %v2664 = vsel %vm2662, %v2634, %v1420
        %v2665 = vsel %vm2662, %v2635, %v1422
        %v2666 = vsel %vm2662, %v2636, %v1424
        %v2667 = vsel %vm2662, %v2637, %v1426
        %v2668 = vsel %vm2662, %v2638, %v1428
        %v2669 = vsel %vm2662, %v2639, %v1430
        %v2670 = vsel %vm2662, %v2640, %v1432
        %v2671 = vsel %vm2662, %v2633, %v1434
        %v2672 = vsel %vm2662, %v2641, %v1436
        %v2673 = vsel %vm2662, %v2642, %v1438
        %v2674 = vsel %vm2662, %v2643, %v1440
        %v2675 = vsel %vm2662, %v2644, %v1442
        %v2676 = vsel %vm2662, %v2645, %v1444
        %v2677 = vsel %vm2662, %v2646, %v1446
        %v2678 = vsel %vm2662, %v2647, %v1448
        %v2679 = vsel %vm2662, %v2633, %v1450
        %v2680 = vsel %vm2662, %v2648, %v1452
        %v2681 = vsel %vm2662, %v2649, %v1454
        %v2682 = vsel %vm2662, %v2650, %v1456
        %v2683 = vsel %vm2662, %v2651, %v1458
        %v2684 = vsel %vm2662, %v2652, %v1460
        %v2685 = vsel %vm2662, %v2653, %v1462
        %v2686 = vsel %vm2662, %v2654, %v1464
        %v2687 = vsel %vm2662, %v2633, %v1466
        %v2688 = vsel %vm2662, %v2655, %v1468
        %v2689 = vsel %vm2662, %v2656, %v1470
        %v2690 = vsel %vm2662, %v2657, %v1472
        %v2691 = vsel %vm2662, %v2658, %v1474
        %v2692 = vsel %vm2662, %v2659, %v1476
        %v2693 = vsel %vm2662, %v2660, %v1478
        %v2694 = vsel %vm2662, %v2661, %v1480
        %vm2695 = vcmask 130048
        %v2696 = vsel %vm2695, %v2663, %v1514
        %v2697 = vsel %vm2695, %v2664, %v1516
        %v2698 = vsel %vm2695, %v2665, %v1518
        %v2699 = vsel %vm2695, %v2666, %v1520
        %v2700 = vsel %vm2695, %v2667, %v1522
        %v2701 = vsel %vm2695, %v2668, %v1524
        %v2702 = vsel %vm2695, %v2669, %v1526
        %v2703 = vsel %vm2695, %v2670, %v1528
        %v2704 = vsel %vm2695, %v2671, %v1530
        %v2705 = vsel %vm2695, %v2672, %v1532
        %v2706 = vsel %vm2695, %v2673, %v1534
        %v2707 = vsel %vm2695, %v2674, %v1536
        %v2708 = vsel %vm2695, %v2675, %v1538
        %v2709 = vsel %vm2695, %v2676, %v1540
        %v2710 = vsel %vm2695, %v2677, %v1542
        %v2711 = vsel %vm2695, %v2678, %v1544
        %v2712 = vsel %vm2695, %v2679, %v1546
        %v2713 = vsel %vm2695, %v2680, %v1548
        %v2714 = vsel %vm2695, %v2681, %v1550
        %v2715 = vsel %vm2695, %v2682, %v1552
        %v2716 = vsel %vm2695, %v2683, %v1554
        %v2717 = vsel %vm2695, %v2684, %v1556
        %v2718 = vsel %vm2695, %v2685, %v1558
        %v2719 = vsel %vm2695, %v2686, %v1560
        %v2720 = vsel %vm2695, %v2687, %v1562
        %v2721 = vsel %vm2695, %v2688, %v1564
        %v2722 = vsel %vm2695, %v2689, %v1566
        %v2723 = vsel %vm2695, %v2690, %v1568
        %v2724 = vsel %vm2695, %v2691, %v1570
        %v2725 = vsel %vm2695, %v2692, %v1572
        %v2726 = vsel %vm2695, %v2693, %v1574
        %v2727 = vsel %vm2695, %v2694, %v1576
        %vm2728 = vcmask 162816
        %v2729 = vsel %vm2728, %v2696, %v1610
        %v2730 = vsel %vm2728, %v2697, %v1612
        %v2731 = vsel %vm2728, %v2698, %v1614
        %v2732 = vsel %vm2728, %v2699, %v1616
        %v2733 = vsel %vm2728, %v2700, %v1618
        %v2734 = vsel %vm2728, %v2701, %v1620
        %v2735 = vsel %vm2728, %v2702, %v1622
        %v2736 = vsel %vm2728, %v2703, %v1624
        %v2737 = vsel %vm2728, %v2704, %v1626
        %v2738 = vsel %vm2728, %v2705, %v1628
        %v2739 = vsel %vm2728, %v2706, %v1630
        %v2740 = vsel %vm2728, %v2707, %v1632
        %v2741 = vsel %vm2728, %v2708, %v1634
        %v2742 = vsel %vm2728, %v2709, %v1636
        %v2743 = vsel %vm2728, %v2710, %v1638
        %v2744 = vsel %vm2728, %v2711, %v1640
        %v2745 = vsel %vm2728, %v2712, %v1642
        %v2746 = vsel %vm2728, %v2713, %v1644
        %v2747 = vsel %vm2728, %v2714, %v1646
        %v2748 = vsel %vm2728, %v2715, %v1648
        %v2749 = vsel %vm2728, %v2716, %v1650
        %v2750 = vsel %vm2728, %v2717, %v1652
        %v2751 = vsel %vm2728, %v2718, %v1654
        %v2752 = vsel %vm2728, %v2719, %v1656
        %v2753 = vsel %vm2728, %v2720, %v1658
        %v2754 = vsel %vm2728, %v2721, %v1660
        %v2755 = vsel %vm2728, %v2722, %v1662
        %v2756 = vsel %vm2728, %v2723, %v1664
        %v2757 = vsel %vm2728, %v2724, %v1666
        %v2758 = vsel %vm2728, %v2725, %v1668
        %v2759 = vsel %vm2728, %v2726, %v1670
        %v2760 = vsel %vm2728, %v2727, %v1672
        %vm2761 = vcmask 195584
        %v2762 = vsel %vm2761, %v2729, %v1706
        %v2763 = vsel %vm2761, %v2730, %v1708
        %v2764 = vsel %vm2761, %v2731, %v1710
        %v2765 = vsel %vm2761, %v2732, %v1712
        %v2766 = vsel %vm2761, %v2733, %v1714
        %v2767 = vsel %vm2761, %v2734, %v1716
        %v2768 = vsel %vm2761, %v2735, %v1718
        %v2769 = vsel %vm2761, %v2736, %v1720
        %v2770 = vsel %vm2761, %v2737, %v1722
        %v2771 = vsel %vm2761, %v2738, %v1724
        %v2772 = vsel %vm2761, %v2739, %v1726
        %v2773 = vsel %vm2761, %v2740, %v1728
        %v2774 = vsel %vm2761, %v2741, %v1730
        %v2775 = vsel %vm2761, %v2742, %v1732
        %v2776 = vsel %vm2761, %v2743, %v1734
        %v2777 = vsel %vm2761, %v2744, %v1720
        %v2778 = vsel %vm2761, %v2745, %v1736
        %v2779 = vsel %vm2761, %v2746, %v1738
        %v2780 = vsel %vm2761, %v2747, %v1740
        %v2781 = vsel %vm2761, %v2748, %v1742
        %v2782 = vsel %vm2761, %v2749, %v1744
        %v2783 = vsel %vm2761, %v2750, %v1746
        %v2784 = vsel %vm2761, %v2751, %v1748
        %v2785 = vsel %vm2761, %v2752, %v1720
        %v2786 = vsel %vm2761, %v2753, %v1750
        %v2787 = vsel %vm2761, %v2754, %v1752
        %v2788 = vsel %vm2761, %v2755, %v1754
        %v2789 = vsel %vm2761, %v2756, %v1756
        %v2790 = vsel %vm2761, %v2757, %v1758
        %v2791 = vsel %vm2761, %v2758, %v1760
        %v2792 = vsel %vm2761, %v2759, %v1762
        %v2793 = vsel %vm2761, %v2760, %v1720
        %vm2794 = vcmask 228352
        %v2795 = vsel %vm2794, %v2762, %v1793
        %v2796 = vsel %vm2794, %v2763, %v1795
        %v2797 = vsel %vm2794, %v2764, %v1797
        %v2798 = vsel %vm2794, %v2765, %v1799
        %v2799 = vsel %vm2794, %v2766, %v1801
        %v2800 = vsel %vm2794, %v2767, %v1803
        %v2801 = vsel %vm2794, %v2768, %v1805
        %v2802 = vsel %vm2794, %v2769, %v1807
        %v2803 = vsel %vm2794, %v2770, %v1809
        %v2804 = vsel %vm2794, %v2771, %v1811
        %v2805 = vsel %vm2794, %v2772, %v1813
        %v2806 = vsel %vm2794, %v2773, %v1815
        %v2807 = vsel %vm2794, %v2774, %v1817
        %v2808 = vsel %vm2794, %v2775, %v1819
        %v2809 = vsel %vm2794, %v2776, %v1821
        %v2810 = vsel %vm2794, %v2777, %v1807
        %v2811 = vsel %vm2794, %v2778, %v1823
        %v2812 = vsel %vm2794, %v2779, %v1825
        %v2813 = vsel %vm2794, %v2780, %v1827
        %v2814 = vsel %vm2794, %v2781, %v1829
        %v2815 = vsel %vm2794, %v2782, %v1831
        %v2816 = vsel %vm2794, %v2783, %v1833
        %v2817 = vsel %vm2794, %v2784, %v1835
        %v2818 = vsel %vm2794, %v2785, %v1807
        %v2819 = vsel %vm2794, %v2786, %v1837
        %v2820 = vsel %vm2794, %v2787, %v1839
        %v2821 = vsel %vm2794, %v2788, %v1841
        %v2822 = vsel %vm2794, %v2789, %v1843
        %v2823 = vsel %vm2794, %v2790, %v1845
        %v2824 = vsel %vm2794, %v2791, %v1847
        %v2825 = vsel %vm2794, %v2792, %v1849
        %v2826 = vsel %vm2794, %v2793, %v1807
        %vm2827 = vcmask 261120
        %v2828 = vsel %vm2827, %v2795, %v1880
        %v2829 = vsel %vm2827, %v2796, %v1882
        %v2830 = vsel %vm2827, %v2797, %v1884
        %v2831 = vsel %vm2827, %v2798, %v1886
        %v2832 = vsel %vm2827, %v2799, %v1888
        %v2833 = vsel %vm2827, %v2800, %v1890
        %v2834 = vsel %vm2827, %v2801, %v1892
        %v2835 = vsel %vm2827, %v2802, %v1894
        %v2836 = vsel %vm2827, %v2803, %v1896
        %v2837 = vsel %vm2827, %v2804, %v1898
        %v2838 = vsel %vm2827, %v2805, %v1900
        %v2839 = vsel %vm2827, %v2806, %v1902
        %v2840 = vsel %vm2827, %v2807, %v1904
        %v2841 = vsel %vm2827, %v2808, %v1906
        %v2842 = vsel %vm2827, %v2809, %v1908
        %v2843 = vsel %vm2827, %v2810, %v1894
        %v2844 = vsel %vm2827, %v2811, %v1910
        %v2845 = vsel %vm2827, %v2812, %v1912
        %v2846 = vsel %vm2827, %v2813, %v1914
        %v2847 = vsel %vm2827, %v2814, %v1916
        %v2848 = vsel %vm2827, %v2815, %v1918
        %v2849 = vsel %vm2827, %v2816, %v1920
        %v2850 = vsel %vm2827, %v2817, %v1922
        %v2851 = vsel %vm2827, %v2818, %v1894
        %v2852 = vsel %vm2827, %v2819, %v1924
        %v2853 = vsel %vm2827, %v2820, %v1926
        %v2854 = vsel %vm2827, %v2821, %v1928
        %v2855 = vsel %vm2827, %v2822, %v1930
        %v2856 = vsel %vm2827, %v2823, %v1932
        %v2857 = vsel %vm2827, %v2824, %v1934
        %v2858 = vsel %vm2827, %v2825, %v1936
        %v2859 = vsel %vm2827, %v2826, %v1894
        %vm2860 = vcmask 293888
        %v2861 = vsel %vm2860, %v2828, %v1967
        %v2862 = vsel %vm2860, %v2829, %v1969
        %v2863 = vsel %vm2860, %v2830, %v1971
        %v2864 = vsel %vm2860, %v2831, %v1973
        %v2865 = vsel %vm2860, %v2832, %v1975
        %v2866 = vsel %vm2860, %v2833, %v1977
        %v2867 = vsel %vm2860, %v2834, %v1979
        %v2868 = vsel %vm2860, %v2835, %v1981
        %v2869 = vsel %vm2860, %v2836, %v1967
        %v2870 = vsel %vm2860, %v2837, %v1983
        %v2871 = vsel %vm2860, %v2838, %v1985
        %v2872 = vsel %vm2860, %v2839, %v1987
        %v2873 = vsel %vm2860, %v2840, %v1989
        %v2874 = vsel %vm2860, %v2841, %v1991
        %v2875 = vsel %vm2860, %v2842, %v1993
        %v2876 = vsel %vm2860, %v2843, %v1995
        %v2877 = vsel %vm2860, %v2844, %v1967
        %v2878 = vsel %vm2860, %v2845, %v1997
        %v2879 = vsel %vm2860, %v2846, %v1999
        %v2880 = vsel %vm2860, %v2847, %v2001
        %v2881 = vsel %vm2860, %v2848, %v2003
        %v2882 = vsel %vm2860, %v2849, %v2005
        %v2883 = vsel %vm2860, %v2850, %v2007
        %v2884 = vsel %vm2860, %v2851, %v2009
        %v2885 = vsel %vm2860, %v2852, %v1967
        %v2886 = vsel %vm2860, %v2853, %v2011
        %v2887 = vsel %vm2860, %v2854, %v2013
        %v2888 = vsel %vm2860, %v2855, %v2015
        %v2889 = vsel %vm2860, %v2856, %v2017
        %v2890 = vsel %vm2860, %v2857, %v2019
        %v2891 = vsel %vm2860, %v2858, %v2021
        %v2892 = vsel %vm2860, %v2859, %v2023
        %vm2893 = vcmask 326656
        %v2894 = vsel %vm2893, %v2861, %v2054
        %v2895 = vsel %vm2893, %v2862, %v2056
        %v2896 = vsel %vm2893, %v2863, %v2058
        %v2897 = vsel %vm2893, %v2864, %v2060
        %v2898 = vsel %vm2893, %v2865, %v2062
        %v2899 = vsel %vm2893, %v2866, %v2064
        %v2900 = vsel %vm2893, %v2867, %v2066
        %v2901 = vsel %vm2893, %v2868, %v2068
        %v2902 = vsel %vm2893, %v2869, %v2054
        %v2903 = vsel %vm2893, %v2870, %v2070
        %v2904 = vsel %vm2893, %v2871, %v2072
        %v2905 = vsel %vm2893, %v2872, %v2074
        %v2906 = vsel %vm2893, %v2873, %v2076
        %v2907 = vsel %vm2893, %v2874, %v2078
        %v2908 = vsel %vm2893, %v2875, %v2080
        %v2909 = vsel %vm2893, %v2876, %v2082
        %v2910 = vsel %vm2893, %v2877, %v2054
        %v2911 = vsel %vm2893, %v2878, %v2084
        %v2912 = vsel %vm2893, %v2879, %v2086
        %v2913 = vsel %vm2893, %v2880, %v2088
        %v2914 = vsel %vm2893, %v2881, %v2090
        %v2915 = vsel %vm2893, %v2882, %v2092
        %v2916 = vsel %vm2893, %v2883, %v2094
        %v2917 = vsel %vm2893, %v2884, %v2096
        %v2918 = vsel %vm2893, %v2885, %v2054
        %v2919 = vsel %vm2893, %v2886, %v2098
        %v2920 = vsel %vm2893, %v2887, %v2100
        %v2921 = vsel %vm2893, %v2888, %v2102
        %v2922 = vsel %vm2893, %v2889, %v2104
        %v2923 = vsel %vm2893, %v2890, %v2106
        %v2924 = vsel %vm2893, %v2891, %v2108
        %v2925 = vsel %vm2893, %v2892, %v2110
        %vm2926 = vcmask 359424
        %v2927 = vsel %vm2926, %v2894, %v2141
        %v2928 = vsel %vm2926, %v2895, %v2143
        %v2929 = vsel %vm2926, %v2896, %v2145
        %v2930 = vsel %vm2926, %v2897, %v2147
        %v2931 = vsel %vm2926, %v2898, %v2149
        %v2932 = vsel %vm2926, %v2899, %v2151
        %v2933 = vsel %vm2926, %v2900, %v2153
        %v2934 = vsel %vm2926, %v2901, %v2155
        %v2935 = vsel %vm2926, %v2902, %v2141
        %v2936 = vsel %vm2926, %v2903, %v2157
        %v2937 = vsel %vm2926, %v2904, %v2159
        %v2938 = vsel %vm2926, %v2905, %v2161
        %v2939 = vsel %vm2926, %v2906, %v2163
        %v2940 = vsel %vm2926, %v2907, %v2165
        %v2941 = vsel %vm2926, %v2908, %v2167
        %v2942 = vsel %vm2926, %v2909, %v2169
        %v2943 = vsel %vm2926, %v2910, %v2141
        %v2944 = vsel %vm2926, %v2911, %v2171
        %v2945 = vsel %vm2926, %v2912, %v2173
        %v2946 = vsel %vm2926, %v2913, %v2175
        %v2947 = vsel %vm2926, %v2914, %v2177
        %v2948 = vsel %vm2926, %v2915, %v2179
        %v2949 = vsel %vm2926, %v2916, %v2181
        %v2950 = vsel %vm2926, %v2917, %v2183
        %v2951 = vsel %vm2926, %v2918, %v2141
        %v2952 = vsel %vm2926, %v2919, %v2185
        %v2953 = vsel %vm2926, %v2920, %v2187
        %v2954 = vsel %vm2926, %v2921, %v2189
        %v2955 = vsel %vm2926, %v2922, %v2191
        %v2956 = vsel %vm2926, %v2923, %v2193
        %v2957 = vsel %vm2926, %v2924, %v2195
        %v2958 = vsel %vm2926, %v2925, %v2197
        %vm2959 = vcmask 392192
        %v2960 = vsel %vm2959, %v2927, %v2228
        %v2961 = vsel %vm2959, %v2928, %v2230
        %v2962 = vsel %vm2959, %v2929, %v2232
        %v2963 = vsel %vm2959, %v2930, %v2234
        %v2964 = vsel %vm2959, %v2931, %v2236
        %v2965 = vsel %vm2959, %v2932, %v2238
        %v2966 = vsel %vm2959, %v2933, %v2240
        %v2967 = vsel %vm2959, %v2934, %v2242
        %v2968 = vsel %vm2959, %v2935, %v2244
        %v2969 = vsel %vm2959, %v2936, %v2246
        %v2970 = vsel %vm2959, %v2937, %v2248
        %v2971 = vsel %vm2959, %v2938, %v2250
        %v2972 = vsel %vm2959, %v2939, %v2252
        %v2973 = vsel %vm2959, %v2940, %v2254
        %v2974 = vsel %vm2959, %v2941, %v2256
        %v2975 = vsel %vm2959, %v2942, %v2258
        %v2976 = vsel %vm2959, %v2943, %v2260
        %v2977 = vsel %vm2959, %v2944, %v2262
        %v2978 = vsel %vm2959, %v2945, %v2264
        %v2979 = vsel %vm2959, %v2946, %v2266
        %v2980 = vsel %vm2959, %v2947, %v2268
        %v2981 = vsel %vm2959, %v2948, %v2270
        %v2982 = vsel %vm2959, %v2949, %v2272
        %v2983 = vsel %vm2959, %v2950, %v2274
        %v2984 = vsel %vm2959, %v2951, %v2276
        %v2985 = vsel %vm2959, %v2952, %v2278
        %v2986 = vsel %vm2959, %v2953, %v2280
        %v2987 = vsel %vm2959, %v2954, %v2282
        %v2988 = vsel %vm2959, %v2955, %v2284
        %v2989 = vsel %vm2959, %v2956, %v2286
        %v2990 = vsel %vm2959, %v2957, %v2288
        %v2991 = vsel %vm2959, %v2958, %v2290
        %vm2992 = vcmask 424960
        %v2993 = vsel %vm2992, %v2960, %v2324
        %v2994 = vsel %vm2992, %v2961, %v2326
        %v2995 = vsel %vm2992, %v2962, %v2328
        %v2996 = vsel %vm2992, %v2963, %v2330
        %v2997 = vsel %vm2992, %v2964, %v2332
        %v2998 = vsel %vm2992, %v2965, %v2334
        %v2999 = vsel %vm2992, %v2966, %v2336
        %v3000 = vsel %vm2992, %v2967, %v2338
        %v3001 = vsel %vm2992, %v2968, %v2340
        %v3002 = vsel %vm2992, %v2969, %v2342
        %v3003 = vsel %vm2992, %v2970, %v2344
        %v3004 = vsel %vm2992, %v2971, %v2346
        %v3005 = vsel %vm2992, %v2972, %v2348
        %v3006 = vsel %vm2992, %v2973, %v2350
        %v3007 = vsel %vm2992, %v2974, %v2352
        %v3008 = vsel %vm2992, %v2975, %v2354
        %v3009 = vsel %vm2992, %v2976, %v2356
        %v3010 = vsel %vm2992, %v2977, %v2358
        %v3011 = vsel %vm2992, %v2978, %v2360
        %v3012 = vsel %vm2992, %v2979, %v2362
        %v3013 = vsel %vm2992, %v2980, %v2364
        %v3014 = vsel %vm2992, %v2981, %v2366
        %v3015 = vsel %vm2992, %v2982, %v2368
        %v3016 = vsel %vm2992, %v2983, %v2370
        %v3017 = vsel %vm2992, %v2984, %v2372
        %v3018 = vsel %vm2992, %v2985, %v2374
        %v3019 = vsel %vm2992, %v2986, %v2376
        %v3020 = vsel %vm2992, %v2987, %v2378
        %v3021 = vsel %vm2992, %v2988, %v2380
        %v3022 = vsel %vm2992, %v2989, %v2382
        %v3023 = vsel %vm2992, %v2990, %v2384
        %v3024 = vsel %vm2992, %v2991, %v2386
        %vm3025 = vcmask 457728
        %v3026 = vsel %vm3025, %v2993, %v2420
        %v3027 = vsel %vm3025, %v2994, %v2422
        %v3028 = vsel %vm3025, %v2995, %v2424
        %v3029 = vsel %vm3025, %v2996, %v2426
        %v3030 = vsel %vm3025, %v2997, %v2428
        %v3031 = vsel %vm3025, %v2998, %v2430
        %v3032 = vsel %vm3025, %v2999, %v2432
        %v3033 = vsel %vm3025, %v3000, %v2434
        %v3034 = vsel %vm3025, %v3001, %v2436
        %v3035 = vsel %vm3025, %v3002, %v2438
        %v3036 = vsel %vm3025, %v3003, %v2440
        %v3037 = vsel %vm3025, %v3004, %v2442
        %v3038 = vsel %vm3025, %v3005, %v2444
        %v3039 = vsel %vm3025, %v3006, %v2446
        %v3040 = vsel %vm3025, %v3007, %v2448
        %v3041 = vsel %vm3025, %v3008, %v2450
        %v3042 = vsel %vm3025, %v3009, %v2452
        %v3043 = vsel %vm3025, %v3010, %v2454
        %v3044 = vsel %vm3025, %v3011, %v2456
        %v3045 = vsel %vm3025, %v3012, %v2458
        %v3046 = vsel %vm3025, %v3013, %v2460
        %v3047 = vsel %vm3025, %v3014, %v2462
        %v3048 = vsel %vm3025, %v3015, %v2464
        %v3049 = vsel %vm3025, %v3016, %v2466
        %v3050 = vsel %vm3025, %v3017, %v2468
        %v3051 = vsel %vm3025, %v3018, %v2470
        %v3052 = vsel %vm3025, %v3019, %v2472
        %v3053 = vsel %vm3025, %v3020, %v2474
        %v3054 = vsel %vm3025, %v3021, %v2476
        %v3055 = vsel %vm3025, %v3022, %v2478
        %v3056 = vsel %vm3025, %v3023, %v2480
        %v3057 = vsel %vm3025, %v3024, %v2482
        %vm3058 = vcmask 490496
        %v3059 = vsel %vm3058, %v3026, %v2516
        %v3060 = vsel %vm3058, %v3027, %v2518
        %v3061 = vsel %vm3058, %v3028, %v2520
        %v3062 = vsel %vm3058, %v3029, %v2522
        %v3063 = vsel %vm3058, %v3030, %v2524
        %v3064 = vsel %vm3058, %v3031, %v2526
        %v3065 = vsel %vm3058, %v3032, %v2528
        %v3066 = vsel %vm3058, %v3033, %v2530
        %v3067 = vsel %vm3058, %v3034, %v2532
        %v3068 = vsel %vm3058, %v3035, %v2534
        %v3069 = vsel %vm3058, %v3036, %v2536
        %v3070 = vsel %vm3058, %v3037, %v2538
        %v3071 = vsel %vm3058, %v3038, %v2540
        %v3072 = vsel %vm3058, %v3039, %v2542
        %v3073 = vsel %vm3058, %v3040, %v2544
        %v3074 = vsel %vm3058, %v3041, %v2530
        %v3075 = vsel %vm3058, %v3042, %v2546
        %v3076 = vsel %vm3058, %v3043, %v2548
        %v3077 = vsel %vm3058, %v3044, %v2550
        %v3078 = vsel %vm3058, %v3045, %v2552
        %v3079 = vsel %vm3058, %v3046, %v2554
        %v3080 = vsel %vm3058, %v3047, %v2556
        %v3081 = vsel %vm3058, %v3048, %v2558
        %v3082 = vsel %vm3058, %v3049, %v2530
        %v3083 = vsel %vm3058, %v3050, %v2560
        %v3084 = vsel %vm3058, %v3051, %v2562
        %v3085 = vsel %vm3058, %v3052, %v2564
        %v3086 = vsel %vm3058, %v3053, %v2566
        %v3087 = vsel %vm3058, %v3054, %v2568
        %v3088 = vsel %vm3058, %v3055, %v2570
        %v3089 = vsel %vm3058, %v3056, %v2572
        %v3090 = vsel %vm3058, %v3057, %v2530
        %3091 = vrot.lane.b32.xlu0 %v996, 4
        %v3092 = vpop.permute.xlu0 %3091
        %3093 = vrot.lane.b32.xlu0 %v999, 4
        %v3094 = vpop.permute.xlu0 %3093
        %3095 = vrot.lane.b32.xlu0 %v1002, 4
        %v3096 = vpop.permute.xlu0 %3095
        %3097 = vrot.lane.b32.xlu0 %v1005, 4
        %v3098 = vpop.permute.xlu0 %3097
        %3099 = vrot.lane.b32.xlu0 %v1008, 4
        %v3100 = vpop.permute.xlu0 %3099
        %3101 = vrot.lane.b32.xlu0 %v1011, 4
        %v3102 = vpop.permute.xlu0 %3101
        %3103 = vrot.lane.b32.xlu0 %v1079, 4
        %v3104 = vpop.permute.xlu0 %3103
        %3105 = vrot.lane.b32.xlu0 %v969, 4
        %v3106 = vpop.permute.xlu0 %3105
        %3107 = vrot.lane.b32.xlu0 %v1017, 4
        %v3108 = vpop.permute.xlu0 %3107
        %3109 = vrot.lane.b32.xlu0 %v1020, 4
        %v3110 = vpop.permute.xlu0 %3109
        %3111 = vrot.lane.b32.xlu0 %v1023, 4
        %v3112 = vpop.permute.xlu0 %3111
        %3113 = vrot.lane.b32.xlu0 %v1026, 4
        %v3114 = vpop.permute.xlu0 %3113
        %3115 = vrot.lane.b32.xlu0 %v1029, 4
        %v3116 = vpop.permute.xlu0 %3115
        %3117 = vrot.lane.b32.xlu0 %v1032, 4
        %v3118 = vpop.permute.xlu0 %3117
        %3119 = vrot.lane.b32.xlu0 %v1082, 4
        %v3120 = vpop.permute.xlu0 %3119
        %3121 = vrot.lane.b32.xlu0 %v1038, 4
        %v3122 = vpop.permute.xlu0 %3121
        %3123 = vrot.lane.b32.xlu0 %v1041, 4
        %v3124 = vpop.permute.xlu0 %3123
        %3125 = vrot.lane.b32.xlu0 %v1044, 4
        %v3126 = vpop.permute.xlu0 %3125
        %3127 = vrot.lane.b32.xlu0 %v1047, 4
        %v3128 = vpop.permute.xlu0 %3127
        %3129 = vrot.lane.b32.xlu0 %v1050, 4
        %v3130 = vpop.permute.xlu0 %3129
        %3131 = vrot.lane.b32.xlu0 %v1053, 4
        %v3132 = vpop.permute.xlu0 %3131
        %3133 = vrot.lane.b32.xlu0 %v1085, 4
        %v3134 = vpop.permute.xlu0 %3133
        %3135 = vrot.lane.b32.xlu0 %v1126, 4
        %v3136 = vpop.permute.xlu0 %3135
        %3137 = vrot.lane.b32.xlu0 %v1129, 4
        %v3138 = vpop.permute.xlu0 %3137
        %3139 = vrot.lane.b32.xlu0 %v1132, 4
        %v3140 = vpop.permute.xlu0 %3139
        %3141 = vrot.lane.b32.xlu0 %v1135, 4
        %v3142 = vpop.permute.xlu0 %3141
        %3143 = vrot.lane.b32.xlu0 %v1138, 4
        %v3144 = vpop.permute.xlu0 %3143
        %3145 = vrot.lane.b32.xlu0 %v1141, 4
        %v3146 = vpop.permute.xlu0 %3145
        %3147 = vrot.lane.b32.xlu0 %v1149, 4
        %v3148 = vpop.permute.xlu0 %3147
        %3178 = vrot.lane.b32.xlu0 %v722, 8
        %v3179 = vpop.permute.xlu0 %3178
        %3180 = vrot.lane.b32.xlu0 %v739, 8
        %v3181 = vpop.permute.xlu0 %3180
        %3182 = vrot.lane.b32.xlu0 %v740, 8
        %v3183 = vpop.permute.xlu0 %3182
        %3184 = vrot.lane.b32.xlu0 %v741, 8
        %v3185 = vpop.permute.xlu0 %3184
        %3186 = vrot.lane.b32.xlu0 %v742, 8
        %v3187 = vpop.permute.xlu0 %3186
        %3188 = vrot.lane.b32.xlu0 %v743, 8
        %v3189 = vpop.permute.xlu0 %3188
        %3190 = vrot.lane.b32.xlu0 %v744, 8
        %v3191 = vpop.permute.xlu0 %3190
        %3192 = vrot.lane.b32.xlu0 %v745, 8
        %v3193 = vpop.permute.xlu0 %3192
        %3194 = vrot.lane.b32.xlu0 %v747, 8
        %v3195 = vpop.permute.xlu0 %3194
        %3196 = vrot.lane.b32.xlu0 %v748, 8
        %v3197 = vpop.permute.xlu0 %3196
        %3198 = vrot.lane.b32.xlu0 %v749, 8
        %v3199 = vpop.permute.xlu0 %3198
        %3200 = vrot.lane.b32.xlu0 %v750, 8
        %v3201 = vpop.permute.xlu0 %3200
        %3202 = vrot.lane.b32.xlu0 %v751, 8
        %v3203 = vpop.permute.xlu0 %3202
        %3204 = vrot.lane.b32.xlu0 %v752, 8
        %v3205 = vpop.permute.xlu0 %3204
        %3206 = vrot.lane.b32.xlu0 %v753, 8
        %v3207 = vpop.permute.xlu0 %3206
        %3208 = vrot.lane.b32.xlu0 %v755, 8
        %v3209 = vpop.permute.xlu0 %3208
        %3210 = vrot.lane.b32.xlu0 %v756, 8
        %v3211 = vpop.permute.xlu0 %3210
        %3212 = vrot.lane.b32.xlu0 %v757, 8
        %v3213 = vpop.permute.xlu0 %3212
        %3214 = vrot.lane.b32.xlu0 %v758, 8
        %v3215 = vpop.permute.xlu0 %3214
        %3216 = vrot.lane.b32.xlu0 %v759, 8
        %v3217 = vpop.permute.xlu0 %3216
        %3218 = vrot.lane.b32.xlu0 %v760, 8
        %v3219 = vpop.permute.xlu0 %3218
        %3220 = vrot.lane.b32.xlu0 %v761, 8
        %v3221 = vpop.permute.xlu0 %3220
        %3222 = vrot.lane.b32.xlu0 %v763, 8
        %v3223 = vpop.permute.xlu0 %3222
        %3224 = vrot.lane.b32.xlu0 %v764, 8
        %v3225 = vpop.permute.xlu0 %3224
        %3226 = vrot.lane.b32.xlu0 %v765, 8
        %v3227 = vpop.permute.xlu0 %3226
        %3228 = vrot.lane.b32.xlu0 %v766, 8
        %v3229 = vpop.permute.xlu0 %3228
        %3230 = vrot.lane.b32.xlu0 %v767, 8
        %v3231 = vpop.permute.xlu0 %3230
        %3232 = vrot.lane.b32.xlu0 %v768, 8
        %v3233 = vpop.permute.xlu0 %3232
        %3234 = vrot.lane.b32.xlu0 %v769, 8
        %v3235 = vpop.permute.xlu0 %3234
        %3265 = vrot.lane.b32.xlu0 %v881, 12
        %v3266 = vpop.permute.xlu0 %3265
        %3267 = vrot.lane.b32.xlu0 %v926, 12
        %v3268 = vpop.permute.xlu0 %3267
        %3269 = vrot.lane.b32.xlu0 %v929, 12
        %v3270 = vpop.permute.xlu0 %3269
        %3271 = vrot.lane.b32.xlu0 %v932, 12
        %v3272 = vpop.permute.xlu0 %3271
        %3273 = vrot.lane.b32.xlu0 %v935, 12
        %v3274 = vpop.permute.xlu0 %3273
        %3275 = vrot.lane.b32.xlu0 %v938, 12
        %v3276 = vpop.permute.xlu0 %3275
        %3277 = vrot.lane.b32.xlu0 %v941, 12
        %v3278 = vpop.permute.xlu0 %3277
        %3279 = vrot.lane.b32.xlu0 %v944, 12
        %v3280 = vpop.permute.xlu0 %3279
        %3281 = vrot.lane.b32.xlu0 %v947, 12
        %v3282 = vpop.permute.xlu0 %3281
        %3283 = vrot.lane.b32.xlu0 %v950, 12
        %v3284 = vpop.permute.xlu0 %3283
        %3285 = vrot.lane.b32.xlu0 %v953, 12
        %v3286 = vpop.permute.xlu0 %3285
        %3287 = vrot.lane.b32.xlu0 %v956, 12
        %v3288 = vpop.permute.xlu0 %3287
        %3289 = vrot.lane.b32.xlu0 %v959, 12
        %v3290 = vpop.permute.xlu0 %3289
        %3291 = vrot.lane.b32.xlu0 %v962, 12
        %v3292 = vpop.permute.xlu0 %3291
        %3293 = vrot.lane.b32.xlu0 %v965, 12
        %v3294 = vpop.permute.xlu0 %3293
        %3295 = vrot.lane.b32.xlu0 %v1102, 12
        %v3296 = vpop.permute.xlu0 %3295
        %3297 = vrot.lane.b32.xlu0 %v1105, 12
        %v3298 = vpop.permute.xlu0 %3297
        %3299 = vrot.lane.b32.xlu0 %v1108, 12
        %v3300 = vpop.permute.xlu0 %3299
        %3301 = vrot.lane.b32.xlu0 %v1111, 12
        %v3302 = vpop.permute.xlu0 %3301
        %3303 = vrot.lane.b32.xlu0 %v1114, 12
        %v3304 = vpop.permute.xlu0 %3303
        %3305 = vrot.lane.b32.xlu0 %v1117, 12
        %v3306 = vpop.permute.xlu0 %3305
        %3307 = vrot.lane.b32.xlu0 %v1120, 12
        %v3308 = vpop.permute.xlu0 %3307
        %3309 = vrot.lane.b32.xlu0 %v1195, 12
        %v3310 = vpop.permute.xlu0 %3309
        %3311 = vrot.lane.b32.xlu0 %v1198, 12
        %v3312 = vpop.permute.xlu0 %3311
        %3313 = vrot.lane.b32.xlu0 %v1201, 12
        %v3314 = vpop.permute.xlu0 %3313
        %3315 = vrot.lane.b32.xlu0 %v1204, 12
        %v3316 = vpop.permute.xlu0 %3315
        %3317 = vrot.lane.b32.xlu0 %v1207, 12
        %v3318 = vpop.permute.xlu0 %3317
        %3319 = vrot.lane.b32.xlu0 %v1210, 12
        %v3320 = vpop.permute.xlu0 %3319
        %3321 = vrot.lane.b32.xlu0 %v1213, 12
        %v3322 = vpop.permute.xlu0 %3321
        %3352 = vrot.lane.b32.xlu0 %v969, 16
        %v3353 = vpop.permute.xlu0 %3352
        %3354 = vrot.lane.b32.xlu0 %v1014, 16
        %v3355 = vpop.permute.xlu0 %3354
        %3356 = vrot.lane.b32.xlu0 %v1017, 16
        %v3357 = vpop.permute.xlu0 %3356
        %3358 = vrot.lane.b32.xlu0 %v1020, 16
        %v3359 = vpop.permute.xlu0 %3358
        %3360 = vrot.lane.b32.xlu0 %v1023, 16
        %v3361 = vpop.permute.xlu0 %3360
        %3362 = vrot.lane.b32.xlu0 %v1026, 16
        %v3363 = vpop.permute.xlu0 %3362
        %3364 = vrot.lane.b32.xlu0 %v1029, 16
        %v3365 = vpop.permute.xlu0 %3364
        %3366 = vrot.lane.b32.xlu0 %v1032, 16
        %v3367 = vpop.permute.xlu0 %3366
        %3368 = vrot.lane.b32.xlu0 %v1035, 16
        %v3369 = vpop.permute.xlu0 %3368
        %3370 = vrot.lane.b32.xlu0 %v1038, 16
        %v3371 = vpop.permute.xlu0 %3370
        %3372 = vrot.lane.b32.xlu0 %v1041, 16
        %v3373 = vpop.permute.xlu0 %3372
        %3374 = vrot.lane.b32.xlu0 %v1044, 16
        %v3375 = vpop.permute.xlu0 %3374
        %3376 = vrot.lane.b32.xlu0 %v1047, 16
        %v3377 = vpop.permute.xlu0 %3376
        %3378 = vrot.lane.b32.xlu0 %v1050, 16
        %v3379 = vpop.permute.xlu0 %3378
        %3380 = vrot.lane.b32.xlu0 %v1053, 16
        %v3381 = vpop.permute.xlu0 %3380
        %3382 = vrot.lane.b32.xlu0 %v1123, 16
        %v3383 = vpop.permute.xlu0 %3382
        %3384 = vrot.lane.b32.xlu0 %v1126, 16
        %v3385 = vpop.permute.xlu0 %3384
        %3386 = vrot.lane.b32.xlu0 %v1129, 16
        %v3387 = vpop.permute.xlu0 %3386
        %3388 = vrot.lane.b32.xlu0 %v1132, 16
        %v3389 = vpop.permute.xlu0 %3388
        %3390 = vrot.lane.b32.xlu0 %v1135, 16
        %v3391 = vpop.permute.xlu0 %3390
        %3392 = vrot.lane.b32.xlu0 %v1138, 16
        %v3393 = vpop.permute.xlu0 %3392
        %3394 = vrot.lane.b32.xlu0 %v1141, 16
        %v3395 = vpop.permute.xlu0 %3394
        %3396 = vrot.lane.b32.xlu0 %v1216, 16
        %v3397 = vpop.permute.xlu0 %3396
        %3398 = vrot.lane.b32.xlu0 %v1219, 16
        %v3399 = vpop.permute.xlu0 %3398
        %3400 = vrot.lane.b32.xlu0 %v1222, 16
        %v3401 = vpop.permute.xlu0 %3400
        %3402 = vrot.lane.b32.xlu0 %v1225, 16
        %v3403 = vpop.permute.xlu0 %3402
        %3404 = vrot.lane.b32.xlu0 %v1228, 16
        %v3405 = vpop.permute.xlu0 %3404
        %3406 = vrot.lane.b32.xlu0 %v1231, 16
        %v3407 = vpop.permute.xlu0 %3406
        %3408 = vrot.lane.b32.xlu0 %v1234, 16
        %v3409 = vpop.permute.xlu0 %3408
        %3439 = vrot.lane.b32.xlu0 %v739, 20
        %v3440 = vpop.permute.xlu0 %3439
        %3441 = vrot.lane.b32.xlu0 %v740, 20
        %v3442 = vpop.permute.xlu0 %3441
        %3443 = vrot.lane.b32.xlu0 %v741, 20
        %v3444 = vpop.permute.xlu0 %3443
        %3445 = vrot.lane.b32.xlu0 %v742, 20
        %v3446 = vpop.permute.xlu0 %3445
        %3447 = vrot.lane.b32.xlu0 %v743, 20
        %v3448 = vpop.permute.xlu0 %3447
        %3449 = vrot.lane.b32.xlu0 %v744, 20
        %v3450 = vpop.permute.xlu0 %3449
        %3451 = vrot.lane.b32.xlu0 %v745, 20
        %v3452 = vpop.permute.xlu0 %3451
        %3453 = vrot.lane.b32.xlu0 %v746, 20
        %v3454 = vpop.permute.xlu0 %3453
        %3455 = vrot.lane.b32.xlu0 %v747, 20
        %v3456 = vpop.permute.xlu0 %3455
        %3457 = vrot.lane.b32.xlu0 %v748, 20
        %v3458 = vpop.permute.xlu0 %3457
        %3459 = vrot.lane.b32.xlu0 %v749, 20
        %v3460 = vpop.permute.xlu0 %3459
        %3461 = vrot.lane.b32.xlu0 %v750, 20
        %v3462 = vpop.permute.xlu0 %3461
        %3463 = vrot.lane.b32.xlu0 %v751, 20
        %v3464 = vpop.permute.xlu0 %3463
        %3465 = vrot.lane.b32.xlu0 %v752, 20
        %v3466 = vpop.permute.xlu0 %3465
        %3467 = vrot.lane.b32.xlu0 %v753, 20
        %v3468 = vpop.permute.xlu0 %3467
        %3469 = vrot.lane.b32.xlu0 %v754, 20
        %v3470 = vpop.permute.xlu0 %3469
        %3471 = vrot.lane.b32.xlu0 %v755, 20
        %v3472 = vpop.permute.xlu0 %3471
        %3473 = vrot.lane.b32.xlu0 %v756, 20
        %v3474 = vpop.permute.xlu0 %3473
        %3475 = vrot.lane.b32.xlu0 %v757, 20
        %v3476 = vpop.permute.xlu0 %3475
        %3477 = vrot.lane.b32.xlu0 %v758, 20
        %v3478 = vpop.permute.xlu0 %3477
        %3479 = vrot.lane.b32.xlu0 %v759, 20
        %v3480 = vpop.permute.xlu0 %3479
        %3481 = vrot.lane.b32.xlu0 %v760, 20
        %v3482 = vpop.permute.xlu0 %3481
        %3483 = vrot.lane.b32.xlu0 %v761, 20
        %v3484 = vpop.permute.xlu0 %3483
        %3485 = vrot.lane.b32.xlu0 %v762, 20
        %v3486 = vpop.permute.xlu0 %3485
        %3487 = vrot.lane.b32.xlu0 %v763, 20
        %v3488 = vpop.permute.xlu0 %3487
        %3489 = vrot.lane.b32.xlu0 %v764, 20
        %v3490 = vpop.permute.xlu0 %3489
        %3491 = vrot.lane.b32.xlu0 %v765, 20
        %v3492 = vpop.permute.xlu0 %3491
        %3493 = vrot.lane.b32.xlu0 %v766, 20
        %v3494 = vpop.permute.xlu0 %3493
        %3495 = vrot.lane.b32.xlu0 %v767, 20
        %v3496 = vpop.permute.xlu0 %3495
        %3497 = vrot.lane.b32.xlu0 %v768, 20
        %v3498 = vpop.permute.xlu0 %3497
        %3499 = vrot.lane.b32.xlu0 %v769, 20
        %v3500 = vpop.permute.xlu0 %3499
        %3501 = vrot.lane.b32.xlu0 %v770, 20
        %v3502 = vpop.permute.xlu0 %3501
        %3535 = vrot.lane.b32.xlu0 %v926, 24
        %v3536 = vpop.permute.xlu0 %3535
        %3537 = vrot.lane.b32.xlu0 %v929, 24
        %v3538 = vpop.permute.xlu0 %3537
        %3539 = vrot.lane.b32.xlu0 %v932, 24
        %v3540 = vpop.permute.xlu0 %3539
        %3541 = vrot.lane.b32.xlu0 %v935, 24
        %v3542 = vpop.permute.xlu0 %3541
        %3543 = vrot.lane.b32.xlu0 %v938, 24
        %v3544 = vpop.permute.xlu0 %3543
        %3545 = vrot.lane.b32.xlu0 %v941, 24
        %v3546 = vpop.permute.xlu0 %3545
        %3547 = vrot.lane.b32.xlu0 %v944, 24
        %v3548 = vpop.permute.xlu0 %3547
        %3549 = vrot.lane.b32.xlu0 %v1070, 24
        %v3550 = vpop.permute.xlu0 %3549
        %3551 = vrot.lane.b32.xlu0 %v947, 24
        %v3552 = vpop.permute.xlu0 %3551
        %3553 = vrot.lane.b32.xlu0 %v950, 24
        %v3554 = vpop.permute.xlu0 %3553
        %3555 = vrot.lane.b32.xlu0 %v953, 24
        %v3556 = vpop.permute.xlu0 %3555
        %3557 = vrot.lane.b32.xlu0 %v956, 24
        %v3558 = vpop.permute.xlu0 %3557
        %3559 = vrot.lane.b32.xlu0 %v959, 24
        %v3560 = vpop.permute.xlu0 %3559
        %3561 = vrot.lane.b32.xlu0 %v962, 24
        %v3562 = vpop.permute.xlu0 %3561
        %3563 = vrot.lane.b32.xlu0 %v965, 24
        %v3564 = vpop.permute.xlu0 %3563
        %3565 = vrot.lane.b32.xlu0 %v1073, 24
        %v3566 = vpop.permute.xlu0 %3565
        %3567 = vrot.lane.b32.xlu0 %v1102, 24
        %v3568 = vpop.permute.xlu0 %3567
        %3569 = vrot.lane.b32.xlu0 %v1105, 24
        %v3570 = vpop.permute.xlu0 %3569
        %3571 = vrot.lane.b32.xlu0 %v1108, 24
        %v3572 = vpop.permute.xlu0 %3571
        %3573 = vrot.lane.b32.xlu0 %v1111, 24
        %v3574 = vpop.permute.xlu0 %3573
        %3575 = vrot.lane.b32.xlu0 %v1114, 24
        %v3576 = vpop.permute.xlu0 %3575
        %3577 = vrot.lane.b32.xlu0 %v1117, 24
        %v3578 = vpop.permute.xlu0 %3577
        %3579 = vrot.lane.b32.xlu0 %v1120, 24
        %v3580 = vpop.permute.xlu0 %3579
        %3581 = vrot.lane.b32.xlu0 %v1146, 24
        %v3582 = vpop.permute.xlu0 %3581
        %3583 = vrot.lane.b32.xlu0 %v1195, 24
        %v3584 = vpop.permute.xlu0 %3583
        %3585 = vrot.lane.b32.xlu0 %v1198, 24
        %v3586 = vpop.permute.xlu0 %3585
        %3587 = vrot.lane.b32.xlu0 %v1201, 24
        %v3588 = vpop.permute.xlu0 %3587
        %3589 = vrot.lane.b32.xlu0 %v1204, 24
        %v3590 = vpop.permute.xlu0 %3589
        %3591 = vrot.lane.b32.xlu0 %v1207, 24
        %v3592 = vpop.permute.xlu0 %3591
        %3593 = vrot.lane.b32.xlu0 %v1210, 24
        %v3594 = vpop.permute.xlu0 %3593
        %3595 = vrot.lane.b32.xlu0 %v1213, 24
        %v3596 = vpop.permute.xlu0 %3595
        %3597 = vrot.lane.b32.xlu0 %v1239, 24
        %v3598 = vpop.permute.xlu0 %3597
        %3631 = vrot.lane.b32.xlu0 %v1014, 28
        %v3632 = vpop.permute.xlu0 %3631
        %3633 = vrot.lane.b32.xlu0 %v1017, 28
        %v3634 = vpop.permute.xlu0 %3633
        %3635 = vrot.lane.b32.xlu0 %v1020, 28
        %v3636 = vpop.permute.xlu0 %3635
        %3637 = vrot.lane.b32.xlu0 %v1023, 28
        %v3638 = vpop.permute.xlu0 %3637
        %3639 = vrot.lane.b32.xlu0 %v1026, 28
        %v3640 = vpop.permute.xlu0 %3639
        %3641 = vrot.lane.b32.xlu0 %v1029, 28
        %v3642 = vpop.permute.xlu0 %3641
        %3643 = vrot.lane.b32.xlu0 %v1032, 28
        %v3644 = vpop.permute.xlu0 %3643
        %3645 = vrot.lane.b32.xlu0 %v1082, 28
        %v3646 = vpop.permute.xlu0 %3645
        %3647 = vrot.lane.b32.xlu0 %v1035, 28
        %v3648 = vpop.permute.xlu0 %3647
        %3649 = vrot.lane.b32.xlu0 %v1038, 28
        %v3650 = vpop.permute.xlu0 %3649
        %3651 = vrot.lane.b32.xlu0 %v1041, 28
        %v3652 = vpop.permute.xlu0 %3651
        %3653 = vrot.lane.b32.xlu0 %v1044, 28
        %v3654 = vpop.permute.xlu0 %3653
        %3655 = vrot.lane.b32.xlu0 %v1047, 28
        %v3656 = vpop.permute.xlu0 %3655
        %3657 = vrot.lane.b32.xlu0 %v1050, 28
        %v3658 = vpop.permute.xlu0 %3657
        %3659 = vrot.lane.b32.xlu0 %v1053, 28
        %v3660 = vpop.permute.xlu0 %3659
        %3661 = vrot.lane.b32.xlu0 %v1085, 28
        %v3662 = vpop.permute.xlu0 %3661
        %3663 = vrot.lane.b32.xlu0 %v1123, 28
        %v3664 = vpop.permute.xlu0 %3663
        %3665 = vrot.lane.b32.xlu0 %v1126, 28
        %v3666 = vpop.permute.xlu0 %3665
        %3667 = vrot.lane.b32.xlu0 %v1129, 28
        %v3668 = vpop.permute.xlu0 %3667
        %3669 = vrot.lane.b32.xlu0 %v1132, 28
        %v3670 = vpop.permute.xlu0 %3669
        %3671 = vrot.lane.b32.xlu0 %v1135, 28
        %v3672 = vpop.permute.xlu0 %3671
        %3673 = vrot.lane.b32.xlu0 %v1138, 28
        %v3674 = vpop.permute.xlu0 %3673
        %3675 = vrot.lane.b32.xlu0 %v1141, 28
        %v3676 = vpop.permute.xlu0 %3675
        %3677 = vrot.lane.b32.xlu0 %v1149, 28
        %v3678 = vpop.permute.xlu0 %3677
        %3679 = vrot.lane.b32.xlu0 %v1216, 28
        %v3680 = vpop.permute.xlu0 %3679
        %3681 = vrot.lane.b32.xlu0 %v1219, 28
        %v3682 = vpop.permute.xlu0 %3681
        %3683 = vrot.lane.b32.xlu0 %v1222, 28
        %v3684 = vpop.permute.xlu0 %3683
        %3685 = vrot.lane.b32.xlu0 %v1225, 28
        %v3686 = vpop.permute.xlu0 %3685
        %3687 = vrot.lane.b32.xlu0 %v1228, 28
        %v3688 = vpop.permute.xlu0 %3687
        %3689 = vrot.lane.b32.xlu0 %v1231, 28
        %v3690 = vpop.permute.xlu0 %3689
        %3691 = vrot.lane.b32.xlu0 %v1234, 28
        %v3692 = vpop.permute.xlu0 %3691
        %3693 = vrot.lane.b32.xlu0 %v1242, 28
        %v3694 = vpop.permute.xlu0 %3693
        %3727 = vrot.lane.b32.xlu0 %v740, 32
        %v3728 = vpop.permute.xlu0 %3727
        %3729 = vrot.lane.b32.xlu0 %v741, 32
        %v3730 = vpop.permute.xlu0 %3729
        %3731 = vrot.lane.b32.xlu0 %v742, 32
        %v3732 = vpop.permute.xlu0 %3731
        %3733 = vrot.lane.b32.xlu0 %v743, 32
        %v3734 = vpop.permute.xlu0 %3733
        %3735 = vrot.lane.b32.xlu0 %v744, 32
        %v3736 = vpop.permute.xlu0 %3735
        %3737 = vrot.lane.b32.xlu0 %v745, 32
        %v3738 = vpop.permute.xlu0 %3737
        %3739 = vrot.lane.b32.xlu0 %v746, 32
        %v3740 = vpop.permute.xlu0 %3739
        %3741 = vrot.lane.b32.xlu0 %v722, 32
        %v3742 = vpop.permute.xlu0 %3741
        %3743 = vrot.lane.b32.xlu0 %v748, 32
        %v3744 = vpop.permute.xlu0 %3743
        %3745 = vrot.lane.b32.xlu0 %v749, 32
        %v3746 = vpop.permute.xlu0 %3745
        %3747 = vrot.lane.b32.xlu0 %v750, 32
        %v3748 = vpop.permute.xlu0 %3747
        %3749 = vrot.lane.b32.xlu0 %v751, 32
        %v3750 = vpop.permute.xlu0 %3749
        %3751 = vrot.lane.b32.xlu0 %v752, 32
        %v3752 = vpop.permute.xlu0 %3751
        %3753 = vrot.lane.b32.xlu0 %v753, 32
        %v3754 = vpop.permute.xlu0 %3753
        %3755 = vrot.lane.b32.xlu0 %v754, 32
        %v3756 = vpop.permute.xlu0 %3755
        %3757 = vrot.lane.b32.xlu0 %v756, 32
        %v3758 = vpop.permute.xlu0 %3757
        %3759 = vrot.lane.b32.xlu0 %v757, 32
        %v3760 = vpop.permute.xlu0 %3759
        %3761 = vrot.lane.b32.xlu0 %v758, 32
        %v3762 = vpop.permute.xlu0 %3761
        %3763 = vrot.lane.b32.xlu0 %v759, 32
        %v3764 = vpop.permute.xlu0 %3763
        %3765 = vrot.lane.b32.xlu0 %v760, 32
        %v3766 = vpop.permute.xlu0 %3765
        %3767 = vrot.lane.b32.xlu0 %v761, 32
        %v3768 = vpop.permute.xlu0 %3767
        %3769 = vrot.lane.b32.xlu0 %v762, 32
        %v3770 = vpop.permute.xlu0 %3769
        %3771 = vrot.lane.b32.xlu0 %v764, 32
        %v3772 = vpop.permute.xlu0 %3771
        %3773 = vrot.lane.b32.xlu0 %v765, 32
        %v3774 = vpop.permute.xlu0 %3773
        %3775 = vrot.lane.b32.xlu0 %v766, 32
        %v3776 = vpop.permute.xlu0 %3775
        %3777 = vrot.lane.b32.xlu0 %v767, 32
        %v3778 = vpop.permute.xlu0 %3777
        %3779 = vrot.lane.b32.xlu0 %v768, 32
        %v3780 = vpop.permute.xlu0 %3779
        %3781 = vrot.lane.b32.xlu0 %v769, 32
        %v3782 = vpop.permute.xlu0 %3781
        %3783 = vrot.lane.b32.xlu0 %v770, 32
        %v3784 = vpop.permute.xlu0 %3783
        %3814 = vrot.lane.b32.xlu0 %v929, 36
        %v3815 = vpop.permute.xlu0 %3814
        %3816 = vrot.lane.b32.xlu0 %v932, 36
        %v3817 = vpop.permute.xlu0 %3816
        %3818 = vrot.lane.b32.xlu0 %v935, 36
        %v3819 = vpop.permute.xlu0 %3818
        %3820 = vrot.lane.b32.xlu0 %v938, 36
        %v3821 = vpop.permute.xlu0 %3820
        %3822 = vrot.lane.b32.xlu0 %v941, 36
        %v3823 = vpop.permute.xlu0 %3822
        %3824 = vrot.lane.b32.xlu0 %v944, 36
        %v3825 = vpop.permute.xlu0 %3824
        %3826 = vrot.lane.b32.xlu0 %v1070, 36
        %v3827 = vpop.permute.xlu0 %3826
        %3828 = vrot.lane.b32.xlu0 %v881, 36
        %v3829 = vpop.permute.xlu0 %3828
        %3830 = vrot.lane.b32.xlu0 %v950, 36
        %v3831 = vpop.permute.xlu0 %3830
        %3832 = vrot.lane.b32.xlu0 %v953, 36
        %v3833 = vpop.permute.xlu0 %3832
        %3834 = vrot.lane.b32.xlu0 %v956, 36
        %v3835 = vpop.permute.xlu0 %3834
        %3836 = vrot.lane.b32.xlu0 %v959, 36
        %v3837 = vpop.permute.xlu0 %3836
        %3838 = vrot.lane.b32.xlu0 %v962, 36
        %v3839 = vpop.permute.xlu0 %3838
        %3840 = vrot.lane.b32.xlu0 %v965, 36
        %v3841 = vpop.permute.xlu0 %3840
        %3842 = vrot.lane.b32.xlu0 %v1073, 36
        %v3843 = vpop.permute.xlu0 %3842
        %3844 = vrot.lane.b32.xlu0 %v1105, 36
        %v3845 = vpop.permute.xlu0 %3844
        %3846 = vrot.lane.b32.xlu0 %v1108, 36
        %v3847 = vpop.permute.xlu0 %3846
        %3848 = vrot.lane.b32.xlu0 %v1111, 36
        %v3849 = vpop.permute.xlu0 %3848
        %3850 = vrot.lane.b32.xlu0 %v1114, 36
        %v3851 = vpop.permute.xlu0 %3850
        %3852 = vrot.lane.b32.xlu0 %v1117, 36
        %v3853 = vpop.permute.xlu0 %3852
        %3854 = vrot.lane.b32.xlu0 %v1120, 36
        %v3855 = vpop.permute.xlu0 %3854
        %3856 = vrot.lane.b32.xlu0 %v1146, 36
        %v3857 = vpop.permute.xlu0 %3856
        %3858 = vrot.lane.b32.xlu0 %v1198, 36
        %v3859 = vpop.permute.xlu0 %3858
        %3860 = vrot.lane.b32.xlu0 %v1201, 36
        %v3861 = vpop.permute.xlu0 %3860
        %3862 = vrot.lane.b32.xlu0 %v1204, 36
        %v3863 = vpop.permute.xlu0 %3862
        %3864 = vrot.lane.b32.xlu0 %v1207, 36
        %v3865 = vpop.permute.xlu0 %3864
        %3866 = vrot.lane.b32.xlu0 %v1210, 36
        %v3867 = vpop.permute.xlu0 %3866
        %3868 = vrot.lane.b32.xlu0 %v1213, 36
        %v3869 = vpop.permute.xlu0 %3868
        %3870 = vrot.lane.b32.xlu0 %v1239, 36
        %v3871 = vpop.permute.xlu0 %3870
        %3901 = vrot.lane.b32.xlu0 %v1017, 40
        %v3902 = vpop.permute.xlu0 %3901
        %3903 = vrot.lane.b32.xlu0 %v1020, 40
        %v3904 = vpop.permute.xlu0 %3903
        %3905 = vrot.lane.b32.xlu0 %v1023, 40
        %v3906 = vpop.permute.xlu0 %3905
        %3907 = vrot.lane.b32.xlu0 %v1026, 40
        %v3908 = vpop.permute.xlu0 %3907
        %3909 = vrot.lane.b32.xlu0 %v1029, 40
        %v3910 = vpop.permute.xlu0 %3909
        %3911 = vrot.lane.b32.xlu0 %v1032, 40
        %v3912 = vpop.permute.xlu0 %3911
        %3913 = vrot.lane.b32.xlu0 %v1082, 40
        %v3914 = vpop.permute.xlu0 %3913
        %3915 = vrot.lane.b32.xlu0 %v969, 40
        %v3916 = vpop.permute.xlu0 %3915
        %3917 = vrot.lane.b32.xlu0 %v1038, 40
        %v3918 = vpop.permute.xlu0 %3917
        %3919 = vrot.lane.b32.xlu0 %v1041, 40
        %v3920 = vpop.permute.xlu0 %3919
        %3921 = vrot.lane.b32.xlu0 %v1044, 40
        %v3922 = vpop.permute.xlu0 %3921
        %3923 = vrot.lane.b32.xlu0 %v1047, 40
        %v3924 = vpop.permute.xlu0 %3923
        %3925 = vrot.lane.b32.xlu0 %v1050, 40
        %v3926 = vpop.permute.xlu0 %3925
        %3927 = vrot.lane.b32.xlu0 %v1053, 40
        %v3928 = vpop.permute.xlu0 %3927
        %3929 = vrot.lane.b32.xlu0 %v1085, 40
        %v3930 = vpop.permute.xlu0 %3929
        %3931 = vrot.lane.b32.xlu0 %v1126, 40
        %v3932 = vpop.permute.xlu0 %3931
        %3933 = vrot.lane.b32.xlu0 %v1129, 40
        %v3934 = vpop.permute.xlu0 %3933
        %3935 = vrot.lane.b32.xlu0 %v1132, 40
        %v3936 = vpop.permute.xlu0 %3935
        %3937 = vrot.lane.b32.xlu0 %v1135, 40
        %v3938 = vpop.permute.xlu0 %3937
        %3939 = vrot.lane.b32.xlu0 %v1138, 40
        %v3940 = vpop.permute.xlu0 %3939
        %3941 = vrot.lane.b32.xlu0 %v1141, 40
        %v3942 = vpop.permute.xlu0 %3941
        %3943 = vrot.lane.b32.xlu0 %v1149, 40
        %v3944 = vpop.permute.xlu0 %3943
        %3945 = vrot.lane.b32.xlu0 %v1219, 40
        %v3946 = vpop.permute.xlu0 %3945
        %3947 = vrot.lane.b32.xlu0 %v1222, 40
        %v3948 = vpop.permute.xlu0 %3947
        %3949 = vrot.lane.b32.xlu0 %v1225, 40
        %v3950 = vpop.permute.xlu0 %3949
        %3951 = vrot.lane.b32.xlu0 %v1228, 40
        %v3952 = vpop.permute.xlu0 %3951
        %3953 = vrot.lane.b32.xlu0 %v1231, 40
        %v3954 = vpop.permute.xlu0 %3953
        %3955 = vrot.lane.b32.xlu0 %v1234, 40
        %v3956 = vpop.permute.xlu0 %3955
        %3957 = vrot.lane.b32.xlu0 %v1242, 40
        %v3958 = vpop.permute.xlu0 %3957
        %v3988 = vsel %vm2602, %v908, %v3092
        %v3989 = vsel %vm2602, %v911, %v3094
        %v3990 = vsel %vm2602, %v914, %v3096
        %v3991 = vsel %vm2602, %v917, %v3098
        %v3992 = vsel %vm2602, %v920, %v3100
        %v3993 = vsel %vm2602, %v923, %v3102
        %v3994 = vsel %vm2602, %v1067, %v3104
        %v3995 = vsel %vm2602, %v881, %v3106
        %v3996 = vsel %vm2602, %v929, %v3108
        %v3997 = vsel %vm2602, %v932, %v3110
        %v3998 = vsel %vm2602, %v935, %v3112
        %v3999 = vsel %vm2602, %v938, %v3114
        %v4000 = vsel %vm2602, %v941, %v3116
        %v4001 = vsel %vm2602, %v944, %v3118
        %v4002 = vsel %vm2602, %v1070, %v3120
        %v4003 = vsel %vm2602, %v950, %v3122
        %v4004 = vsel %vm2602, %v953, %v3124
        %v4005 = vsel %vm2602, %v956, %v3126
        %v4006 = vsel %vm2602, %v959, %v3128
        %v4007 = vsel %vm2602, %v962, %v3130
        %v4008 = vsel %vm2602, %v965, %v3132
        %v4009 = vsel %vm2602, %v1073, %v3134
        %v4010 = vsel %vm2602, %v1105, %v3136
        %v4011 = vsel %vm2602, %v1108, %v3138
        %v4012 = vsel %vm2602, %v1111, %v3140
        %v4013 = vsel %vm2602, %v1114, %v3142
        %v4014 = vsel %vm2602, %v1117, %v3144
        %v4015 = vsel %vm2602, %v1120, %v3146
        %v4016 = vsel %vm2602, %v1146, %v3148
        %v4017 = vsel %vm2632, %v3988, %v3179
        %v4018 = vsel %vm2632, %v3989, %v3181
        %v4019 = vsel %vm2632, %v3990, %v3183
        %v4020 = vsel %vm2632, %v3991, %v3185
        %v4021 = vsel %vm2632, %v3992, %v3187
        %v4022 = vsel %vm2632, %v3993, %v3189
        %v4023 = vsel %vm2632, %v3994, %v3191
        %v4024 = vsel %vm2632, %v3995, %v3193
        %v4025 = vsel %vm2632, %v3996, %v3179
        %v4026 = vsel %vm2632, %v3997, %v3195
        %v4027 = vsel %vm2632, %v3998, %v3197
        %v4028 = vsel %vm2632, %v3999, %v3199
        %v4029 = vsel %vm2632, %v4000, %v3201
        %v4030 = vsel %vm2632, %v4001, %v3203
        %v4031 = vsel %vm2632, %v4002, %v3205
        %v4032 = vsel %vm2632, %v3995, %v3207
        %v4033 = vsel %vm2632, %v4003, %v3179
        %v4034 = vsel %vm2632, %v4004, %v3209
        %v4035 = vsel %vm2632, %v4005, %v3211
        %v4036 = vsel %vm2632, %v4006, %v3213
        %v4037 = vsel %vm2632, %v4007, %v3215
        %v4038 = vsel %vm2632, %v4008, %v3217
        %v4039 = vsel %vm2632, %v4009, %v3219
        %v4040 = vsel %vm2632, %v3995, %v3221
        %v4041 = vsel %vm2632, %v4010, %v3179
        %v4042 = vsel %vm2632, %v4011, %v3223
        %v4043 = vsel %vm2632, %v4012, %v3225
        %v4044 = vsel %vm2632, %v4013, %v3227
        %v4045 = vsel %vm2632, %v4014, %v3229
        %v4046 = vsel %vm2632, %v4015, %v3231
        %v4047 = vsel %vm2632, %v4016, %v3233
        %v4048 = vsel %vm2632, %v3995, %v3235
        %v4049 = vsel %vm2662, %v4017, %v3266
        %v4050 = vsel %vm2662, %v4018, %v3268
        %v4051 = vsel %vm2662, %v4019, %v3270
        %v4052 = vsel %vm2662, %v4020, %v3272
        %v4053 = vsel %vm2662, %v4021, %v3274
        %v4054 = vsel %vm2662, %v4022, %v3276
        %v4055 = vsel %vm2662, %v4023, %v3278
        %v4056 = vsel %vm2662, %v4024, %v3280
        %v4057 = vsel %vm2662, %v4025, %v3266
        %v4058 = vsel %vm2662, %v4026, %v3282
        %v4059 = vsel %vm2662, %v4027, %v3284
        %v4060 = vsel %vm2662, %v4028, %v3286
        %v4061 = vsel %vm2662, %v4029, %v3288
        %v4062 = vsel %vm2662, %v4030, %v3290
        %v4063 = vsel %vm2662, %v4031, %v3292
        %v4064 = vsel %vm2662, %v4032, %v3294
        %v4065 = vsel %vm2662, %v4033, %v3266
        %v4066 = vsel %vm2662, %v4034, %v3296
        %v4067 = vsel %vm2662, %v4035, %v3298
        %v4068 = vsel %vm2662, %v4036, %v3300
        %v4069 = vsel %vm2662, %v4037, %v3302
        %v4070 = vsel %vm2662, %v4038, %v3304
        %v4071 = vsel %vm2662, %v4039, %v3306
        %v4072 = vsel %vm2662, %v4040, %v3308
        %v4073 = vsel %vm2662, %v4041, %v3266
        %v4074 = vsel %vm2662, %v4042, %v3310
        %v4075 = vsel %vm2662, %v4043, %v3312
        %v4076 = vsel %vm2662, %v4044, %v3314
        %v4077 = vsel %vm2662, %v4045, %v3316
        %v4078 = vsel %vm2662, %v4046, %v3318
        %v4079 = vsel %vm2662, %v4047, %v3320
        %v4080 = vsel %vm2662, %v4048, %v3322
        %v4081 = vsel %vm2695, %v4049, %v3353
        %v4082 = vsel %vm2695, %v4050, %v3355
        %v4083 = vsel %vm2695, %v4051, %v3357
        %v4084 = vsel %vm2695, %v4052, %v3359
        %v4085 = vsel %vm2695, %v4053, %v3361
        %v4086 = vsel %vm2695, %v4054, %v3363
        %v4087 = vsel %vm2695, %v4055, %v3365
        %v4088 = vsel %vm2695, %v4056, %v3367
        %v4089 = vsel %vm2695, %v4057, %v3353
        %v4090 = vsel %vm2695, %v4058, %v3369
        %v4091 = vsel %vm2695, %v4059, %v3371
        %v4092 = vsel %vm2695, %v4060, %v3373
        %v4093 = vsel %vm2695, %v4061, %v3375
        %v4094 = vsel %vm2695, %v4062, %v3377
        %v4095 = vsel %vm2695, %v4063, %v3379
        %v4096 = vsel %vm2695, %v4064, %v3381
        %v4097 = vsel %vm2695, %v4065, %v3353
        %v4098 = vsel %vm2695, %v4066, %v3383
        %v4099 = vsel %vm2695, %v4067, %v3385
        %v4100 = vsel %vm2695, %v4068, %v3387
        %v4101 = vsel %vm2695, %v4069, %v3389
        %v4102 = vsel %vm2695, %v4070, %v3391
        %v4103 = vsel %vm2695, %v4071, %v3393
        %v4104 = vsel %vm2695, %v4072, %v3395
        %v4105 = vsel %vm2695, %v4073, %v3353
        %v4106 = vsel %vm2695, %v4074, %v3397
        %v4107 = vsel %vm2695, %v4075, %v3399
        %v4108 = vsel %vm2695, %v4076, %v3401
        %v4109 = vsel %vm2695, %v4077, %v3403
        %v4110 = vsel %vm2695, %v4078, %v3405
        %v4111 = vsel %vm2695, %v4079, %v3407
        %v4112 = vsel %vm2695, %v4080, %v3409
        %v4113 = vsel %vm2728, %v4081, %v3440
        %v4114 = vsel %vm2728, %v4082, %v3442
        %v4115 = vsel %vm2728, %v4083, %v3444
        %v4116 = vsel %vm2728, %v4084, %v3446
        %v4117 = vsel %vm2728, %v4085, %v3448
        %v4118 = vsel %vm2728, %v4086, %v3450
        %v4119 = vsel %vm2728, %v4087, %v3452
        %v4120 = vsel %vm2728, %v4088, %v3454
        %v4121 = vsel %vm2728, %v4089, %v3456
        %v4122 = vsel %vm2728, %v4090, %v3458
        %v4123 = vsel %vm2728, %v4091, %v3460
        %v4124 = vsel %vm2728, %v4092, %v3462
        %v4125 = vsel %vm2728, %v4093, %v3464
        %v4126 = vsel %vm2728, %v4094, %v3466
        %v4127 = vsel %vm2728, %v4095, %v3468
        %v4128 = vsel %vm2728, %v4096, %v3470
        %v4129 = vsel %vm2728, %v4097, %v3472
        %v4130 = vsel %vm2728, %v4098, %v3474
        %v4131 = vsel %vm2728, %v4099, %v3476
        %v4132 = vsel %vm2728, %v4100, %v3478
        %v4133 = vsel %vm2728, %v4101, %v3480
        %v4134 = vsel %vm2728, %v4102, %v3482
        %v4135 = vsel %vm2728, %v4103, %v3484
        %v4136 = vsel %vm2728, %v4104, %v3486
        %v4137 = vsel %vm2728, %v4105, %v3488
        %v4138 = vsel %vm2728, %v4106, %v3490
        %v4139 = vsel %vm2728, %v4107, %v3492
        %v4140 = vsel %vm2728, %v4108, %v3494
        %v4141 = vsel %vm2728, %v4109, %v3496
        %v4142 = vsel %vm2728, %v4110, %v3498
        %v4143 = vsel %vm2728, %v4111, %v3500
        %v4144 = vsel %vm2728, %v4112, %v3502
        %v4145 = vsel %vm2761, %v4113, %v3536
        %v4146 = vsel %vm2761, %v4114, %v3538
        %v4147 = vsel %vm2761, %v4115, %v3540
        %v4148 = vsel %vm2761, %v4116, %v3542
        %v4149 = vsel %vm2761, %v4117, %v3544
        %v4150 = vsel %vm2761, %v4118, %v3546
        %v4151 = vsel %vm2761, %v4119, %v3548
        %v4152 = vsel %vm2761, %v4120, %v3550
        %v4153 = vsel %vm2761, %v4121, %v3552
        %v4154 = vsel %vm2761, %v4122, %v3554
        %v4155 = vsel %vm2761, %v4123, %v3556
        %v4156 = vsel %vm2761, %v4124, %v3558
        %v4157 = vsel %vm2761, %v4125, %v3560
        %v4158 = vsel %vm2761, %v4126, %v3562
        %v4159 = vsel %vm2761, %v4127, %v3564
        %v4160 = vsel %vm2761, %v4128, %v3566
        %v4161 = vsel %vm2761, %v4129, %v3568
        %v4162 = vsel %vm2761, %v4130, %v3570
        %v4163 = vsel %vm2761, %v4131, %v3572
        %v4164 = vsel %vm2761, %v4132, %v3574
        %v4165 = vsel %vm2761, %v4133, %v3576
        %v4166 = vsel %vm2761, %v4134, %v3578
        %v4167 = vsel %vm2761, %v4135, %v3580
        %v4168 = vsel %vm2761, %v4136, %v3582
        %v4169 = vsel %vm2761, %v4137, %v3584
        %v4170 = vsel %vm2761, %v4138, %v3586
        %v4171 = vsel %vm2761, %v4139, %v3588
        %v4172 = vsel %vm2761, %v4140, %v3590
        %v4173 = vsel %vm2761, %v4141, %v3592
        %v4174 = vsel %vm2761, %v4142, %v3594
        %v4175 = vsel %vm2761, %v4143, %v3596
        %v4176 = vsel %vm2761, %v4144, %v3598
        %v4177 = vsel %vm2794, %v4145, %v3632
        %v4178 = vsel %vm2794, %v4146, %v3634
        %v4179 = vsel %vm2794, %v4147, %v3636
        %v4180 = vsel %vm2794, %v4148, %v3638
        %v4181 = vsel %vm2794, %v4149, %v3640
        %v4182 = vsel %vm2794, %v4150, %v3642
        %v4183 = vsel %vm2794, %v4151, %v3644
        %v4184 = vsel %vm2794, %v4152, %v3646
        %v4185 = vsel %vm2794, %v4153, %v3648
        %v4186 = vsel %vm2794, %v4154, %v3650
        %v4187 = vsel %vm2794, %v4155, %v3652
        %v4188 = vsel %vm2794, %v4156, %v3654
        %v4189 = vsel %vm2794, %v4157, %v3656
        %v4190 = vsel %vm2794, %v4158, %v3658
        %v4191 = vsel %vm2794, %v4159, %v3660
        %v4192 = vsel %vm2794, %v4160, %v3662
        %v4193 = vsel %vm2794, %v4161, %v3664
        %v4194 = vsel %vm2794, %v4162, %v3666
        %v4195 = vsel %vm2794, %v4163, %v3668
        %v4196 = vsel %vm2794, %v4164, %v3670
        %v4197 = vsel %vm2794, %v4165, %v3672
        %v4198 = vsel %vm2794, %v4166, %v3674
        %v4199 = vsel %vm2794, %v4167, %v3676
        %v4200 = vsel %vm2794, %v4168, %v3678
        %v4201 = vsel %vm2794, %v4169, %v3680
        %v4202 = vsel %vm2794, %v4170, %v3682
        %v4203 = vsel %vm2794, %v4171, %v3684
        %v4204 = vsel %vm2794, %v4172, %v3686
        %v4205 = vsel %vm2794, %v4173, %v3688
        %v4206 = vsel %vm2794, %v4174, %v3690
        %v4207 = vsel %vm2794, %v4175, %v3692
        %v4208 = vsel %vm2794, %v4176, %v3694
        %v4209 = vsel %vm2827, %v4177, %v3728
        %v4210 = vsel %vm2827, %v4178, %v3730
        %v4211 = vsel %vm2827, %v4179, %v3732
        %v4212 = vsel %vm2827, %v4180, %v3734
        %v4213 = vsel %vm2827, %v4181, %v3736
        %v4214 = vsel %vm2827, %v4182, %v3738
        %v4215 = vsel %vm2827, %v4183, %v3740
        %v4216 = vsel %vm2827, %v4184, %v3742
        %v4217 = vsel %vm2827, %v4185, %v3744
        %v4218 = vsel %vm2827, %v4186, %v3746
        %v4219 = vsel %vm2827, %v4187, %v3748
        %v4220 = vsel %vm2827, %v4188, %v3750
        %v4221 = vsel %vm2827, %v4189, %v3752
        %v4222 = vsel %vm2827, %v4190, %v3754
        %v4223 = vsel %vm2827, %v4191, %v3756
        %v4224 = vsel %vm2827, %v4192, %v3742
        %v4225 = vsel %vm2827, %v4193, %v3758
        %v4226 = vsel %vm2827, %v4194, %v3760
        %v4227 = vsel %vm2827, %v4195, %v3762
        %v4228 = vsel %vm2827, %v4196, %v3764
        %v4229 = vsel %vm2827, %v4197, %v3766
        %v4230 = vsel %vm2827, %v4198, %v3768
        %v4231 = vsel %vm2827, %v4199, %v3770
        %v4232 = vsel %vm2827, %v4200, %v3742
        %v4233 = vsel %vm2827, %v4201, %v3772
        %v4234 = vsel %vm2827, %v4202, %v3774
        %v4235 = vsel %vm2827, %v4203, %v3776
        %v4236 = vsel %vm2827, %v4204, %v3778
        %v4237 = vsel %vm2827, %v4205, %v3780
        %v4238 = vsel %vm2827, %v4206, %v3782
        %v4239 = vsel %vm2827, %v4207, %v3784
        %v4240 = vsel %vm2827, %v4208, %v3742
        %v4241 = vsel %vm2860, %v4209, %v3815
        %v4242 = vsel %vm2860, %v4210, %v3817
        %v4243 = vsel %vm2860, %v4211, %v3819
        %v4244 = vsel %vm2860, %v4212, %v3821
        %v4245 = vsel %vm2860, %v4213, %v3823
        %v4246 = vsel %vm2860, %v4214, %v3825
        %v4247 = vsel %vm2860, %v4215, %v3827
        %v4248 = vsel %vm2860, %v4216, %v3829
        %v4249 = vsel %vm2860, %v4217, %v3831
        %v4250 = vsel %vm2860, %v4218, %v3833
        %v4251 = vsel %vm2860, %v4219, %v3835
        %v4252 = vsel %vm2860, %v4220, %v3837
        %v4253 = vsel %vm2860, %v4221, %v3839
        %v4254 = vsel %vm2860, %v4222, %v3841
        %v4255 = vsel %vm2860, %v4223, %v3843
        %v4256 = vsel %vm2860, %v4224, %v3829
        %v4257 = vsel %vm2860, %v4225, %v3845
        %v4258 = vsel %vm2860, %v4226, %v3847
        %v4259 = vsel %vm2860, %v4227, %v3849
        %v4260 = vsel %vm2860, %v4228, %v3851
        %v4261 = vsel %vm2860, %v4229, %v3853
        %v4262 = vsel %vm2860, %v4230, %v3855
        %v4263 = vsel %vm2860, %v4231, %v3857
        %v4264 = vsel %vm2860, %v4232, %v3829
        %v4265 = vsel %vm2860, %v4233, %v3859
        %v4266 = vsel %vm2860, %v4234, %v3861
        %v4267 = vsel %vm2860, %v4235, %v3863
        %v4268 = vsel %vm2860, %v4236, %v3865
        %v4269 = vsel %vm2860, %v4237, %v3867
        %v4270 = vsel %vm2860, %v4238, %v3869
        %v4271 = vsel %vm2860, %v4239, %v3871
        %v4272 = vsel %vm2860, %v4240, %v3829
        %v4273 = vsel %vm2893, %v4241, %v3902
        %v4274 = vsel %vm2893, %v4242, %v3904
        %v4275 = vsel %vm2893, %v4243, %v3906
        %v4276 = vsel %vm2893, %v4244, %v3908
        %v4277 = vsel %vm2893, %v4245, %v3910
        %v4278 = vsel %vm2893, %v4246, %v3912
        %v4279 = vsel %vm2893, %v4247, %v3914
        %v4280 = vsel %vm2893, %v4248, %v3916
        %v4281 = vsel %vm2893, %v4249, %v3918
        %v4282 = vsel %vm2893, %v4250, %v3920
        %v4283 = vsel %vm2893, %v4251, %v3922
        %v4284 = vsel %vm2893, %v4252, %v3924
        %v4285 = vsel %vm2893, %v4253, %v3926
        %v4286 = vsel %vm2893, %v4254, %v3928
        %v4287 = vsel %vm2893, %v4255, %v3930
        %v4288 = vsel %vm2893, %v4256, %v3916
        %v4289 = vsel %vm2893, %v4257, %v3932
        %v4290 = vsel %vm2893, %v4258, %v3934
        %v4291 = vsel %vm2893, %v4259, %v3936
        %v4292 = vsel %vm2893, %v4260, %v3938
        %v4293 = vsel %vm2893, %v4261, %v3940
        %v4294 = vsel %vm2893, %v4262, %v3942
        %v4295 = vsel %vm2893, %v4263, %v3944
        %v4296 = vsel %vm2893, %v4264, %v3916
        %v4297 = vsel %vm2893, %v4265, %v3946
        %v4298 = vsel %vm2893, %v4266, %v3948
        %v4299 = vsel %vm2893, %v4267, %v3950
        %v4300 = vsel %vm2893, %v4268, %v3952
        %v4301 = vsel %vm2893, %v4269, %v3954
        %v4302 = vsel %vm2893, %v4270, %v3956
        %v4303 = vsel %vm2893, %v4271, %v3958
        %v4304 = vsel %vm2893, %v4272, %v3916
        %4337 = vrot.lane.b32.xlu0 %v4273, 64
        %v4338 = vpop.permute.xlu0 %4337
        %4339 = vrot.lane.b32.xlu0 %v4274, 64
        %v4340 = vpop.permute.xlu0 %4339
        %4341 = vrot.lane.b32.xlu0 %v4275, 64
        %v4342 = vpop.permute.xlu0 %4341
        %4343 = vrot.lane.b32.xlu0 %v4276, 64
        %v4344 = vpop.permute.xlu0 %4343
        %4345 = vrot.lane.b32.xlu0 %v4277, 64
        %v4346 = vpop.permute.xlu0 %4345
        %4347 = vrot.lane.b32.xlu0 %v4278, 64
        %v4348 = vpop.permute.xlu0 %4347
        %4349 = vrot.lane.b32.xlu0 %v4279, 64
        %v4350 = vpop.permute.xlu0 %4349
        %4351 = vrot.lane.b32.xlu0 %v4280, 64
        %v4352 = vpop.permute.xlu0 %4351
        %4353 = vrot.lane.b32.xlu0 %v4281, 64
        %v4354 = vpop.permute.xlu0 %4353
        %4355 = vrot.lane.b32.xlu0 %v4282, 64
        %v4356 = vpop.permute.xlu0 %4355
        %4357 = vrot.lane.b32.xlu0 %v4283, 64
        %v4358 = vpop.permute.xlu0 %4357
        %4359 = vrot.lane.b32.xlu0 %v4284, 64
        %v4360 = vpop.permute.xlu0 %4359
        %4361 = vrot.lane.b32.xlu0 %v4285, 64
        %v4362 = vpop.permute.xlu0 %4361
        %4363 = vrot.lane.b32.xlu0 %v4286, 64
        %v4364 = vpop.permute.xlu0 %4363
        %4365 = vrot.lane.b32.xlu0 %v4287, 64
        %v4366 = vpop.permute.xlu0 %4365
        %4367 = vrot.lane.b32.xlu0 %v4288, 64
        %v4368 = vpop.permute.xlu0 %4367
        %4369 = vrot.lane.b32.xlu0 %v4289, 64
        %v4370 = vpop.permute.xlu0 %4369
        %4371 = vrot.lane.b32.xlu0 %v4290, 64
        %v4372 = vpop.permute.xlu0 %4371
        %4373 = vrot.lane.b32.xlu0 %v4291, 64
        %v4374 = vpop.permute.xlu0 %4373
        %4375 = vrot.lane.b32.xlu0 %v4292, 64
        %v4376 = vpop.permute.xlu0 %4375
        %4377 = vrot.lane.b32.xlu0 %v4293, 64
        %v4378 = vpop.permute.xlu0 %4377
        %4379 = vrot.lane.b32.xlu0 %v4294, 64
        %v4380 = vpop.permute.xlu0 %4379
        %4381 = vrot.lane.b32.xlu0 %v4295, 64
        %v4382 = vpop.permute.xlu0 %4381
        %4383 = vrot.lane.b32.xlu0 %v4296, 64
        %v4384 = vpop.permute.xlu0 %4383
        %4385 = vrot.lane.b32.xlu0 %v4297, 64
        %v4386 = vpop.permute.xlu0 %4385
        %4387 = vrot.lane.b32.xlu0 %v4298, 64
        %v4388 = vpop.permute.xlu0 %4387
        %4389 = vrot.lane.b32.xlu0 %v4299, 64
        %v4390 = vpop.permute.xlu0 %4389
        %4391 = vrot.lane.b32.xlu0 %v4300, 64
        %v4392 = vpop.permute.xlu0 %4391
        %4393 = vrot.lane.b32.xlu0 %v4301, 64
        %v4394 = vpop.permute.xlu0 %4393
        %4395 = vrot.lane.b32.xlu0 %v4302, 64
        %v4396 = vpop.permute.xlu0 %4395
        %4397 = vrot.lane.b32.xlu0 %v4303, 64
        %v4398 = vpop.permute.xlu0 %4397
        %4399 = vrot.lane.b32.xlu0 %v4304, 64
        %v4400 = vpop.permute.xlu0 %4399
        %vm4433 = vcmask 523264
        %v4434 = vsel %vm4433, %v3059, %v4338
        %v4435 = vsel %vm4433, %v3060, %v4340
        %v4436 = vsel %vm4433, %v3061, %v4342
        %v4437 = vsel %vm4433, %v3062, %v4344
        %v4438 = vsel %vm4433, %v3063, %v4346
        %v4439 = vsel %vm4433, %v3064, %v4348
        %v4440 = vsel %vm4433, %v3065, %v4350
        %v4441 = vsel %vm4433, %v3066, %v4352
        %v4442 = vsel %vm4433, %v3067, %v4354
        %v4443 = vsel %vm4433, %v3068, %v4356
        %v4444 = vsel %vm4433, %v3069, %v4358
        %v4445 = vsel %vm4433, %v3070, %v4360
        %v4446 = vsel %vm4433, %v3071, %v4362
        %v4447 = vsel %vm4433, %v3072, %v4364
        %v4448 = vsel %vm4433, %v3073, %v4366
        %v4449 = vsel %vm4433, %v3074, %v4368
        %v4450 = vsel %vm4433, %v3075, %v4370
        %v4451 = vsel %vm4433, %v3076, %v4372
        %v4452 = vsel %vm4433, %v3077, %v4374
        %v4453 = vsel %vm4433, %v3078, %v4376
        %v4454 = vsel %vm4433, %v3079, %v4378
        %v4455 = vsel %vm4433, %v3080, %v4380
        %v4456 = vsel %vm4433, %v3081, %v4382
        %v4457 = vsel %vm4433, %v3082, %v4384
        %v4458 = vsel %vm4433, %v3083, %v4386
        %v4459 = vsel %vm4433, %v3084, %v4388
        %v4460 = vsel %vm4433, %v3085, %v4390
        %v4461 = vsel %vm4433, %v3086, %v4392
        %v4462 = vsel %vm4433, %v3087, %v4394
        %v4463 = vsel %vm4433, %v3088, %v4396
        %v4464 = vsel %vm4433, %v3089, %v4398
        %v4465 = vsel %vm4433, %v3090, %v4400
        %v4466 = vpack.c.bf16 %v4435, %v4434
        %v4467 = vpack.c.bf16 %v4437, %v4436
        %v4468 = vpack.c.bf16 %v4439, %v4438
        %v4469 = vpack.c.bf16 %v4441, %v4440
        %v4470 = vpack.c.bf16 %v4443, %v4442
        %v4471 = vpack.c.bf16 %v4445, %v4444
        %v4472 = vpack.c.bf16 %v4447, %v4446
        %v4473 = vpack.c.bf16 %v4449, %v4448
        %v4474 = vpack.c.bf16 %v4451, %v4450
        %v4475 = vpack.c.bf16 %v4453, %v4452
        %v4476 = vpack.c.bf16 %v4455, %v4454
        %v4477 = vpack.c.bf16 %v4457, %v4456
        %v4478 = vpack.c.bf16 %v4459, %v4458
        %v4479 = vpack.c.bf16 %v4461, %v4460
        %v4480 = vpack.c.bf16 %v4463, %v4462
        %v4481 = vpack.c.bf16 %v4465, %v4464
        %v4482 = vld [vmem:[%s3] sm:$0xf]
        %v4483 = vld [vmem:[%s3 + $0x4] sm:$0xf]
        %v4484 = vld [vmem:[%s3 + $0x8] sm:$0xf]
        %v4485 = vld [vmem:[%s3 + $0xc] sm:$0xf]
        %v4486 = vld [vmem:[%s3 + $0x10] sm:$0xf]
        %v4487 = vld [vmem:[%s3 + $0x14] sm:$0xf]
        %v4488 = vld [vmem:[%s3 + $0x18] sm:$0xf]
        %v4489 = vld [vmem:[%s3 + $0x1c] sm:$0xf]
        %v4490 = vld [vmem:[%s3 + $0x20] sm:$0xf]
        %v4491 = vld [vmem:[%s3 + $0x24] sm:$0xf]
        %v4492 = vld [vmem:[%s3 + $0x28] sm:$0xf]
        %v4493 = vld [vmem:[%s3 + $0x2c] sm:$0xf]
        %v4494 = vld [vmem:[%s3 + $0x30] sm:$0xf]
        %v4495 = vld [vmem:[%s3 + $0x34] sm:$0x3]
        %v4496 = vld [vmem:[#allocation2] sm:$0x1]
        %v4498 = vlaneseq
        %v4499 = vshrl.u32 %v4498, 7
        %v4500 = vsub.s32 0, %v4499
        %v4501 = vrot.slane %v4496, %v4500
        %v4517 = vunpack.c.l.b16 %v4482
        %v4518 = vunpack.c.l.b16 %v4483
        %v4519 = vunpack.c.l.b16 %v4484
        %v4520 = vunpack.c.l.b16 %v4485
        %v4521 = vunpack.c.l.b16 %v4486
        %v4522 = vunpack.c.l.b16 %v4487
        %v4523 = vunpack.c.l.b16 %v4488
        %v4524 = vunpack.c.l.b16 %v4489
        %v4525 = vunpack.c.l.b16 %v4490
        %v4526 = vunpack.c.l.b16 %v4491
        %v4527 = vunpack.c.l.b16 %v4492
        %v4528 = vunpack.c.l.b16 %v4493
        %v4529 = vunpack.c.l.b16 %v4494
        %v4530 = vunpack.c.l.b16 %v4495
        %v4531 = vpack.c.b16 %v4518, %v4517
        %v4532 = vpack.c.b16 %v4520, %v4519
        %v4533 = vpack.c.b16 %v4522, %v4521
        %v4534 = vpack.c.b16 %v4524, %v4523
        %v4535 = vpack.c.b16 %v4526, %v4525
        %v4536 = vpack.c.b16 %v4528, %v4527
        %v4537 = vpack.c.b16 %v4530, %v4529
        %vm4544 = vcmask 883712
        %v4546 = vsel %vm4544, %v4466, 0
        %v4549 = vsel %vm4544, %v4467, 0
        %v4552 = vsel %vm4544, %v4468, 0
        %v4555 = vsel %vm4544, %v4469, 0
        %v4558 = vsel %vm4544, %v4470, 0
        %v4561 = vsel %vm4544, %v4471, 0
        %v4564 = vsel %vm4544, %v4472, 0
        %v4567 = vsel %vm4544, %v4473, 0
        %v4570 = vsel %vm4544, %v4474, 0
        %v4573 = vsel %vm4544, %v4475, 0
        %v4576 = vsel %vm4544, %v4476, 0
        %v4579 = vsel %vm4544, %v4477, 0
        %v4582 = vsel %vm4544, %v4478, 0
        %v4585 = vsel %vm4544, %v4479, 0
        %v4588 = vsel %vm4544, %v4480, 0
        %v4591 = vsel %vm4544, %v4481, 0
        %v4594 = vsel %vm966, %v4537, 0
        %4596 = vmatprep.subr.bf16.mxu0 0
        %4597 = vmatpush1.bf16.msra.mxu0 0
        %4598 = vmatprep.subr.bf16.mxu0 0
        %4599 = vmatpush1.bf16.msra.mxu0 %v4594
        %4600 = vmatprep.subr.bf16.mxu0 0
        %4601 = vmatpush1.bf16.msra.mxu0 %v4536
        %4602 = vmatprep.subr.bf16.mxu0 0
        %4603 = vmatpush1.bf16.msra.mxu0 %v4535
        %4604 = vmatprep.subr.bf16.mxu0 0
        %4605 = vmatpush1.bf16.msra.mxu0 %v4534
        %4606 = vmatprep.subr.bf16.mxu0 0
        %4607 = vmatpush1.bf16.msra.mxu0 %v4533
        %4608 = vmatprep.subr.bf16.mxu0 0
        %4609 = vmatpush1.bf16.msra.mxu0 %v4532
        %4610 = vmatprep.subr.bf16.mxu0 0
        %4611 = vmatpush1.bf16.msra.mxu0 %v4531
        %4612 = vmatprep.subr.bf16.mxu0 0
        %4613 = vmatpush2.bf16.msra.mxu0 0
        %4614 = vmatprep.subr.bf16.mxu0 0
        %4615 = vmatpush2.bf16.msra.mxu0 0
        %4616 = vmatprep.subr.bf16.mxu0 0
        %4617 = vmatpush2.bf16.msra.mxu0 0
        %4618 = vmatprep.subr.bf16.mxu0 0
        %4619 = vmatpush2.bf16.msra.mxu0 0
        %4620 = vmatprep.subr.bf16.mxu0 0
        %4621 = vmatpush2.bf16.msra.mxu0 0
        %4622 = vmatprep.subr.bf16.mxu0 0
        %4623 = vmatpush2.bf16.msra.mxu0 0
        %4624 = vmatprep.subr.bf16.mxu0 0
        %4625 = vmatpush2.bf16.msra.mxu0 0
        %4626 = vmatprep.subr.bf16.mxu0 0
        %4627 = vmatpush2.bf16.msra.mxu0 0
        %4628 = vmatprep.mubr.bf16.mxu0 0
        %4629 = vmatmul.mubr.bf16.gmra.mxu0 %v4546
        %v4630 = vpop.f32.mrf.mxu0
        %v4631 = vadd.f32 %v4501, %v4630
        %v4632 = vpop.f32.mrf.mxu0
        %v4633 = vpop.f32.mrf.mxu0
        %v4634 = vadd.f32 %v4501, %v4633
        %v4635 = vpop.f32.mrf.mxu0
        %4636 = vmatprep.mubr.bf16.mxu0 0
        %4637 = vmatmul.mubr.bf16.gmra.mxu0 %v4549
        %v4638 = vpop.f32.mrf.mxu0
        %v4639 = vadd.f32 %v4501, %v4638
        %v4640 = vpop.f32.mrf.mxu0
        %v4641 = vpop.f32.mrf.mxu0
        %v4642 = vadd.f32 %v4501, %v4641
        %v4643 = vpop.f32.mrf.mxu0
        %4644 = vmatprep.mubr.bf16.mxu0 0
        %4645 = vmatmul.mubr.bf16.gmra.mxu0 %v4552
        %v4646 = vpop.f32.mrf.mxu0
        %v4647 = vadd.f32 %v4501, %v4646
        %v4648 = vpop.f32.mrf.mxu0
        %v4649 = vpop.f32.mrf.mxu0
        %v4650 = vadd.f32 %v4501, %v4649
        %v4651 = vpop.f32.mrf.mxu0
        %4652 = vmatprep.mubr.bf16.mxu0 0
        %4653 = vmatmul.mubr.bf16.gmra.mxu0 %v4555
        %v4654 = vpop.f32.mrf.mxu0
        %v4655 = vadd.f32 %v4501, %v4654
        %v4656 = vpop.f32.mrf.mxu0
        %v4657 = vpop.f32.mrf.mxu0
        %v4658 = vadd.f32 %v4501, %v4657
        %v4659 = vpop.f32.mrf.mxu0
        %4660 = vmatprep.mubr.bf16.mxu0 0
        %4661 = vmatmul.mubr.bf16.gmra.mxu0 %v4558
        %v4662 = vpop.f32.mrf.mxu0
        %v4663 = vadd.f32 %v4501, %v4662
        %v4664 = vpop.f32.mrf.mxu0
        %v4665 = vpop.f32.mrf.mxu0
        %v4666 = vadd.f32 %v4501, %v4665
        %v4667 = vpop.f32.mrf.mxu0
        %4668 = vmatprep.mubr.bf16.mxu0 0
        %4669 = vmatmul.mubr.bf16.gmra.mxu0 %v4561
        %v4670 = vpop.f32.mrf.mxu0
        %v4671 = vadd.f32 %v4501, %v4670
        %v4672 = vpop.f32.mrf.mxu0
        %v4673 = vpop.f32.mrf.mxu0
        %v4674 = vadd.f32 %v4501, %v4673
        %v4675 = vpop.f32.mrf.mxu0
        %4676 = vmatprep.mubr.bf16.mxu0 0
        %4677 = vmatmul.mubr.bf16.gmra.mxu0 %v4564
        %v4678 = vpop.f32.mrf.mxu0
        %v4679 = vadd.f32 %v4501, %v4678
        %v4680 = vpop.f32.mrf.mxu0
        %v4681 = vpop.f32.mrf.mxu0
        %v4682 = vadd.f32 %v4501, %v4681
        %v4683 = vpop.f32.mrf.mxu0
        %4684 = vmatprep.mubr.bf16.mxu0 0
        %4685 = vmatmul.mubr.bf16.gmra.mxu0 %v4567
        %v4686 = vpop.f32.mrf.mxu0
        %v4687 = vadd.f32 %v4501, %v4686
        %v4688 = vpop.f32.mrf.mxu0
        %v4689 = vpop.f32.mrf.mxu0
        %v4690 = vadd.f32 %v4501, %v4689
        %v4691 = vpop.f32.mrf.mxu0
        %4692 = vmatprep.mubr.bf16.mxu0 0
        %4693 = vmatmul.mubr.bf16.gmra.mxu0 %v4570
        %v4694 = vpop.f32.mrf.mxu0
        %v4695 = vadd.f32 %v4501, %v4694
        %v4696 = vpop.f32.mrf.mxu0
        %v4697 = vpop.f32.mrf.mxu0
        %v4698 = vadd.f32 %v4501, %v4697
        %v4699 = vpop.f32.mrf.mxu0
        %4700 = vmatprep.mubr.bf16.mxu0 0
        %4701 = vmatmul.mubr.bf16.gmra.mxu0 %v4573
        %v4702 = vpop.f32.mrf.mxu0
        %v4703 = vadd.f32 %v4501, %v4702
        %v4704 = vpop.f32.mrf.mxu0
        %v4705 = vpop.f32.mrf.mxu0
        %v4706 = vadd.f32 %v4501, %v4705
        %v4707 = vpop.f32.mrf.mxu0
        %4708 = vmatprep.mubr.bf16.mxu0 0
        %4709 = vmatmul.mubr.bf16.gmra.mxu0 %v4576
        %v4710 = vpop.f32.mrf.mxu0
        %v4711 = vadd.f32 %v4501, %v4710
        %v4712 = vpop.f32.mrf.mxu0
        %v4713 = vpop.f32.mrf.mxu0
        %v4714 = vadd.f32 %v4501, %v4713
        %v4715 = vpop.f32.mrf.mxu0
        %4716 = vmatprep.mubr.bf16.mxu0 0
        %4717 = vmatmul.mubr.bf16.gmra.mxu0 %v4579
        %v4718 = vpop.f32.mrf.mxu0
        %v4719 = vadd.f32 %v4501, %v4718
        %v4720 = vpop.f32.mrf.mxu0
        %v4721 = vpop.f32.mrf.mxu0
        %v4722 = vadd.f32 %v4501, %v4721
        %v4723 = vpop.f32.mrf.mxu0
        %4724 = vmatprep.mubr.bf16.mxu0 0
        %4725 = vmatmul.mubr.bf16.gmra.mxu0 %v4582
        %v4726 = vpop.f32.mrf.mxu0
        %v4727 = vadd.f32 %v4501, %v4726
        %v4728 = vpop.f32.mrf.mxu0
        %v4729 = vpop.f32.mrf.mxu0
        %v4730 = vadd.f32 %v4501, %v4729
        %v4731 = vpop.f32.mrf.mxu0
        %4732 = vmatprep.mubr.bf16.mxu0 0
        %4733 = vmatmul.mubr.bf16.gmra.mxu0 %v4585
        %v4734 = vpop.f32.mrf.mxu0
        %v4735 = vadd.f32 %v4501, %v4734
        %v4736 = vpop.f32.mrf.mxu0
        %v4737 = vpop.f32.mrf.mxu0
        %v4738 = vadd.f32 %v4501, %v4737
        %v4739 = vpop.f32.mrf.mxu0
        %4740 = vmatprep.mubr.bf16.mxu0 0
        %4741 = vmatmul.mubr.bf16.gmra.mxu0 %v4588
        %v4742 = vpop.f32.mrf.mxu0
        %v4743 = vadd.f32 %v4501, %v4742
        %v4744 = vpop.f32.mrf.mxu0
        %v4745 = vpop.f32.mrf.mxu0
        %v4746 = vadd.f32 %v4501, %v4745
        %v4747 = vpop.f32.mrf.mxu0
        %4748 = vmatprep.mubr.bf16.mxu0 0
        %4749 = vmatmul.mubr.bf16.gmra.mxu0 %v4591
        %v4750 = vpop.f32.mrf.mxu0
        %v4751 = vadd.f32 %v4501, %v4750
        %v4752 = vpop.f32.mrf.mxu0
        %v4753 = vpop.f32.mrf.mxu0
        %v4754 = vadd.f32 %v4501, %v4753
        %v4755 = vpop.f32.mrf.mxu0
        %4756 = vdwg.mxu0
        %4757 = vst.msk [vmem:[%s441] sm:$0xff] %vm2632, %v4631
        %4758 = vst.msk [vmem:[%s441 + $0x8] sm:$0xff] %vm2632, %v4634
        %4759 = vst.msk [vmem:[%s441 + $0x10] sm:$0xff] %vm2632, %v4639
        %4760 = vst.msk [vmem:[%s441 + $0x18] sm:$0xff] %vm2632, %v4642
        %4761 = vst.msk [vmem:[%s441 + $0x20] sm:$0xff] %vm2632, %v4647
        %4762 = vst.msk [vmem:[%s441 + $0x28] sm:$0xff] %vm2632, %v4650
        %4763 = vst.msk [vmem:[%s441 + $0x30] sm:$0xff] %vm2632, %v4655
        %4764 = vst.msk [vmem:[%s441 + $0x38] sm:$0xff] %vm2632, %v4658
        %4765 = vst.msk [vmem:[%s441 + $0x40] sm:$0xff] %vm2632, %v4663
        %4766 = vst.msk [vmem:[%s441 + $0x48] sm:$0xff] %vm2632, %v4666
        %4767 = vst.msk [vmem:[%s441 + $0x50] sm:$0xff] %vm2632, %v4671
        %4768 = vst.msk [vmem:[%s441 + $0x58] sm:$0xff] %vm2632, %v4674
        %4769 = vst.msk [vmem:[%s441 + $0x60] sm:$0xff] %vm2632, %v4679
        %4770 = vst.msk [vmem:[%s441 + $0x68] sm:$0xff] %vm2632, %v4682
        %4771 = vst.msk [vmem:[%s441 + $0x70] sm:$0xff] %vm2632, %v4687
        %4772 = vst.msk [vmem:[%s441 + $0x78] sm:$0xff] %vm2632, %v4690
        %4773 = vst.msk [vmem:[%s441 + $0x80] sm:$0xff] %vm2632, %v4695
        %4774 = vst.msk [vmem:[%s441 + $0x88] sm:$0xff] %vm2632, %v4698
        %4775 = vst.msk [vmem:[%s441 + $0x90] sm:$0xff] %vm2632, %v4703
        %4776 = vst.msk [vmem:[%s441 + $0x98] sm:$0xff] %vm2632, %v4706
        %4777 = vst.msk [vmem:[%s441 + $0xa0] sm:$0xff] %vm2632, %v4711
        %4778 = vst.msk [vmem:[%s441 + $0xa8] sm:$0xff] %vm2632, %v4714
        %4779 = vst.msk [vmem:[%s441 + $0xb0] sm:$0xff] %vm2632, %v4719
        %4780 = vst.msk [vmem:[%s441 + $0xb8] sm:$0xff] %vm2632, %v4722
        %4781 = vst.msk [vmem:[%s441 + $0xc0] sm:$0xff] %vm2632, %v4727
        %4782 = vst.msk [vmem:[%s441 + $0xc8] sm:$0xff] %vm2632, %v4730
        %4783 = vst.msk [vmem:[%s441 + $0xd0] sm:$0xff] %vm2632, %v4735
        %4784 = vst.msk [vmem:[%s441 + $0xd8] sm:$0xff] %vm2632, %v4738
        %4785 = vst.msk [vmem:[%s441 + $0xe0] sm:$0xff] %vm2632, %v4743
        %4786 = vst.msk [vmem:[%s441 + $0xe8] sm:$0xff] %vm2632, %v4746
        %4787 = vst.msk [vmem:[%s441 + $0xf0] sm:$0xff] %vm2632, %v4751
        %4788 = vst.msk [vmem:[%s441 + $0xf8] sm:$0xff] %vm2632, %v4754
        %v4789 = vsel %vm2632, %v4631, 0.0
        %v4790 = vsel %vm2632, %v4634, 0.0
        %v4791 = vadd.f32 %v4789, %v4790
        %v4792 = vsel %vm2632, %v4639, 0.0
        %v4793 = vadd.f32 %v4791, %v4792
        %v4794 = vsel %vm2632, %v4642, 0.0
        %v4795 = vadd.f32 %v4793, %v4794
        %v4796 = vsel %vm2632, %v4647, 0.0
        %v4797 = vadd.f32 %v4795, %v4796
        %v4798 = vsel %vm2632, %v4650, 0.0
        %v4799 = vadd.f32 %v4797, %v4798
        %v4800 = vsel %vm2632, %v4655, 0.0
        %v4801 = vadd.f32 %v4799, %v4800
        %v4802 = vsel %vm2632, %v4658, 0.0
        %v4803 = vadd.f32 %v4801, %v4802
        %v4804 = vsel %vm2632, %v4663, 0.0
        %v4805 = vadd.f32 %v4803, %v4804
        %v4806 = vsel %vm2632, %v4666, 0.0
        %v4807 = vadd.f32 %v4805, %v4806
        %v4808 = vsel %vm2632, %v4671, 0.0
        %v4809 = vadd.f32 %v4807, %v4808
        %v4810 = vsel %vm2632, %v4674, 0.0
        %v4811 = vadd.f32 %v4809, %v4810
        %v4812 = vsel %vm2632, %v4679, 0.0
        %v4813 = vadd.f32 %v4811, %v4812
        %v4814 = vsel %vm2632, %v4682, 0.0
        %v4815 = vadd.f32 %v4813, %v4814
        %v4816 = vsel %vm2632, %v4687, 0.0
        %v4817 = vadd.f32 %v4815, %v4816
        %v4818 = vsel %vm2632, %v4690, 0.0
        %v4819 = vadd.f32 %v4817, %v4818
        %v4820 = vsel %vm2632, %v4695, 0.0
        %v4821 = vadd.f32 %v4819, %v4820
        %v4822 = vsel %vm2632, %v4698, 0.0
        %v4823 = vadd.f32 %v4821, %v4822
        %v4824 = vsel %vm2632, %v4703, 0.0
        %v4825 = vadd.f32 %v4823, %v4824
        %v4826 = vsel %vm2632, %v4706, 0.0
        %v4827 = vadd.f32 %v4825, %v4826
        %v4828 = vsel %vm2632, %v4711, 0.0
        %v4829 = vadd.f32 %v4827, %v4828
        %v4830 = vsel %vm2632, %v4714, 0.0
        %v4831 = vadd.f32 %v4829, %v4830
        %v4832 = vsel %vm2632, %v4719, 0.0
        %v4833 = vadd.f32 %v4831, %v4832
        %v4834 = vsel %vm2632, %v4722, 0.0
        %v4835 = vadd.f32 %v4833, %v4834
        %v4836 = vsel %vm2632, %v4727, 0.0
        %v4837 = vadd.f32 %v4835, %v4836
        %v4838 = vsel %vm2632, %v4730, 0.0
        %v4839 = vadd.f32 %v4837, %v4838
        %v4840 = vsel %vm2632, %v4735, 0.0
        %v4841 = vadd.f32 %v4839, %v4840
        %v4842 = vsel %vm2632, %v4738, 0.0
        %v4843 = vadd.f32 %v4841, %v4842
        %v4844 = vsel %vm2632, %v4743, 0.0
        %v4845 = vadd.f32 %v4843, %v4844
        %v4846 = vsel %vm2632, %v4746, 0.0
        %v4847 = vadd.f32 %v4845, %v4846
        %v4848 = vsel %vm2632, %v4751, 0.0
        %v4849 = vadd.f32 %v4847, %v4848
        %v4850 = vsel %vm2632, %v4754, 0.0
        %v4851 = vadd.f32 %v4849, %v4850
        %v4852 = vrot.slane %v4851, 4
        %v4853 = vadd.f32 %v4851, %v4852
        %v4854 = vrot.slane %v4853, 2
        %v4855 = vadd.f32 %v4853, %v4854
        %v4856 = vrot.slane %v4855, 1
        %v4857 = vadd.f32 %v4855, %v4856
        %v4858 = vmul.f32 %v4631, %v4631
        %v4859 = vmul.f32 %v4634, %v4634
        %v4860 = vmul.f32 %v4639, %v4639
        %v4861 = vmul.f32 %v4642, %v4642
        %v4862 = vmul.f32 %v4647, %v4647
        %v4863 = vmul.f32 %v4650, %v4650
        %v4864 = vmul.f32 %v4655, %v4655
        %v4865 = vmul.f32 %v4658, %v4658
        %v4866 = vmul.f32 %v4663, %v4663
        %v4867 = vmul.f32 %v4666, %v4666
        %v4868 = vmul.f32 %v4671, %v4671
        %v4869 = vmul.f32 %v4674, %v4674
        %v4870 = vmul.f32 %v4679, %v4679
        %v4871 = vmul.f32 %v4682, %v4682
        %v4872 = vmul.f32 %v4687, %v4687
        %v4873 = vmul.f32 %v4690, %v4690
        %v4874 = vmul.f32 %v4695, %v4695
        %v4875 = vmul.f32 %v4698, %v4698
        %v4876 = vmul.f32 %v4703, %v4703
        %v4877 = vmul.f32 %v4706, %v4706
        %v4878 = vmul.f32 %v4711, %v4711
        %v4879 = vmul.f32 %v4714, %v4714
        %v4880 = vmul.f32 %v4719, %v4719
        %v4881 = vmul.f32 %v4722, %v4722
        %v4882 = vmul.f32 %v4727, %v4727
        %v4883 = vmul.f32 %v4730, %v4730
        %v4884 = vmul.f32 %v4735, %v4735
        %v4885 = vmul.f32 %v4738, %v4738
        %v4886 = vmul.f32 %v4743, %v4743
        %v4887 = vmul.f32 %v4746, %v4746
        %v4888 = vmul.f32 %v4751, %v4751
        %v4889 = vmul.f32 %v4754, %v4754
        %v4890 = vsel %vm2632, %v4858, 0.0
        %v4891 = vsel %vm2632, %v4859, 0.0
        %v4892 = vadd.f32 %v4890, %v4891
        %v4893 = vsel %vm2632, %v4860, 0.0
        %v4894 = vadd.f32 %v4892, %v4893
        %v4895 = vsel %vm2632, %v4861, 0.0
        %v4896 = vadd.f32 %v4894, %v4895
        %v4897 = vsel %vm2632, %v4862, 0.0
        %v4898 = vadd.f32 %v4896, %v4897
        %v4899 = vsel %vm2632, %v4863, 0.0
        %v4900 = vadd.f32 %v4898, %v4899
        %v4901 = vsel %vm2632, %v4864, 0.0
        %v4902 = vadd.f32 %v4900, %v4901
        %v4903 = vsel %vm2632, %v4865, 0.0
        %v4904 = vadd.f32 %v4902, %v4903
        %v4905 = vsel %vm2632, %v4866, 0.0
        %v4906 = vadd.f32 %v4904, %v4905
        %v4907 = vsel %vm2632, %v4867, 0.0
        %v4908 = vadd.f32 %v4906, %v4907
        %v4909 = vsel %vm2632, %v4868, 0.0
        %v4910 = vadd.f32 %v4908, %v4909
        %v4911 = vsel %vm2632, %v4869, 0.0
        %v4912 = vadd.f32 %v4910, %v4911
        %v4913 = vsel %vm2632, %v4870, 0.0
        %v4914 = vadd.f32 %v4912, %v4913
        %v4915 = vsel %vm2632, %v4871, 0.0
        %v4916 = vadd.f32 %v4914, %v4915
        %v4917 = vsel %vm2632, %v4872, 0.0
        %v4918 = vadd.f32 %v4916, %v4917
        %v4919 = vsel %vm2632, %v4873, 0.0
        %v4920 = vadd.f32 %v4918, %v4919
        %v4921 = vsel %vm2632, %v4874, 0.0
        %v4922 = vadd.f32 %v4920, %v4921
        %v4923 = vsel %vm2632, %v4875, 0.0
        %v4924 = vadd.f32 %v4922, %v4923
        %v4925 = vsel %vm2632, %v4876, 0.0
        %v4926 = vadd.f32 %v4924, %v4925
        %v4927 = vsel %vm2632, %v4877, 0.0
        %v4928 = vadd.f32 %v4926, %v4927
        %v4929 = vsel %vm2632, %v4878, 0.0
        %v4930 = vadd.f32 %v4928, %v4929
        %v4931 = vsel %vm2632, %v4879, 0.0
        %v4932 = vadd.f32 %v4930, %v4931
        %v4933 = vsel %vm2632, %v4880, 0.0
        %v4934 = vadd.f32 %v4932, %v4933
        %v4935 = vsel %vm2632, %v4881, 0.0
        %v4936 = vadd.f32 %v4934, %v4935
        %v4937 = vsel %vm2632, %v4882, 0.0
        %v4938 = vadd.f32 %v4936, %v4937
        %v4939 = vsel %vm2632, %v4883, 0.0
        %v4940 = vadd.f32 %v4938, %v4939
        %v4941 = vsel %vm2632, %v4884, 0.0
        %v4942 = vadd.f32 %v4940, %v4941
        %v4943 = vsel %vm2632, %v4885, 0.0
        %v4944 = vadd.f32 %v4942, %v4943
        %v4945 = vsel %vm2632, %v4886, 0.0
        %v4946 = vadd.f32 %v4944, %v4945
        %v4947 = vsel %vm2632, %v4887, 0.0
        %v4948 = vadd.f32 %v4946, %v4947
        %v4949 = vsel %vm2632, %v4888, 0.0
        %v4950 = vadd.f32 %v4948, %v4949
        %v4951 = vsel %vm2632, %v4889, 0.0
        %v4952 = vadd.f32 %v4950, %v4951
        %v4953 = vrot.slane %v4952, 4
        %v4954 = vadd.f32 %v4952, %v4953
        %v4955 = vrot.slane %v4954, 2
        %v4956 = vadd.f32 %v4954, %v4955
        %v4957 = vrot.slane %v4956, 1
        %v4958 = vadd.f32 %v4956, %v4957
        %v4959 = vsel %vm721, %v4857, %v4958
        %vm4960 = vcmask 58368
        %4961 = vst.msk [vmem:[%s450] sm:$0x3] %vm4960, %v4959
        %s4962 = smul.u32 %s23, 2
        %s4963 = sadd.s32 %s4962, %s24
        %s4964 = smul.u32 32, %s4963
        %p4965 = scmp.lt.s32.totalorder %s4964, 127
        %s4966 = scalar_select %p4965, %s4964, 127
        %s4967 = smul.addr %s4966, 8
        %s4968 = scalar_lea.vmem %s5, %s4967
        %s4969 = smul.u32 %s23, 2
        %s4970 = sadd.s32 %s4969, %s24
        %p4971 = scmp.lt.s32.totalorder %s4970, 3
        %s4972 = scalar_select %p4971, %s4970, 3
        %s4973 = smul.addr %s4972, 2
        %s4974 = scalar_lea.vmem %s6, %s4973
        // Predicated region
        $region45: #{decoder_block3d.2} parent=39 // pred_check
          %p4975 = pneg %p201
        $region46: #{decoder_block3d.2} parent=39 // pred_check_branch
          %4977 = sbr.rel (%p4975) target = $region48
        $region47: #{decoder_block3d.2} parent=39 // pred_region
          %s4978 = smul.u32 %s23, 2
          %s4979 = sadd.s32 %s4978, %s24
          %s4980 = smul.u32 32, %s4979
        $region48: #{decoder_block3d.2} parent=39 // pred_fallthru
          _
        // Predicated region
        $region49: #{decoder_block3d.2} parent=39 // pred_check
          %p4981 = pneg %p231
        $region50: #{decoder_block3d.2} parent=39 // pred_check_branch
          %4983 = sbr.rel (%p4981) target = $region52
        $region51: #{decoder_block3d.2} parent=39 // pred_region
          %s4984 = smul.u32 %s23, 2
          %s4985 = sadd.s32 %s4984, %s24
        $region52: #{decoder_block3d.2} parent=39 // pred_fallthru
          _
      $region40: #{decoder_block3d.2} parent=5 // pred_fallthru
        _
      %p4986 = scmp.le.s32.totalorder 2, %s14
      // Predicated region
      $region53: #{decoder_block3d.2} parent=5 // pred_check
        %p4987 = pneg %p4986
      $region54: #{decoder_block3d.2} parent=5 // pred_check_branch
        %4989 = sbr.rel (%p4987) target = $region56
      $region55: #{decoder_block3d.2} parent=5 // pred_region
        %s4990 = ssub.s32 %s14, 2
        // Predicated region
        $region57: #{decoder_block3d.2} parent=55 // pred_check
          %p4991 = pneg %p207
        $region58: #{decoder_block3d.2} parent=55 // pred_check_branch
          %4993 = sbr.rel (%p4991) target = $region60
        $region59: #{decoder_block3d.2} parent=55 // pred_region
          %s4994 = smul.u32 %s25, 2
          %s4995 = sadd.s32 %s4994, %s26
          %s4996 = smul.u32 32, %s4995
          %p4997 = scmp.lt.s32.totalorder %s4996, 127
          %s4998 = scalar_select %p4997, %s4996, 127
          %s4999 = smul.addr %s4998, 8
          %s5000 = scalar_lea.vmem %s5, %s4999
        $region60: #{decoder_block3d.2} parent=55 // pred_fallthru
          _
        // Predicated region
        $region61: #{decoder_block3d.2} parent=55 // pred_check
          %p5001 = pneg %p237
        $region62: #{decoder_block3d.2} parent=55 // pred_check_branch
          %5003 = sbr.rel (%p5001) target = $region64
        $region63: #{decoder_block3d.2} parent=55 // pred_region
          %s5004 = smul.u32 %s25, 2
          %s5005 = sadd.s32 %s5004, %s26
          %p5006 = scmp.lt.s32.totalorder %s5005, 3
          %s5007 = scalar_select %p5006, %s5005, 3
          %s5008 = smul.addr %s5007, 2
          %s5009 = scalar_lea.vmem %s6, %s5008
        $region64: #{decoder_block3d.2} parent=55 // pred_fallthru
          _
      $region56: #{decoder_block3d.2} parent=5 // pred_fallthru
        _
    $region6: #{decoder_block3d.2} parent=1 // loop_footer
      %s18 = sadd.s32 1, %s14
    $region7: #{decoder_block3d.2} parent=1 // loop_footer_branch
      %13 = sbr.rel target = $region3
    $region8: #{decoder_block3d.2} parent=1 // loop_exit
      _
    %5010 = vsyncpa [#allocation3], 1
    %s5011 = scalar_lea.sflag [#allocation3], 1
    %5012 = vsyncpa %s5011, 1

</llo_original>
